<compile_context>
chip_gen: v7x
topology: tpu7x:2x2x1
jax: 0.10.0
libtpu: 0.0.40
codegen_flags: <defaults>
</compile_context>

<pallas_src>
import numpy as np

import jax
import jax.numpy as jnp
from jax.experimental import pallas as pl
from jax.experimental.pallas import tpu as pltpu

BN_EPS = 1e-5
LRELU_SLOPE = 0.2


# ----------------------------- fused Pallas kernel ---------------------------

def _disc_kernel(*refs):
    (x0_ref,
     g1_ref, w1_ref, b1_ref, ga1_ref, be1_ref,
     g2_ref, w2_ref, b2_ref, ga2_ref, be2_ref,
     g3_ref, w3_ref, b3_ref, ga3_ref, be3_ref,
     meta_ref, wm_ref, bm_ref, gam_ref, bem_ref,
     wd_ref, bd_ref, gad_ref, bed_ref,
     wo_ref, bo_ref,
     out_ref) = refs

    def lrelu_bn(y, gamma, beta):
        # LeakyReLU(0.2) then BatchNorm with batch statistics (training mode).
        y = jnp.where(y > 0, y, LRELU_SLOPE * y)
        inv_n = 1.0 / y.shape[0]
        mean = jnp.sum(y, axis=0, keepdims=True) * inv_n
        ex2 = jnp.sum(y * y, axis=0, keepdims=True) * inv_n
        var = ex2 - mean * mean                      # single-pass biased var
        scale = gamma * jax.lax.rsqrt(var + BN_EPS)  # EUP rsqrt
        shift = beta - mean * scale
        return y * scale + shift

    def conv_block(x, g_ref, w_ref, b, gamma, beta):
        # y[r, o] = sum_t (G_t @ X)[r, c] * W_t[c, o]   (tap-sum stride-2 conv)
        taps = g_ref.shape[0]
        patch = jnp.dot(g_ref[0], x, preferred_element_type=jnp.float32)
        acc = jnp.dot(patch, w_ref[0], preferred_element_type=jnp.float32)
        for t in range(1, taps):
            patch = jnp.dot(g_ref[t], x, preferred_element_type=jnp.float32)
            acc = acc + jnp.dot(patch, w_ref[t],
                                preferred_element_type=jnp.float32)
        return lrelu_bn(acc + b, gamma, beta)

    # conv stack: [N*64, Cin] -> [N*16, 64] -> [N*4, 128] -> [N, 256]
    x = conv_block(x0_ref[...], g1_ref, w1_ref,
                   b1_ref[...], ga1_ref[...], be1_ref[...])
    x = conv_block(x, g2_ref, w2_ref, b2_ref[...], ga2_ref[...], be2_ref[...])
    x = conv_block(x, g3_ref, w3_ref, b3_ref[...], ga3_ref[...], be3_ref[...])
    # conv3 output spatial is 1x1 so x is already the flattened [N, 256].

    # metadata branch: Linear -> LeakyReLU -> BatchNorm1d
    m = jnp.dot(meta_ref[...], wm_ref[...],
                preferred_element_type=jnp.float32) + bm_ref[...]
    m = lrelu_bn(m, gam_ref[...], bem_ref[...])

    # dense1 on cat([x, m], 1) without materializing the concat:
    # split the (pre-transposed) [512, 512] weight rows.
    cf = x.shape[1]
    h = (jnp.dot(x, wd_ref[:cf, :], preferred_element_type=jnp.float32)
         + jnp.dot(m, wd_ref[cf:, :], preferred_element_type=jnp.float32)
         + bd_ref[...])
    h = lrelu_bn(h, gad_ref[...], bed_ref[...])

    # output layer (512 -> 1) as VPU multiply + lane reduction, then sigmoid.
    logits = jnp.sum(h * wo_ref[...], axis=1, keepdims=True) + bo_ref[...]
    out_ref[...] = 1.0 / (1.0 + jnp.exp(-logits))


def _zero_index_map(ndim):
    def idx(i):
        return (0,) * ndim
    return idx


def _fused_forward(x0, metadata, p):
    inputs = [
        x0,
        p["G1"], p["W1"], p["b1"], p["g1"], p["be1"],
        p["G2"], p["W2"], p["b2"], p["g2"], p["be2"],
        p["G3"], p["W3"], p["b3"], p["g3"], p["be3"],
        metadata, p["Wm"], p["bm"], p["gm"], p["bem"],
        p["Wd"], p["bd"], p["gd"], p["bed"],
        p["Wo"], p["bo"],
    ]
    in_specs = [pl.BlockSpec(tuple(a.shape), _zero_index_map(a.ndim))
                for a in inputs]
    n = metadata.shape[0]
    return pl.pallas_call(
        _disc_kernel,
        out_shape=jax.ShapeDtypeStruct((n, 1), jnp.float32),
        grid=(1,),
        in_specs=in_specs,
        out_specs=pl.BlockSpec((n, 1), lambda i: (0, 0)),
        compiler_params=pltpu.CompilerParams(
            dimension_semantics=("arbitrary",),
            vmem_limit_bytes=32 * 1024 * 1024,
        ),
    )(*inputs)


# ----------------------------- parameter prep --------------------------------

def _make_gather_mats(n, h, w, stride=2, k=3, pad=1):
    """Binary row-gather matrices [k*k, N*Ho*Wo, N*H*W] for an im2col conv."""
    ho = (h + 2 * pad - k) // stride + 1
    wo = (w + 2 * pad - k) // stride + 1
    g = np.zeros((k * k, n * ho * wo, n * h * w), dtype=np.float32)
    for b in range(n):
        for i in range(ho):
            for j in range(wo):
                r = (b * ho + i) * wo + j
                for di in range(k):
                    for dj in range(k):
                        hi = stride * i + di - pad
                        wi = stride * j + dj - pad
                        if 0 <= hi < h and 0 <= wi < w:
                            g[di * k + dj, r, (b * h + hi) * w + wi] = 1.0
    return g, ho, wo


def init_params(key, in_ch, metadata_dim):
    """Parameters in PyTorch layout (as the nn.Module would hold them)."""
    ks = jax.random.split(key, 24)
    n = lambda k, s, sc=0.1: jax.random.normal(k, s, dtype=jnp.float32) * sc
    p = {}
    p["conv1"] = (n(ks[0], (64, in_ch, 3, 3)), n(ks[1], (64,)),
                  1.0 + n(ks[2], (64,)), n(ks[3], (64,)))
    p["conv2"] = (n(ks[4], (128, 64, 3, 3)), n(ks[5], (128,)),
                  1.0 + n(ks[6], (128,)), n(ks[7], (128,)))
    p["conv3"] = (n(ks[8], (256, 128, 3, 3)), n(ks[9], (256,)),
                  1.0 + n(ks[10], (256,)), n(ks[11], (256,)))
    p["dense_meta"] = (n(ks[12], (256, metadata_dim)), n(ks[13], (256,)),
                       1.0 + n(ks[14], (256,)), n(ks[15], (256,)))
    p["dense1"] = (n(ks[16], (512, 512)), n(ks[17], (512,)),
                   1.0 + n(ks[18], (512,)), n(ks[19], (512,)))
    p["out"] = (n(ks[20], (1, 512)), n(ks[21], (1,)))
    return p


def prepare_params(params, image_shape, batch):
    """One-time layout prep: pre-transpose/stack weights + build gather mats."""
    c, h, w = image_shape
    g1, h1, w1 = _make_gather_mats(batch, h, w)
    g2, h2, w2 = _make_gather_mats(batch, h1, w1)
    g3, h3, w3 = _make_gather_mats(batch, h2, w2)
    assert h3 == 1 and w3 == 1, "Discriminator requires 8x8 input images"
    prep = {"G1": jnp.asarray(g1), "G2": jnp.asarray(g2), "G3": jnp.asarray(g3)}

    for name, tag in (("conv1", "1"), ("conv2", "2"), ("conv3", "3")):
        wt, b, ga, be = params[name]
        cout, cin, k, _ = wt.shape
        # [Cout, Cin, kh, kw] -> [kh*kw, Cin, Cout]
        prep["W" + tag] = jnp.transpose(wt, (2, 3, 1, 0)).reshape(k * k, cin, cout)
        prep["b" + tag] = b.reshape(1, cout)
        prep["g" + tag] = ga.reshape(1, cout)
        prep["be" + tag] = be.reshape(1, cout)

    wm, bm, gm, bem = params["dense_meta"]
    prep["Wm"], prep["bm"] = wm.T, bm.reshape(1, -1)
    prep["gm"], prep["bem"] = gm.reshape(1, -1), bem.reshape(1, -1)

    wd, bd, gd, bed = params["dense1"]
    prep["Wd"], prep["bd"] = wd.T, bd.reshape(1, -1)
    prep["gd"], prep["bed"] = gd.reshape(1, -1), bed.reshape(1, -1)

    wo, bo = params["out"]
    prep["Wo"] = wo.reshape(1, -1)     # [1, 512] row for the VPU reduce
    prep["bo"] = bo.reshape(1, 1)
    return prep


def discriminator_forward(prep, image_nchw, metadata_input):
    n, c, h, w = image_nchw.shape
    # Single boundary layout op: NCHW image -> channels-last row matrix.
    x0 = jnp.transpose(image_nchw, (0, 2, 3, 1)).reshape(n * h * w, c)
    return _fused_forward(x0, metadata_input, prep)


# ----------------------------- pure-JAX reference ----------------------------

def reference_forward(params, image, metadata):
    def lrelu(x):
        return jnp.where(x > 0, x, LRELU_SLOPE * x)

    def bn(y, g, b, axes):
        mean = jnp.mean(y, axis=axes, keepdims=True)
        var = jnp.mean((y - mean) ** 2, axis=axes, keepdims=True)
        shape = [1] * y.ndim
        shape[1] = -1
        yhat = (y - mean) / jnp.sqrt(var + BN_EPS)
        return yhat * g.reshape(shape) + b.reshape(shape)

    x = image
    for name in ("conv1", "conv2", "conv3"):
        wt, b, ga, be = params[name]
        x = jax.lax.conv_general_dilated(
            x, wt, window_strides=(2, 2), padding=((1, 1), (1, 1)),
            dimension_numbers=("NCHW", "OIHW", "NCHW"))
        x = x + b.reshape(1, -1, 1, 1)
        x = bn(lrelu(x), ga, be, axes=(0, 2, 3))
    x = x.reshape(x.shape[0], -1)

    wm, bm, gm, bem = params["dense_meta"]
    m = bn(lrelu(metadata @ wm.T + bm), gm, bem, axes=(0,))

    comb = jnp.concatenate([x, m], axis=1)
    wd, bd, gd, bed = params["dense1"]
    h = bn(lrelu(comb @ wd.T + bd), gd, bed, axes=(0,))

    wo, bo = params["out"]
    return jax.nn.sigmoid(h @ wo.T + bo)


# ----------------------------- main -------------------------------------------

if __name__ == "__main__":
    batch = 2
    image_shape = (4, 8, 8)   # (C, H, W); 8 -> 4 -> 2 -> 1 so flatten == 256
    metadata_dim = 16

    key = jax.random.PRNGKey(0)
    k_img, k_meta, k_par = jax.random.split(key, 3)
    image_input = jax.random.normal(k_img, (batch,) + image_shape,
                                    dtype=jnp.float32)
    metadata_input = jax.random.normal(k_meta, (batch, metadata_dim),
                                       dtype=jnp.float32)

    params = init_params(k_par, image_shape[0], metadata_dim)
    prep = prepare_params(params, image_shape, batch)

    fwd = jax.jit(discriminator_forward)
    out = jax.block_until_ready(fwd(prep, image_input, metadata_input))

    assert out.shape == (batch, 1), out.shape
    assert bool(jnp.all(jnp.isfinite(out)))
    assert bool(jnp.all((out >= 0.0) & (out <= 1.0)))

    # Correctness check against a pure-JAX reference (loose tolerance: BN over
    # a batch of 2 is numerically touchy, but structural bugs show up >> 5e-2).
    ref = reference_forward(params, image_input, metadata_input)
    max_err = float(jnp.max(jnp.abs(out - ref)))
    assert max_err < 5e-2, f"mismatch vs reference: {max_err}"

    print("KERNEL_OK")
</pallas_src>

<mosaic_0001>
module attributes {stable_mosaic.version = 11 : i64} {
  func.func @_disc_kernel(%arg0: i32, %arg1: memref<128x4xf32, #tpu.memory_space<vmem>>, %arg2: memref<9x32x128xf32, #tpu.memory_space<vmem>>, %arg3: memref<9x4x64xf32, #tpu.memory_space<vmem>>, %arg4: memref<1x64xf32, #tpu.memory_space<vmem>>, %arg5: memref<1x64xf32, #tpu.memory_space<vmem>>, %arg6: memref<1x64xf32, #tpu.memory_space<vmem>>, %arg7: memref<9x8x32xf32, #tpu.memory_space<vmem>>, %arg8: memref<9x64x128xf32, #tpu.memory_space<vmem>>, %arg9: memref<1x128xf32, #tpu.memory_space<vmem>>, %arg10: memref<1x128xf32, #tpu.memory_space<vmem>>, %arg11: memref<1x128xf32, #tpu.memory_space<vmem>>, %arg12: memref<9x2x8xf32, #tpu.memory_space<vmem>>, %arg13: memref<9x128x256xf32, #tpu.memory_space<vmem>>, %arg14: memref<1x256xf32, #tpu.memory_space<vmem>>, %arg15: memref<1x256xf32, #tpu.memory_space<vmem>>, %arg16: memref<1x256xf32, #tpu.memory_space<vmem>>, %arg17: memref<2x16xf32, #tpu.memory_space<vmem>>, %arg18: memref<16x256xf32, #tpu.memory_space<vmem>>, %arg19: memref<1x256xf32, #tpu.memory_space<vmem>>, %arg20: memref<1x256xf32, #tpu.memory_space<vmem>>, %arg21: memref<1x256xf32, #tpu.memory_space<vmem>>, %arg22: memref<512x512xf32, #tpu.memory_space<vmem>>, %arg23: memref<1x512xf32, #tpu.memory_space<vmem>>, %arg24: memref<1x512xf32, #tpu.memory_space<vmem>>, %arg25: memref<1x512xf32, #tpu.memory_space<vmem>>, %arg26: memref<1x512xf32, #tpu.memory_space<vmem>>, %arg27: memref<1x1xf32, #tpu.memory_space<vmem>>, %arg28: memref<2x1xf32, #tpu.memory_space<vmem>>) attributes {dimension_semantics = [#tpu.dimension_semantics<arbitrary>], iteration_bounds = array<i64: 1>, scalar_prefetch = 0 : i64, scratch_operands = 0 : i64, tpu.core_type = #tpu.core_type<tc>, window_params = [{pipeline_mode = #tpu.pipeline_mode<synchronous>, transform_indices = @transform_0, window_bounds = array<i64: 128, 4>}, {pipeline_mode = #tpu.pipeline_mode<synchronous>, transform_indices = @transform_1, window_bounds = array<i64: 9, 32, 128>}, {pipeline_mode = #tpu.pipeline_mode<synchronous>, transform_indices = @transform_2, window_bounds = array<i64: 9, 4, 64>}, {pipeline_mode = #tpu.pipeline_mode<synchronous>, transform_indices = @transform_3, window_bounds = array<i64: 1, 64>}, {pipeline_mode = #tpu.pipeline_mode<synchronous>, transform_indices = @transform_4, window_bounds = array<i64: 1, 64>}, {pipeline_mode = #tpu.pipeline_mode<synchronous>, transform_indices = @transform_5, window_bounds = array<i64: 1, 64>}, {pipeline_mode = #tpu.pipeline_mode<synchronous>, transform_indices = @transform_6, window_bounds = array<i64: 9, 8, 32>}, {pipeline_mode = #tpu.pipeline_mode<synchronous>, transform_indices = @transform_7, window_bounds = array<i64: 9, 64, 128>}, {pipeline_mode = #tpu.pipeline_mode<synchronous>, transform_indices = @transform_8, window_bounds = array<i64: 1, 128>}, {pipeline_mode = #tpu.pipeline_mode<synchronous>, transform_indices = @transform_9, window_bounds = array<i64: 1, 128>}, {pipeline_mode = #tpu.pipeline_mode<synchronous>, transform_indices = @transform_10, window_bounds = array<i64: 1, 128>}, {pipeline_mode = #tpu.pipeline_mode<synchronous>, transform_indices = @transform_11, window_bounds = array<i64: 9, 2, 8>}, {pipeline_mode = #tpu.pipeline_mode<synchronous>, transform_indices = @transform_12, window_bounds = array<i64: 9, 128, 256>}, {pipeline_mode = #tpu.pipeline_mode<synchronous>, transform_indices = @transform_13, window_bounds = array<i64: 1, 256>}, {pipeline_mode = #tpu.pipeline_mode<synchronous>, transform_indices = @transform_14, window_bounds = array<i64: 1, 256>}, {pipeline_mode = #tpu.pipeline_mode<synchronous>, transform_indices = @transform_15, window_bounds = array<i64: 1, 256>}, {pipeline_mode = #tpu.pipeline_mode<synchronous>, transform_indices = @transform_16, window_bounds = array<i64: 2, 16>}, {pipeline_mode = #tpu.pipeline_mode<synchronous>, transform_indices = @transform_17, window_bounds = array<i64: 16, 256>}, {pipeline_mode = #tpu.pipeline_mode<synchronous>, transform_indices = @transform_18, window_bounds = array<i64: 1, 256>}, {pipeline_mode = #tpu.pipeline_mode<synchronous>, transform_indices = @transform_19, window_bounds = array<i64: 1, 256>}, {pipeline_mode = #tpu.pipeline_mode<synchronous>, transform_indices = @transform_20, window_bounds = array<i64: 1, 256>}, {pipeline_mode = #tpu.pipeline_mode<synchronous>, transform_indices = @transform_21, window_bounds = array<i64: 512, 512>}, {pipeline_mode = #tpu.pipeline_mode<synchronous>, transform_indices = @transform_22, window_bounds = array<i64: 1, 512>}, {pipeline_mode = #tpu.pipeline_mode<synchronous>, transform_indices = @transform_23, window_bounds = array<i64: 1, 512>}, {pipeline_mode = #tpu.pipeline_mode<synchronous>, transform_indices = @transform_24, window_bounds = array<i64: 1, 512>}, {pipeline_mode = #tpu.pipeline_mode<synchronous>, transform_indices = @transform_25, window_bounds = array<i64: 1, 512>}, {pipeline_mode = #tpu.pipeline_mode<synchronous>, transform_indices = @transform_26, window_bounds = array<i64: 1, 1>}, {pipeline_mode = #tpu.pipeline_mode<synchronous>, transform_indices = @transform_27, window_bounds = array<i64: 2, 1>}]} {
    %c0 = arith.constant 0 : index
    %c0_0 = arith.constant 0 : index
    %0 = vector.load %arg1[%c0, %c0_0] : memref<128x4xf32, #tpu.memory_space<vmem>>, vector<128x4xf32>
    %c0_1 = arith.constant 0 : index
    %c0_2 = arith.constant 0 : index
    %1 = vector.load %arg4[%c0_1, %c0_2] : memref<1x64xf32, #tpu.memory_space<vmem>>, vector<1x64xf32>
    %c0_3 = arith.constant 0 : index
    %c0_4 = arith.constant 0 : index
    %2 = vector.load %arg5[%c0_3, %c0_4] : memref<1x64xf32, #tpu.memory_space<vmem>>, vector<1x64xf32>
    %c0_5 = arith.constant 0 : index
    %c0_6 = arith.constant 0 : index
    %3 = vector.load %arg6[%c0_5, %c0_6] : memref<1x64xf32, #tpu.memory_space<vmem>>, vector<1x64xf32>
    %c0_7 = arith.constant 0 : index
    %c0_8 = arith.constant 0 : index
    %c0_9 = arith.constant 0 : index
    %4 = vector.load %arg2[%c0_7, %c0_8, %c0_9] : memref<9x32x128xf32, #tpu.memory_space<vmem>>, vector<1x32x128xf32>
    %5 = vector.shape_cast %4 : vector<1x32x128xf32> to vector<32x128xf32>
    %cst = arith.constant dense<0.000000e+00> : vector<32x4xf32>
    %6 = tpu.matmul %5, %0, %cst {dimension_numbers = #tpu.dot_dimension_numbers<[1], [0], [0], [1], [0, 0, 1, 1], [], []>} : vector<32x128xf32>, vector<128x4xf32>, vector<32x4xf32> -> vector<32x4xf32>
    %c0_10 = arith.constant 0 : index
    %c0_11 = arith.constant 0 : index
    %c0_12 = arith.constant 0 : index
    %7 = vector.load %arg3[%c0_10, %c0_11, %c0_12] : memref<9x4x64xf32, #tpu.memory_space<vmem>>, vector<1x4x64xf32>
    %8 = vector.shape_cast %7 : vector<1x4x64xf32> to vector<4x64xf32>
    %cst_13 = arith.constant dense<0.000000e+00> : vector<32x64xf32>
    %9 = tpu.matmul %6, %8, %cst_13 {dimension_numbers = #tpu.dot_dimension_numbers<[1], [0], [0], [1], [0, 0, 1, 1], [], []>} : vector<32x4xf32>, vector<4x64xf32>, vector<32x64xf32> -> vector<32x64xf32>
    %c1 = arith.constant 1 : index
    %c0_14 = arith.constant 0 : index
    %c0_15 = arith.constant 0 : index
    %10 = vector.load %arg2[%c1, %c0_14, %c0_15] : memref<9x32x128xf32, #tpu.memory_space<vmem>>, vector<1x32x128xf32>
    %11 = vector.shape_cast %10 : vector<1x32x128xf32> to vector<32x128xf32>
    %cst_16 = arith.constant dense<0.000000e+00> : vector<32x4xf32>
    %12 = tpu.matmul %11, %0, %cst_16 {dimension_numbers = #tpu.dot_dimension_numbers<[1], [0], [0], [1], [0, 0, 1, 1], [], []>} : vector<32x128xf32>, vector<128x4xf32>, vector<32x4xf32> -> vector<32x4xf32>
    %c1_17 = arith.constant 1 : index
    %c0_18 = arith.constant 0 : index
    %c0_19 = arith.constant 0 : index
    %13 = vector.load %arg3[%c1_17, %c0_18, %c0_19] : memref<9x4x64xf32, #tpu.memory_space<vmem>>, vector<1x4x64xf32>
    %14 = vector.shape_cast %13 : vector<1x4x64xf32> to vector<4x64xf32>
    %cst_20 = arith.constant dense<0.000000e+00> : vector<32x64xf32>
    %15 = tpu.matmul %12, %14, %cst_20 {dimension_numbers = #tpu.dot_dimension_numbers<[1], [0], [0], [1], [0, 0, 1, 1], [], []>} : vector<32x4xf32>, vector<4x64xf32>, vector<32x64xf32> -> vector<32x64xf32>
    %16 = arith.addf %9, %15 : vector<32x64xf32>
    %c2 = arith.constant 2 : index
    %c0_21 = arith.constant 0 : index
    %c0_22 = arith.constant 0 : index
    %17 = vector.load %arg2[%c2, %c0_21, %c0_22] : memref<9x32x128xf32, #tpu.memory_space<vmem>>, vector<1x32x128xf32>
    %18 = vector.shape_cast %17 : vector<1x32x128xf32> to vector<32x128xf32>
    %cst_23 = arith.constant dense<0.000000e+00> : vector<32x4xf32>
    %19 = tpu.matmul %18, %0, %cst_23 {dimension_numbers = #tpu.dot_dimension_numbers<[1], [0], [0], [1], [0, 0, 1, 1], [], []>} : vector<32x128xf32>, vector<128x4xf32>, vector<32x4xf32> -> vector<32x4xf32>
    %c2_24 = arith.constant 2 : index
    %c0_25 = arith.constant 0 : index
    %c0_26 = arith.constant 0 : index
    %20 = vector.load %arg3[%c2_24, %c0_25, %c0_26] : memref<9x4x64xf32, #tpu.memory_space<vmem>>, vector<1x4x64xf32>
    %21 = vector.shape_cast %20 : vector<1x4x64xf32> to vector<4x64xf32>
    %cst_27 = arith.constant dense<0.000000e+00> : vector<32x64xf32>
    %22 = tpu.matmul %19, %21, %cst_27 {dimension_numbers = #tpu.dot_dimension_numbers<[1], [0], [0], [1], [0, 0, 1, 1], [], []>} : vector<32x4xf32>, vector<4x64xf32>, vector<32x64xf32> -> vector<32x64xf32>
    %23 = arith.addf %16, %22 : vector<32x64xf32>
    %c3 = arith.constant 3 : index
    %c0_28 = arith.constant 0 : index
    %c0_29 = arith.constant 0 : index
    %24 = vector.load %arg2[%c3, %c0_28, %c0_29] : memref<9x32x128xf32, #tpu.memory_space<vmem>>, vector<1x32x128xf32>
    %25 = vector.shape_cast %24 : vector<1x32x128xf32> to vector<32x128xf32>
    %cst_30 = arith.constant dense<0.000000e+00> : vector<32x4xf32>
    %26 = tpu.matmul %25, %0, %cst_30 {dimension_numbers = #tpu.dot_dimension_numbers<[1], [0], [0], [1], [0, 0, 1, 1], [], []>} : vector<32x128xf32>, vector<128x4xf32>, vector<32x4xf32> -> vector<32x4xf32>
    %c3_31 = arith.constant 3 : index
    %c0_32 = arith.constant 0 : index
    %c0_33 = arith.constant 0 : index
    %27 = vector.load %arg3[%c3_31, %c0_32, %c0_33] : memref<9x4x64xf32, #tpu.memory_space<vmem>>, vector<1x4x64xf32>
    %28 = vector.shape_cast %27 : vector<1x4x64xf32> to vector<4x64xf32>
    %cst_34 = arith.constant dense<0.000000e+00> : vector<32x64xf32>
    %29 = tpu.matmul %26, %28, %cst_34 {dimension_numbers = #tpu.dot_dimension_numbers<[1], [0], [0], [1], [0, 0, 1, 1], [], []>} : vector<32x4xf32>, vector<4x64xf32>, vector<32x64xf32> -> vector<32x64xf32>
    %30 = arith.addf %23, %29 : vector<32x64xf32>
    %c4 = arith.constant 4 : index
    %c0_35 = arith.constant 0 : index
    %c0_36 = arith.constant 0 : index
    %31 = vector.load %arg2[%c4, %c0_35, %c0_36] : memref<9x32x128xf32, #tpu.memory_space<vmem>>, vector<1x32x128xf32>
    %32 = vector.shape_cast %31 : vector<1x32x128xf32> to vector<32x128xf32>
    %cst_37 = arith.constant dense<0.000000e+00> : vector<32x4xf32>
    %33 = tpu.matmul %32, %0, %cst_37 {dimension_numbers = #tpu.dot_dimension_numbers<[1], [0], [0], [1], [0, 0, 1, 1], [], []>} : vector<32x128xf32>, vector<128x4xf32>, vector<32x4xf32> -> vector<32x4xf32>
    %c4_38 = arith.constant 4 : index
    %c0_39 = arith.constant 0 : index
    %c0_40 = arith.constant 0 : index
    %34 = vector.load %arg3[%c4_38, %c0_39, %c0_40] : memref<9x4x64xf32, #tpu.memory_space<vmem>>, vector<1x4x64xf32>
    %35 = vector.shape_cast %34 : vector<1x4x64xf32> to vector<4x64xf32>
    %cst_41 = arith.constant dense<0.000000e+00> : vector<32x64xf32>
    %36 = tpu.matmul %33, %35, %cst_41 {dimension_numbers = #tpu.dot_dimension_numbers<[1], [0], [0], [1], [0, 0, 1, 1], [], []>} : vector<32x4xf32>, vector<4x64xf32>, vector<32x64xf32> -> vector<32x64xf32>
    %37 = arith.addf %30, %36 : vector<32x64xf32>
    %c5 = arith.constant 5 : index
    %c0_42 = arith.constant 0 : index
    %c0_43 = arith.constant 0 : index
    %38 = vector.load %arg2[%c5, %c0_42, %c0_43] : memref<9x32x128xf32, #tpu.memory_space<vmem>>, vector<1x32x128xf32>
    %39 = vector.shape_cast %38 : vector<1x32x128xf32> to vector<32x128xf32>
    %cst_44 = arith.constant dense<0.000000e+00> : vector<32x4xf32>
    %40 = tpu.matmul %39, %0, %cst_44 {dimension_numbers = #tpu.dot_dimension_numbers<[1], [0], [0], [1], [0, 0, 1, 1], [], []>} : vector<32x128xf32>, vector<128x4xf32>, vector<32x4xf32> -> vector<32x4xf32>
    %c5_45 = arith.constant 5 : index
    %c0_46 = arith.constant 0 : index
    %c0_47 = arith.constant 0 : index
    %41 = vector.load %arg3[%c5_45, %c0_46, %c0_47] : memref<9x4x64xf32, #tpu.memory_space<vmem>>, vector<1x4x64xf32>
    %42 = vector.shape_cast %41 : vector<1x4x64xf32> to vector<4x64xf32>
    %cst_48 = arith.constant dense<0.000000e+00> : vector<32x64xf32>
    %43 = tpu.matmul %40, %42, %cst_48 {dimension_numbers = #tpu.dot_dimension_numbers<[1], [0], [0], [1], [0, 0, 1, 1], [], []>} : vector<32x4xf32>, vector<4x64xf32>, vector<32x64xf32> -> vector<32x64xf32>
    %44 = arith.addf %37, %43 : vector<32x64xf32>
    %c6 = arith.constant 6 : index
    %c0_49 = arith.constant 0 : index
    %c0_50 = arith.constant 0 : index
    %45 = vector.load %arg2[%c6, %c0_49, %c0_50] : memref<9x32x128xf32, #tpu.memory_space<vmem>>, vector<1x32x128xf32>
    %46 = vector.shape_cast %45 : vector<1x32x128xf32> to vector<32x128xf32>
    %cst_51 = arith.constant dense<0.000000e+00> : vector<32x4xf32>
    %47 = tpu.matmul %46, %0, %cst_51 {dimension_numbers = #tpu.dot_dimension_numbers<[1], [0], [0], [1], [0, 0, 1, 1], [], []>} : vector<32x128xf32>, vector<128x4xf32>, vector<32x4xf32> -> vector<32x4xf32>
    %c6_52 = arith.constant 6 : index
    %c0_53 = arith.constant 0 : index
    %c0_54 = arith.constant 0 : index
    %48 = vector.load %arg3[%c6_52, %c0_53, %c0_54] : memref<9x4x64xf32, #tpu.memory_space<vmem>>, vector<1x4x64xf32>
    %49 = vector.shape_cast %48 : vector<1x4x64xf32> to vector<4x64xf32>
    %cst_55 = arith.constant dense<0.000000e+00> : vector<32x64xf32>
    %50 = tpu.matmul %47, %49, %cst_55 {dimension_numbers = #tpu.dot_dimension_numbers<[1], [0], [0], [1], [0, 0, 1, 1], [], []>} : vector<32x4xf32>, vector<4x64xf32>, vector<32x64xf32> -> vector<32x64xf32>
    %51 = arith.addf %44, %50 : vector<32x64xf32>
    %c7 = arith.constant 7 : index
    %c0_56 = arith.constant 0 : index
    %c0_57 = arith.constant 0 : index
    %52 = vector.load %arg2[%c7, %c0_56, %c0_57] : memref<9x32x128xf32, #tpu.memory_space<vmem>>, vector<1x32x128xf32>
    %53 = vector.shape_cast %52 : vector<1x32x128xf32> to vector<32x128xf32>
    %cst_58 = arith.constant dense<0.000000e+00> : vector<32x4xf32>
    %54 = tpu.matmul %53, %0, %cst_58 {dimension_numbers = #tpu.dot_dimension_numbers<[1], [0], [0], [1], [0, 0, 1, 1], [], []>} : vector<32x128xf32>, vector<128x4xf32>, vector<32x4xf32> -> vector<32x4xf32>
    %c7_59 = arith.constant 7 : index
    %c0_60 = arith.constant 0 : index
    %c0_61 = arith.constant 0 : index
    %55 = vector.load %arg3[%c7_59, %c0_60, %c0_61] : memref<9x4x64xf32, #tpu.memory_space<vmem>>, vector<1x4x64xf32>
    %56 = vector.shape_cast %55 : vector<1x4x64xf32> to vector<4x64xf32>
    %cst_62 = arith.constant dense<0.000000e+00> : vector<32x64xf32>
    %57 = tpu.matmul %54, %56, %cst_62 {dimension_numbers = #tpu.dot_dimension_numbers<[1], [0], [0], [1], [0, 0, 1, 1], [], []>} : vector<32x4xf32>, vector<4x64xf32>, vector<32x64xf32> -> vector<32x64xf32>
    %58 = arith.addf %51, %57 : vector<32x64xf32>
    %c8 = arith.constant 8 : index
    %c0_63 = arith.constant 0 : index
    %c0_64 = arith.constant 0 : index
    %59 = vector.load %arg2[%c8, %c0_63, %c0_64] : memref<9x32x128xf32, #tpu.memory_space<vmem>>, vector<1x32x128xf32>
    %60 = vector.shape_cast %59 : vector<1x32x128xf32> to vector<32x128xf32>
    %cst_65 = arith.constant dense<0.000000e+00> : vector<32x4xf32>
    %61 = tpu.matmul %60, %0, %cst_65 {dimension_numbers = #tpu.dot_dimension_numbers<[1], [0], [0], [1], [0, 0, 1, 1], [], []>} : vector<32x128xf32>, vector<128x4xf32>, vector<32x4xf32> -> vector<32x4xf32>
    %c8_66 = arith.constant 8 : index
    %c0_67 = arith.constant 0 : index
    %c0_68 = arith.constant 0 : index
    %62 = vector.load %arg3[%c8_66, %c0_67, %c0_68] : memref<9x4x64xf32, #tpu.memory_space<vmem>>, vector<1x4x64xf32>
    %63 = vector.shape_cast %62 : vector<1x4x64xf32> to vector<4x64xf32>
    %cst_69 = arith.constant dense<0.000000e+00> : vector<32x64xf32>
    %64 = tpu.matmul %61, %63, %cst_69 {dimension_numbers = #tpu.dot_dimension_numbers<[1], [0], [0], [1], [0, 0, 1, 1], [], []>} : vector<32x4xf32>, vector<4x64xf32>, vector<32x64xf32> -> vector<32x64xf32>
    %65 = arith.addf %58, %64 : vector<32x64xf32>
    %66 = vector.broadcast %1 : vector<1x64xf32> to vector<32x64xf32>
    %67 = arith.addf %65, %66 : vector<32x64xf32>
    %cst_70 = arith.constant 0.000000e+00 : f32
    %68 = vector.broadcast %cst_70 : f32 to vector<32x64xf32>
    %69 = arith.cmpf ogt, %67, %68 : vector<32x64xf32>
    %cst_71 = arith.constant 2.000000e-01 : f32
    %70 = vector.broadcast %cst_71 : f32 to vector<32x64xf32>
    %71 = arith.mulf %70, %67 : vector<32x64xf32>
    %72 = arith.select %69, %67, %71 : vector<32x64xi1>, vector<32x64xf32>
    %cst_72 = arith.constant dense<0.000000e+00> : vector<64xf32>
    %73 = vector.multi_reduction <add>, %72, %cst_72 [0] : vector<32x64xf32> to vector<64xf32>
    %74 = vector.shape_cast %73 : vector<64xf32> to vector<1x64xf32>
    %cst_73 = arith.constant 3.125000e-02 : f32
    %75 = vector.broadcast %cst_73 : f32 to vector<1x64xf32>
    %76 = arith.mulf %74, %75 : vector<1x64xf32>
    %77 = arith.mulf %72, %72 : vector<32x64xf32>
    %cst_74 = arith.constant dense<0.000000e+00> : vector<64xf32>
    %78 = vector.multi_reduction <add>, %77, %cst_74 [0] : vector<32x64xf32> to vector<64xf32>
    %79 = vector.shape_cast %78 : vector<64xf32> to vector<1x64xf32>
    %cst_75 = arith.constant 3.125000e-02 : f32
    %80 = vector.broadcast %cst_75 : f32 to vector<1x64xf32>
    %81 = arith.mulf %79, %80 : vector<1x64xf32>
    %82 = arith.mulf %76, %76 : vector<1x64xf32>
    %83 = arith.subf %81, %82 : vector<1x64xf32>
    %cst_76 = arith.constant 9.99999974E-6 : f32
    %84 = vector.broadcast %cst_76 : f32 to vector<1x64xf32>
    %85 = arith.addf %83, %84 : vector<1x64xf32>
    %86 = math.rsqrt %85 : vector<1x64xf32>
    %87 = arith.mulf %2, %86 : vector<1x64xf32>
    %88 = arith.mulf %76, %87 : vector<1x64xf32>
    %89 = arith.subf %3, %88 : vector<1x64xf32>
    %90 = vector.broadcast %87 : vector<1x64xf32> to vector<32x64xf32>
    %91 = arith.mulf %72, %90 : vector<32x64xf32>
    %92 = vector.broadcast %89 : vector<1x64xf32> to vector<32x64xf32>
    %93 = arith.addf %91, %92 : vector<32x64xf32>
    %c0_77 = arith.constant 0 : index
    %c0_78 = arith.constant 0 : index
    %94 = vector.load %arg9[%c0_77, %c0_78] : memref<1x128xf32, #tpu.memory_space<vmem>>, vector<1x128xf32>
    %c0_79 = arith.constant 0 : index
    %c0_80 = arith.constant 0 : index
    %95 = vector.load %arg10[%c0_79, %c0_80] : memref<1x128xf32, #tpu.memory_space<vmem>>, vector<1x128xf32>
    %c0_81 = arith.constant 0 : index
    %c0_82 = arith.constant 0 : index
    %96 = vector.load %arg11[%c0_81, %c0_82] : memref<1x128xf32, #tpu.memory_space<vmem>>, vector<1x128xf32>
    %c0_83 = arith.constant 0 : index
    %c0_84 = arith.constant 0 : index
    %c0_85 = arith.constant 0 : index
    %97 = vector.load %arg7[%c0_83, %c0_84, %c0_85] : memref<9x8x32xf32, #tpu.memory_space<vmem>>, vector<1x8x32xf32>
    %98 = vector.shape_cast %97 : vector<1x8x32xf32> to vector<8x32xf32>
    %cst_86 = arith.constant dense<0.000000e+00> : vector<8x64xf32>
    %99 = tpu.matmul %98, %93, %cst_86 {dimension_numbers = #tpu.dot_dimension_numbers<[1], [0], [0], [1], [0, 0, 1, 1], [], []>} : vector<8x32xf32>, vector<32x64xf32>, vector<8x64xf32> -> vector<8x64xf32>
    %c0_87 = arith.constant 0 : index
    %c0_88 = arith.constant 0 : index
    %c0_89 = arith.constant 0 : index
    %100 = vector.load %arg8[%c0_87, %c0_88, %c0_89] : memref<9x64x128xf32, #tpu.memory_space<vmem>>, vector<1x64x128xf32>
    %101 = vector.shape_cast %100 : vector<1x64x128xf32> to vector<64x128xf32>
    %cst_90 = arith.constant dense<0.000000e+00> : vector<8x128xf32>
    %102 = tpu.matmul %99, %101, %cst_90 {dimension_numbers = #tpu.dot_dimension_numbers<[1], [0], [0], [1], [0, 0, 1, 1], [], []>} : vector<8x64xf32>, vector<64x128xf32>, vector<8x128xf32> -> vector<8x128xf32>
    %c1_91 = arith.constant 1 : index
    %c0_92 = arith.constant 0 : index
    %c0_93 = arith.constant 0 : index
    %103 = vector.load %arg7[%c1_91, %c0_92, %c0_93] : memref<9x8x32xf32, #tpu.memory_space<vmem>>, vector<1x8x32xf32>
    %104 = vector.shape_cast %103 : vector<1x8x32xf32> to vector<8x32xf32>
    %cst_94 = arith.constant dense<0.000000e+00> : vector<8x64xf32>
    %105 = tpu.matmul %104, %93, %cst_94 {dimension_numbers = #tpu.dot_dimension_numbers<[1], [0], [0], [1], [0, 0, 1, 1], [], []>} : vector<8x32xf32>, vector<32x64xf32>, vector<8x64xf32> -> vector<8x64xf32>
    %c1_95 = arith.constant 1 : index
    %c0_96 = arith.constant 0 : index
    %c0_97 = arith.constant 0 : index
    %106 = vector.load %arg8[%c1_95, %c0_96, %c0_97] : memref<9x64x128xf32, #tpu.memory_space<vmem>>, vector<1x64x128xf32>
    %107 = vector.shape_cast %106 : vector<1x64x128xf32> to vector<64x128xf32>
    %cst_98 = arith.constant dense<0.000000e+00> : vector<8x128xf32>
    %108 = tpu.matmul %105, %107, %cst_98 {dimension_numbers = #tpu.dot_dimension_numbers<[1], [0], [0], [1], [0, 0, 1, 1], [], []>} : vector<8x64xf32>, vector<64x128xf32>, vector<8x128xf32> -> vector<8x128xf32>
    %109 = arith.addf %102, %108 : vector<8x128xf32>
    %c2_99 = arith.constant 2 : index
    %c0_100 = arith.constant 0 : index
    %c0_101 = arith.constant 0 : index
    %110 = vector.load %arg7[%c2_99, %c0_100, %c0_101] : memref<9x8x32xf32, #tpu.memory_space<vmem>>, vector<1x8x32xf32>
    %111 = vector.shape_cast %110 : vector<1x8x32xf32> to vector<8x32xf32>
    %cst_102 = arith.constant dense<0.000000e+00> : vector<8x64xf32>
    %112 = tpu.matmul %111, %93, %cst_102 {dimension_numbers = #tpu.dot_dimension_numbers<[1], [0], [0], [1], [0, 0, 1, 1], [], []>} : vector<8x32xf32>, vector<32x64xf32>, vector<8x64xf32> -> vector<8x64xf32>
    %c2_103 = arith.constant 2 : index
    %c0_104 = arith.constant 0 : index
    %c0_105 = arith.constant 0 : index
    %113 = vector.load %arg8[%c2_103, %c0_104, %c0_105] : memref<9x64x128xf32, #tpu.memory_space<vmem>>, vector<1x64x128xf32>
    %114 = vector.shape_cast %113 : vector<1x64x128xf32> to vector<64x128xf32>
    %cst_106 = arith.constant dense<0.000000e+00> : vector<8x128xf32>
    %115 = tpu.matmul %112, %114, %cst_106 {dimension_numbers = #tpu.dot_dimension_numbers<[1], [0], [0], [1], [0, 0, 1, 1], [], []>} : vector<8x64xf32>, vector<64x128xf32>, vector<8x128xf32> -> vector<8x128xf32>
    %116 = arith.addf %109, %115 : vector<8x128xf32>
    %c3_107 = arith.constant 3 : index
    %c0_108 = arith.constant 0 : index
    %c0_109 = arith.constant 0 : index
    %117 = vector.load %arg7[%c3_107, %c0_108, %c0_109] : memref<9x8x32xf32, #tpu.memory_space<vmem>>, vector<1x8x32xf32>
    %118 = vector.shape_cast %117 : vector<1x8x32xf32> to vector<8x32xf32>
    %cst_110 = arith.constant dense<0.000000e+00> : vector<8x64xf32>
    %119 = tpu.matmul %118, %93, %cst_110 {dimension_numbers = #tpu.dot_dimension_numbers<[1], [0], [0], [1], [0, 0, 1, 1], [], []>} : vector<8x32xf32>, vector<32x64xf32>, vector<8x64xf32> -> vector<8x64xf32>
    %c3_111 = arith.constant 3 : index
    %c0_112 = arith.constant 0 : index
    %c0_113 = arith.constant 0 : index
    %120 = vector.load %arg8[%c3_111, %c0_112, %c0_113] : memref<9x64x128xf32, #tpu.memory_space<vmem>>, vector<1x64x128xf32>
    %121 = vector.shape_cast %120 : vector<1x64x128xf32> to vector<64x128xf32>
    %cst_114 = arith.constant dense<0.000000e+00> : vector<8x128xf32>
    %122 = tpu.matmul %119, %121, %cst_114 {dimension_numbers = #tpu.dot_dimension_numbers<[1], [0], [0], [1], [0, 0, 1, 1], [], []>} : vector<8x64xf32>, vector<64x128xf32>, vector<8x128xf32> -> vector<8x128xf32>
    %123 = arith.addf %116, %122 : vector<8x128xf32>
    %c4_115 = arith.constant 4 : index
    %c0_116 = arith.constant 0 : index
    %c0_117 = arith.constant 0 : index
    %124 = vector.load %arg7[%c4_115, %c0_116, %c0_117] : memref<9x8x32xf32, #tpu.memory_space<vmem>>, vector<1x8x32xf32>
    %125 = vector.shape_cast %124 : vector<1x8x32xf32> to vector<8x32xf32>
    %cst_118 = arith.constant dense<0.000000e+00> : vector<8x64xf32>
    %126 = tpu.matmul %125, %93, %cst_118 {dimension_numbers = #tpu.dot_dimension_numbers<[1], [0], [0], [1], [0, 0, 1, 1], [], []>} : vector<8x32xf32>, vector<32x64xf32>, vector<8x64xf32> -> vector<8x64xf32>
    %c4_119 = arith.constant 4 : index
    %c0_120 = arith.constant 0 : index
    %c0_121 = arith.constant 0 : index
    %127 = vector.load %arg8[%c4_119, %c0_120, %c0_121] : memref<9x64x128xf32, #tpu.memory_space<vmem>>, vector<1x64x128xf32>
    %128 = vector.shape_cast %127 : vector<1x64x128xf32> to vector<64x128xf32>
    %cst_122 = arith.constant dense<0.000000e+00> : vector<8x128xf32>
    %129 = tpu.matmul %126, %128, %cst_122 {dimension_numbers = #tpu.dot_dimension_numbers<[1], [0], [0], [1], [0, 0, 1, 1], [], []>} : vector<8x64xf32>, vector<64x128xf32>, vector<8x128xf32> -> vector<8x128xf32>
    %130 = arith.addf %123, %129 : vector<8x128xf32>
    %c5_123 = arith.constant 5 : index
    %c0_124 = arith.constant 0 : index
    %c0_125 = arith.constant 0 : index
    %131 = vector.load %arg7[%c5_123, %c0_124, %c0_125] : memref<9x8x32xf32, #tpu.memory_space<vmem>>, vector<1x8x32xf32>
    %132 = vector.shape_cast %131 : vector<1x8x32xf32> to vector<8x32xf32>
    %cst_126 = arith.constant dense<0.000000e+00> : vector<8x64xf32>
    %133 = tpu.matmul %132, %93, %cst_126 {dimension_numbers = #tpu.dot_dimension_numbers<[1], [0], [0], [1], [0, 0, 1, 1], [], []>} : vector<8x32xf32>, vector<32x64xf32>, vector<8x64xf32> -> vector<8x64xf32>
    %c5_127 = arith.constant 5 : index
    %c0_128 = arith.constant 0 : index
    %c0_129 = arith.constant 0 : index
    %134 = vector.load %arg8[%c5_127, %c0_128, %c0_129] : memref<9x64x128xf32, #tpu.memory_space<vmem>>, vector<1x64x128xf32>
    %135 = vector.shape_cast %134 : vector<1x64x128xf32> to vector<64x128xf32>
    %cst_130 = arith.constant dense<0.000000e+00> : vector<8x128xf32>
    %136 = tpu.matmul %133, %135, %cst_130 {dimension_numbers = #tpu.dot_dimension_numbers<[1], [0], [0], [1], [0, 0, 1, 1], [], []>} : vector<8x64xf32>, vector<64x128xf32>, vector<8x128xf32> -> vector<8x128xf32>
    %137 = arith.addf %130, %136 : vector<8x128xf32>
    %c6_131 = arith.constant 6 : index
    %c0_132 = arith.constant 0 : index
    %c0_133 = arith.constant 0 : index
    %138 = vector.load %arg7[%c6_131, %c0_132, %c0_133] : memref<9x8x32xf32, #tpu.memory_space<vmem>>, vector<1x8x32xf32>
    %139 = vector.shape_cast %138 : vector<1x8x32xf32> to vector<8x32xf32>
    %cst_134 = arith.constant dense<0.000000e+00> : vector<8x64xf32>
    %140 = tpu.matmul %139, %93, %cst_134 {dimension_numbers = #tpu.dot_dimension_numbers<[1], [0], [0], [1], [0, 0, 1, 1], [], []>} : vector<8x32xf32>, vector<32x64xf32>, vector<8x64xf32> -> vector<8x64xf32>
    %c6_135 = arith.constant 6 : index
    %c0_136 = arith.constant 0 : index
    %c0_137 = arith.constant 0 : index
    %141 = vector.load %arg8[%c6_135, %c0_136, %c0_137] : memref<9x64x128xf32, #tpu.memory_space<vmem>>, vector<1x64x128xf32>
    %142 = vector.shape_cast %141 : vector<1x64x128xf32> to vector<64x128xf32>
    %cst_138 = arith.constant dense<0.000000e+00> : vector<8x128xf32>
    %143 = tpu.matmul %140, %142, %cst_138 {dimension_numbers = #tpu.dot_dimension_numbers<[1], [0], [0], [1], [0, 0, 1, 1], [], []>} : vector<8x64xf32>, vector<64x128xf32>, vector<8x128xf32> -> vector<8x128xf32>
    %144 = arith.addf %137, %143 : vector<8x128xf32>
    %c7_139 = arith.constant 7 : index
    %c0_140 = arith.constant 0 : index
    %c0_141 = arith.constant 0 : index
    %145 = vector.load %arg7[%c7_139, %c0_140, %c0_141] : memref<9x8x32xf32, #tpu.memory_space<vmem>>, vector<1x8x32xf32>
    %146 = vector.shape_cast %145 : vector<1x8x32xf32> to vector<8x32xf32>
    %cst_142 = arith.constant dense<0.000000e+00> : vector<8x64xf32>
    %147 = tpu.matmul %146, %93, %cst_142 {dimension_numbers = #tpu.dot_dimension_numbers<[1], [0], [0], [1], [0, 0, 1, 1], [], []>} : vector<8x32xf32>, vector<32x64xf32>, vector<8x64xf32> -> vector<8x64xf32>
    %c7_143 = arith.constant 7 : index
    %c0_144 = arith.constant 0 : index
    %c0_145 = arith.constant 0 : index
    %148 = vector.load %arg8[%c7_143, %c0_144, %c0_145] : memref<9x64x128xf32, #tpu.memory_space<vmem>>, vector<1x64x128xf32>
    %149 = vector.shape_cast %148 : vector<1x64x128xf32> to vector<64x128xf32>
    %cst_146 = arith.constant dense<0.000000e+00> : vector<8x128xf32>
    %150 = tpu.matmul %147, %149, %cst_146 {dimension_numbers = #tpu.dot_dimension_numbers<[1], [0], [0], [1], [0, 0, 1, 1], [], []>} : vector<8x64xf32>, vector<64x128xf32>, vector<8x128xf32> -> vector<8x128xf32>
    %151 = arith.addf %144, %150 : vector<8x128xf32>
    %c8_147 = arith.constant 8 : index
    %c0_148 = arith.constant 0 : index
    %c0_149 = arith.constant 0 : index
    %152 = vector.load %arg7[%c8_147, %c0_148, %c0_149] : memref<9x8x32xf32, #tpu.memory_space<vmem>>, vector<1x8x32xf32>
    %153 = vector.shape_cast %152 : vector<1x8x32xf32> to vector<8x32xf32>
    %cst_150 = arith.constant dense<0.000000e+00> : vector<8x64xf32>
    %154 = tpu.matmul %153, %93, %cst_150 {dimension_numbers = #tpu.dot_dimension_numbers<[1], [0], [0], [1], [0, 0, 1, 1], [], []>} : vector<8x32xf32>, vector<32x64xf32>, vector<8x64xf32> -> vector<8x64xf32>
    %c8_151 = arith.constant 8 : index
    %c0_152 = arith.constant 0 : index
    %c0_153 = arith.constant 0 : index
    %155 = vector.load %arg8[%c8_151, %c0_152, %c0_153] : memref<9x64x128xf32, #tpu.memory_space<vmem>>, vector<1x64x128xf32>
    %156 = vector.shape_cast %155 : vector<1x64x128xf32> to vector<64x128xf32>
    %cst_154 = arith.constant dense<0.000000e+00> : vector<8x128xf32>
    %157 = tpu.matmul %154, %156, %cst_154 {dimension_numbers = #tpu.dot_dimension_numbers<[1], [0], [0], [1], [0, 0, 1, 1], [], []>} : vector<8x64xf32>, vector<64x128xf32>, vector<8x128xf32> -> vector<8x128xf32>
    %158 = arith.addf %151, %157 : vector<8x128xf32>
    %159 = vector.broadcast %94 : vector<1x128xf32> to vector<8x128xf32>
    %160 = arith.addf %158, %159 : vector<8x128xf32>
    %cst_155 = arith.constant 0.000000e+00 : f32
    %161 = vector.broadcast %cst_155 : f32 to vector<8x128xf32>
    %162 = arith.cmpf ogt, %160, %161 : vector<8x128xf32>
    %cst_156 = arith.constant 2.000000e-01 : f32
    %163 = vector.broadcast %cst_156 : f32 to vector<8x128xf32>
    %164 = arith.mulf %163, %160 : vector<8x128xf32>
    %165 = arith.select %162, %160, %164 : vector<8x128xi1>, vector<8x128xf32>
    %cst_157 = arith.constant dense<0.000000e+00> : vector<128xf32>
    %166 = vector.multi_reduction <add>, %165, %cst_157 [0] : vector<8x128xf32> to vector<128xf32>
    %167 = vector.shape_cast %166 : vector<128xf32> to vector<1x128xf32>
    %cst_158 = arith.constant 1.250000e-01 : f32
    %168 = vector.broadcast %cst_158 : f32 to vector<1x128xf32>
    %169 = arith.mulf %167, %168 : vector<1x128xf32>
    %170 = arith.mulf %165, %165 : vector<8x128xf32>
    %cst_159 = arith.constant dense<0.000000e+00> : vector<128xf32>
    %171 = vector.multi_reduction <add>, %170, %cst_159 [0] : vector<8x128xf32> to vector<128xf32>
    %172 = vector.shape_cast %171 : vector<128xf32> to vector<1x128xf32>
    %cst_160 = arith.constant 1.250000e-01 : f32
    %173 = vector.broadcast %cst_160 : f32 to vector<1x128xf32>
    %174 = arith.mulf %172, %173 : vector<1x128xf32>
    %175 = arith.mulf %169, %169 : vector<1x128xf32>
    %176 = arith.subf %174, %175 : vector<1x128xf32>
    %cst_161 = arith.constant 9.99999974E-6 : f32
    %177 = vector.broadcast %cst_161 : f32 to vector<1x128xf32>
    %178 = arith.addf %176, %177 : vector<1x128xf32>
    %179 = math.rsqrt %178 : vector<1x128xf32>
    %180 = arith.mulf %95, %179 : vector<1x128xf32>
    %181 = arith.mulf %169, %180 : vector<1x128xf32>
    %182 = arith.subf %96, %181 : vector<1x128xf32>
    %183 = vector.broadcast %180 : vector<1x128xf32> to vector<8x128xf32>
    %184 = arith.mulf %165, %183 : vector<8x128xf32>
    %185 = vector.broadcast %182 : vector<1x128xf32> to vector<8x128xf32>
    %186 = arith.addf %184, %185 : vector<8x128xf32>
    %c0_162 = arith.constant 0 : index
    %c0_163 = arith.constant 0 : index
    %187 = vector.load %arg14[%c0_162, %c0_163] : memref<1x256xf32, #tpu.memory_space<vmem>>, vector<1x256xf32>
    %c0_164 = arith.constant 0 : index
    %c0_165 = arith.constant 0 : index
    %188 = vector.load %arg15[%c0_164, %c0_165] : memref<1x256xf32, #tpu.memory_space<vmem>>, vector<1x256xf32>
    %c0_166 = arith.constant 0 : index
    %c0_167 = arith.constant 0 : index
    %189 = vector.load %arg16[%c0_166, %c0_167] : memref<1x256xf32, #tpu.memory_space<vmem>>, vector<1x256xf32>
    %c0_168 = arith.constant 0 : index
    %c0_169 = arith.constant 0 : index
    %c0_170 = arith.constant 0 : index
    %190 = vector.load %arg12[%c0_168, %c0_169, %c0_170] : memref<9x2x8xf32, #tpu.memory_space<vmem>>, vector<1x2x8xf32>
    %191 = vector.shape_cast %190 : vector<1x2x8xf32> to vector<2x8xf32>
    %cst_171 = arith.constant dense<0.000000e+00> : vector<2x128xf32>
    %192 = tpu.matmul %191, %186, %cst_171 {dimension_numbers = #tpu.dot_dimension_numbers<[1], [0], [0], [1], [0, 0, 1, 1], [], []>} : vector<2x8xf32>, vector<8x128xf32>, vector<2x128xf32> -> vector<2x128xf32>
    %c0_172 = arith.constant 0 : index
    %c0_173 = arith.constant 0 : index
    %c0_174 = arith.constant 0 : index
    %193 = vector.load %arg13[%c0_172, %c0_173, %c0_174] : memref<9x128x256xf32, #tpu.memory_space<vmem>>, vector<1x128x256xf32>
    %194 = vector.shape_cast %193 : vector<1x128x256xf32> to vector<128x256xf32>
    %cst_175 = arith.constant dense<0.000000e+00> : vector<2x256xf32>
    %195 = tpu.matmul %192, %194, %cst_175 {dimension_numbers = #tpu.dot_dimension_numbers<[1], [0], [0], [1], [0, 0, 1, 1], [], []>} : vector<2x128xf32>, vector<128x256xf32>, vector<2x256xf32> -> vector<2x256xf32>
    %c1_176 = arith.constant 1 : index
    %c0_177 = arith.constant 0 : index
    %c0_178 = arith.constant 0 : index
    %196 = vector.load %arg12[%c1_176, %c0_177, %c0_178] : memref<9x2x8xf32, #tpu.memory_space<vmem>>, vector<1x2x8xf32>
    %197 = vector.shape_cast %196 : vector<1x2x8xf32> to vector<2x8xf32>
    %cst_179 = arith.constant dense<0.000000e+00> : vector<2x128xf32>
    %198 = tpu.matmul %197, %186, %cst_179 {dimension_numbers = #tpu.dot_dimension_numbers<[1], [0], [0], [1], [0, 0, 1, 1], [], []>} : vector<2x8xf32>, vector<8x128xf32>, vector<2x128xf32> -> vector<2x128xf32>
    %c1_180 = arith.constant 1 : index
    %c0_181 = arith.constant 0 : index
    %c0_182 = arith.constant 0 : index
    %199 = vector.load %arg13[%c1_180, %c0_181, %c0_182] : memref<9x128x256xf32, #tpu.memory_space<vmem>>, vector<1x128x256xf32>
    %200 = vector.shape_cast %199 : vector<1x128x256xf32> to vector<128x256xf32>
    %cst_183 = arith.constant dense<0.000000e+00> : vector<2x256xf32>
    %201 = tpu.matmul %198, %200, %cst_183 {dimension_numbers = #tpu.dot_dimension_numbers<[1], [0], [0], [1], [0, 0, 1, 1], [], []>} : vector<2x128xf32>, vector<128x256xf32>, vector<2x256xf32> -> vector<2x256xf32>
    %202 = arith.addf %195, %201 : vector<2x256xf32>
    %c2_184 = arith.constant 2 : index
    %c0_185 = arith.constant 0 : index
    %c0_186 = arith.constant 0 : index
    %203 = vector.load %arg12[%c2_184, %c0_185, %c0_186] : memref<9x2x8xf32, #tpu.memory_space<vmem>>, vector<1x2x8xf32>
    %204 = vector.shape_cast %203 : vector<1x2x8xf32> to vector<2x8xf32>
    %cst_187 = arith.constant dense<0.000000e+00> : vector<2x128xf32>
    %205 = tpu.matmul %204, %186, %cst_187 {dimension_numbers = #tpu.dot_dimension_numbers<[1], [0], [0], [1], [0, 0, 1, 1], [], []>} : vector<2x8xf32>, vector<8x128xf32>, vector<2x128xf32> -> vector<2x128xf32>
    %c2_188 = arith.constant 2 : index
    %c0_189 = arith.constant 0 : index
    %c0_190 = arith.constant 0 : index
    %206 = vector.load %arg13[%c2_188, %c0_189, %c0_190] : memref<9x128x256xf32, #tpu.memory_space<vmem>>, vector<1x128x256xf32>
    %207 = vector.shape_cast %206 : vector<1x128x256xf32> to vector<128x256xf32>
    %cst_191 = arith.constant dense<0.000000e+00> : vector<2x256xf32>
    %208 = tpu.matmul %205, %207, %cst_191 {dimension_numbers = #tpu.dot_dimension_numbers<[1], [0], [0], [1], [0, 0, 1, 1], [], []>} : vector<2x128xf32>, vector<128x256xf32>, vector<2x256xf32> -> vector<2x256xf32>
    %209 = arith.addf %202, %208 : vector<2x256xf32>
    %c3_192 = arith.constant 3 : index
    %c0_193 = arith.constant 0 : index
    %c0_194 = arith.constant 0 : index
    %210 = vector.load %arg12[%c3_192, %c0_193, %c0_194] : memref<9x2x8xf32, #tpu.memory_space<vmem>>, vector<1x2x8xf32>
    %211 = vector.shape_cast %210 : vector<1x2x8xf32> to vector<2x8xf32>
    %cst_195 = arith.constant dense<0.000000e+00> : vector<2x128xf32>
    %212 = tpu.matmul %211, %186, %cst_195 {dimension_numbers = #tpu.dot_dimension_numbers<[1], [0], [0], [1], [0, 0, 1, 1], [], []>} : vector<2x8xf32>, vector<8x128xf32>, vector<2x128xf32> -> vector<2x128xf32>
    %c3_196 = arith.constant 3 : index
    %c0_197 = arith.constant 0 : index
    %c0_198 = arith.constant 0 : index
    %213 = vector.load %arg13[%c3_196, %c0_197, %c0_198] : memref<9x128x256xf32, #tpu.memory_space<vmem>>, vector<1x128x256xf32>
    %214 = vector.shape_cast %213 : vector<1x128x256xf32> to vector<128x256xf32>
    %cst_199 = arith.constant dense<0.000000e+00> : vector<2x256xf32>
    %215 = tpu.matmul %212, %214, %cst_199 {dimension_numbers = #tpu.dot_dimension_numbers<[1], [0], [0], [1], [0, 0, 1, 1], [], []>} : vector<2x128xf32>, vector<128x256xf32>, vector<2x256xf32> -> vector<2x256xf32>
    %216 = arith.addf %209, %215 : vector<2x256xf32>
    %c4_200 = arith.constant 4 : index
    %c0_201 = arith.constant 0 : index
    %c0_202 = arith.constant 0 : index
    %217 = vector.load %arg12[%c4_200, %c0_201, %c0_202] : memref<9x2x8xf32, #tpu.memory_space<vmem>>, vector<1x2x8xf32>
    %218 = vector.shape_cast %217 : vector<1x2x8xf32> to vector<2x8xf32>
    %cst_203 = arith.constant dense<0.000000e+00> : vector<2x128xf32>
    %219 = tpu.matmul %218, %186, %cst_203 {dimension_numbers = #tpu.dot_dimension_numbers<[1], [0], [0], [1], [0, 0, 1, 1], [], []>} : vector<2x8xf32>, vector<8x128xf32>, vector<2x128xf32> -> vector<2x128xf32>
    %c4_204 = arith.constant 4 : index
    %c0_205 = arith.constant 0 : index
    %c0_206 = arith.constant 0 : index
    %220 = vector.load %arg13[%c4_204, %c0_205, %c0_206] : memref<9x128x256xf32, #tpu.memory_space<vmem>>, vector<1x128x256xf32>
    %221 = vector.shape_cast %220 : vector<1x128x256xf32> to vector<128x256xf32>
    %cst_207 = arith.constant dense<0.000000e+00> : vector<2x256xf32>
    %222 = tpu.matmul %219, %221, %cst_207 {dimension_numbers = #tpu.dot_dimension_numbers<[1], [0], [0], [1], [0, 0, 1, 1], [], []>} : vector<2x128xf32>, vector<128x256xf32>, vector<2x256xf32> -> vector<2x256xf32>
    %223 = arith.addf %216, %222 : vector<2x256xf32>
    %c5_208 = arith.constant 5 : index
    %c0_209 = arith.constant 0 : index
    %c0_210 = arith.constant 0 : index
    %224 = vector.load %arg12[%c5_208, %c0_209, %c0_210] : memref<9x2x8xf32, #tpu.memory_space<vmem>>, vector<1x2x8xf32>
    %225 = vector.shape_cast %224 : vector<1x2x8xf32> to vector<2x8xf32>
    %cst_211 = arith.constant dense<0.000000e+00> : vector<2x128xf32>
    %226 = tpu.matmul %225, %186, %cst_211 {dimension_numbers = #tpu.dot_dimension_numbers<[1], [0], [0], [1], [0, 0, 1, 1], [], []>} : vector<2x8xf32>, vector<8x128xf32>, vector<2x128xf32> -> vector<2x128xf32>
    %c5_212 = arith.constant 5 : index
    %c0_213 = arith.constant 0 : index
    %c0_214 = arith.constant 0 : index
    %227 = vector.load %arg13[%c5_212, %c0_213, %c0_214] : memref<9x128x256xf32, #tpu.memory_space<vmem>>, vector<1x128x256xf32>
    %228 = vector.shape_cast %227 : vector<1x128x256xf32> to vector<128x256xf32>
    %cst_215 = arith.constant dense<0.000000e+00> : vector<2x256xf32>
    %229 = tpu.matmul %226, %228, %cst_215 {dimension_numbers = #tpu.dot_dimension_numbers<[1], [0], [0], [1], [0, 0, 1, 1], [], []>} : vector<2x128xf32>, vector<128x256xf32>, vector<2x256xf32> -> vector<2x256xf32>
    %230 = arith.addf %223, %229 : vector<2x256xf32>
    %c6_216 = arith.constant 6 : index
    %c0_217 = arith.constant 0 : index
    %c0_218 = arith.constant 0 : index
    %231 = vector.load %arg12[%c6_216, %c0_217, %c0_218] : memref<9x2x8xf32, #tpu.memory_space<vmem>>, vector<1x2x8xf32>
    %232 = vector.shape_cast %231 : vector<1x2x8xf32> to vector<2x8xf32>
    %cst_219 = arith.constant dense<0.000000e+00> : vector<2x128xf32>
    %233 = tpu.matmul %232, %186, %cst_219 {dimension_numbers = #tpu.dot_dimension_numbers<[1], [0], [0], [1], [0, 0, 1, 1], [], []>} : vector<2x8xf32>, vector<8x128xf32>, vector<2x128xf32> -> vector<2x128xf32>
    %c6_220 = arith.constant 6 : index
    %c0_221 = arith.constant 0 : index
    %c0_222 = arith.constant 0 : index
    %234 = vector.load %arg13[%c6_220, %c0_221, %c0_222] : memref<9x128x256xf32, #tpu.memory_space<vmem>>, vector<1x128x256xf32>
    %235 = vector.shape_cast %234 : vector<1x128x256xf32> to vector<128x256xf32>
    %cst_223 = arith.constant dense<0.000000e+00> : vector<2x256xf32>
    %236 = tpu.matmul %233, %235, %cst_223 {dimension_numbers = #tpu.dot_dimension_numbers<[1], [0], [0], [1], [0, 0, 1, 1], [], []>} : vector<2x128xf32>, vector<128x256xf32>, vector<2x256xf32> -> vector<2x256xf32>
    %237 = arith.addf %230, %236 : vector<2x256xf32>
    %c7_224 = arith.constant 7 : index
    %c0_225 = arith.constant 0 : index
    %c0_226 = arith.constant 0 : index
    %238 = vector.load %arg12[%c7_224, %c0_225, %c0_226] : memref<9x2x8xf32, #tpu.memory_space<vmem>>, vector<1x2x8xf32>
    %239 = vector.shape_cast %238 : vector<1x2x8xf32> to vector<2x8xf32>
    %cst_227 = arith.constant dense<0.000000e+00> : vector<2x128xf32>
    %240 = tpu.matmul %239, %186, %cst_227 {dimension_numbers = #tpu.dot_dimension_numbers<[1], [0], [0], [1], [0, 0, 1, 1], [], []>} : vector<2x8xf32>, vector<8x128xf32>, vector<2x128xf32> -> vector<2x128xf32>
    %c7_228 = arith.constant 7 : index
    %c0_229 = arith.constant 0 : index
    %c0_230 = arith.constant 0 : index
    %241 = vector.load %arg13[%c7_228, %c0_229, %c0_230] : memref<9x128x256xf32, #tpu.memory_space<vmem>>, vector<1x128x256xf32>
    %242 = vector.shape_cast %241 : vector<1x128x256xf32> to vector<128x256xf32>
    %cst_231 = arith.constant dense<0.000000e+00> : vector<2x256xf32>
    %243 = tpu.matmul %240, %242, %cst_231 {dimension_numbers = #tpu.dot_dimension_numbers<[1], [0], [0], [1], [0, 0, 1, 1], [], []>} : vector<2x128xf32>, vector<128x256xf32>, vector<2x256xf32> -> vector<2x256xf32>
    %244 = arith.addf %237, %243 : vector<2x256xf32>
    %c8_232 = arith.constant 8 : index
    %c0_233 = arith.constant 0 : index
    %c0_234 = arith.constant 0 : index
    %245 = vector.load %arg12[%c8_232, %c0_233, %c0_234] : memref<9x2x8xf32, #tpu.memory_space<vmem>>, vector<1x2x8xf32>
    %246 = vector.shape_cast %245 : vector<1x2x8xf32> to vector<2x8xf32>
    %cst_235 = arith.constant dense<0.000000e+00> : vector<2x128xf32>
    %247 = tpu.matmul %246, %186, %cst_235 {dimension_numbers = #tpu.dot_dimension_numbers<[1], [0], [0], [1], [0, 0, 1, 1], [], []>} : vector<2x8xf32>, vector<8x128xf32>, vector<2x128xf32> -> vector<2x128xf32>
    %c8_236 = arith.constant 8 : index
    %c0_237 = arith.constant 0 : index
    %c0_238 = arith.constant 0 : index
    %248 = vector.load %arg13[%c8_236, %c0_237, %c0_238] : memref<9x128x256xf32, #tpu.memory_space<vmem>>, vector<1x128x256xf32>
    %249 = vector.shape_cast %248 : vector<1x128x256xf32> to vector<128x256xf32>
    %cst_239 = arith.constant dense<0.000000e+00> : vector<2x256xf32>
    %250 = tpu.matmul %247, %249, %cst_239 {dimension_numbers = #tpu.dot_dimension_numbers<[1], [0], [0], [1], [0, 0, 1, 1], [], []>} : vector<2x128xf32>, vector<128x256xf32>, vector<2x256xf32> -> vector<2x256xf32>
    %251 = arith.addf %244, %250 : vector<2x256xf32>
    %252 = vector.broadcast %187 : vector<1x256xf32> to vector<2x256xf32>
    %253 = arith.addf %251, %252 : vector<2x256xf32>
    %cst_240 = arith.constant 0.000000e+00 : f32
    %254 = vector.broadcast %cst_240 : f32 to vector<2x256xf32>
    %255 = arith.cmpf ogt, %253, %254 : vector<2x256xf32>
    %cst_241 = arith.constant 2.000000e-01 : f32
    %256 = vector.broadcast %cst_241 : f32 to vector<2x256xf32>
    %257 = arith.mulf %256, %253 : vector<2x256xf32>
    %258 = arith.select %255, %253, %257 : vector<2x256xi1>, vector<2x256xf32>
    %cst_242 = arith.constant dense<0.000000e+00> : vector<256xf32>
    %259 = vector.multi_reduction <add>, %258, %cst_242 [0] : vector<2x256xf32> to vector<256xf32>
    %260 = vector.shape_cast %259 : vector<256xf32> to vector<1x256xf32>
    %cst_243 = arith.constant 5.000000e-01 : f32
    %261 = vector.broadcast %cst_243 : f32 to vector<1x256xf32>
    %262 = arith.mulf %260, %261 : vector<1x256xf32>
    %263 = arith.mulf %258, %258 : vector<2x256xf32>
    %cst_244 = arith.constant dense<0.000000e+00> : vector<256xf32>
    %264 = vector.multi_reduction <add>, %263, %cst_244 [0] : vector<2x256xf32> to vector<256xf32>
    %265 = vector.shape_cast %264 : vector<256xf32> to vector<1x256xf32>
    %cst_245 = arith.constant 5.000000e-01 : f32
    %266 = vector.broadcast %cst_245 : f32 to vector<1x256xf32>
    %267 = arith.mulf %265, %266 : vector<1x256xf32>
    %268 = arith.mulf %262, %262 : vector<1x256xf32>
    %269 = arith.subf %267, %268 : vector<1x256xf32>
    %cst_246 = arith.constant 9.99999974E-6 : f32
    %270 = vector.broadcast %cst_246 : f32 to vector<1x256xf32>
    %271 = arith.addf %269, %270 : vector<1x256xf32>
    %272 = math.rsqrt %271 : vector<1x256xf32>
    %273 = arith.mulf %188, %272 : vector<1x256xf32>
    %274 = arith.mulf %262, %273 : vector<1x256xf32>
    %275 = arith.subf %189, %274 : vector<1x256xf32>
    %276 = vector.broadcast %273 : vector<1x256xf32> to vector<2x256xf32>
    %277 = arith.mulf %258, %276 : vector<2x256xf32>
    %278 = vector.broadcast %275 : vector<1x256xf32> to vector<2x256xf32>
    %279 = arith.addf %277, %278 : vector<2x256xf32>
    %c0_247 = arith.constant 0 : index
    %c0_248 = arith.constant 0 : index
    %280 = vector.load %arg17[%c0_247, %c0_248] : memref<2x16xf32, #tpu.memory_space<vmem>>, vector<2x16xf32>
    %c0_249 = arith.constant 0 : index
    %c0_250 = arith.constant 0 : index
    %281 = vector.load %arg18[%c0_249, %c0_250] : memref<16x256xf32, #tpu.memory_space<vmem>>, vector<16x256xf32>
    %cst_251 = arith.constant dense<0.000000e+00> : vector<2x256xf32>
    %282 = tpu.matmul %280, %281, %cst_251 {dimension_numbers = #tpu.dot_dimension_numbers<[1], [0], [0], [1], [0, 0, 1, 1], [], []>} : vector<2x16xf32>, vector<16x256xf32>, vector<2x256xf32> -> vector<2x256xf32>
    %c0_252 = arith.constant 0 : index
    %c0_253 = arith.constant 0 : index
    %283 = vector.load %arg19[%c0_252, %c0_253] : memref<1x256xf32, #tpu.memory_space<vmem>>, vector<1x256xf32>
    %284 = vector.broadcast %283 : vector<1x256xf32> to vector<2x256xf32>
    %285 = arith.addf %282, %284 : vector<2x256xf32>
    %c0_254 = arith.constant 0 : index
    %c0_255 = arith.constant 0 : index
    %286 = vector.load %arg20[%c0_254, %c0_255] : memref<1x256xf32, #tpu.memory_space<vmem>>, vector<1x256xf32>
    %c0_256 = arith.constant 0 : index
    %c0_257 = arith.constant 0 : index
    %287 = vector.load %arg21[%c0_256, %c0_257] : memref<1x256xf32, #tpu.memory_space<vmem>>, vector<1x256xf32>
    %cst_258 = arith.constant 0.000000e+00 : f32
    %288 = vector.broadcast %cst_258 : f32 to vector<2x256xf32>
    %289 = arith.cmpf ogt, %285, %288 : vector<2x256xf32>
    %cst_259 = arith.constant 2.000000e-01 : f32
    %290 = vector.broadcast %cst_259 : f32 to vector<2x256xf32>
    %291 = arith.mulf %290, %285 : vector<2x256xf32>
    %292 = arith.select %289, %285, %291 : vector<2x256xi1>, vector<2x256xf32>
    %cst_260 = arith.constant dense<0.000000e+00> : vector<256xf32>
    %293 = vector.multi_reduction <add>, %292, %cst_260 [0] : vector<2x256xf32> to vector<256xf32>
    %294 = vector.shape_cast %293 : vector<256xf32> to vector<1x256xf32>
    %cst_261 = arith.constant 5.000000e-01 : f32
    %295 = vector.broadcast %cst_261 : f32 to vector<1x256xf32>
    %296 = arith.mulf %294, %295 : vector<1x256xf32>
    %297 = arith.mulf %292, %292 : vector<2x256xf32>
    %cst_262 = arith.constant dense<0.000000e+00> : vector<256xf32>
    %298 = vector.multi_reduction <add>, %297, %cst_262 [0] : vector<2x256xf32> to vector<256xf32>
    %299 = vector.shape_cast %298 : vector<256xf32> to vector<1x256xf32>
    %cst_263 = arith.constant 5.000000e-01 : f32
    %300 = vector.broadcast %cst_263 : f32 to vector<1x256xf32>
    %301 = arith.mulf %299, %300 : vector<1x256xf32>
    %302 = arith.mulf %296, %296 : vector<1x256xf32>
    %303 = arith.subf %301, %302 : vector<1x256xf32>
    %cst_264 = arith.constant 9.99999974E-6 : f32
    %304 = vector.broadcast %cst_264 : f32 to vector<1x256xf32>
    %305 = arith.addf %303, %304 : vector<1x256xf32>
    %306 = math.rsqrt %305 : vector<1x256xf32>
    %307 = arith.mulf %286, %306 : vector<1x256xf32>
    %308 = arith.mulf %296, %307 : vector<1x256xf32>
    %309 = arith.subf %287, %308 : vector<1x256xf32>
    %310 = vector.broadcast %307 : vector<1x256xf32> to vector<2x256xf32>
    %311 = arith.mulf %292, %310 : vector<2x256xf32>
    %312 = vector.broadcast %309 : vector<1x256xf32> to vector<2x256xf32>
    %313 = arith.addf %311, %312 : vector<2x256xf32>
    %c0_265 = arith.constant 0 : index
    %c0_266 = arith.constant 0 : index
    %314 = vector.load %arg22[%c0_265, %c0_266] : memref<512x512xf32, #tpu.memory_space<vmem>>, vector<256x512xf32>
    %cst_267 = arith.constant dense<0.000000e+00> : vector<2x512xf32>
    %315 = tpu.matmul %279, %314, %cst_267 {dimension_numbers = #tpu.dot_dimension_numbers<[1], [0], [0], [1], [0, 0, 1, 1], [], []>} : vector<2x256xf32>, vector<256x512xf32>, vector<2x512xf32> -> vector<2x512xf32>
    %c256 = arith.constant 256 : index
    %c0_268 = arith.constant 0 : index
    %316 = vector.load %arg22[%c256, %c0_268] : memref<512x512xf32, #tpu.memory_space<vmem>>, vector<256x512xf32>
    %cst_269 = arith.constant dense<0.000000e+00> : vector<2x512xf32>
    %317 = tpu.matmul %313, %316, %cst_269 {dimension_numbers = #tpu.dot_dimension_numbers<[1], [0], [0], [1], [0, 0, 1, 1], [], []>} : vector<2x256xf32>, vector<256x512xf32>, vector<2x512xf32> -> vector<2x512xf32>
    %318 = arith.addf %315, %317 : vector<2x512xf32>
    %c0_270 = arith.constant 0 : index
    %c0_271 = arith.constant 0 : index
    %319 = vector.load %arg23[%c0_270, %c0_271] : memref<1x512xf32, #tpu.memory_space<vmem>>, vector<1x512xf32>
    %320 = vector.broadcast %319 : vector<1x512xf32> to vector<2x512xf32>
    %321 = arith.addf %318, %320 : vector<2x512xf32>
    %c0_272 = arith.constant 0 : index
    %c0_273 = arith.constant 0 : index
    %322 = vector.load %arg24[%c0_272, %c0_273] : memref<1x512xf32, #tpu.memory_space<vmem>>, vector<1x512xf32>
    %c0_274 = arith.constant 0 : index
    %c0_275 = arith.constant 0 : index
    %323 = vector.load %arg25[%c0_274, %c0_275] : memref<1x512xf32, #tpu.memory_space<vmem>>, vector<1x512xf32>
    %cst_276 = arith.constant 0.000000e+00 : f32
    %324 = vector.broadcast %cst_276 : f32 to vector<2x512xf32>
    %325 = arith.cmpf ogt, %321, %324 : vector<2x512xf32>
    %cst_277 = arith.constant 2.000000e-01 : f32
    %326 = vector.broadcast %cst_277 : f32 to vector<2x512xf32>
    %327 = arith.mulf %326, %321 : vector<2x512xf32>
    %328 = arith.select %325, %321, %327 : vector<2x512xi1>, vector<2x512xf32>
    %cst_278 = arith.constant dense<0.000000e+00> : vector<512xf32>
    %329 = vector.multi_reduction <add>, %328, %cst_278 [0] : vector<2x512xf32> to vector<512xf32>
    %330 = vector.shape_cast %329 : vector<512xf32> to vector<1x512xf32>
    %cst_279 = arith.constant 5.000000e-01 : f32
    %331 = vector.broadcast %cst_279 : f32 to vector<1x512xf32>
    %332 = arith.mulf %330, %331 : vector<1x512xf32>
    %333 = arith.mulf %328, %328 : vector<2x512xf32>
    %cst_280 = arith.constant dense<0.000000e+00> : vector<512xf32>
    %334 = vector.multi_reduction <add>, %333, %cst_280 [0] : vector<2x512xf32> to vector<512xf32>
    %335 = vector.shape_cast %334 : vector<512xf32> to vector<1x512xf32>
    %cst_281 = arith.constant 5.000000e-01 : f32
    %336 = vector.broadcast %cst_281 : f32 to vector<1x512xf32>
    %337 = arith.mulf %335, %336 : vector<1x512xf32>
    %338 = arith.mulf %332, %332 : vector<1x512xf32>
    %339 = arith.subf %337, %338 : vector<1x512xf32>
    %cst_282 = arith.constant 9.99999974E-6 : f32
    %340 = vector.broadcast %cst_282 : f32 to vector<1x512xf32>
    %341 = arith.addf %339, %340 : vector<1x512xf32>
    %342 = math.rsqrt %341 : vector<1x512xf32>
    %343 = arith.mulf %322, %342 : vector<1x512xf32>
    %344 = arith.mulf %332, %343 : vector<1x512xf32>
    %345 = arith.subf %323, %344 : vector<1x512xf32>
    %346 = vector.broadcast %343 : vector<1x512xf32> to vector<2x512xf32>
    %347 = arith.mulf %328, %346 : vector<2x512xf32>
    %348 = vector.broadcast %345 : vector<1x512xf32> to vector<2x512xf32>
    %349 = arith.addf %347, %348 : vector<2x512xf32>
    %c0_283 = arith.constant 0 : index
    %c0_284 = arith.constant 0 : index
    %350 = vector.load %arg26[%c0_283, %c0_284] : memref<1x512xf32, #tpu.memory_space<vmem>>, vector<1x512xf32>
    %351 = vector.broadcast %350 : vector<1x512xf32> to vector<2x512xf32>
    %352 = arith.mulf %349, %351 : vector<2x512xf32>
    %cst_285 = arith.constant dense<0.000000e+00> : vector<2xf32>
    %353 = vector.multi_reduction <add>, %352, %cst_285 [1] : vector<2x512xf32> to vector<2xf32>
    %354 = vector.shape_cast %353 : vector<2xf32> to vector<2x1xf32>
    %c0_286 = arith.constant 0 : index
    %c0_287 = arith.constant 0 : index
    %355 = vector.load %arg27[%c0_286, %c0_287] : memref<1x1xf32, #tpu.memory_space<vmem>>, vector<1x1xf32>
    %356 = vector.broadcast %355 : vector<1x1xf32> to vector<2x1xf32>
    %357 = arith.addf %354, %356 : vector<2x1xf32>
    %cst_288 = arith.constant 0.000000e+00 : f32
    %358 = vector.broadcast %cst_288 : f32 to vector<2x1xf32>
    %359 = arith.subf %358, %357 : vector<2x1xf32>
    %360 = math.exp %359 : vector<2x1xf32>
    %cst_289 = arith.constant 1.000000e+00 : f32
    %361 = vector.broadcast %cst_289 : f32 to vector<2x1xf32>
    %362 = arith.addf %361, %360 : vector<2x1xf32>
    %cst_290 = arith.constant 1.000000e+00 : f32
    %363 = vector.broadcast %cst_290 : f32 to vector<2x1xf32>
    %364 = arith.divf %363, %362 : vector<2x1xf32>
    %c0_291 = arith.constant 0 : index
    %c0_292 = arith.constant 0 : index
    %365 = vector.load %arg28[%c0_291, %c0_292] : memref<2x1xf32, #tpu.memory_space<vmem>>, vector<2x1xf32>
    tpu.vector_store %arg28[%c0_291, %c0_292], %364 {strides = array<i32>} : memref<2x1xf32, #tpu.memory_space<vmem>>, vector<2x1xf32>,
    return
  }
  func.func @transform_0(%arg0: i32) -> (i32, i32) {
    %c0_i32 = arith.constant 0 : i32
    %c0_i32_0 = arith.constant 0 : i32
    %c0_i32_1 = arith.constant 0 : i32
    return %c0_i32, %c0_i32_0 : i32, i32
  }
  func.func @transform_1(%arg0: i32) -> (i32, i32, i32) {
    %c0_i32 = arith.constant 0 : i32
    %c0_i32_0 = arith.constant 0 : i32
    %c0_i32_1 = arith.constant 0 : i32
    %c0_i32_2 = arith.constant 0 : i32
    return %c0_i32, %c0_i32_0, %c0_i32_1 : i32, i32, i32
  }
  func.func @transform_2(%arg0: i32) -> (i32, i32, i32) {
    %c0_i32 = arith.constant 0 : i32
    %c0_i32_0 = arith.constant 0 : i32
    %c0_i32_1 = arith.constant 0 : i32
    %c0_i32_2 = arith.constant 0 : i32
    return %c0_i32, %c0_i32_0, %c0_i32_1 : i32, i32, i32
  }
  func.func @transform_3(%arg0: i32) -> (i32, i32) {
    %c0_i32 = arith.constant 0 : i32
    %c0_i32_0 = arith.constant 0 : i32
    %c0_i32_1 = arith.constant 0 : i32
    return %c0_i32, %c0_i32_0 : i32, i32
  }
  func.func @transform_4(%arg0: i32) -> (i32, i32) {
    %c0_i32 = arith.constant 0 : i32
    %c0_i32_0 = arith.constant 0 : i32
    %c0_i32_1 = arith.constant 0 : i32
    return %c0_i32, %c0_i32_0 : i32, i32
  }
  func.func @transform_5(%arg0: i32) -> (i32, i32) {
    %c0_i32 = arith.constant 0 : i32
    %c0_i32_0 = arith.constant 0 : i32
    %c0_i32_1 = arith.constant 0 : i32
    return %c0_i32, %c0_i32_0 : i32, i32
  }
  func.func @transform_6(%arg0: i32) -> (i32, i32, i32) {
    %c0_i32 = arith.constant 0 : i32
    %c0_i32_0 = arith.constant 0 : i32
    %c0_i32_1 = arith.constant 0 : i32
    %c0_i32_2 = arith.constant 0 : i32
    return %c0_i32, %c0_i32_0, %c0_i32_1 : i32, i32, i32
  }
  func.func @transform_7(%arg0: i32) -> (i32, i32, i32) {
    %c0_i32 = arith.constant 0 : i32
    %c0_i32_0 = arith.constant 0 : i32
    %c0_i32_1 = arith.constant 0 : i32
    %c0_i32_2 = arith.constant 0 : i32
    return %c0_i32, %c0_i32_0, %c0_i32_1 : i32, i32, i32
  }
  func.func @transform_8(%arg0: i32) -> (i32, i32) {
    %c0_i32 = arith.constant 0 : i32
    %c0_i32_0 = arith.constant 0 : i32
    %c0_i32_1 = arith.constant 0 : i32
    return %c0_i32, %c0_i32_0 : i32, i32
  }
  func.func @transform_9(%arg0: i32) -> (i32, i32) {
    %c0_i32 = arith.constant 0 : i32
    %c0_i32_0 = arith.constant 0 : i32
    %c0_i32_1 = arith.constant 0 : i32
    return %c0_i32, %c0_i32_0 : i32, i32
  }
  func.func @transform_10(%arg0: i32) -> (i32, i32) {
    %c0_i32 = arith.constant 0 : i32
    %c0_i32_0 = arith.constant 0 : i32
    %c0_i32_1 = arith.constant 0 : i32
    return %c0_i32, %c0_i32_0 : i32, i32
  }
  func.func @transform_11(%arg0: i32) -> (i32, i32, i32) {
    %c0_i32 = arith.constant 0 : i32
    %c0_i32_0 = arith.constant 0 : i32
    %c0_i32_1 = arith.constant 0 : i32
    %c0_i32_2 = arith.constant 0 : i32
    return %c0_i32, %c0_i32_0, %c0_i32_1 : i32, i32, i32
  }
  func.func @transform_12(%arg0: i32) -> (i32, i32, i32) {
    %c0_i32 = arith.constant 0 : i32
    %c0_i32_0 = arith.constant 0 : i32
    %c0_i32_1 = arith.constant 0 : i32
    %c0_i32_2 = arith.constant 0 : i32
    return %c0_i32, %c0_i32_0, %c0_i32_1 : i32, i32, i32
  }
  func.func @transform_13(%arg0: i32) -> (i32, i32) {
    %c0_i32 = arith.constant 0 : i32
    %c0_i32_0 = arith.constant 0 : i32
    %c0_i32_1 = arith.constant 0 : i32
    return %c0_i32, %c0_i32_0 : i32, i32
  }
  func.func @transform_14(%arg0: i32) -> (i32, i32) {
    %c0_i32 = arith.constant 0 : i32
    %c0_i32_0 = arith.constant 0 : i32
    %c0_i32_1 = arith.constant 0 : i32
    return %c0_i32, %c0_i32_0 : i32, i32
  }
  func.func @transform_15(%arg0: i32) -> (i32, i32) {
    %c0_i32 = arith.constant 0 : i32
    %c0_i32_0 = arith.constant 0 : i32
    %c0_i32_1 = arith.constant 0 : i32
    return %c0_i32, %c0_i32_0 : i32, i32
  }
  func.func @transform_16(%arg0: i32) -> (i32, i32) {
    %c0_i32 = arith.constant 0 : i32
    %c0_i32_0 = arith.constant 0 : i32
    %c0_i32_1 = arith.constant 0 : i32
    return %c0_i32, %c0_i32_0 : i32, i32
  }
  func.func @transform_17(%arg0: i32) -> (i32, i32) {
    %c0_i32 = arith.constant 0 : i32
    %c0_i32_0 = arith.constant 0 : i32
    %c0_i32_1 = arith.constant 0 : i32
    return %c0_i32, %c0_i32_0 : i32, i32
  }
  func.func @transform_18(%arg0: i32) -> (i32, i32) {
    %c0_i32 = arith.constant 0 : i32
    %c0_i32_0 = arith.constant 0 : i32
    %c0_i32_1 = arith.constant 0 : i32
    return %c0_i32, %c0_i32_0 : i32, i32
  }
  func.func @transform_19(%arg0: i32) -> (i32, i32) {
    %c0_i32 = arith.constant 0 : i32
    %c0_i32_0 = arith.constant 0 : i32
    %c0_i32_1 = arith.constant 0 : i32
    return %c0_i32, %c0_i32_0 : i32, i32
  }
  func.func @transform_20(%arg0: i32) -> (i32, i32) {
    %c0_i32 = arith.constant 0 : i32
    %c0_i32_0 = arith.constant 0 : i32
    %c0_i32_1 = arith.constant 0 : i32
    return %c0_i32, %c0_i32_0 : i32, i32
  }
  func.func @transform_21(%arg0: i32) -> (i32, i32) {
    %c0_i32 = arith.constant 0 : i32
    %c0_i32_0 = arith.constant 0 : i32
    %c0_i32_1 = arith.constant 0 : i32
    return %c0_i32, %c0_i32_0 : i32, i32
  }
  func.func @transform_22(%arg0: i32) -> (i32, i32) {
    %c0_i32 = arith.constant 0 : i32
    %c0_i32_0 = arith.constant 0 : i32
    %c0_i32_1 = arith.constant 0 : i32
    return %c0_i32, %c0_i32_0 : i32, i32
  }
  func.func @transform_23(%arg0: i32) -> (i32, i32) {
    %c0_i32 = arith.constant 0 : i32
    %c0_i32_0 = arith.constant 0 : i32
    %c0_i32_1 = arith.constant 0 : i32
    return %c0_i32, %c0_i32_0 : i32, i32
  }
  func.func @transform_24(%arg0: i32) -> (i32, i32) {
    %c0_i32 = arith.constant 0 : i32
    %c0_i32_0 = arith.constant 0 : i32
    %c0_i32_1 = arith.constant 0 : i32
    return %c0_i32, %c0_i32_0 : i32, i32
  }
  func.func @transform_25(%arg0: i32) -> (i32, i32) {
    %c0_i32 = arith.constant 0 : i32
    %c0_i32_0 = arith.constant 0 : i32
    %c0_i32_1 = arith.constant 0 : i32
    return %c0_i32, %c0_i32_0 : i32, i32
  }
  func.func @transform_26(%arg0: i32) -> (i32, i32) {
    %c0_i32 = arith.constant 0 : i32
    %c0_i32_0 = arith.constant 0 : i32
    %c0_i32_1 = arith.constant 0 : i32
    return %c0_i32, %c0_i32_0 : i32, i32
  }
  func.func @transform_27(%arg0: i32) -> (i32, i32) {
    %c0_i32 = arith.constant 0 : i32
    %c0_i32_0 = arith.constant 0 : i32
    %c0_i32_1 = arith.constant 0 : i32
    return %c0_i32, %c0_i32_0 : i32, i32
  }
}

</mosaic_0001>

<llo_original>
// kernel: discriminator_forward.1
$region0: #{discriminator_forward.1}
  #allocation0 [shape = 'u32[]', space=smem, size = 0x4, offset = 0x4, fixed_abs, tag = 'smem constant byte address 0x4 - core index']
  #allocation1 [shape = 'u32[144,128]{1,0:T(1,128)}', space=vmem, size = 0x12000, scoped, tag = 'internal scratch']
  #allocation2 [shape = 'f32[1,1]{1,0:T(1,128)S(1)}', space=vmem, size = 0x200, scoped, tag = 'scoped memory for discriminator_forward.1']
  %s0 = inlined_call_operand.vmem [shape: f32[128,4], index: 0, kind: input, shape index: {}]
  %s1 = inlined_call_operand.hbm [shape: f32[9,32,128], index: 1, kind: input, shape index: {}]
  %s2 = inlined_call_operand.hbm [shape: f32[9,4,64], index: 2, kind: input, shape index: {}]
  %s3 = inlined_call_operand.hbm [shape: f32[1,64], index: 3, kind: input, shape index: {}]
  %s4 = inlined_call_operand.hbm [shape: f32[1,64], index: 4, kind: input, shape index: {}]
  %s5 = inlined_call_operand.hbm [shape: f32[1,64], index: 5, kind: input, shape index: {}]
  %s6 = inlined_call_operand.hbm [shape: f32[9,8,32], index: 6, kind: input, shape index: {}]
  %s7 = inlined_call_operand.hbm [shape: f32[9,64,128], index: 7, kind: input, shape index: {}]
  %s8 = inlined_call_operand.hbm [shape: f32[1,128], index: 8, kind: input, shape index: {}]
  %s9 = inlined_call_operand.hbm [shape: f32[1,128], index: 9, kind: input, shape index: {}]
  %s10 = inlined_call_operand.hbm [shape: f32[1,128], index: 10, kind: input, shape index: {}]
  %s11 = inlined_call_operand.vmem [shape: f32[9,2,8], index: 11, kind: input, shape index: {}]
  %s12 = inlined_call_operand.hbm [shape: f32[9,128,256], index: 12, kind: input, shape index: {}]
  %s13 = inlined_call_operand.hbm [shape: f32[1,256], index: 13, kind: input, shape index: {}]
  %s14 = inlined_call_operand.hbm [shape: f32[1,256], index: 14, kind: input, shape index: {}]
  %s15 = inlined_call_operand.hbm [shape: f32[1,256], index: 15, kind: input, shape index: {}]
  %s16 = inlined_call_operand.hbm [shape: f32[2,16], index: 16, kind: input, shape index: {}]
  %s17 = inlined_call_operand.hbm [shape: f32[16,256], index: 17, kind: input, shape index: {}]
  %s18 = inlined_call_operand.hbm [shape: f32[1,256], index: 18, kind: input, shape index: {}]
  %s19 = inlined_call_operand.hbm [shape: f32[1,256], index: 19, kind: input, shape index: {}]
  %s20 = inlined_call_operand.hbm [shape: f32[1,256], index: 20, kind: input, shape index: {}]
  %s21 = inlined_call_operand.hbm [shape: f32[512,512], index: 21, kind: input, shape index: {}]
  %s22 = inlined_call_operand.hbm [shape: f32[1,512], index: 22, kind: input, shape index: {}]
  %s23 = inlined_call_operand.hbm [shape: f32[1,512], index: 23, kind: input, shape index: {}]
  %s24 = inlined_call_operand.hbm [shape: f32[1,512], index: 24, kind: input, shape index: {}]
  %s25 = inlined_call_operand.hbm [shape: f32[1,512], index: 25, kind: input, shape index: {}]
  %s26 = inlined_call_operand.<no memory space> [shape: f32[1,1], index: 26, kind: input, shape index: {}]
  %s27 = inlined_call_operand.vmem [shape: f32[2,1], index: 27, kind: output, shape index: {}]
  %s28 = sld [smem:[#allocation0]]
  $region214: #{discriminator_forward.1} parent=0
    _
  %s30 = ssub.s32 1, %s28
  %s31 = scalar_select 0, %s30, %s28
  %v32 = vstv %s26
  %33 = vst [vmem:[#allocation2] sm:$0x1] %v32
  $region1: #{discriminator_forward.1} parent=0
    #allocation3 [shape = 'u8[147456]{0}', space=vmem, size = 0x24000, scoped, tag = 'input window, operand 1, single buffered']
    #allocation4 [shape = 's32[1]{0}', space=sflag, size = 0x4, scoped, tag = 'scoped memory for discriminator_forward.1']
    #allocation5 [shape = 'u8[18432]{0}', space=vmem, size = 0x4800, scoped, tag = 'input window, operand 2, single buffered']
    #allocation6 [shape = 's32[1]{0}', space=sflag, size = 0x4, scoped, tag = 'scoped memory for discriminator_forward.1']
    #allocation7 [shape = 'u8[512]{0}', space=vmem, size = 0x400, scoped, tag = 'input window, operand 3, single buffered']
    #allocation8 [shape = 'u8[512]{0}', space=vmem, size = 0x400, scoped, tag = 'input window, operand 4, single buffered']
    #allocation9 [shape = 's32[1]{0}', space=sflag, size = 0x4, scoped, tag = 'scoped memory for discriminator_forward.1']
    #allocation10 [shape = 'u8[512]{0}', space=vmem, size = 0x400, scoped, tag = 'input window, operand 5, single buffered']
    #allocation11 [shape = 'u8[36864]{0}', space=vmem, size = 0x9000, scoped, tag = 'input window, operand 6, single buffered']
    #allocation12 [shape = 's32[1]{0}', space=sflag, size = 0x4, scoped, tag = 'scoped memory for discriminator_forward.1']
    #allocation13 [shape = 'u8[294912]{0}', space=vmem, size = 0x48000, scoped, tag = 'input window, operand 7, single buffered']
    #allocation14 [shape = 'u8[512]{0}', space=vmem, size = 0x400, scoped, tag = 'input window, operand 8, single buffered']
    #allocation15 [shape = 's32[1]{0}', space=sflag, size = 0x4, scoped, tag = 'scoped memory for discriminator_forward.1']
    #allocation16 [shape = 'u8[512]{0}', space=vmem, size = 0x400, scoped, tag = 'input window, operand 9, single buffered']
    #allocation17 [shape = 'u8[512]{0}', space=vmem, size = 0x400, scoped, tag = 'input window, operand 10, single buffered']
    #allocation18 [shape = 's32[1]{0}', space=sflag, size = 0x4, scoped, tag = 'scoped memory for discriminator_forward.1']
    #allocation19 [shape = 'u8[1179648]{0}', space=vmem, size = 0x120000, scoped, tag = 'input window, operand 12, single buffered']
    #allocation20 [shape = 'u8[1024]{0}', space=vmem, size = 0x400, scoped, tag = 'input window, operand 13, single buffered']
    #allocation21 [shape = 's32[1]{0}', space=sflag, size = 0x4, scoped, tag = 'scoped memory for discriminator_forward.1']
    #allocation22 [shape = 'u8[1024]{0}', space=vmem, size = 0x400, scoped, tag = 'input window, operand 14, single buffered']
    #allocation23 [shape = 'u8[1024]{0}', space=vmem, size = 0x400, scoped, tag = 'input window, operand 15, single buffered']
    #allocation24 [shape = 's32[1]{0}', space=sflag, size = 0x4, scoped, tag = 'scoped memory for discriminator_forward.1']
    #allocation25 [shape = 'u8[1024]{0}', space=vmem, size = 0x400, scoped, tag = 'input window, operand 16, single buffered']
    #allocation26 [shape = 'u8[16384]{0}', space=vmem, size = 0x4000, scoped, tag = 'input window, operand 17, single buffered']
    #allocation27 [shape = 's32[1]{0}', space=sflag, size = 0x4, scoped, tag = 'scoped memory for discriminator_forward.1']
    #allocation28 [shape = 'u8[1024]{0}', space=vmem, size = 0x400, scoped, tag = 'input window, operand 18, single buffered']
    #allocation29 [shape = 'u8[1024]{0}', space=vmem, size = 0x400, scoped, tag = 'input window, operand 19, single buffered']
    #allocation30 [shape = 's32[1]{0}', space=sflag, size = 0x4, scoped, tag = 'scoped memory for discriminator_forward.1']
    #allocation31 [shape = 'u8[1024]{0}', space=vmem, size = 0x400, scoped, tag = 'input window, operand 20, single buffered']
    #allocation32 [shape = 'u8[1048576]{0}', space=vmem, size = 0x100000, scoped, tag = 'input window, operand 21, single buffered']
    #allocation33 [shape = 's32[1]{0}', space=sflag, size = 0x4, scoped, tag = 'scoped memory for discriminator_forward.1']
    #allocation34 [shape = 'u8[2048]{0}', space=vmem, size = 0x800, scoped, tag = 'input window, operand 22, single buffered']
    #allocation35 [shape = 'u8[2048]{0}', space=vmem, size = 0x800, scoped, tag = 'input window, operand 23, single buffered']
    #allocation36 [shape = 's32[1]{0}', space=sflag, size = 0x4, scoped, tag = 'scoped memory for discriminator_forward.1']
    #allocation37 [shape = 'u8[2048]{0}', space=vmem, size = 0x800, scoped, tag = 'input window, operand 24, single buffered']
    #allocation38 [shape = 'u8[2048]{0}', space=vmem, size = 0x800, scoped, tag = 'input window, operand 25, single buffered']
    #allocation39 [shape = 's32[1]{0}', space=sflag, size = 0x4, scoped, tag = 'scoped memory for discriminator_forward.1']
    %34 = vsyncpa [#allocation4], 0
    %35 = vsyncpa [#allocation6], 0
    %36 = vsyncpa [#allocation9], 0
    %37 = vsyncpa [#allocation12], 0
    %38 = vsyncpa [#allocation15], 0
    %39 = vsyncpa [#allocation18], 0
    %40 = vsyncpa [#allocation21], 0
    %41 = vsyncpa [#allocation24], 0
    %42 = vsyncpa [#allocation27], 0
    %43 = vsyncpa [#allocation30], 0
    %44 = vsyncpa [#allocation33], 0
    %45 = vsyncpa [#allocation36], 0
    %46 = vsyncpa [#allocation39], 0
    // Predicated region
    $region2: #{discriminator_forward.1} parent=1 // pred_check
      _
    $region3: #{discriminator_forward.1} parent=1 // pred_check_branch
      %48 = sbr.rel (0) target = $region5
    $region4: #{discriminator_forward.1} parent=1 // pred_region
      _
    $region5: #{discriminator_forward.1} parent=1 // pred_fallthru
      _
    // Predicated region
    $region6: #{discriminator_forward.1} parent=1 // pred_check
      _
    $region7: #{discriminator_forward.1} parent=1 // pred_check_branch
      %50 = sbr.rel (0) target = $region9
    $region8: #{discriminator_forward.1} parent=1 // pred_region
      %s52 = ssub.s32 4608, 4608
      %53 = vsyncadd [#allocation4], %s52
      %s54 = sshll.u32 [#allocation3], 4
      %s55 = int_to_ptr.vmem [resolvable:$true] %s54
      %60 = dma.hbm_to_vmem [thread:$0]  %s1, 4608, %s55, [#allocation4], 128, 128, 8
    $region9: #{discriminator_forward.1} parent=1 // pred_fallthru
      _
    // Predicated region
    $region10: #{discriminator_forward.1} parent=1 // pred_check
      _
    $region11: #{discriminator_forward.1} parent=1 // pred_check_branch
      %62 = sbr.rel (0) target = $region13
    $region12: #{discriminator_forward.1} parent=1 // pred_region
      %s64 = ssub.s32 576, 576
      %65 = vsyncadd [#allocation6], %s64
      %s66 = sshll.u32 [#allocation5], 4
      %s67 = int_to_ptr.vmem [resolvable:$true] %s66
      %72 = dma.hbm_to_vmem [thread:$0]  %s2, 576, %s67, [#allocation6], 64, 64, 4
    $region13: #{discriminator_forward.1} parent=1 // pred_fallthru
      _
    // Predicated region
    $region14: #{discriminator_forward.1} parent=1 // pred_check
      _
    $region15: #{discriminator_forward.1} parent=1 // pred_check_branch
      %74 = sbr.rel (0) target = $region17
    $region16: #{discriminator_forward.1} parent=1 // pred_region
      %s76 = ssub.s32 16, 16
      %77 = vsyncadd [#allocation6], %s76
      %s79 = sshll.u32 [#allocation7], 4
      %s80 = int_to_ptr.vmem [resolvable:$true] %s79
      %82 = dma.hbm_to_vmem [thread:$0]  %s3, 16, %s80, [#allocation6]
    $region17: #{discriminator_forward.1} parent=1 // pred_fallthru
      _
    // Predicated region
    $region18: #{discriminator_forward.1} parent=1 // pred_check
      _
    $region19: #{discriminator_forward.1} parent=1 // pred_check_branch
      %84 = sbr.rel (0) target = $region21
    $region20: #{discriminator_forward.1} parent=1 // pred_region
      %s86 = ssub.s32 16, 16
      %87 = vsyncadd [#allocation9], %s86
      %s89 = sshll.u32 [#allocation8], 4
      %s90 = int_to_ptr.vmem [resolvable:$true] %s89
      %92 = dma.hbm_to_vmem [thread:$0]  %s4, 16, %s90, [#allocation9]
    $region21: #{discriminator_forward.1} parent=1 // pred_fallthru
      _
    // Predicated region
    $region22: #{discriminator_forward.1} parent=1 // pred_check
      _
    $region23: #{discriminator_forward.1} parent=1 // pred_check_branch
      %94 = sbr.rel (0) target = $region25
    $region24: #{discriminator_forward.1} parent=1 // pred_region
      %s96 = ssub.s32 16, 16
      %97 = vsyncadd [#allocation9], %s96
      %s99 = sshll.u32 [#allocation10], 4
      %s100 = int_to_ptr.vmem [resolvable:$true] %s99
      %102 = dma.hbm_to_vmem [thread:$0]  %s5, 16, %s100, [#allocation9]
    $region25: #{discriminator_forward.1} parent=1 // pred_fallthru
      _
    // Predicated region
    $region26: #{discriminator_forward.1} parent=1 // pred_check
      _
    $region27: #{discriminator_forward.1} parent=1 // pred_check_branch
      %104 = sbr.rel (0) target = $region29
    $region28: #{discriminator_forward.1} parent=1 // pred_region
      %s106 = ssub.s32 1152, 1152
      %107 = vsyncadd [#allocation12], %s106
      %s108 = sshll.u32 [#allocation11], 4
      %s109 = int_to_ptr.vmem [resolvable:$true] %s108
      %114 = dma.hbm_to_vmem [thread:$0]  %s6, 1152, %s109, [#allocation12], 128, 128, 8
    $region29: #{discriminator_forward.1} parent=1 // pred_fallthru
      _
    // Predicated region
    $region30: #{discriminator_forward.1} parent=1 // pred_check
      _
    $region31: #{discriminator_forward.1} parent=1 // pred_check_branch
      %116 = sbr.rel (0) target = $region33
    $region32: #{discriminator_forward.1} parent=1 // pred_region
      %s118 = ssub.s32 9216, 9216
      %119 = vsyncadd [#allocation12], %s118
      %s120 = sshll.u32 [#allocation13], 4
      %s121 = int_to_ptr.vmem [resolvable:$true] %s120
      %126 = dma.hbm_to_vmem [thread:$0]  %s7, 9216, %s121, [#allocation12], 128, 128, 8
    $region33: #{discriminator_forward.1} parent=1 // pred_fallthru
      _
    // Predicated region
    $region34: #{discriminator_forward.1} parent=1 // pred_check
      _
    $region35: #{discriminator_forward.1} parent=1 // pred_check_branch
      %128 = sbr.rel (0) target = $region37
    $region36: #{discriminator_forward.1} parent=1 // pred_region
      %s130 = ssub.s32 16, 16
      %131 = vsyncadd [#allocation15], %s130
      %s133 = sshll.u32 [#allocation14], 4
      %s134 = int_to_ptr.vmem [resolvable:$true] %s133
      %136 = dma.hbm_to_vmem [thread:$0]  %s8, 16, %s134, [#allocation15]
    $region37: #{discriminator_forward.1} parent=1 // pred_fallthru
      _
    // Predicated region
    $region38: #{discriminator_forward.1} parent=1 // pred_check
      _
    $region39: #{discriminator_forward.1} parent=1 // pred_check_branch
      %138 = sbr.rel (0) target = $region41
    $region40: #{discriminator_forward.1} parent=1 // pred_region
      %s140 = ssub.s32 16, 16
      %141 = vsyncadd [#allocation15], %s140
      %s143 = sshll.u32 [#allocation16], 4
      %s144 = int_to_ptr.vmem [resolvable:$true] %s143
      %146 = dma.hbm_to_vmem [thread:$0]  %s9, 16, %s144, [#allocation15]
    $region41: #{discriminator_forward.1} parent=1 // pred_fallthru
      _
    // Predicated region
    $region42: #{discriminator_forward.1} parent=1 // pred_check
      _
    $region43: #{discriminator_forward.1} parent=1 // pred_check_branch
      %148 = sbr.rel (0) target = $region45
    $region44: #{discriminator_forward.1} parent=1 // pred_region
      %s150 = ssub.s32 16, 16
      %151 = vsyncadd [#allocation18], %s150
      %s153 = sshll.u32 [#allocation17], 4
      %s154 = int_to_ptr.vmem [resolvable:$true] %s153
      %156 = dma.hbm_to_vmem [thread:$0]  %s10, 16, %s154, [#allocation18]
    $region45: #{discriminator_forward.1} parent=1 // pred_fallthru
      _
    // Predicated region
    $region46: #{discriminator_forward.1} parent=1 // pred_check
      _
    $region47: #{discriminator_forward.1} parent=1 // pred_check_branch
      %158 = sbr.rel (0) target = $region49
    $region48: #{discriminator_forward.1} parent=1 // pred_region
      _
    $region49: #{discriminator_forward.1} parent=1 // pred_fallthru
      _
    // Predicated region
    $region50: #{discriminator_forward.1} parent=1 // pred_check
      _
    $region51: #{discriminator_forward.1} parent=1 // pred_check_branch
      %160 = sbr.rel (0) target = $region53
    $region52: #{discriminator_forward.1} parent=1 // pred_region
      %s162 = ssub.s32 36864, 36864
      %163 = vsyncadd [#allocation18], %s162
      %s164 = sshll.u32 [#allocation19], 4
      %s165 = int_to_ptr.vmem [resolvable:$true] %s164
      %170 = dma.hbm_to_vmem [thread:$0]  %s12, 36864, %s165, [#allocation18], 256, 256, 16
    $region53: #{discriminator_forward.1} parent=1 // pred_fallthru
      _
    // Predicated region
    $region54: #{discriminator_forward.1} parent=1 // pred_check
      _
    $region55: #{discriminator_forward.1} parent=1 // pred_check_branch
      %172 = sbr.rel (0) target = $region57
    $region56: #{discriminator_forward.1} parent=1 // pred_region
      %s174 = ssub.s32 32, 32
      %175 = vsyncadd [#allocation21], %s174
      %s177 = sshll.u32 [#allocation20], 4
      %s178 = int_to_ptr.vmem [resolvable:$true] %s177
      %180 = dma.hbm_to_vmem [thread:$0]  %s13, 32, %s178, [#allocation21]
    $region57: #{discriminator_forward.1} parent=1 // pred_fallthru
      _
    // Predicated region
    $region58: #{discriminator_forward.1} parent=1 // pred_check
      _
    $region59: #{discriminator_forward.1} parent=1 // pred_check_branch
      %182 = sbr.rel (0) target = $region61
    $region60: #{discriminator_forward.1} parent=1 // pred_region
      %s184 = ssub.s32 32, 32
      %185 = vsyncadd [#allocation21], %s184
      %s187 = sshll.u32 [#allocation22], 4
      %s188 = int_to_ptr.vmem [resolvable:$true] %s187
      %190 = dma.hbm_to_vmem [thread:$0]  %s14, 32, %s188, [#allocation21]
    $region61: #{discriminator_forward.1} parent=1 // pred_fallthru
      _
    // Predicated region
    $region62: #{discriminator_forward.1} parent=1 // pred_check
      _
    $region63: #{discriminator_forward.1} parent=1 // pred_check_branch
      %192 = sbr.rel (0) target = $region65
    $region64: #{discriminator_forward.1} parent=1 // pred_region
      %s194 = ssub.s32 32, 32
      %195 = vsyncadd [#allocation24], %s194
      %s197 = sshll.u32 [#allocation23], 4
      %s198 = int_to_ptr.vmem [resolvable:$true] %s197
      %200 = dma.hbm_to_vmem [thread:$0]  %s15, 32, %s198, [#allocation24]
    $region65: #{discriminator_forward.1} parent=1 // pred_fallthru
      _
    // Predicated region
    $region66: #{discriminator_forward.1} parent=1 // pred_check
      _
    $region67: #{discriminator_forward.1} parent=1 // pred_check_branch
      %202 = sbr.rel (0) target = $region69
    $region68: #{discriminator_forward.1} parent=1 // pred_region
      %s204 = ssub.s32 32, 32
      %205 = vsyncadd [#allocation24], %s204
      %s207 = sshll.u32 [#allocation25], 4
      %s208 = int_to_ptr.vmem [resolvable:$true] %s207
      %210 = dma.hbm_to_vmem [thread:$0]  %s16, 32, %s208, [#allocation24]
    $region69: #{discriminator_forward.1} parent=1 // pred_fallthru
      _
    // Predicated region
    $region70: #{discriminator_forward.1} parent=1 // pred_check
      _
    $region71: #{discriminator_forward.1} parent=1 // pred_check_branch
      %212 = sbr.rel (0) target = $region73
    $region72: #{discriminator_forward.1} parent=1 // pred_region
      %s214 = ssub.s32 512, 512
      %215 = vsyncadd [#allocation27], %s214
      %s216 = sshll.u32 [#allocation26], 4
      %s217 = int_to_ptr.vmem [resolvable:$true] %s216
      %222 = dma.hbm_to_vmem [thread:$0]  %s17, 512, %s217, [#allocation27], 256, 256, 16
    $region73: #{discriminator_forward.1} parent=1 // pred_fallthru
      _
    // Predicated region
    $region74: #{discriminator_forward.1} parent=1 // pred_check
      _
    $region75: #{discriminator_forward.1} parent=1 // pred_check_branch
      %224 = sbr.rel (0) target = $region77
    $region76: #{discriminator_forward.1} parent=1 // pred_region
      %s226 = ssub.s32 32, 32
      %227 = vsyncadd [#allocation27], %s226
      %s229 = sshll.u32 [#allocation28], 4
      %s230 = int_to_ptr.vmem [resolvable:$true] %s229
      %232 = dma.hbm_to_vmem [thread:$0]  %s18, 32, %s230, [#allocation27]
    $region77: #{discriminator_forward.1} parent=1 // pred_fallthru
      _
    // Predicated region
    $region78: #{discriminator_forward.1} parent=1 // pred_check
      _
    $region79: #{discriminator_forward.1} parent=1 // pred_check_branch
      %234 = sbr.rel (0) target = $region81
    $region80: #{discriminator_forward.1} parent=1 // pred_region
      %s236 = ssub.s32 32, 32
      %237 = vsyncadd [#allocation30], %s236
      %s239 = sshll.u32 [#allocation29], 4
      %s240 = int_to_ptr.vmem [resolvable:$true] %s239
      %242 = dma.hbm_to_vmem [thread:$0]  %s19, 32, %s240, [#allocation30]
    $region81: #{discriminator_forward.1} parent=1 // pred_fallthru
      _
    // Predicated region
    $region82: #{discriminator_forward.1} parent=1 // pred_check
      _
    $region83: #{discriminator_forward.1} parent=1 // pred_check_branch
      %244 = sbr.rel (0) target = $region85
    $region84: #{discriminator_forward.1} parent=1 // pred_region
      %s246 = ssub.s32 32, 32
      %247 = vsyncadd [#allocation30], %s246
      %s249 = sshll.u32 [#allocation31], 4
      %s250 = int_to_ptr.vmem [resolvable:$true] %s249
      %252 = dma.hbm_to_vmem [thread:$0]  %s20, 32, %s250, [#allocation30]
    $region85: #{discriminator_forward.1} parent=1 // pred_fallthru
      _
    // Predicated region
    $region86: #{discriminator_forward.1} parent=1 // pred_check
      _
    $region87: #{discriminator_forward.1} parent=1 // pred_check_branch
      %254 = sbr.rel (0) target = $region89
    $region88: #{discriminator_forward.1} parent=1 // pred_region
      %s256 = ssub.s32 32768, 32768
      %257 = vsyncadd [#allocation33], %s256
      %s258 = sshll.u32 [#allocation32], 4
      %s259 = int_to_ptr.vmem [resolvable:$true] %s258
      %264 = dma.hbm_to_vmem [thread:$0]  %s21, 32768, %s259, [#allocation33], 512, 512, 32
    $region89: #{discriminator_forward.1} parent=1 // pred_fallthru
      _
    // Predicated region
    $region90: #{discriminator_forward.1} parent=1 // pred_check
      _
    $region91: #{discriminator_forward.1} parent=1 // pred_check_branch
      %266 = sbr.rel (0) target = $region93
    $region92: #{discriminator_forward.1} parent=1 // pred_region
      %s268 = ssub.s32 64, 64
      %269 = vsyncadd [#allocation33], %s268
      %s271 = sshll.u32 [#allocation34], 4
      %s272 = int_to_ptr.vmem [resolvable:$true] %s271
      %274 = dma.hbm_to_vmem [thread:$0]  %s22, 64, %s272, [#allocation33]
    $region93: #{discriminator_forward.1} parent=1 // pred_fallthru
      _
    // Predicated region
    $region94: #{discriminator_forward.1} parent=1 // pred_check
      _
    $region95: #{discriminator_forward.1} parent=1 // pred_check_branch
      %276 = sbr.rel (0) target = $region97
    $region96: #{discriminator_forward.1} parent=1 // pred_region
      %s278 = ssub.s32 64, 64
      %279 = vsyncadd [#allocation36], %s278
      %s281 = sshll.u32 [#allocation35], 4
      %s282 = int_to_ptr.vmem [resolvable:$true] %s281
      %284 = dma.hbm_to_vmem [thread:$0]  %s23, 64, %s282, [#allocation36]
    $region97: #{discriminator_forward.1} parent=1 // pred_fallthru
      _
    // Predicated region
    $region98: #{discriminator_forward.1} parent=1 // pred_check
      _
    $region99: #{discriminator_forward.1} parent=1 // pred_check_branch
      %286 = sbr.rel (0) target = $region101
    $region100: #{discriminator_forward.1} parent=1 // pred_region
      %s288 = ssub.s32 64, 64
      %289 = vsyncadd [#allocation36], %s288
      %s291 = sshll.u32 [#allocation37], 4
      %s292 = int_to_ptr.vmem [resolvable:$true] %s291
      %294 = dma.hbm_to_vmem [thread:$0]  %s24, 64, %s292, [#allocation36]
    $region101: #{discriminator_forward.1} parent=1 // pred_fallthru
      _
    // Predicated region
    $region102: #{discriminator_forward.1} parent=1 // pred_check
      _
    $region103: #{discriminator_forward.1} parent=1 // pred_check_branch
      %296 = sbr.rel (0) target = $region105
    $region104: #{discriminator_forward.1} parent=1 // pred_region
      %s298 = ssub.s32 64, 64
      %299 = vsyncadd [#allocation39], %s298
      %s301 = sshll.u32 [#allocation38], 4
      %s302 = int_to_ptr.vmem [resolvable:$true] %s301
      %304 = dma.hbm_to_vmem [thread:$0]  %s25, 64, %s302, [#allocation39]
    $region105: #{discriminator_forward.1} parent=1 // pred_fallthru
      _
    // Predicated region
    $region106: #{discriminator_forward.1} parent=1 // pred_check
      _
    $region107: #{discriminator_forward.1} parent=1 // pred_check_branch
      %306 = sbr.rel (0) target = $region109
    $region108: #{discriminator_forward.1} parent=1 // pred_region
      _
    $region109: #{discriminator_forward.1} parent=1 // pred_fallthru
      _
    // Predicated region
    $region110: #{discriminator_forward.1} parent=1 // pred_check
      _
    $region111: #{discriminator_forward.1} parent=1 // pred_check_branch
      %308 = sbr.rel (0) target = $region113
    $region112: #{discriminator_forward.1} parent=1 // pred_region
      %309 = dma.done [#allocation4], 4608
    $region113: #{discriminator_forward.1} parent=1 // pred_fallthru
      _
    // Predicated region
    $region114: #{discriminator_forward.1} parent=1 // pred_check
      _
    $region115: #{discriminator_forward.1} parent=1 // pred_check_branch
      %311 = sbr.rel (0) target = $region117
    $region116: #{discriminator_forward.1} parent=1 // pred_region
      %312 = dma.done [#allocation6], 576
    $region117: #{discriminator_forward.1} parent=1 // pred_fallthru
      _
    // Predicated region
    $region118: #{discriminator_forward.1} parent=1 // pred_check
      _
    $region119: #{discriminator_forward.1} parent=1 // pred_check_branch
      %314 = sbr.rel (0) target = $region121
    $region120: #{discriminator_forward.1} parent=1 // pred_region
      %315 = dma.done [#allocation6], 16
    $region121: #{discriminator_forward.1} parent=1 // pred_fallthru
      _
    // Predicated region
    $region122: #{discriminator_forward.1} parent=1 // pred_check
      _
    $region123: #{discriminator_forward.1} parent=1 // pred_check_branch
      %317 = sbr.rel (0) target = $region125
    $region124: #{discriminator_forward.1} parent=1 // pred_region
      %318 = dma.done [#allocation9], 16
    $region125: #{discriminator_forward.1} parent=1 // pred_fallthru
      _
    // Predicated region
    $region126: #{discriminator_forward.1} parent=1 // pred_check
      _
    $region127: #{discriminator_forward.1} parent=1 // pred_check_branch
      %320 = sbr.rel (0) target = $region129
    $region128: #{discriminator_forward.1} parent=1 // pred_region
      %321 = dma.done [#allocation9], 16
    $region129: #{discriminator_forward.1} parent=1 // pred_fallthru
      _
    // Predicated region
    $region130: #{discriminator_forward.1} parent=1 // pred_check
      _
    $region131: #{discriminator_forward.1} parent=1 // pred_check_branch
      %323 = sbr.rel (0) target = $region133
    $region132: #{discriminator_forward.1} parent=1 // pred_region
      %324 = dma.done [#allocation12], 1152
    $region133: #{discriminator_forward.1} parent=1 // pred_fallthru
      _
    // Predicated region
    $region134: #{discriminator_forward.1} parent=1 // pred_check
      _
    $region135: #{discriminator_forward.1} parent=1 // pred_check_branch
      %326 = sbr.rel (0) target = $region137
    $region136: #{discriminator_forward.1} parent=1 // pred_region
      %327 = dma.done [#allocation12], 9216
    $region137: #{discriminator_forward.1} parent=1 // pred_fallthru
      _
    // Predicated region
    $region138: #{discriminator_forward.1} parent=1 // pred_check
      _
    $region139: #{discriminator_forward.1} parent=1 // pred_check_branch
      %329 = sbr.rel (0) target = $region141
    $region140: #{discriminator_forward.1} parent=1 // pred_region
      %330 = dma.done [#allocation15], 16
    $region141: #{discriminator_forward.1} parent=1 // pred_fallthru
      _
    // Predicated region
    $region142: #{discriminator_forward.1} parent=1 // pred_check
      _
    $region143: #{discriminator_forward.1} parent=1 // pred_check_branch
      %332 = sbr.rel (0) target = $region145
    $region144: #{discriminator_forward.1} parent=1 // pred_region
      %333 = dma.done [#allocation15], 16
    $region145: #{discriminator_forward.1} parent=1 // pred_fallthru
      _
    // Predicated region
    $region146: #{discriminator_forward.1} parent=1 // pred_check
      _
    $region147: #{discriminator_forward.1} parent=1 // pred_check_branch
      %335 = sbr.rel (0) target = $region149
    $region148: #{discriminator_forward.1} parent=1 // pred_region
      %336 = dma.done [#allocation18], 16
    $region149: #{discriminator_forward.1} parent=1 // pred_fallthru
      _
    // Predicated region
    $region150: #{discriminator_forward.1} parent=1 // pred_check
      _
    $region151: #{discriminator_forward.1} parent=1 // pred_check_branch
      %338 = sbr.rel (0) target = $region153
    $region152: #{discriminator_forward.1} parent=1 // pred_region
      %339 = dma.done [#allocation18], 36864
    $region153: #{discriminator_forward.1} parent=1 // pred_fallthru
      _
    // Predicated region
    $region154: #{discriminator_forward.1} parent=1 // pred_check
      _
    $region155: #{discriminator_forward.1} parent=1 // pred_check_branch
      %341 = sbr.rel (0) target = $region157
    $region156: #{discriminator_forward.1} parent=1 // pred_region
      %342 = dma.done [#allocation21], 32
    $region157: #{discriminator_forward.1} parent=1 // pred_fallthru
      _
    // Predicated region
    $region158: #{discriminator_forward.1} parent=1 // pred_check
      _
    $region159: #{discriminator_forward.1} parent=1 // pred_check_branch
      %344 = sbr.rel (0) target = $region161
    $region160: #{discriminator_forward.1} parent=1 // pred_region
      %345 = dma.done [#allocation21], 32
    $region161: #{discriminator_forward.1} parent=1 // pred_fallthru
      _
    // Predicated region
    $region162: #{discriminator_forward.1} parent=1 // pred_check
      _
    $region163: #{discriminator_forward.1} parent=1 // pred_check_branch
      %347 = sbr.rel (0) target = $region165
    $region164: #{discriminator_forward.1} parent=1 // pred_region
      %348 = dma.done [#allocation24], 32
    $region165: #{discriminator_forward.1} parent=1 // pred_fallthru
      _
    // Predicated region
    $region166: #{discriminator_forward.1} parent=1 // pred_check
      _
    $region167: #{discriminator_forward.1} parent=1 // pred_check_branch
      %350 = sbr.rel (0) target = $region169
    $region168: #{discriminator_forward.1} parent=1 // pred_region
      %351 = dma.done [#allocation24], 32
    $region169: #{discriminator_forward.1} parent=1 // pred_fallthru
      _
    // Predicated region
    $region170: #{discriminator_forward.1} parent=1 // pred_check
      _
    $region171: #{discriminator_forward.1} parent=1 // pred_check_branch
      %353 = sbr.rel (0) target = $region173
    $region172: #{discriminator_forward.1} parent=1 // pred_region
      %354 = dma.done [#allocation27], 512
    $region173: #{discriminator_forward.1} parent=1 // pred_fallthru
      _
    // Predicated region
    $region174: #{discriminator_forward.1} parent=1 // pred_check
      _
    $region175: #{discriminator_forward.1} parent=1 // pred_check_branch
      %356 = sbr.rel (0) target = $region177
    $region176: #{discriminator_forward.1} parent=1 // pred_region
      %357 = dma.done [#allocation27], 32
    $region177: #{discriminator_forward.1} parent=1 // pred_fallthru
      _
    // Predicated region
    $region178: #{discriminator_forward.1} parent=1 // pred_check
      _
    $region179: #{discriminator_forward.1} parent=1 // pred_check_branch
      %359 = sbr.rel (0) target = $region181
    $region180: #{discriminator_forward.1} parent=1 // pred_region
      %360 = dma.done [#allocation30], 32
    $region181: #{discriminator_forward.1} parent=1 // pred_fallthru
      _
    // Predicated region
    $region182: #{discriminator_forward.1} parent=1 // pred_check
      _
    $region183: #{discriminator_forward.1} parent=1 // pred_check_branch
      %362 = sbr.rel (0) target = $region185
    $region184: #{discriminator_forward.1} parent=1 // pred_region
      %363 = dma.done [#allocation30], 32
    $region185: #{discriminator_forward.1} parent=1 // pred_fallthru
      _
    // Predicated region
    $region186: #{discriminator_forward.1} parent=1 // pred_check
      _
    $region187: #{discriminator_forward.1} parent=1 // pred_check_branch
      %365 = sbr.rel (0) target = $region189
    $region188: #{discriminator_forward.1} parent=1 // pred_region
      %366 = dma.done [#allocation33], 32768
    $region189: #{discriminator_forward.1} parent=1 // pred_fallthru
      _
    // Predicated region
    $region190: #{discriminator_forward.1} parent=1 // pred_check
      _
    $region191: #{discriminator_forward.1} parent=1 // pred_check_branch
      %368 = sbr.rel (0) target = $region193
    $region192: #{discriminator_forward.1} parent=1 // pred_region
      %369 = dma.done [#allocation33], 64
    $region193: #{discriminator_forward.1} parent=1 // pred_fallthru
      _
    // Predicated region
    $region194: #{discriminator_forward.1} parent=1 // pred_check
      _
    $region195: #{discriminator_forward.1} parent=1 // pred_check_branch
      %371 = sbr.rel (0) target = $region197
    $region196: #{discriminator_forward.1} parent=1 // pred_region
      %372 = dma.done [#allocation36], 64
    $region197: #{discriminator_forward.1} parent=1 // pred_fallthru
      _
    // Predicated region
    $region198: #{discriminator_forward.1} parent=1 // pred_check
      _
    $region199: #{discriminator_forward.1} parent=1 // pred_check_branch
      %374 = sbr.rel (0) target = $region201
    $region200: #{discriminator_forward.1} parent=1 // pred_region
      %375 = dma.done [#allocation36], 64
    $region201: #{discriminator_forward.1} parent=1 // pred_fallthru
      _
    // Predicated region
    $region202: #{discriminator_forward.1} parent=1 // pred_check
      _
    $region203: #{discriminator_forward.1} parent=1 // pred_check_branch
      %377 = sbr.rel (0) target = $region205
    $region204: #{discriminator_forward.1} parent=1 // pred_region
      %378 = dma.done [#allocation39], 64
    $region205: #{discriminator_forward.1} parent=1 // pred_fallthru
      _
    %v379 = vld [vmem:[%s0] sm:$0xff]
    %v380 = vld [vmem:[%s0 + $0x8] sm:$0xff]
    %v381 = vld [vmem:[%s0 + $0x10] sm:$0xff]
    %v382 = vld [vmem:[%s0 + $0x18] sm:$0xff]
    %v383 = vld [vmem:[%s0 + $0x20] sm:$0xff]
    %v384 = vld [vmem:[%s0 + $0x28] sm:$0xff]
    %v385 = vld [vmem:[%s0 + $0x30] sm:$0xff]
    %v386 = vld [vmem:[%s0 + $0x38] sm:$0xff]
    %v387 = vld [vmem:[%s0 + $0x40] sm:$0xff]
    %v388 = vld [vmem:[%s0 + $0x48] sm:$0xff]
    %v389 = vld [vmem:[%s0 + $0x50] sm:$0xff]
    %v390 = vld [vmem:[%s0 + $0x58] sm:$0xff]
    %v391 = vld [vmem:[%s0 + $0x60] sm:$0xff]
    %v392 = vld [vmem:[%s0 + $0x68] sm:$0xff]
    %v393 = vld [vmem:[%s0 + $0x70] sm:$0xff]
    %v394 = vld [vmem:[%s0 + $0x78] sm:$0xff]
    %v395 = vld [vmem:[#allocation7] sm:$0x1]
    %v396 = vld [vmem:[#allocation8] sm:$0x1]
    %v397 = vld [vmem:[#allocation10] sm:$0x1]
    %v398 = vld [vmem:[#allocation3] sm:$0xff]
    %v399 = vld [vmem:[#allocation3 + $0x8] sm:$0xff]
    %v400 = vld [vmem:[#allocation3 + $0x10] sm:$0xff]
    %v401 = vld [vmem:[#allocation3 + $0x18] sm:$0xff]
    %402 = vmatprep.subr.mxu0 0.0
    %403 = vmatpush1.msra.mxu0 %v379
    %404 = vmatprep.subr.mxu0 0.0
    %405 = vmatpush1.msra.mxu0 %v380
    %406 = vmatprep.subr.mxu0 0.0
    %407 = vmatpush1.msra.mxu0 %v381
    %408 = vmatprep.subr.mxu0 0.0
    %409 = vmatpush1.msra.mxu0 %v382
    %410 = vmatprep.subr.mxu0 0.0
    %411 = vmatpush1.msra.mxu0 %v383
    %412 = vmatprep.subr.mxu0 0.0
    %413 = vmatpush1.msra.mxu0 %v384
    %414 = vmatprep.subr.mxu0 0.0
    %415 = vmatpush1.msra.mxu0 %v385
    %416 = vmatprep.subr.mxu0 0.0
    %417 = vmatpush1.msra.mxu0 %v386
    %418 = vmatprep.subr.mxu0 0.0
    %419 = vmatpush1.msra.mxu0 %v387
    %420 = vmatprep.subr.mxu0 0.0
    %421 = vmatpush1.msra.mxu0 %v388
    %422 = vmatprep.subr.mxu0 0.0
    %423 = vmatpush1.msra.mxu0 %v389
    %424 = vmatprep.subr.mxu0 0.0
    %425 = vmatpush1.msra.mxu0 %v390
    %426 = vmatprep.subr.mxu0 0.0
    %427 = vmatpush1.msra.mxu0 %v391
    %428 = vmatprep.subr.mxu0 0.0
    %429 = vmatpush1.msra.mxu0 %v392
    %430 = vmatprep.subr.mxu0 0.0
    %431 = vmatpush1.msra.mxu0 %v393
    %432 = vmatprep.subr.mxu0 0.0
    %433 = vmatpush1.msra.mxu0 %v394
    %434 = vmatprep.subr.mxu0 0.0
    %435 = vmatpush1.msra.mxu0 0.0
    %436 = vmatprep.subr.mxu0 0.0
    %437 = vmatpush1.msra.mxu0 0.0
    %438 = vmatprep.subr.mxu0 0.0
    %439 = vmatpush1.msra.mxu0 0.0
    %440 = vmatprep.subr.mxu0 0.0
    %441 = vmatpush1.msra.mxu0 0.0
    %442 = vmatprep.subr.mxu0 0.0
    %443 = vmatpush1.msra.mxu0 0.0
    %444 = vmatprep.subr.mxu0 0.0
    %445 = vmatpush1.msra.mxu0 0.0
    %446 = vmatprep.subr.mxu0 0.0
    %447 = vmatpush1.msra.mxu0 0.0
    %448 = vmatprep.subr.mxu0 0.0
    %449 = vmatpush1.msra.mxu0 0.0
    %450 = vmatprep.subr.mxu0 0.0
    %451 = vmatpush1.msra.mxu0 0.0
    %452 = vmatprep.subr.mxu0 0.0
    %453 = vmatpush1.msra.mxu0 0.0
    %454 = vmatprep.subr.mxu0 0.0
    %455 = vmatpush1.msra.mxu0 0.0
    %456 = vmatprep.subr.mxu0 0.0
    %457 = vmatpush1.msra.mxu0 0.0
    %458 = vmatprep.subr.mxu0 0.0
    %459 = vmatpush1.msra.mxu0 0.0
    %460 = vmatprep.subr.mxu0 0.0
    %461 = vmatpush1.msra.mxu0 0.0
    %462 = vmatprep.subr.mxu0 0.0
    %463 = vmatpush1.msra.mxu0 0.0
    %464 = vmatprep.subr.mxu0 0.0
    %465 = vmatpush1.msra.mxu0 0.0
    %466 = vmatprep.mubr.f32.mxu0 0.0
    %467 = vmatmul.mubr.f32.gmra.mrb[0].mxu0 %v398
    %v468 = vpop.f32.mrb[0].mxu0
    %v469 = vadd.f32 0.0, %v468
    %v470 = vpop.f32.mrb[0].mxu0
    %471 = vmatprep.mubr.f32.mxu0 0.0
    %472 = vmatmul.mubr.f32.gmra.mrb[0].mxu0 %v399
    %v473 = vpop.f32.mrb[0].mxu0
    %v474 = vadd.f32 0.0, %v473
    %v475 = vpop.f32.mrb[0].mxu0
    %476 = vmatprep.mubr.f32.mxu0 0.0
    %477 = vmatmul.mubr.f32.gmra.mrb[0].mxu0 %v400
    %v478 = vpop.f32.mrb[0].mxu0
    %v479 = vadd.f32 0.0, %v478
    %v480 = vpop.f32.mrb[0].mxu0
    %481 = vmatprep.mubr.f32.mxu0 0.0
    %482 = vmatmul.mubr.f32.gmra.mrb[0].mxu0 %v401
    %v483 = vpop.f32.mrb[0].mxu0
    %v484 = vadd.f32 0.0, %v483
    %v485 = vpop.f32.mrb[0].mxu0
    %486 = vdwg.mxu0
    %v487 = vld [vmem:[#allocation5] sm:$0xf]
    %s488 = scalar_lea.vmem [#allocation3], 32
    %v489 = vld [vmem:[%s488] sm:$0xff]
    %v490 = vld [vmem:[%s488 + $0x8] sm:$0xff]
    %v491 = vld [vmem:[%s488 + $0x10] sm:$0xff]
    %v492 = vld [vmem:[%s488 + $0x18] sm:$0xff]
    %493 = vmatprep.subr.mxu0 0.0
    %494 = vmatpush1.msra.mxu0 %v379
    %495 = vmatprep.subr.mxu0 0.0
    %496 = vmatpush1.msra.mxu0 %v380
    %497 = vmatprep.subr.mxu0 0.0
    %498 = vmatpush1.msra.mxu0 %v381
    %499 = vmatprep.subr.mxu0 0.0
    %500 = vmatpush1.msra.mxu0 %v382
    %501 = vmatprep.subr.mxu0 0.0
    %502 = vmatpush1.msra.mxu0 %v383
    %503 = vmatprep.subr.mxu0 0.0
    %504 = vmatpush1.msra.mxu0 %v384
    %505 = vmatprep.subr.mxu0 0.0
    %506 = vmatpush1.msra.mxu0 %v385
    %507 = vmatprep.subr.mxu0 0.0
    %508 = vmatpush1.msra.mxu0 %v386
    %509 = vmatprep.subr.mxu0 0.0
    %510 = vmatpush1.msra.mxu0 %v387
    %511 = vmatprep.subr.mxu0 0.0
    %512 = vmatpush1.msra.mxu0 %v388
    %513 = vmatprep.subr.mxu0 0.0
    %514 = vmatpush1.msra.mxu0 %v389
    %515 = vmatprep.subr.mxu0 0.0
    %516 = vmatpush1.msra.mxu0 %v390
    %517 = vmatprep.subr.mxu0 0.0
    %518 = vmatpush1.msra.mxu0 %v391
    %519 = vmatprep.subr.mxu0 0.0
    %520 = vmatpush1.msra.mxu0 %v392
    %521 = vmatprep.subr.mxu0 0.0
    %522 = vmatpush1.msra.mxu0 %v393
    %523 = vmatprep.subr.mxu0 0.0
    %524 = vmatpush1.msra.mxu0 %v394
    %525 = vmatprep.subr.mxu0 0.0
    %526 = vmatpush1.msra.mxu0 0.0
    %527 = vmatprep.subr.mxu0 0.0
    %528 = vmatpush1.msra.mxu0 0.0
    %529 = vmatprep.subr.mxu0 0.0
    %530 = vmatpush1.msra.mxu0 0.0
    %531 = vmatprep.subr.mxu0 0.0
    %532 = vmatpush1.msra.mxu0 0.0
    %533 = vmatprep.subr.mxu0 0.0
    %534 = vmatpush1.msra.mxu0 0.0
    %535 = vmatprep.subr.mxu0 0.0
    %536 = vmatpush1.msra.mxu0 0.0
    %537 = vmatprep.subr.mxu0 0.0
    %538 = vmatpush1.msra.mxu0 0.0
    %539 = vmatprep.subr.mxu0 0.0
    %540 = vmatpush1.msra.mxu0 0.0
    %541 = vmatprep.subr.mxu0 0.0
    %542 = vmatpush1.msra.mxu0 0.0
    %543 = vmatprep.subr.mxu0 0.0
    %544 = vmatpush1.msra.mxu0 0.0
    %545 = vmatprep.subr.mxu0 0.0
    %546 = vmatpush1.msra.mxu0 0.0
    %547 = vmatprep.subr.mxu0 0.0
    %548 = vmatpush1.msra.mxu0 0.0
    %549 = vmatprep.subr.mxu0 0.0
    %550 = vmatpush1.msra.mxu0 0.0
    %551 = vmatprep.subr.mxu0 0.0
    %552 = vmatpush1.msra.mxu0 0.0
    %553 = vmatprep.subr.mxu0 0.0
    %554 = vmatpush1.msra.mxu0 0.0
    %555 = vmatprep.subr.mxu0 0.0
    %556 = vmatpush1.msra.mxu0 0.0
    %557 = vmatprep.mubr.f32.mxu0 0.0
    %558 = vmatmul.mubr.f32.gmra.mrb[0].mxu0 %v489
    %v559 = vpop.f32.mrb[0].mxu0
    %v560 = vadd.f32 0.0, %v559
    %v561 = vpop.f32.mrb[0].mxu0
    %562 = vmatprep.mubr.f32.mxu0 0.0
    %563 = vmatmul.mubr.f32.gmra.mrb[0].mxu0 %v490
    %v564 = vpop.f32.mrb[0].mxu0
    %v565 = vadd.f32 0.0, %v564
    %v566 = vpop.f32.mrb[0].mxu0
    %567 = vmatprep.mubr.f32.mxu0 0.0
    %568 = vmatmul.mubr.f32.gmra.mrb[0].mxu0 %v491
    %v569 = vpop.f32.mrb[0].mxu0
    %v570 = vadd.f32 0.0, %v569
    %v571 = vpop.f32.mrb[0].mxu0
    %572 = vmatprep.mubr.f32.mxu0 0.0
    %573 = vmatmul.mubr.f32.gmra.mrb[0].mxu0 %v492
    %v574 = vpop.f32.mrb[0].mxu0
    %v575 = vadd.f32 0.0, %v574
    %v576 = vpop.f32.mrb[0].mxu0
    %577 = vdwg.mxu0
    %s578 = scalar_lea.vmem [#allocation5], 4
    %v579 = vld [vmem:[%s578] sm:$0xf]
    %vm580 = vcmask 31744
    %v582 = vsel %vm580, %v560, 0
    %v585 = vsel %vm580, %v565, 0
    %v588 = vsel %vm580, %v570, 0
    %v591 = vsel %vm580, %v575, 0
    %vm593 = vcmask 1043456
    %v595 = vsel %vm593, %v579, 0
    %597 = vmatprep.subr.mxu0 0.0
    %598 = vmatpush1.msra.mxu0 %v595
    %599 = vmatprep.subr.mxu0 0.0
    %600 = vmatpush1.msra.mxu0 0.0
    %601 = vmatprep.subr.mxu0 0.0
    %602 = vmatpush1.msra.mxu0 0.0
    %603 = vmatprep.subr.mxu0 0.0
    %604 = vmatpush1.msra.mxu0 0.0
    %605 = vmatprep.subr.mxu0 0.0
    %606 = vmatpush1.msra.mxu0 0.0
    %607 = vmatprep.subr.mxu0 0.0
    %608 = vmatpush1.msra.mxu0 0.0
    %609 = vmatprep.subr.mxu0 0.0
    %610 = vmatpush1.msra.mxu0 0.0
    %611 = vmatprep.subr.mxu0 0.0
    %612 = vmatpush1.msra.mxu0 0.0
    %613 = vmatprep.subr.mxu0 0.0
    %614 = vmatpush1.msra.mxu0 0.0
    %615 = vmatprep.subr.mxu0 0.0
    %616 = vmatpush1.msra.mxu0 0.0
    %617 = vmatprep.subr.mxu0 0.0
    %618 = vmatpush1.msra.mxu0 0.0
    %619 = vmatprep.subr.mxu0 0.0
    %620 = vmatpush1.msra.mxu0 0.0
    %621 = vmatprep.subr.mxu0 0.0
    %622 = vmatpush1.msra.mxu0 0.0
    %623 = vmatprep.subr.mxu0 0.0
    %624 = vmatpush1.msra.mxu0 0.0
    %625 = vmatprep.subr.mxu0 0.0
    %626 = vmatpush1.msra.mxu0 0.0
    %627 = vmatprep.subr.mxu0 0.0
    %628 = vmatpush1.msra.mxu0 0.0
    %629 = vmatprep.subr.mxu0 0.0
    %630 = vmatpush1.msra.mxu0 0.0
    %631 = vmatprep.subr.mxu0 0.0
    %632 = vmatpush1.msra.mxu0 0.0
    %633 = vmatprep.subr.mxu0 0.0
    %634 = vmatpush1.msra.mxu0 0.0
    %635 = vmatprep.subr.mxu0 0.0
    %636 = vmatpush1.msra.mxu0 0.0
    %637 = vmatprep.subr.mxu0 0.0
    %638 = vmatpush1.msra.mxu0 0.0
    %639 = vmatprep.subr.mxu0 0.0
    %640 = vmatpush1.msra.mxu0 0.0
    %641 = vmatprep.subr.mxu0 0.0
    %642 = vmatpush1.msra.mxu0 0.0
    %643 = vmatprep.subr.mxu0 0.0
    %644 = vmatpush1.msra.mxu0 0.0
    %645 = vmatprep.subr.mxu0 0.0
    %646 = vmatpush1.msra.mxu0 0.0
    %647 = vmatprep.subr.mxu0 0.0
    %648 = vmatpush1.msra.mxu0 0.0
    %649 = vmatprep.subr.mxu0 0.0
    %650 = vmatpush1.msra.mxu0 0.0
    %651 = vmatprep.subr.mxu0 0.0
    %652 = vmatpush1.msra.mxu0 0.0
    %653 = vmatprep.subr.mxu0 0.0
    %654 = vmatpush1.msra.mxu0 0.0
    %655 = vmatprep.subr.mxu0 0.0
    %656 = vmatpush1.msra.mxu0 0.0
    %657 = vmatprep.subr.mxu0 0.0
    %658 = vmatpush1.msra.mxu0 0.0
    %659 = vmatprep.subr.mxu0 0.0
    %660 = vmatpush1.msra.mxu0 0.0
    %661 = vmatprep.mubr.f32.mxu0 0.0
    %662 = vmatmul.mubr.f32.gmra.mrb[0].mxu0 %v582
    %v663 = vpop.f32.mrb[0].mxu0
    %v664 = vadd.f32 0.0, %v663
    %v665 = vpop.f32.mrb[0].mxu0
    %666 = vmatprep.mubr.f32.mxu0 0.0
    %667 = vmatmul.mubr.f32.gmra.mrb[0].mxu0 %v585
    %v668 = vpop.f32.mrb[0].mxu0
    %v669 = vadd.f32 0.0, %v668
    %v670 = vpop.f32.mrb[0].mxu0
    %671 = vmatprep.mubr.f32.mxu0 0.0
    %672 = vmatmul.mubr.f32.gmra.mrb[0].mxu0 %v588
    %v673 = vpop.f32.mrb[0].mxu0
    %v674 = vadd.f32 0.0, %v673
    %v675 = vpop.f32.mrb[0].mxu0
    %676 = vmatprep.mubr.f32.mxu0 0.0
    %677 = vmatmul.mubr.f32.gmra.mrb[0].mxu0 %v591
    %v678 = vpop.f32.mrb[0].mxu0
    %v679 = vadd.f32 0.0, %v678
    %v680 = vpop.f32.mrb[0].mxu0
    %681 = vdwg.mxu0
    %v683 = vsel %vm580, %v469, 0
    %v686 = vsel %vm580, %v474, 0
    %v689 = vsel %vm580, %v479, 0
    %v692 = vsel %vm580, %v484, 0
    %v695 = vsel %vm593, %v487, 0
    %697 = vmatprep.subr.mxu0 0.0
    %698 = vmatpush1.msra.mxu0 %v695
    %699 = vmatprep.subr.mxu0 0.0
    %700 = vmatpush1.msra.mxu0 0.0
    %701 = vmatprep.subr.mxu0 0.0
    %702 = vmatpush1.msra.mxu0 0.0
    %703 = vmatprep.subr.mxu0 0.0
    %704 = vmatpush1.msra.mxu0 0.0
    %705 = vmatprep.subr.mxu0 0.0
    %706 = vmatpush1.msra.mxu0 0.0
    %707 = vmatprep.subr.mxu0 0.0
    %708 = vmatpush1.msra.mxu0 0.0
    %709 = vmatprep.subr.mxu0 0.0
    %710 = vmatpush1.msra.mxu0 0.0
    %711 = vmatprep.subr.mxu0 0.0
    %712 = vmatpush1.msra.mxu0 0.0
    %713 = vmatprep.subr.mxu0 0.0
    %714 = vmatpush1.msra.mxu0 0.0
    %715 = vmatprep.subr.mxu0 0.0
    %716 = vmatpush1.msra.mxu0 0.0
    %717 = vmatprep.subr.mxu0 0.0
    %718 = vmatpush1.msra.mxu0 0.0
    %719 = vmatprep.subr.mxu0 0.0
    %720 = vmatpush1.msra.mxu0 0.0
    %721 = vmatprep.subr.mxu0 0.0
    %722 = vmatpush1.msra.mxu0 0.0
    %723 = vmatprep.subr.mxu0 0.0
    %724 = vmatpush1.msra.mxu0 0.0
    %725 = vmatprep.subr.mxu0 0.0
    %726 = vmatpush1.msra.mxu0 0.0
    %727 = vmatprep.subr.mxu0 0.0
    %728 = vmatpush1.msra.mxu0 0.0
    %729 = vmatprep.subr.mxu0 0.0
    %730 = vmatpush1.msra.mxu0 0.0
    %731 = vmatprep.subr.mxu0 0.0
    %732 = vmatpush1.msra.mxu0 0.0
    %733 = vmatprep.subr.mxu0 0.0
    %734 = vmatpush1.msra.mxu0 0.0
    %735 = vmatprep.subr.mxu0 0.0
    %736 = vmatpush1.msra.mxu0 0.0
    %737 = vmatprep.subr.mxu0 0.0
    %738 = vmatpush1.msra.mxu0 0.0
    %739 = vmatprep.subr.mxu0 0.0
    %740 = vmatpush1.msra.mxu0 0.0
    %741 = vmatprep.subr.mxu0 0.0
    %742 = vmatpush1.msra.mxu0 0.0
    %743 = vmatprep.subr.mxu0 0.0
    %744 = vmatpush1.msra.mxu0 0.0
    %745 = vmatprep.subr.mxu0 0.0
    %746 = vmatpush1.msra.mxu0 0.0
    %747 = vmatprep.subr.mxu0 0.0
    %748 = vmatpush1.msra.mxu0 0.0
    %749 = vmatprep.subr.mxu0 0.0
    %750 = vmatpush1.msra.mxu0 0.0
    %751 = vmatprep.subr.mxu0 0.0
    %752 = vmatpush1.msra.mxu0 0.0
    %753 = vmatprep.subr.mxu0 0.0
    %754 = vmatpush1.msra.mxu0 0.0
    %755 = vmatprep.subr.mxu0 0.0
    %756 = vmatpush1.msra.mxu0 0.0
    %757 = vmatprep.subr.mxu0 0.0
    %758 = vmatpush1.msra.mxu0 0.0
    %759 = vmatprep.subr.mxu0 0.0
    %760 = vmatpush1.msra.mxu0 0.0
    %761 = vmatprep.mubr.f32.mxu0 0.0
    %762 = vmatmul.mubr.f32.gmra.mrb[0].mxu0 %v683
    %v763 = vpop.f32.mrb[0].mxu0
    %v764 = vadd.f32 %v664, %v763
    %v765 = vpop.f32.mrb[0].mxu0
    %766 = vmatprep.mubr.f32.mxu0 0.0
    %767 = vmatmul.mubr.f32.gmra.mrb[0].mxu0 %v686
    %v768 = vpop.f32.mrb[0].mxu0
    %v769 = vadd.f32 %v669, %v768
    %v770 = vpop.f32.mrb[0].mxu0
    %771 = vmatprep.mubr.f32.mxu0 0.0
    %772 = vmatmul.mubr.f32.gmra.mrb[0].mxu0 %v689
    %v773 = vpop.f32.mrb[0].mxu0
    %v774 = vadd.f32 %v674, %v773
    %v775 = vpop.f32.mrb[0].mxu0
    %776 = vmatprep.mubr.f32.mxu0 0.0
    %777 = vmatmul.mubr.f32.gmra.mrb[0].mxu0 %v692
    %v778 = vpop.f32.mrb[0].mxu0
    %v779 = vadd.f32 %v679, %v778
    %v780 = vpop.f32.mrb[0].mxu0
    %781 = vdwg.mxu0
    %s782 = scalar_lea.vmem [#allocation3], 64
    %v783 = vld [vmem:[%s782] sm:$0xff]
    %v784 = vld [vmem:[%s782 + $0x8] sm:$0xff]
    %v785 = vld [vmem:[%s782 + $0x10] sm:$0xff]
    %v786 = vld [vmem:[%s782 + $0x18] sm:$0xff]
    %787 = vmatprep.subr.mxu0 0.0
    %788 = vmatpush1.msra.mxu0 %v379
    %789 = vmatprep.subr.mxu0 0.0
    %790 = vmatpush1.msra.mxu0 %v380
    %791 = vmatprep.subr.mxu0 0.0
    %792 = vmatpush1.msra.mxu0 %v381
    %793 = vmatprep.subr.mxu0 0.0
    %794 = vmatpush1.msra.mxu0 %v382
    %795 = vmatprep.subr.mxu0 0.0
    %796 = vmatpush1.msra.mxu0 %v383
    %797 = vmatprep.subr.mxu0 0.0
    %798 = vmatpush1.msra.mxu0 %v384
    %799 = vmatprep.subr.mxu0 0.0
    %800 = vmatpush1.msra.mxu0 %v385
    %801 = vmatprep.subr.mxu0 0.0
    %802 = vmatpush1.msra.mxu0 %v386
    %803 = vmatprep.subr.mxu0 0.0
    %804 = vmatpush1.msra.mxu0 %v387
    %805 = vmatprep.subr.mxu0 0.0
    %806 = vmatpush1.msra.mxu0 %v388
    %807 = vmatprep.subr.mxu0 0.0
    %808 = vmatpush1.msra.mxu0 %v389
    %809 = vmatprep.subr.mxu0 0.0
    %810 = vmatpush1.msra.mxu0 %v390
    %811 = vmatprep.subr.mxu0 0.0
    %812 = vmatpush1.msra.mxu0 %v391
    %813 = vmatprep.subr.mxu0 0.0
    %814 = vmatpush1.msra.mxu0 %v392
    %815 = vmatprep.subr.mxu0 0.0
    %816 = vmatpush1.msra.mxu0 %v393
    %817 = vmatprep.subr.mxu0 0.0
    %818 = vmatpush1.msra.mxu0 %v394
    %819 = vmatprep.subr.mxu0 0.0
    %820 = vmatpush1.msra.mxu0 0.0
    %821 = vmatprep.subr.mxu0 0.0
    %822 = vmatpush1.msra.mxu0 0.0
    %823 = vmatprep.subr.mxu0 0.0
    %824 = vmatpush1.msra.mxu0 0.0
    %825 = vmatprep.subr.mxu0 0.0
    %826 = vmatpush1.msra.mxu0 0.0
    %827 = vmatprep.subr.mxu0 0.0
    %828 = vmatpush1.msra.mxu0 0.0
    %829 = vmatprep.subr.mxu0 0.0
    %830 = vmatpush1.msra.mxu0 0.0
    %831 = vmatprep.subr.mxu0 0.0
    %832 = vmatpush1.msra.mxu0 0.0
    %833 = vmatprep.subr.mxu0 0.0
    %834 = vmatpush1.msra.mxu0 0.0
    %835 = vmatprep.subr.mxu0 0.0
    %836 = vmatpush1.msra.mxu0 0.0
    %837 = vmatprep.subr.mxu0 0.0
    %838 = vmatpush1.msra.mxu0 0.0
    %839 = vmatprep.subr.mxu0 0.0
    %840 = vmatpush1.msra.mxu0 0.0
    %841 = vmatprep.subr.mxu0 0.0
    %842 = vmatpush1.msra.mxu0 0.0
    %843 = vmatprep.subr.mxu0 0.0
    %844 = vmatpush1.msra.mxu0 0.0
    %845 = vmatprep.subr.mxu0 0.0
    %846 = vmatpush1.msra.mxu0 0.0
    %847 = vmatprep.subr.mxu0 0.0
    %848 = vmatpush1.msra.mxu0 0.0
    %849 = vmatprep.subr.mxu0 0.0
    %850 = vmatpush1.msra.mxu0 0.0
    %851 = vmatprep.mubr.f32.mxu0 0.0
    %852 = vmatmul.mubr.f32.gmra.mrb[0].mxu0 %v783
    %v853 = vpop.f32.mrb[0].mxu0
    %v854 = vadd.f32 0.0, %v853
    %v855 = vpop.f32.mrb[0].mxu0
    %856 = vmatprep.mubr.f32.mxu0 0.0
    %857 = vmatmul.mubr.f32.gmra.mrb[0].mxu0 %v784
    %v858 = vpop.f32.mrb[0].mxu0
    %v859 = vadd.f32 0.0, %v858
    %v860 = vpop.f32.mrb[0].mxu0
    %861 = vmatprep.mubr.f32.mxu0 0.0
    %862 = vmatmul.mubr.f32.gmra.mrb[0].mxu0 %v785
    %v863 = vpop.f32.mrb[0].mxu0
    %v864 = vadd.f32 0.0, %v863
    %v865 = vpop.f32.mrb[0].mxu0
    %866 = vmatprep.mubr.f32.mxu0 0.0
    %867 = vmatmul.mubr.f32.gmra.mrb[0].mxu0 %v786
    %v868 = vpop.f32.mrb[0].mxu0
    %v869 = vadd.f32 0.0, %v868
    %v870 = vpop.f32.mrb[0].mxu0
    %871 = vdwg.mxu0
    %s872 = scalar_lea.vmem [#allocation5], 8
    %v873 = vld [vmem:[%s872] sm:$0xf]
    %v875 = vsel %vm580, %v854, 0
    %v878 = vsel %vm580, %v859, 0
    %v881 = vsel %vm580, %v864, 0
    %v884 = vsel %vm580, %v869, 0
    %v887 = vsel %vm593, %v873, 0
    %889 = vmatprep.subr.mxu0 0.0
    %890 = vmatpush1.msra.mxu0 %v887
    %891 = vmatprep.subr.mxu0 0.0
    %892 = vmatpush1.msra.mxu0 0.0
    %893 = vmatprep.subr.mxu0 0.0
    %894 = vmatpush1.msra.mxu0 0.0
    %895 = vmatprep.subr.mxu0 0.0
    %896 = vmatpush1.msra.mxu0 0.0
    %897 = vmatprep.subr.mxu0 0.0
    %898 = vmatpush1.msra.mxu0 0.0
    %899 = vmatprep.subr.mxu0 0.0
    %900 = vmatpush1.msra.mxu0 0.0
    %901 = vmatprep.subr.mxu0 0.0
    %902 = vmatpush1.msra.mxu0 0.0
    %903 = vmatprep.subr.mxu0 0.0
    %904 = vmatpush1.msra.mxu0 0.0
    %905 = vmatprep.subr.mxu0 0.0
    %906 = vmatpush1.msra.mxu0 0.0
    %907 = vmatprep.subr.mxu0 0.0
    %908 = vmatpush1.msra.mxu0 0.0
    %909 = vmatprep.subr.mxu0 0.0
    %910 = vmatpush1.msra.mxu0 0.0
    %911 = vmatprep.subr.mxu0 0.0
    %912 = vmatpush1.msra.mxu0 0.0
    %913 = vmatprep.subr.mxu0 0.0
    %914 = vmatpush1.msra.mxu0 0.0
    %915 = vmatprep.subr.mxu0 0.0
    %916 = vmatpush1.msra.mxu0 0.0
    %917 = vmatprep.subr.mxu0 0.0
    %918 = vmatpush1.msra.mxu0 0.0
    %919 = vmatprep.subr.mxu0 0.0
    %920 = vmatpush1.msra.mxu0 0.0
    %921 = vmatprep.subr.mxu0 0.0
    %922 = vmatpush1.msra.mxu0 0.0
    %923 = vmatprep.subr.mxu0 0.0
    %924 = vmatpush1.msra.mxu0 0.0
    %925 = vmatprep.subr.mxu0 0.0
    %926 = vmatpush1.msra.mxu0 0.0
    %927 = vmatprep.subr.mxu0 0.0
    %928 = vmatpush1.msra.mxu0 0.0
    %929 = vmatprep.subr.mxu0 0.0
    %930 = vmatpush1.msra.mxu0 0.0
    %931 = vmatprep.subr.mxu0 0.0
    %932 = vmatpush1.msra.mxu0 0.0
    %933 = vmatprep.subr.mxu0 0.0
    %934 = vmatpush1.msra.mxu0 0.0
    %935 = vmatprep.subr.mxu0 0.0
    %936 = vmatpush1.msra.mxu0 0.0
    %937 = vmatprep.subr.mxu0 0.0
    %938 = vmatpush1.msra.mxu0 0.0
    %939 = vmatprep.subr.mxu0 0.0
    %940 = vmatpush1.msra.mxu0 0.0
    %941 = vmatprep.subr.mxu0 0.0
    %942 = vmatpush1.msra.mxu0 0.0
    %943 = vmatprep.subr.mxu0 0.0
    %944 = vmatpush1.msra.mxu0 0.0
    %945 = vmatprep.subr.mxu0 0.0
    %946 = vmatpush1.msra.mxu0 0.0
    %947 = vmatprep.subr.mxu0 0.0
    %948 = vmatpush1.msra.mxu0 0.0
    %949 = vmatprep.subr.mxu0 0.0
    %950 = vmatpush1.msra.mxu0 0.0
    %951 = vmatprep.subr.mxu0 0.0
    %952 = vmatpush1.msra.mxu0 0.0
    %953 = vmatprep.mubr.f32.mxu0 0.0
    %954 = vmatmul.mubr.f32.gmra.mrb[0].mxu0 %v875
    %v955 = vpop.f32.mrb[0].mxu0
    %v956 = vadd.f32 0.0, %v955
    %v957 = vpop.f32.mrb[0].mxu0
    %958 = vmatprep.mubr.f32.mxu0 0.0
    %959 = vmatmul.mubr.f32.gmra.mrb[0].mxu0 %v878
    %v960 = vpop.f32.mrb[0].mxu0
    %v961 = vadd.f32 0.0, %v960
    %v962 = vpop.f32.mrb[0].mxu0
    %963 = vmatprep.mubr.f32.mxu0 0.0
    %964 = vmatmul.mubr.f32.gmra.mrb[0].mxu0 %v881
    %v965 = vpop.f32.mrb[0].mxu0
    %v966 = vadd.f32 0.0, %v965
    %v967 = vpop.f32.mrb[0].mxu0
    %968 = vmatprep.mubr.f32.mxu0 0.0
    %969 = vmatmul.mubr.f32.gmra.mrb[0].mxu0 %v884
    %v970 = vpop.f32.mrb[0].mxu0
    %v971 = vadd.f32 0.0, %v970
    %v972 = vpop.f32.mrb[0].mxu0
    %973 = vdwg.mxu0
    %v974 = vadd.f32 %v764, %v956
    %v975 = vadd.f32 %v769, %v961
    %v976 = vadd.f32 %v774, %v966
    %v977 = vadd.f32 %v779, %v971
    %s978 = scalar_lea.vmem [#allocation3], 96
    %v979 = vld [vmem:[%s978] sm:$0xff]
    %v980 = vld [vmem:[%s978 + $0x8] sm:$0xff]
    %v981 = vld [vmem:[%s978 + $0x10] sm:$0xff]
    %v982 = vld [vmem:[%s978 + $0x18] sm:$0xff]
    %983 = vmatprep.subr.mxu0 0.0
    %984 = vmatpush1.msra.mxu0 %v379
    %985 = vmatprep.subr.mxu0 0.0
    %986 = vmatpush1.msra.mxu0 %v380
    %987 = vmatprep.subr.mxu0 0.0
    %988 = vmatpush1.msra.mxu0 %v381
    %989 = vmatprep.subr.mxu0 0.0
    %990 = vmatpush1.msra.mxu0 %v382
    %991 = vmatprep.subr.mxu0 0.0
    %992 = vmatpush1.msra.mxu0 %v383
    %993 = vmatprep.subr.mxu0 0.0
    %994 = vmatpush1.msra.mxu0 %v384
    %995 = vmatprep.subr.mxu0 0.0
    %996 = vmatpush1.msra.mxu0 %v385
    %997 = vmatprep.subr.mxu0 0.0
    %998 = vmatpush1.msra.mxu0 %v386
    %999 = vmatprep.subr.mxu0 0.0
    %1000 = vmatpush1.msra.mxu0 %v387
    %1001 = vmatprep.subr.mxu0 0.0
    %1002 = vmatpush1.msra.mxu0 %v388
    %1003 = vmatprep.subr.mxu0 0.0
    %1004 = vmatpush1.msra.mxu0 %v389
    %1005 = vmatprep.subr.mxu0 0.0
    %1006 = vmatpush1.msra.mxu0 %v390
    %1007 = vmatprep.subr.mxu0 0.0
    %1008 = vmatpush1.msra.mxu0 %v391
    %1009 = vmatprep.subr.mxu0 0.0
    %1010 = vmatpush1.msra.mxu0 %v392
    %1011 = vmatprep.subr.mxu0 0.0
    %1012 = vmatpush1.msra.mxu0 %v393
    %1013 = vmatprep.subr.mxu0 0.0
    %1014 = vmatpush1.msra.mxu0 %v394
    %1015 = vmatprep.subr.mxu0 0.0
    %1016 = vmatpush1.msra.mxu0 0.0
    %1017 = vmatprep.subr.mxu0 0.0
    %1018 = vmatpush1.msra.mxu0 0.0
    %1019 = vmatprep.subr.mxu0 0.0
    %1020 = vmatpush1.msra.mxu0 0.0
    %1021 = vmatprep.subr.mxu0 0.0
    %1022 = vmatpush1.msra.mxu0 0.0
    %1023 = vmatprep.subr.mxu0 0.0
    %1024 = vmatpush1.msra.mxu0 0.0
    %1025 = vmatprep.subr.mxu0 0.0
    %1026 = vmatpush1.msra.mxu0 0.0
    %1027 = vmatprep.subr.mxu0 0.0
    %1028 = vmatpush1.msra.mxu0 0.0
    %1029 = vmatprep.subr.mxu0 0.0
    %1030 = vmatpush1.msra.mxu0 0.0
    %1031 = vmatprep.subr.mxu0 0.0
    %1032 = vmatpush1.msra.mxu0 0.0
    %1033 = vmatprep.subr.mxu0 0.0
    %1034 = vmatpush1.msra.mxu0 0.0
    %1035 = vmatprep.subr.mxu0 0.0
    %1036 = vmatpush1.msra.mxu0 0.0
    %1037 = vmatprep.subr.mxu0 0.0
    %1038 = vmatpush1.msra.mxu0 0.0
    %1039 = vmatprep.subr.mxu0 0.0
    %1040 = vmatpush1.msra.mxu0 0.0
    %1041 = vmatprep.subr.mxu0 0.0
    %1042 = vmatpush1.msra.mxu0 0.0
    %1043 = vmatprep.subr.mxu0 0.0
    %1044 = vmatpush1.msra.mxu0 0.0
    %1045 = vmatprep.subr.mxu0 0.0
    %1046 = vmatpush1.msra.mxu0 0.0
    %1047 = vmatprep.mubr.f32.mxu0 0.0
    %1048 = vmatmul.mubr.f32.gmra.mrb[0].mxu0 %v979
    %v1049 = vpop.f32.mrb[0].mxu0
    %v1050 = vadd.f32 0.0, %v1049
    %v1051 = vpop.f32.mrb[0].mxu0
    %1052 = vmatprep.mubr.f32.mxu0 0.0
    %1053 = vmatmul.mubr.f32.gmra.mrb[0].mxu0 %v980
    %v1054 = vpop.f32.mrb[0].mxu0
    %v1055 = vadd.f32 0.0, %v1054
    %v1056 = vpop.f32.mrb[0].mxu0
    %1057 = vmatprep.mubr.f32.mxu0 0.0
    %1058 = vmatmul.mubr.f32.gmra.mrb[0].mxu0 %v981
    %v1059 = vpop.f32.mrb[0].mxu0
    %v1060 = vadd.f32 0.0, %v1059
    %v1061 = vpop.f32.mrb[0].mxu0
    %1062 = vmatprep.mubr.f32.mxu0 0.0
    %1063 = vmatmul.mubr.f32.gmra.mrb[0].mxu0 %v982
    %v1064 = vpop.f32.mrb[0].mxu0
    %v1065 = vadd.f32 0.0, %v1064
    %v1066 = vpop.f32.mrb[0].mxu0
    %1067 = vdwg.mxu0
    %s1068 = scalar_lea.vmem [#allocation5], 12
    %v1069 = vld [vmem:[%s1068] sm:$0xf]
    %v1071 = vsel %vm580, %v1050, 0
    %v1074 = vsel %vm580, %v1055, 0
    %v1077 = vsel %vm580, %v1060, 0
    %v1080 = vsel %vm580, %v1065, 0
    %v1083 = vsel %vm593, %v1069, 0
    %1085 = vmatprep.subr.mxu0 0.0
    %1086 = vmatpush1.msra.mxu0 %v1083
    %1087 = vmatprep.subr.mxu0 0.0
    %1088 = vmatpush1.msra.mxu0 0.0
    %1089 = vmatprep.subr.mxu0 0.0
    %1090 = vmatpush1.msra.mxu0 0.0
    %1091 = vmatprep.subr.mxu0 0.0
    %1092 = vmatpush1.msra.mxu0 0.0
    %1093 = vmatprep.subr.mxu0 0.0
    %1094 = vmatpush1.msra.mxu0 0.0
    %1095 = vmatprep.subr.mxu0 0.0
    %1096 = vmatpush1.msra.mxu0 0.0
    %1097 = vmatprep.subr.mxu0 0.0
    %1098 = vmatpush1.msra.mxu0 0.0
    %1099 = vmatprep.subr.mxu0 0.0
    %1100 = vmatpush1.msra.mxu0 0.0
    %1101 = vmatprep.subr.mxu0 0.0
    %1102 = vmatpush1.msra.mxu0 0.0
    %1103 = vmatprep.subr.mxu0 0.0
    %1104 = vmatpush1.msra.mxu0 0.0
    %1105 = vmatprep.subr.mxu0 0.0
    %1106 = vmatpush1.msra.mxu0 0.0
    %1107 = vmatprep.subr.mxu0 0.0
    %1108 = vmatpush1.msra.mxu0 0.0
    %1109 = vmatprep.subr.mxu0 0.0
    %1110 = vmatpush1.msra.mxu0 0.0
    %1111 = vmatprep.subr.mxu0 0.0
    %1112 = vmatpush1.msra.mxu0 0.0
    %1113 = vmatprep.subr.mxu0 0.0
    %1114 = vmatpush1.msra.mxu0 0.0
    %1115 = vmatprep.subr.mxu0 0.0
    %1116 = vmatpush1.msra.mxu0 0.0
    %1117 = vmatprep.subr.mxu0 0.0
    %1118 = vmatpush1.msra.mxu0 0.0
    %1119 = vmatprep.subr.mxu0 0.0
    %1120 = vmatpush1.msra.mxu0 0.0
    %1121 = vmatprep.subr.mxu0 0.0
    %1122 = vmatpush1.msra.mxu0 0.0
    %1123 = vmatprep.subr.mxu0 0.0
    %1124 = vmatpush1.msra.mxu0 0.0
    %1125 = vmatprep.subr.mxu0 0.0
    %1126 = vmatpush1.msra.mxu0 0.0
    %1127 = vmatprep.subr.mxu0 0.0
    %1128 = vmatpush1.msra.mxu0 0.0
    %1129 = vmatprep.subr.mxu0 0.0
    %1130 = vmatpush1.msra.mxu0 0.0
    %1131 = vmatprep.subr.mxu0 0.0
    %1132 = vmatpush1.msra.mxu0 0.0
    %1133 = vmatprep.subr.mxu0 0.0
    %1134 = vmatpush1.msra.mxu0 0.0
    %1135 = vmatprep.subr.mxu0 0.0
    %1136 = vmatpush1.msra.mxu0 0.0
    %1137 = vmatprep.subr.mxu0 0.0
    %1138 = vmatpush1.msra.mxu0 0.0
    %1139 = vmatprep.subr.mxu0 0.0
    %1140 = vmatpush1.msra.mxu0 0.0
    %1141 = vmatprep.subr.mxu0 0.0
    %1142 = vmatpush1.msra.mxu0 0.0
    %1143 = vmatprep.subr.mxu0 0.0
    %1144 = vmatpush1.msra.mxu0 0.0
    %1145 = vmatprep.subr.mxu0 0.0
    %1146 = vmatpush1.msra.mxu0 0.0
    %1147 = vmatprep.subr.mxu0 0.0
    %1148 = vmatpush1.msra.mxu0 0.0
    %1149 = vmatprep.mubr.f32.mxu0 0.0
    %1150 = vmatmul.mubr.f32.gmra.mrb[0].mxu0 %v1071
    %v1151 = vpop.f32.mrb[0].mxu0
    %v1152 = vadd.f32 0.0, %v1151
    %v1153 = vpop.f32.mrb[0].mxu0
    %1154 = vmatprep.mubr.f32.mxu0 0.0
    %1155 = vmatmul.mubr.f32.gmra.mrb[0].mxu0 %v1074
    %v1156 = vpop.f32.mrb[0].mxu0
    %v1157 = vadd.f32 0.0, %v1156
    %v1158 = vpop.f32.mrb[0].mxu0
    %1159 = vmatprep.mubr.f32.mxu0 0.0
    %1160 = vmatmul.mubr.f32.gmra.mrb[0].mxu0 %v1077
    %v1161 = vpop.f32.mrb[0].mxu0
    %v1162 = vadd.f32 0.0, %v1161
    %v1163 = vpop.f32.mrb[0].mxu0
    %1164 = vmatprep.mubr.f32.mxu0 0.0
    %1165 = vmatmul.mubr.f32.gmra.mrb[0].mxu0 %v1080
    %v1166 = vpop.f32.mrb[0].mxu0
    %v1167 = vadd.f32 0.0, %v1166
    %v1168 = vpop.f32.mrb[0].mxu0
    %1169 = vdwg.mxu0
    %v1170 = vadd.f32 %v974, %v1152
    %v1171 = vadd.f32 %v975, %v1157
    %v1172 = vadd.f32 %v976, %v1162
    %v1173 = vadd.f32 %v977, %v1167
    %s1174 = scalar_lea.vmem [#allocation3], 128
    %v1175 = vld [vmem:[%s1174] sm:$0xff]
    %v1176 = vld [vmem:[%s1174 + $0x8] sm:$0xff]
    %v1177 = vld [vmem:[%s1174 + $0x10] sm:$0xff]
    %v1178 = vld [vmem:[%s1174 + $0x18] sm:$0xff]
    %1179 = vmatprep.subr.mxu0 0.0
    %1180 = vmatpush1.msra.mxu0 %v379
    %1181 = vmatprep.subr.mxu0 0.0
    %1182 = vmatpush1.msra.mxu0 %v380
    %1183 = vmatprep.subr.mxu0 0.0
    %1184 = vmatpush1.msra.mxu0 %v381
    %1185 = vmatprep.subr.mxu0 0.0
    %1186 = vmatpush1.msra.mxu0 %v382
    %1187 = vmatprep.subr.mxu0 0.0
    %1188 = vmatpush1.msra.mxu0 %v383
    %1189 = vmatprep.subr.mxu0 0.0
    %1190 = vmatpush1.msra.mxu0 %v384
    %1191 = vmatprep.subr.mxu0 0.0
    %1192 = vmatpush1.msra.mxu0 %v385
    %1193 = vmatprep.subr.mxu0 0.0
    %1194 = vmatpush1.msra.mxu0 %v386
    %1195 = vmatprep.subr.mxu0 0.0
    %1196 = vmatpush1.msra.mxu0 %v387
    %1197 = vmatprep.subr.mxu0 0.0
    %1198 = vmatpush1.msra.mxu0 %v388
    %1199 = vmatprep.subr.mxu0 0.0
    %1200 = vmatpush1.msra.mxu0 %v389
    %1201 = vmatprep.subr.mxu0 0.0
    %1202 = vmatpush1.msra.mxu0 %v390
    %1203 = vmatprep.subr.mxu0 0.0
    %1204 = vmatpush1.msra.mxu0 %v391
    %1205 = vmatprep.subr.mxu0 0.0
    %1206 = vmatpush1.msra.mxu0 %v392
    %1207 = vmatprep.subr.mxu0 0.0
    %1208 = vmatpush1.msra.mxu0 %v393
    %1209 = vmatprep.subr.mxu0 0.0
    %1210 = vmatpush1.msra.mxu0 %v394
    %1211 = vmatprep.subr.mxu0 0.0
    %1212 = vmatpush1.msra.mxu0 0.0
    %1213 = vmatprep.subr.mxu0 0.0
    %1214 = vmatpush1.msra.mxu0 0.0
    %1215 = vmatprep.subr.mxu0 0.0
    %1216 = vmatpush1.msra.mxu0 0.0
    %1217 = vmatprep.subr.mxu0 0.0
    %1218 = vmatpush1.msra.mxu0 0.0
    %1219 = vmatprep.subr.mxu0 0.0
    %1220 = vmatpush1.msra.mxu0 0.0
    %1221 = vmatprep.subr.mxu0 0.0
    %1222 = vmatpush1.msra.mxu0 0.0
    %1223 = vmatprep.subr.mxu0 0.0
    %1224 = vmatpush1.msra.mxu0 0.0
    %1225 = vmatprep.subr.mxu0 0.0
    %1226 = vmatpush1.msra.mxu0 0.0
    %1227 = vmatprep.subr.mxu0 0.0
    %1228 = vmatpush1.msra.mxu0 0.0
    %1229 = vmatprep.subr.mxu0 0.0
    %1230 = vmatpush1.msra.mxu0 0.0
    %1231 = vmatprep.subr.mxu0 0.0
    %1232 = vmatpush1.msra.mxu0 0.0
    %1233 = vmatprep.subr.mxu0 0.0
    %1234 = vmatpush1.msra.mxu0 0.0
    %1235 = vmatprep.subr.mxu0 0.0
    %1236 = vmatpush1.msra.mxu0 0.0
    %1237 = vmatprep.subr.mxu0 0.0
    %1238 = vmatpush1.msra.mxu0 0.0
    %1239 = vmatprep.subr.mxu0 0.0
    %1240 = vmatpush1.msra.mxu0 0.0
    %1241 = vmatprep.subr.mxu0 0.0
    %1242 = vmatpush1.msra.mxu0 0.0
    %1243 = vmatprep.mubr.f32.mxu0 0.0
    %1244 = vmatmul.mubr.f32.gmra.mrb[0].mxu0 %v1175
    %v1245 = vpop.f32.mrb[0].mxu0
    %v1246 = vadd.f32 0.0, %v1245
    %v1247 = vpop.f32.mrb[0].mxu0
    %1248 = vmatprep.mubr.f32.mxu0 0.0
    %1249 = vmatmul.mubr.f32.gmra.mrb[0].mxu0 %v1176
    %v1250 = vpop.f32.mrb[0].mxu0
    %v1251 = vadd.f32 0.0, %v1250
    %v1252 = vpop.f32.mrb[0].mxu0
    %1253 = vmatprep.mubr.f32.mxu0 0.0
    %1254 = vmatmul.mubr.f32.gmra.mrb[0].mxu0 %v1177
    %v1255 = vpop.f32.mrb[0].mxu0
    %v1256 = vadd.f32 0.0, %v1255
    %v1257 = vpop.f32.mrb[0].mxu0
    %1258 = vmatprep.mubr.f32.mxu0 0.0
    %1259 = vmatmul.mubr.f32.gmra.mrb[0].mxu0 %v1178
    %v1260 = vpop.f32.mrb[0].mxu0
    %v1261 = vadd.f32 0.0, %v1260
    %v1262 = vpop.f32.mrb[0].mxu0
    %1263 = vdwg.mxu0
    %s1264 = scalar_lea.vmem [#allocation5], 16
    %v1265 = vld [vmem:[%s1264] sm:$0xf]
    %v1267 = vsel %vm580, %v1246, 0
    %v1270 = vsel %vm580, %v1251, 0
    %v1273 = vsel %vm580, %v1256, 0
    %v1276 = vsel %vm580, %v1261, 0
    %v1279 = vsel %vm593, %v1265, 0
    %1281 = vmatprep.subr.mxu0 0.0
    %1282 = vmatpush1.msra.mxu0 %v1279
    %1283 = vmatprep.subr.mxu0 0.0
    %1284 = vmatpush1.msra.mxu0 0.0
    %1285 = vmatprep.subr.mxu0 0.0
    %1286 = vmatpush1.msra.mxu0 0.0
    %1287 = vmatprep.subr.mxu0 0.0
    %1288 = vmatpush1.msra.mxu0 0.0
    %1289 = vmatprep.subr.mxu0 0.0
    %1290 = vmatpush1.msra.mxu0 0.0
    %1291 = vmatprep.subr.mxu0 0.0
    %1292 = vmatpush1.msra.mxu0 0.0
    %1293 = vmatprep.subr.mxu0 0.0
    %1294 = vmatpush1.msra.mxu0 0.0
    %1295 = vmatprep.subr.mxu0 0.0
    %1296 = vmatpush1.msra.mxu0 0.0
    %1297 = vmatprep.subr.mxu0 0.0
    %1298 = vmatpush1.msra.mxu0 0.0
    %1299 = vmatprep.subr.mxu0 0.0
    %1300 = vmatpush1.msra.mxu0 0.0
    %1301 = vmatprep.subr.mxu0 0.0
    %1302 = vmatpush1.msra.mxu0 0.0
    %1303 = vmatprep.subr.mxu0 0.0
    %1304 = vmatpush1.msra.mxu0 0.0
    %1305 = vmatprep.subr.mxu0 0.0
    %1306 = vmatpush1.msra.mxu0 0.0
    %1307 = vmatprep.subr.mxu0 0.0
    %1308 = vmatpush1.msra.mxu0 0.0
    %1309 = vmatprep.subr.mxu0 0.0
    %1310 = vmatpush1.msra.mxu0 0.0
    %1311 = vmatprep.subr.mxu0 0.0
    %1312 = vmatpush1.msra.mxu0 0.0
    %1313 = vmatprep.subr.mxu0 0.0
    %1314 = vmatpush1.msra.mxu0 0.0
    %1315 = vmatprep.subr.mxu0 0.0
    %1316 = vmatpush1.msra.mxu0 0.0
    %1317 = vmatprep.subr.mxu0 0.0
    %1318 = vmatpush1.msra.mxu0 0.0
    %1319 = vmatprep.subr.mxu0 0.0
    %1320 = vmatpush1.msra.mxu0 0.0
    %1321 = vmatprep.subr.mxu0 0.0
    %1322 = vmatpush1.msra.mxu0 0.0
    %1323 = vmatprep.subr.mxu0 0.0
    %1324 = vmatpush1.msra.mxu0 0.0
    %1325 = vmatprep.subr.mxu0 0.0
    %1326 = vmatpush1.msra.mxu0 0.0
    %1327 = vmatprep.subr.mxu0 0.0
    %1328 = vmatpush1.msra.mxu0 0.0
    %1329 = vmatprep.subr.mxu0 0.0
    %1330 = vmatpush1.msra.mxu0 0.0
    %1331 = vmatprep.subr.mxu0 0.0
    %1332 = vmatpush1.msra.mxu0 0.0
    %1333 = vmatprep.subr.mxu0 0.0
    %1334 = vmatpush1.msra.mxu0 0.0
    %1335 = vmatprep.subr.mxu0 0.0
    %1336 = vmatpush1.msra.mxu0 0.0
    %1337 = vmatprep.subr.mxu0 0.0
    %1338 = vmatpush1.msra.mxu0 0.0
    %1339 = vmatprep.subr.mxu0 0.0
    %1340 = vmatpush1.msra.mxu0 0.0
    %1341 = vmatprep.subr.mxu0 0.0
    %1342 = vmatpush1.msra.mxu0 0.0
    %1343 = vmatprep.subr.mxu0 0.0
    %1344 = vmatpush1.msra.mxu0 0.0
    %1345 = vmatprep.mubr.f32.mxu0 0.0
    %1346 = vmatmul.mubr.f32.gmra.mrb[0].mxu0 %v1267
    %v1347 = vpop.f32.mrb[0].mxu0
    %v1348 = vadd.f32 0.0, %v1347
    %v1349 = vpop.f32.mrb[0].mxu0
    %1350 = vmatprep.mubr.f32.mxu0 0.0
    %1351 = vmatmul.mubr.f32.gmra.mrb[0].mxu0 %v1270
    %v1352 = vpop.f32.mrb[0].mxu0
    %v1353 = vadd.f32 0.0, %v1352
    %v1354 = vpop.f32.mrb[0].mxu0
    %1355 = vmatprep.mubr.f32.mxu0 0.0
    %1356 = vmatmul.mubr.f32.gmra.mrb[0].mxu0 %v1273
    %v1357 = vpop.f32.mrb[0].mxu0
    %v1358 = vadd.f32 0.0, %v1357
    %v1359 = vpop.f32.mrb[0].mxu0
    %1360 = vmatprep.mubr.f32.mxu0 0.0
    %1361 = vmatmul.mubr.f32.gmra.mrb[0].mxu0 %v1276
    %v1362 = vpop.f32.mrb[0].mxu0
    %v1363 = vadd.f32 0.0, %v1362
    %v1364 = vpop.f32.mrb[0].mxu0
    %1365 = vdwg.mxu0
    %v1366 = vadd.f32 %v1170, %v1348
    %v1367 = vadd.f32 %v1171, %v1353
    %v1368 = vadd.f32 %v1172, %v1358
    %v1369 = vadd.f32 %v1173, %v1363
    %s1370 = scalar_lea.vmem [#allocation3], 160
    %v1371 = vld [vmem:[%s1370] sm:$0xff]
    %v1372 = vld [vmem:[%s1370 + $0x8] sm:$0xff]
    %v1373 = vld [vmem:[%s1370 + $0x10] sm:$0xff]
    %v1374 = vld [vmem:[%s1370 + $0x18] sm:$0xff]
    %1375 = vmatprep.subr.mxu0 0.0
    %1376 = vmatpush1.msra.mxu0 %v379
    %1377 = vmatprep.subr.mxu0 0.0
    %1378 = vmatpush1.msra.mxu0 %v380
    %1379 = vmatprep.subr.mxu0 0.0
    %1380 = vmatpush1.msra.mxu0 %v381
    %1381 = vmatprep.subr.mxu0 0.0
    %1382 = vmatpush1.msra.mxu0 %v382
    %1383 = vmatprep.subr.mxu0 0.0
    %1384 = vmatpush1.msra.mxu0 %v383
    %1385 = vmatprep.subr.mxu0 0.0
    %1386 = vmatpush1.msra.mxu0 %v384
    %1387 = vmatprep.subr.mxu0 0.0
    %1388 = vmatpush1.msra.mxu0 %v385
    %1389 = vmatprep.subr.mxu0 0.0
    %1390 = vmatpush1.msra.mxu0 %v386
    %1391 = vmatprep.subr.mxu0 0.0
    %1392 = vmatpush1.msra.mxu0 %v387
    %1393 = vmatprep.subr.mxu0 0.0
    %1394 = vmatpush1.msra.mxu0 %v388
    %1395 = vmatprep.subr.mxu0 0.0
    %1396 = vmatpush1.msra.mxu0 %v389
    %1397 = vmatprep.subr.mxu0 0.0
    %1398 = vmatpush1.msra.mxu0 %v390
    %1399 = vmatprep.subr.mxu0 0.0
    %1400 = vmatpush1.msra.mxu0 %v391
    %1401 = vmatprep.subr.mxu0 0.0
    %1402 = vmatpush1.msra.mxu0 %v392
    %1403 = vmatprep.subr.mxu0 0.0
    %1404 = vmatpush1.msra.mxu0 %v393
    %1405 = vmatprep.subr.mxu0 0.0
    %1406 = vmatpush1.msra.mxu0 %v394
    %1407 = vmatprep.subr.mxu0 0.0
    %1408 = vmatpush1.msra.mxu0 0.0
    %1409 = vmatprep.subr.mxu0 0.0
    %1410 = vmatpush1.msra.mxu0 0.0
    %1411 = vmatprep.subr.mxu0 0.0
    %1412 = vmatpush1.msra.mxu0 0.0
    %1413 = vmatprep.subr.mxu0 0.0
    %1414 = vmatpush1.msra.mxu0 0.0
    %1415 = vmatprep.subr.mxu0 0.0
    %1416 = vmatpush1.msra.mxu0 0.0
    %1417 = vmatprep.subr.mxu0 0.0
    %1418 = vmatpush1.msra.mxu0 0.0
    %1419 = vmatprep.subr.mxu0 0.0
    %1420 = vmatpush1.msra.mxu0 0.0
    %1421 = vmatprep.subr.mxu0 0.0
    %1422 = vmatpush1.msra.mxu0 0.0
    %1423 = vmatprep.subr.mxu0 0.0
    %1424 = vmatpush1.msra.mxu0 0.0
    %1425 = vmatprep.subr.mxu0 0.0
    %1426 = vmatpush1.msra.mxu0 0.0
    %1427 = vmatprep.subr.mxu0 0.0
    %1428 = vmatpush1.msra.mxu0 0.0
    %1429 = vmatprep.subr.mxu0 0.0
    %1430 = vmatpush1.msra.mxu0 0.0
    %1431 = vmatprep.subr.mxu0 0.0
    %1432 = vmatpush1.msra.mxu0 0.0
    %1433 = vmatprep.subr.mxu0 0.0
    %1434 = vmatpush1.msra.mxu0 0.0
    %1435 = vmatprep.subr.mxu0 0.0
    %1436 = vmatpush1.msra.mxu0 0.0
    %1437 = vmatprep.subr.mxu0 0.0
    %1438 = vmatpush1.msra.mxu0 0.0
    %1439 = vmatprep.mubr.f32.mxu0 0.0
    %1440 = vmatmul.mubr.f32.gmra.mrb[0].mxu0 %v1371
    %v1441 = vpop.f32.mrb[0].mxu0
    %v1442 = vadd.f32 0.0, %v1441
    %v1443 = vpop.f32.mrb[0].mxu0
    %1444 = vmatprep.mubr.f32.mxu0 0.0
    %1445 = vmatmul.mubr.f32.gmra.mrb[0].mxu0 %v1372
    %v1446 = vpop.f32.mrb[0].mxu0
    %v1447 = vadd.f32 0.0, %v1446
    %v1448 = vpop.f32.mrb[0].mxu0
    %1449 = vmatprep.mubr.f32.mxu0 0.0
    %1450 = vmatmul.mubr.f32.gmra.mrb[0].mxu0 %v1373
    %v1451 = vpop.f32.mrb[0].mxu0
    %v1452 = vadd.f32 0.0, %v1451
    %v1453 = vpop.f32.mrb[0].mxu0
    %1454 = vmatprep.mubr.f32.mxu0 0.0
    %1455 = vmatmul.mubr.f32.gmra.mrb[0].mxu0 %v1374
    %v1456 = vpop.f32.mrb[0].mxu0
    %v1457 = vadd.f32 0.0, %v1456
    %v1458 = vpop.f32.mrb[0].mxu0
    %1459 = vdwg.mxu0
    %s1460 = scalar_lea.vmem [#allocation5], 20
    %v1461 = vld [vmem:[%s1460] sm:$0xf]
    %v1463 = vsel %vm580, %v1442, 0
    %v1466 = vsel %vm580, %v1447, 0
    %v1469 = vsel %vm580, %v1452, 0
    %v1472 = vsel %vm580, %v1457, 0
    %v1475 = vsel %vm593, %v1461, 0
    %1477 = vmatprep.subr.mxu0 0.0
    %1478 = vmatpush1.msra.mxu0 %v1475
    %1479 = vmatprep.subr.mxu0 0.0
    %1480 = vmatpush1.msra.mxu0 0.0
    %1481 = vmatprep.subr.mxu0 0.0
    %1482 = vmatpush1.msra.mxu0 0.0
    %1483 = vmatprep.subr.mxu0 0.0
    %1484 = vmatpush1.msra.mxu0 0.0
    %1485 = vmatprep.subr.mxu0 0.0
    %1486 = vmatpush1.msra.mxu0 0.0
    %1487 = vmatprep.subr.mxu0 0.0
    %1488 = vmatpush1.msra.mxu0 0.0
    %1489 = vmatprep.subr.mxu0 0.0
    %1490 = vmatpush1.msra.mxu0 0.0
    %1491 = vmatprep.subr.mxu0 0.0
    %1492 = vmatpush1.msra.mxu0 0.0
    %1493 = vmatprep.subr.mxu0 0.0
    %1494 = vmatpush1.msra.mxu0 0.0
    %1495 = vmatprep.subr.mxu0 0.0
    %1496 = vmatpush1.msra.mxu0 0.0
    %1497 = vmatprep.subr.mxu0 0.0
    %1498 = vmatpush1.msra.mxu0 0.0
    %1499 = vmatprep.subr.mxu0 0.0
    %1500 = vmatpush1.msra.mxu0 0.0
    %1501 = vmatprep.subr.mxu0 0.0
    %1502 = vmatpush1.msra.mxu0 0.0
    %1503 = vmatprep.subr.mxu0 0.0
    %1504 = vmatpush1.msra.mxu0 0.0
    %1505 = vmatprep.subr.mxu0 0.0
    %1506 = vmatpush1.msra.mxu0 0.0
    %1507 = vmatprep.subr.mxu0 0.0
    %1508 = vmatpush1.msra.mxu0 0.0
    %1509 = vmatprep.subr.mxu0 0.0
    %1510 = vmatpush1.msra.mxu0 0.0
    %1511 = vmatprep.subr.mxu0 0.0
    %1512 = vmatpush1.msra.mxu0 0.0
    %1513 = vmatprep.subr.mxu0 0.0
    %1514 = vmatpush1.msra.mxu0 0.0
    %1515 = vmatprep.subr.mxu0 0.0
    %1516 = vmatpush1.msra.mxu0 0.0
    %1517 = vmatprep.subr.mxu0 0.0
    %1518 = vmatpush1.msra.mxu0 0.0
    %1519 = vmatprep.subr.mxu0 0.0
    %1520 = vmatpush1.msra.mxu0 0.0
    %1521 = vmatprep.subr.mxu0 0.0
    %1522 = vmatpush1.msra.mxu0 0.0
    %1523 = vmatprep.subr.mxu0 0.0
    %1524 = vmatpush1.msra.mxu0 0.0
    %1525 = vmatprep.subr.mxu0 0.0
    %1526 = vmatpush1.msra.mxu0 0.0
    %1527 = vmatprep.subr.mxu0 0.0
    %1528 = vmatpush1.msra.mxu0 0.0
    %1529 = vmatprep.subr.mxu0 0.0
    %1530 = vmatpush1.msra.mxu0 0.0
    %1531 = vmatprep.subr.mxu0 0.0
    %1532 = vmatpush1.msra.mxu0 0.0
    %1533 = vmatprep.subr.mxu0 0.0
    %1534 = vmatpush1.msra.mxu0 0.0
    %1535 = vmatprep.subr.mxu0 0.0
    %1536 = vmatpush1.msra.mxu0 0.0
    %1537 = vmatprep.subr.mxu0 0.0
    %1538 = vmatpush1.msra.mxu0 0.0
    %1539 = vmatprep.subr.mxu0 0.0
    %1540 = vmatpush1.msra.mxu0 0.0
    %1541 = vmatprep.mubr.f32.mxu0 0.0
    %1542 = vmatmul.mubr.f32.gmra.mrb[0].mxu0 %v1463
    %v1543 = vpop.f32.mrb[0].mxu0
    %v1544 = vadd.f32 0.0, %v1543
    %v1545 = vpop.f32.mrb[0].mxu0
    %1546 = vmatprep.mubr.f32.mxu0 0.0
    %1547 = vmatmul.mubr.f32.gmra.mrb[0].mxu0 %v1466
    %v1548 = vpop.f32.mrb[0].mxu0
    %v1549 = vadd.f32 0.0, %v1548
    %v1550 = vpop.f32.mrb[0].mxu0
    %1551 = vmatprep.mubr.f32.mxu0 0.0
    %1552 = vmatmul.mubr.f32.gmra.mrb[0].mxu0 %v1469
    %v1553 = vpop.f32.mrb[0].mxu0
    %v1554 = vadd.f32 0.0, %v1553
    %v1555 = vpop.f32.mrb[0].mxu0
    %1556 = vmatprep.mubr.f32.mxu0 0.0
    %1557 = vmatmul.mubr.f32.gmra.mrb[0].mxu0 %v1472
    %v1558 = vpop.f32.mrb[0].mxu0
    %v1559 = vadd.f32 0.0, %v1558
    %v1560 = vpop.f32.mrb[0].mxu0
    %1561 = vdwg.mxu0
    %v1562 = vadd.f32 %v1366, %v1544
    %v1563 = vadd.f32 %v1367, %v1549
    %v1564 = vadd.f32 %v1368, %v1554
    %v1565 = vadd.f32 %v1369, %v1559
    %s1566 = scalar_lea.vmem [#allocation3], 192
    %v1567 = vld [vmem:[%s1566] sm:$0xff]
    %v1568 = vld [vmem:[%s1566 + $0x8] sm:$0xff]
    %v1569 = vld [vmem:[%s1566 + $0x10] sm:$0xff]
    %v1570 = vld [vmem:[%s1566 + $0x18] sm:$0xff]
    %1571 = vmatprep.subr.mxu0 0.0
    %1572 = vmatpush1.msra.mxu0 %v379
    %1573 = vmatprep.subr.mxu0 0.0
    %1574 = vmatpush1.msra.mxu0 %v380
    %1575 = vmatprep.subr.mxu0 0.0
    %1576 = vmatpush1.msra.mxu0 %v381
    %1577 = vmatprep.subr.mxu0 0.0
    %1578 = vmatpush1.msra.mxu0 %v382
    %1579 = vmatprep.subr.mxu0 0.0
    %1580 = vmatpush1.msra.mxu0 %v383
    %1581 = vmatprep.subr.mxu0 0.0
    %1582 = vmatpush1.msra.mxu0 %v384
    %1583 = vmatprep.subr.mxu0 0.0
    %1584 = vmatpush1.msra.mxu0 %v385
    %1585 = vmatprep.subr.mxu0 0.0
    %1586 = vmatpush1.msra.mxu0 %v386
    %1587 = vmatprep.subr.mxu0 0.0
    %1588 = vmatpush1.msra.mxu0 %v387
    %1589 = vmatprep.subr.mxu0 0.0
    %1590 = vmatpush1.msra.mxu0 %v388
    %1591 = vmatprep.subr.mxu0 0.0
    %1592 = vmatpush1.msra.mxu0 %v389
    %1593 = vmatprep.subr.mxu0 0.0
    %1594 = vmatpush1.msra.mxu0 %v390
    %1595 = vmatprep.subr.mxu0 0.0
    %1596 = vmatpush1.msra.mxu0 %v391
    %1597 = vmatprep.subr.mxu0 0.0
    %1598 = vmatpush1.msra.mxu0 %v392
    %1599 = vmatprep.subr.mxu0 0.0
    %1600 = vmatpush1.msra.mxu0 %v393
    %1601 = vmatprep.subr.mxu0 0.0
    %1602 = vmatpush1.msra.mxu0 %v394
    %1603 = vmatprep.subr.mxu0 0.0
    %1604 = vmatpush1.msra.mxu0 0.0
    %1605 = vmatprep.subr.mxu0 0.0
    %1606 = vmatpush1.msra.mxu0 0.0
    %1607 = vmatprep.subr.mxu0 0.0
    %1608 = vmatpush1.msra.mxu0 0.0
    %1609 = vmatprep.subr.mxu0 0.0
    %1610 = vmatpush1.msra.mxu0 0.0
    %1611 = vmatprep.subr.mxu0 0.0
    %1612 = vmatpush1.msra.mxu0 0.0
    %1613 = vmatprep.subr.mxu0 0.0
    %1614 = vmatpush1.msra.mxu0 0.0
    %1615 = vmatprep.subr.mxu0 0.0
    %1616 = vmatpush1.msra.mxu0 0.0
    %1617 = vmatprep.subr.mxu0 0.0
    %1618 = vmatpush1.msra.mxu0 0.0
    %1619 = vmatprep.subr.mxu0 0.0
    %1620 = vmatpush1.msra.mxu0 0.0
    %1621 = vmatprep.subr.mxu0 0.0
    %1622 = vmatpush1.msra.mxu0 0.0
    %1623 = vmatprep.subr.mxu0 0.0
    %1624 = vmatpush1.msra.mxu0 0.0
    %1625 = vmatprep.subr.mxu0 0.0
    %1626 = vmatpush1.msra.mxu0 0.0
    %1627 = vmatprep.subr.mxu0 0.0
    %1628 = vmatpush1.msra.mxu0 0.0
    %1629 = vmatprep.subr.mxu0 0.0
    %1630 = vmatpush1.msra.mxu0 0.0
    %1631 = vmatprep.subr.mxu0 0.0
    %1632 = vmatpush1.msra.mxu0 0.0
    %1633 = vmatprep.subr.mxu0 0.0
    %1634 = vmatpush1.msra.mxu0 0.0
    %1635 = vmatprep.mubr.f32.mxu0 0.0
    %1636 = vmatmul.mubr.f32.gmra.mrb[0].mxu0 %v1567
    %v1637 = vpop.f32.mrb[0].mxu0
    %v1638 = vadd.f32 0.0, %v1637
    %v1639 = vpop.f32.mrb[0].mxu0
    %1640 = vmatprep.mubr.f32.mxu0 0.0
    %1641 = vmatmul.mubr.f32.gmra.mrb[0].mxu0 %v1568
    %v1642 = vpop.f32.mrb[0].mxu0
    %v1643 = vadd.f32 0.0, %v1642
    %v1644 = vpop.f32.mrb[0].mxu0
    %1645 = vmatprep.mubr.f32.mxu0 0.0
    %1646 = vmatmul.mubr.f32.gmra.mrb[0].mxu0 %v1569
    %v1647 = vpop.f32.mrb[0].mxu0
    %v1648 = vadd.f32 0.0, %v1647
    %v1649 = vpop.f32.mrb[0].mxu0
    %1650 = vmatprep.mubr.f32.mxu0 0.0
    %1651 = vmatmul.mubr.f32.gmra.mrb[0].mxu0 %v1570
    %v1652 = vpop.f32.mrb[0].mxu0
    %v1653 = vadd.f32 0.0, %v1652
    %v1654 = vpop.f32.mrb[0].mxu0
    %1655 = vdwg.mxu0
    %s1656 = scalar_lea.vmem [#allocation5], 24
    %v1657 = vld [vmem:[%s1656] sm:$0xf]
    %v1659 = vsel %vm580, %v1638, 0
    %v1662 = vsel %vm580, %v1643, 0
    %v1665 = vsel %vm580, %v1648, 0
    %v1668 = vsel %vm580, %v1653, 0
    %v1671 = vsel %vm593, %v1657, 0
    %1673 = vmatprep.subr.mxu0 0.0
    %1674 = vmatpush1.msra.mxu0 %v1671
    %1675 = vmatprep.subr.mxu0 0.0
    %1676 = vmatpush1.msra.mxu0 0.0
    %1677 = vmatprep.subr.mxu0 0.0
    %1678 = vmatpush1.msra.mxu0 0.0
    %1679 = vmatprep.subr.mxu0 0.0
    %1680 = vmatpush1.msra.mxu0 0.0
    %1681 = vmatprep.subr.mxu0 0.0
    %1682 = vmatpush1.msra.mxu0 0.0
    %1683 = vmatprep.subr.mxu0 0.0
    %1684 = vmatpush1.msra.mxu0 0.0
    %1685 = vmatprep.subr.mxu0 0.0
    %1686 = vmatpush1.msra.mxu0 0.0
    %1687 = vmatprep.subr.mxu0 0.0
    %1688 = vmatpush1.msra.mxu0 0.0
    %1689 = vmatprep.subr.mxu0 0.0
    %1690 = vmatpush1.msra.mxu0 0.0
    %1691 = vmatprep.subr.mxu0 0.0
    %1692 = vmatpush1.msra.mxu0 0.0
    %1693 = vmatprep.subr.mxu0 0.0
    %1694 = vmatpush1.msra.mxu0 0.0
    %1695 = vmatprep.subr.mxu0 0.0
    %1696 = vmatpush1.msra.mxu0 0.0
    %1697 = vmatprep.subr.mxu0 0.0
    %1698 = vmatpush1.msra.mxu0 0.0
    %1699 = vmatprep.subr.mxu0 0.0
    %1700 = vmatpush1.msra.mxu0 0.0
    %1701 = vmatprep.subr.mxu0 0.0
    %1702 = vmatpush1.msra.mxu0 0.0
    %1703 = vmatprep.subr.mxu0 0.0
    %1704 = vmatpush1.msra.mxu0 0.0
    %1705 = vmatprep.subr.mxu0 0.0
    %1706 = vmatpush1.msra.mxu0 0.0
    %1707 = vmatprep.subr.mxu0 0.0
    %1708 = vmatpush1.msra.mxu0 0.0
    %1709 = vmatprep.subr.mxu0 0.0
    %1710 = vmatpush1.msra.mxu0 0.0
    %1711 = vmatprep.subr.mxu0 0.0
    %1712 = vmatpush1.msra.mxu0 0.0
    %1713 = vmatprep.subr.mxu0 0.0
    %1714 = vmatpush1.msra.mxu0 0.0
    %1715 = vmatprep.subr.mxu0 0.0
    %1716 = vmatpush1.msra.mxu0 0.0
    %1717 = vmatprep.subr.mxu0 0.0
    %1718 = vmatpush1.msra.mxu0 0.0
    %1719 = vmatprep.subr.mxu0 0.0
    %1720 = vmatpush1.msra.mxu0 0.0
    %1721 = vmatprep.subr.mxu0 0.0
    %1722 = vmatpush1.msra.mxu0 0.0
    %1723 = vmatprep.subr.mxu0 0.0
    %1724 = vmatpush1.msra.mxu0 0.0
    %1725 = vmatprep.subr.mxu0 0.0
    %1726 = vmatpush1.msra.mxu0 0.0
    %1727 = vmatprep.subr.mxu0 0.0
    %1728 = vmatpush1.msra.mxu0 0.0
    %1729 = vmatprep.subr.mxu0 0.0
    %1730 = vmatpush1.msra.mxu0 0.0
    %1731 = vmatprep.subr.mxu0 0.0
    %1732 = vmatpush1.msra.mxu0 0.0
    %1733 = vmatprep.subr.mxu0 0.0
    %1734 = vmatpush1.msra.mxu0 0.0
    %1735 = vmatprep.subr.mxu0 0.0
    %1736 = vmatpush1.msra.mxu0 0.0
    %1737 = vmatprep.mubr.f32.mxu0 0.0
    %1738 = vmatmul.mubr.f32.gmra.mrb[0].mxu0 %v1659
    %v1739 = vpop.f32.mrb[0].mxu0
    %v1740 = vadd.f32 0.0, %v1739
    %v1741 = vpop.f32.mrb[0].mxu0
    %1742 = vmatprep.mubr.f32.mxu0 0.0
    %1743 = vmatmul.mubr.f32.gmra.mrb[0].mxu0 %v1662
    %v1744 = vpop.f32.mrb[0].mxu0
    %v1745 = vadd.f32 0.0, %v1744
    %v1746 = vpop.f32.mrb[0].mxu0
    %1747 = vmatprep.mubr.f32.mxu0 0.0
    %1748 = vmatmul.mubr.f32.gmra.mrb[0].mxu0 %v1665
    %v1749 = vpop.f32.mrb[0].mxu0
    %v1750 = vadd.f32 0.0, %v1749
    %v1751 = vpop.f32.mrb[0].mxu0
    %1752 = vmatprep.mubr.f32.mxu0 0.0
    %1753 = vmatmul.mubr.f32.gmra.mrb[0].mxu0 %v1668
    %v1754 = vpop.f32.mrb[0].mxu0
    %v1755 = vadd.f32 0.0, %v1754
    %v1756 = vpop.f32.mrb[0].mxu0
    %1757 = vdwg.mxu0
    %v1758 = vadd.f32 %v1562, %v1740
    %v1759 = vadd.f32 %v1563, %v1745
    %v1760 = vadd.f32 %v1564, %v1750
    %v1761 = vadd.f32 %v1565, %v1755
    %s1762 = scalar_lea.vmem [#allocation3], 224
    %v1763 = vld [vmem:[%s1762] sm:$0xff]
    %v1764 = vld [vmem:[%s1762 + $0x8] sm:$0xff]
    %v1765 = vld [vmem:[%s1762 + $0x10] sm:$0xff]
    %v1766 = vld [vmem:[%s1762 + $0x18] sm:$0xff]
    %1767 = vmatprep.subr.mxu0 0.0
    %1768 = vmatpush1.msra.mxu0 %v379
    %1769 = vmatprep.subr.mxu0 0.0
    %1770 = vmatpush1.msra.mxu0 %v380
    %1771 = vmatprep.subr.mxu0 0.0
    %1772 = vmatpush1.msra.mxu0 %v381
    %1773 = vmatprep.subr.mxu0 0.0
    %1774 = vmatpush1.msra.mxu0 %v382
    %1775 = vmatprep.subr.mxu0 0.0
    %1776 = vmatpush1.msra.mxu0 %v383
    %1777 = vmatprep.subr.mxu0 0.0
    %1778 = vmatpush1.msra.mxu0 %v384
    %1779 = vmatprep.subr.mxu0 0.0
    %1780 = vmatpush1.msra.mxu0 %v385
    %1781 = vmatprep.subr.mxu0 0.0
    %1782 = vmatpush1.msra.mxu0 %v386
    %1783 = vmatprep.subr.mxu0 0.0
    %1784 = vmatpush1.msra.mxu0 %v387
    %1785 = vmatprep.subr.mxu0 0.0
    %1786 = vmatpush1.msra.mxu0 %v388
    %1787 = vmatprep.subr.mxu0 0.0
    %1788 = vmatpush1.msra.mxu0 %v389
    %1789 = vmatprep.subr.mxu0 0.0
    %1790 = vmatpush1.msra.mxu0 %v390
    %1791 = vmatprep.subr.mxu0 0.0
    %1792 = vmatpush1.msra.mxu0 %v391
    %1793 = vmatprep.subr.mxu0 0.0
    %1794 = vmatpush1.msra.mxu0 %v392
    %1795 = vmatprep.subr.mxu0 0.0
    %1796 = vmatpush1.msra.mxu0 %v393
    %1797 = vmatprep.subr.mxu0 0.0
    %1798 = vmatpush1.msra.mxu0 %v394
    %1799 = vmatprep.subr.mxu0 0.0
    %1800 = vmatpush1.msra.mxu0 0.0
    %1801 = vmatprep.subr.mxu0 0.0
    %1802 = vmatpush1.msra.mxu0 0.0
    %1803 = vmatprep.subr.mxu0 0.0
    %1804 = vmatpush1.msra.mxu0 0.0
    %1805 = vmatprep.subr.mxu0 0.0
    %1806 = vmatpush1.msra.mxu0 0.0
    %1807 = vmatprep.subr.mxu0 0.0
    %1808 = vmatpush1.msra.mxu0 0.0
    %1809 = vmatprep.subr.mxu0 0.0
    %1810 = vmatpush1.msra.mxu0 0.0
    %1811 = vmatprep.subr.mxu0 0.0
    %1812 = vmatpush1.msra.mxu0 0.0
    %1813 = vmatprep.subr.mxu0 0.0
    %1814 = vmatpush1.msra.mxu0 0.0
    %1815 = vmatprep.subr.mxu0 0.0
    %1816 = vmatpush1.msra.mxu0 0.0
    %1817 = vmatprep.subr.mxu0 0.0
    %1818 = vmatpush1.msra.mxu0 0.0
    %1819 = vmatprep.subr.mxu0 0.0
    %1820 = vmatpush1.msra.mxu0 0.0
    %1821 = vmatprep.subr.mxu0 0.0
    %1822 = vmatpush1.msra.mxu0 0.0
    %1823 = vmatprep.subr.mxu0 0.0
    %1824 = vmatpush1.msra.mxu0 0.0
    %1825 = vmatprep.subr.mxu0 0.0
    %1826 = vmatpush1.msra.mxu0 0.0
    %1827 = vmatprep.subr.mxu0 0.0
    %1828 = vmatpush1.msra.mxu0 0.0
    %1829 = vmatprep.subr.mxu0 0.0
    %1830 = vmatpush1.msra.mxu0 0.0
    %1831 = vmatprep.mubr.f32.mxu0 0.0
    %1832 = vmatmul.mubr.f32.gmra.mrb[0].mxu0 %v1763
    %v1833 = vpop.f32.mrb[0].mxu0
    %v1834 = vadd.f32 0.0, %v1833
    %v1835 = vpop.f32.mrb[0].mxu0
    %1836 = vmatprep.mubr.f32.mxu0 0.0
    %1837 = vmatmul.mubr.f32.gmra.mrb[0].mxu0 %v1764
    %v1838 = vpop.f32.mrb[0].mxu0
    %v1839 = vadd.f32 0.0, %v1838
    %v1840 = vpop.f32.mrb[0].mxu0
    %1841 = vmatprep.mubr.f32.mxu0 0.0
    %1842 = vmatmul.mubr.f32.gmra.mrb[0].mxu0 %v1765
    %v1843 = vpop.f32.mrb[0].mxu0
    %v1844 = vadd.f32 0.0, %v1843
    %v1845 = vpop.f32.mrb[0].mxu0
    %1846 = vmatprep.mubr.f32.mxu0 0.0
    %1847 = vmatmul.mubr.f32.gmra.mrb[0].mxu0 %v1766
    %v1848 = vpop.f32.mrb[0].mxu0
    %v1849 = vadd.f32 0.0, %v1848
    %v1850 = vpop.f32.mrb[0].mxu0
    %1851 = vdwg.mxu0
    %s1852 = scalar_lea.vmem [#allocation5], 28
    %v1853 = vld [vmem:[%s1852] sm:$0xf]
    %v1855 = vsel %vm580, %v1834, 0
    %v1858 = vsel %vm580, %v1839, 0
    %v1861 = vsel %vm580, %v1844, 0
    %v1864 = vsel %vm580, %v1849, 0
    %v1867 = vsel %vm593, %v1853, 0
    %1869 = vmatprep.subr.mxu0 0.0
    %1870 = vmatpush1.msra.mxu0 %v1867
    %1871 = vmatprep.subr.mxu0 0.0
    %1872 = vmatpush1.msra.mxu0 0.0
    %1873 = vmatprep.subr.mxu0 0.0
    %1874 = vmatpush1.msra.mxu0 0.0
    %1875 = vmatprep.subr.mxu0 0.0
    %1876 = vmatpush1.msra.mxu0 0.0
    %1877 = vmatprep.subr.mxu0 0.0
    %1878 = vmatpush1.msra.mxu0 0.0
    %1879 = vmatprep.subr.mxu0 0.0
    %1880 = vmatpush1.msra.mxu0 0.0
    %1881 = vmatprep.subr.mxu0 0.0
    %1882 = vmatpush1.msra.mxu0 0.0
    %1883 = vmatprep.subr.mxu0 0.0
    %1884 = vmatpush1.msra.mxu0 0.0
    %1885 = vmatprep.subr.mxu0 0.0
    %1886 = vmatpush1.msra.mxu0 0.0
    %1887 = vmatprep.subr.mxu0 0.0
    %1888 = vmatpush1.msra.mxu0 0.0
    %1889 = vmatprep.subr.mxu0 0.0
    %1890 = vmatpush1.msra.mxu0 0.0
    %1891 = vmatprep.subr.mxu0 0.0
    %1892 = vmatpush1.msra.mxu0 0.0
    %1893 = vmatprep.subr.mxu0 0.0
    %1894 = vmatpush1.msra.mxu0 0.0
    %1895 = vmatprep.subr.mxu0 0.0
    %1896 = vmatpush1.msra.mxu0 0.0
    %1897 = vmatprep.subr.mxu0 0.0
    %1898 = vmatpush1.msra.mxu0 0.0
    %1899 = vmatprep.subr.mxu0 0.0
    %1900 = vmatpush1.msra.mxu0 0.0
    %1901 = vmatprep.subr.mxu0 0.0
    %1902 = vmatpush1.msra.mxu0 0.0
    %1903 = vmatprep.subr.mxu0 0.0
    %1904 = vmatpush1.msra.mxu0 0.0
    %1905 = vmatprep.subr.mxu0 0.0
    %1906 = vmatpush1.msra.mxu0 0.0
    %1907 = vmatprep.subr.mxu0 0.0
    %1908 = vmatpush1.msra.mxu0 0.0
    %1909 = vmatprep.subr.mxu0 0.0
    %1910 = vmatpush1.msra.mxu0 0.0
    %1911 = vmatprep.subr.mxu0 0.0
    %1912 = vmatpush1.msra.mxu0 0.0
    %1913 = vmatprep.subr.mxu0 0.0
    %1914 = vmatpush1.msra.mxu0 0.0
    %1915 = vmatprep.subr.mxu0 0.0
    %1916 = vmatpush1.msra.mxu0 0.0
    %1917 = vmatprep.subr.mxu0 0.0
    %1918 = vmatpush1.msra.mxu0 0.0
    %1919 = vmatprep.subr.mxu0 0.0
    %1920 = vmatpush1.msra.mxu0 0.0
    %1921 = vmatprep.subr.mxu0 0.0
    %1922 = vmatpush1.msra.mxu0 0.0
    %1923 = vmatprep.subr.mxu0 0.0
    %1924 = vmatpush1.msra.mxu0 0.0
    %1925 = vmatprep.subr.mxu0 0.0
    %1926 = vmatpush1.msra.mxu0 0.0
    %1927 = vmatprep.subr.mxu0 0.0
    %1928 = vmatpush1.msra.mxu0 0.0
    %1929 = vmatprep.subr.mxu0 0.0
    %1930 = vmatpush1.msra.mxu0 0.0
    %1931 = vmatprep.subr.mxu0 0.0
    %1932 = vmatpush1.msra.mxu0 0.0
    %1933 = vmatprep.mubr.f32.mxu0 0.0
    %1934 = vmatmul.mubr.f32.gmra.mrb[0].mxu0 %v1855
    %v1935 = vpop.f32.mrb[0].mxu0
    %v1936 = vadd.f32 0.0, %v1935
    %v1937 = vpop.f32.mrb[0].mxu0
    %1938 = vmatprep.mubr.f32.mxu0 0.0
    %1939 = vmatmul.mubr.f32.gmra.mrb[0].mxu0 %v1858
    %v1940 = vpop.f32.mrb[0].mxu0
    %v1941 = vadd.f32 0.0, %v1940
    %v1942 = vpop.f32.mrb[0].mxu0
    %1943 = vmatprep.mubr.f32.mxu0 0.0
    %1944 = vmatmul.mubr.f32.gmra.mrb[0].mxu0 %v1861
    %v1945 = vpop.f32.mrb[0].mxu0
    %v1946 = vadd.f32 0.0, %v1945
    %v1947 = vpop.f32.mrb[0].mxu0
    %1948 = vmatprep.mubr.f32.mxu0 0.0
    %1949 = vmatmul.mubr.f32.gmra.mrb[0].mxu0 %v1864
    %v1950 = vpop.f32.mrb[0].mxu0
    %v1951 = vadd.f32 0.0, %v1950
    %v1952 = vpop.f32.mrb[0].mxu0
    %1953 = vdwg.mxu0
    %v1954 = vadd.f32 %v1758, %v1936
    %v1955 = vadd.f32 %v1759, %v1941
    %v1956 = vadd.f32 %v1760, %v1946
    %v1957 = vadd.f32 %v1761, %v1951
    %s1958 = scalar_lea.vmem [#allocation3], 256
    %v1959 = vld [vmem:[%s1958] sm:$0xff]
    %v1960 = vld [vmem:[%s1958 + $0x8] sm:$0xff]
    %v1961 = vld [vmem:[%s1958 + $0x10] sm:$0xff]
    %v1962 = vld [vmem:[%s1958 + $0x18] sm:$0xff]
    %1963 = vmatprep.subr.mxu0 0.0
    %1964 = vmatpush1.msra.mxu0 %v379
    %1965 = vmatprep.subr.mxu0 0.0
    %1966 = vmatpush1.msra.mxu0 %v380
    %1967 = vmatprep.subr.mxu0 0.0
    %1968 = vmatpush1.msra.mxu0 %v381
    %1969 = vmatprep.subr.mxu0 0.0
    %1970 = vmatpush1.msra.mxu0 %v382
    %1971 = vmatprep.subr.mxu0 0.0
    %1972 = vmatpush1.msra.mxu0 %v383
    %1973 = vmatprep.subr.mxu0 0.0
    %1974 = vmatpush1.msra.mxu0 %v384
    %1975 = vmatprep.subr.mxu0 0.0
    %1976 = vmatpush1.msra.mxu0 %v385
    %1977 = vmatprep.subr.mxu0 0.0
    %1978 = vmatpush1.msra.mxu0 %v386
    %1979 = vmatprep.subr.mxu0 0.0
    %1980 = vmatpush1.msra.mxu0 %v387
    %1981 = vmatprep.subr.mxu0 0.0
    %1982 = vmatpush1.msra.mxu0 %v388
    %1983 = vmatprep.subr.mxu0 0.0
    %1984 = vmatpush1.msra.mxu0 %v389
    %1985 = vmatprep.subr.mxu0 0.0
    %1986 = vmatpush1.msra.mxu0 %v390
    %1987 = vmatprep.subr.mxu0 0.0
    %1988 = vmatpush1.msra.mxu0 %v391
    %1989 = vmatprep.subr.mxu0 0.0
    %1990 = vmatpush1.msra.mxu0 %v392
    %1991 = vmatprep.subr.mxu0 0.0
    %1992 = vmatpush1.msra.mxu0 %v393
    %1993 = vmatprep.subr.mxu0 0.0
    %1994 = vmatpush1.msra.mxu0 %v394
    %1995 = vmatprep.subr.mxu0 0.0
    %1996 = vmatpush1.msra.mxu0 0.0
    %1997 = vmatprep.subr.mxu0 0.0
    %1998 = vmatpush1.msra.mxu0 0.0
    %1999 = vmatprep.subr.mxu0 0.0
    %2000 = vmatpush1.msra.mxu0 0.0
    %2001 = vmatprep.subr.mxu0 0.0
    %2002 = vmatpush1.msra.mxu0 0.0
    %2003 = vmatprep.subr.mxu0 0.0
    %2004 = vmatpush1.msra.mxu0 0.0
    %2005 = vmatprep.subr.mxu0 0.0
    %2006 = vmatpush1.msra.mxu0 0.0
    %2007 = vmatprep.subr.mxu0 0.0
    %2008 = vmatpush1.msra.mxu0 0.0
    %2009 = vmatprep.subr.mxu0 0.0
    %2010 = vmatpush1.msra.mxu0 0.0
    %2011 = vmatprep.subr.mxu0 0.0
    %2012 = vmatpush1.msra.mxu0 0.0
    %2013 = vmatprep.subr.mxu0 0.0
    %2014 = vmatpush1.msra.mxu0 0.0
    %2015 = vmatprep.subr.mxu0 0.0
    %2016 = vmatpush1.msra.mxu0 0.0
    %2017 = vmatprep.subr.mxu0 0.0
    %2018 = vmatpush1.msra.mxu0 0.0
    %2019 = vmatprep.subr.mxu0 0.0
    %2020 = vmatpush1.msra.mxu0 0.0
    %2021 = vmatprep.subr.mxu0 0.0
    %2022 = vmatpush1.msra.mxu0 0.0
    %2023 = vmatprep.subr.mxu0 0.0
    %2024 = vmatpush1.msra.mxu0 0.0
    %2025 = vmatprep.subr.mxu0 0.0
    %2026 = vmatpush1.msra.mxu0 0.0
    %2027 = vmatprep.mubr.f32.mxu0 0.0
    %2028 = vmatmul.mubr.f32.gmra.mrb[0].mxu0 %v1959
    %v2029 = vpop.f32.mrb[0].mxu0
    %v2030 = vadd.f32 0.0, %v2029
    %v2031 = vpop.f32.mrb[0].mxu0
    %2032 = vmatprep.mubr.f32.mxu0 0.0
    %2033 = vmatmul.mubr.f32.gmra.mrb[0].mxu0 %v1960
    %v2034 = vpop.f32.mrb[0].mxu0
    %v2035 = vadd.f32 0.0, %v2034
    %v2036 = vpop.f32.mrb[0].mxu0
    %2037 = vmatprep.mubr.f32.mxu0 0.0
    %2038 = vmatmul.mubr.f32.gmra.mrb[0].mxu0 %v1961
    %v2039 = vpop.f32.mrb[0].mxu0
    %v2040 = vadd.f32 0.0, %v2039
    %v2041 = vpop.f32.mrb[0].mxu0
    %2042 = vmatprep.mubr.f32.mxu0 0.0
    %2043 = vmatmul.mubr.f32.gmra.mrb[0].mxu0 %v1962
    %v2044 = vpop.f32.mrb[0].mxu0
    %v2045 = vadd.f32 0.0, %v2044
    %v2046 = vpop.f32.mrb[0].mxu0
    %2047 = vdwg.mxu0
    %s2048 = scalar_lea.vmem [#allocation5], 32
    %v2049 = vld [vmem:[%s2048] sm:$0xf]
    %v2051 = vsel %vm580, %v2030, 0
    %v2054 = vsel %vm580, %v2035, 0
    %v2057 = vsel %vm580, %v2040, 0
    %v2060 = vsel %vm580, %v2045, 0
    %v2063 = vsel %vm593, %v2049, 0
    %2065 = vmatprep.subr.mxu0 0.0
    %2066 = vmatpush1.msra.mxu0 %v2063
    %2067 = vmatprep.subr.mxu0 0.0
    %2068 = vmatpush1.msra.mxu0 0.0
    %2069 = vmatprep.subr.mxu0 0.0
    %2070 = vmatpush1.msra.mxu0 0.0
    %2071 = vmatprep.subr.mxu0 0.0
    %2072 = vmatpush1.msra.mxu0 0.0
    %2073 = vmatprep.subr.mxu0 0.0
    %2074 = vmatpush1.msra.mxu0 0.0
    %2075 = vmatprep.subr.mxu0 0.0
    %2076 = vmatpush1.msra.mxu0 0.0
    %2077 = vmatprep.subr.mxu0 0.0
    %2078 = vmatpush1.msra.mxu0 0.0
    %2079 = vmatprep.subr.mxu0 0.0
    %2080 = vmatpush1.msra.mxu0 0.0
    %2081 = vmatprep.subr.mxu0 0.0
    %2082 = vmatpush1.msra.mxu0 0.0
    %2083 = vmatprep.subr.mxu0 0.0
    %2084 = vmatpush1.msra.mxu0 0.0
    %2085 = vmatprep.subr.mxu0 0.0
    %2086 = vmatpush1.msra.mxu0 0.0
    %2087 = vmatprep.subr.mxu0 0.0
    %2088 = vmatpush1.msra.mxu0 0.0
    %2089 = vmatprep.subr.mxu0 0.0
    %2090 = vmatpush1.msra.mxu0 0.0
    %2091 = vmatprep.subr.mxu0 0.0
    %2092 = vmatpush1.msra.mxu0 0.0
    %2093 = vmatprep.subr.mxu0 0.0
    %2094 = vmatpush1.msra.mxu0 0.0
    %2095 = vmatprep.subr.mxu0 0.0
    %2096 = vmatpush1.msra.mxu0 0.0
    %2097 = vmatprep.subr.mxu0 0.0
    %2098 = vmatpush1.msra.mxu0 0.0
    %2099 = vmatprep.subr.mxu0 0.0
    %2100 = vmatpush1.msra.mxu0 0.0
    %2101 = vmatprep.subr.mxu0 0.0
    %2102 = vmatpush1.msra.mxu0 0.0
    %2103 = vmatprep.subr.mxu0 0.0
    %2104 = vmatpush1.msra.mxu0 0.0
    %2105 = vmatprep.subr.mxu0 0.0
    %2106 = vmatpush1.msra.mxu0 0.0
    %2107 = vmatprep.subr.mxu0 0.0
    %2108 = vmatpush1.msra.mxu0 0.0
    %2109 = vmatprep.subr.mxu0 0.0
    %2110 = vmatpush1.msra.mxu0 0.0
    %2111 = vmatprep.subr.mxu0 0.0
    %2112 = vmatpush1.msra.mxu0 0.0
    %2113 = vmatprep.subr.mxu0 0.0
    %2114 = vmatpush1.msra.mxu0 0.0
    %2115 = vmatprep.subr.mxu0 0.0
    %2116 = vmatpush1.msra.mxu0 0.0
    %2117 = vmatprep.subr.mxu0 0.0
    %2118 = vmatpush1.msra.mxu0 0.0
    %2119 = vmatprep.subr.mxu0 0.0
    %2120 = vmatpush1.msra.mxu0 0.0
    %2121 = vmatprep.subr.mxu0 0.0
    %2122 = vmatpush1.msra.mxu0 0.0
    %2123 = vmatprep.subr.mxu0 0.0
    %2124 = vmatpush1.msra.mxu0 0.0
    %2125 = vmatprep.subr.mxu0 0.0
    %2126 = vmatpush1.msra.mxu0 0.0
    %2127 = vmatprep.subr.mxu0 0.0
    %2128 = vmatpush1.msra.mxu0 0.0
    %2129 = vmatprep.mubr.f32.mxu0 0.0
    %2130 = vmatmul.mubr.f32.gmra.mrb[0].mxu0 %v2051
    %v2131 = vpop.f32.mrb[0].mxu0
    %v2132 = vadd.f32 0.0, %v2131
    %v2133 = vpop.f32.mrb[0].mxu0
    %2134 = vmatprep.mubr.f32.mxu0 0.0
    %2135 = vmatmul.mubr.f32.gmra.mrb[0].mxu0 %v2054
    %v2136 = vpop.f32.mrb[0].mxu0
    %v2137 = vadd.f32 0.0, %v2136
    %v2138 = vpop.f32.mrb[0].mxu0
    %2139 = vmatprep.mubr.f32.mxu0 0.0
    %2140 = vmatmul.mubr.f32.gmra.mrb[0].mxu0 %v2057
    %v2141 = vpop.f32.mrb[0].mxu0
    %v2142 = vadd.f32 0.0, %v2141
    %v2143 = vpop.f32.mrb[0].mxu0
    %2144 = vmatprep.mubr.f32.mxu0 0.0
    %2145 = vmatmul.mubr.f32.gmra.mrb[0].mxu0 %v2060
    %v2146 = vpop.f32.mrb[0].mxu0
    %v2147 = vadd.f32 0.0, %v2146
    %v2148 = vpop.f32.mrb[0].mxu0
    %2149 = vdwg.mxu0
    %v2150 = vadd.f32 %v1954, %v2132
    %v2151 = vadd.f32 %v1955, %v2137
    %v2152 = vadd.f32 %v1956, %v2142
    %v2153 = vadd.f32 %v1957, %v2147
    %v2155 = vlaneseq
    %v2156 = vshrl.u32 %v2155, 7
    %v2157 = vsub.s32 0, %v2156
    %v2158 = vrot.slane %v395, %v2157
    %v2160 = vadd.f32 %v2150, %v2158
    %v2161 = vadd.f32 %v2151, %v2158
    %v2162 = vadd.f32 %v2152, %v2158
    %v2163 = vadd.f32 %v2153, %v2158
    %vm2164 = vcmp.gt.f32.partialorder %v2160, 0.0
    %vm2165 = vcmp.gt.f32.partialorder %v2161, 0.0
    %vm2166 = vcmp.gt.f32.partialorder %v2162, 0.0
    %vm2167 = vcmp.gt.f32.partialorder %v2163, 0.0
    %v2168 = vmul.f32 %v2160, 0.2
    %v2169 = vmul.f32 %v2161, 0.2
    %v2170 = vmul.f32 %v2162, 0.2
    %v2171 = vmul.f32 %v2163, 0.2
    %v2172 = vsel %vm2164, %v2160, %v2168
    %v2173 = vsel %vm2165, %v2161, %v2169
    %v2174 = vsel %vm2166, %v2162, %v2170
    %v2175 = vsel %vm2167, %v2163, %v2171
    %vm2176 = vcmask 523264
    %v2177 = vsel %vm2176, %v2172, 0.0
    %v2178 = vsel %vm2176, %v2173, 0.0
    %v2179 = vadd.f32 %v2177, %v2178
    %v2180 = vsel %vm2176, %v2174, 0.0
    %v2181 = vadd.f32 %v2179, %v2180
    %v2182 = vsel %vm2176, %v2175, 0.0
    %v2183 = vadd.f32 %v2181, %v2182
    %v2184 = vrot.slane %v2183, 4
    %v2185 = vadd.f32 %v2183, %v2184
    %v2186 = vrot.slane %v2185, 2
    %v2187 = vadd.f32 %v2185, %v2186
    %v2188 = vrot.slane %v2187, 1
    %v2189 = vadd.f32 %v2187, %v2188
    %v2190 = vmul.f32 %v2189, 0.03125
    %v2191 = vmul.f32 %v2172, %v2172
    %v2192 = vmul.f32 %v2173, %v2173
    %v2193 = vmul.f32 %v2174, %v2174
    %v2194 = vmul.f32 %v2175, %v2175
    %v2195 = vsel %vm2176, %v2191, 0.0
    %v2196 = vsel %vm2176, %v2192, 0.0
    %v2197 = vadd.f32 %v2195, %v2196
    %v2198 = vsel %vm2176, %v2193, 0.0
    %v2199 = vadd.f32 %v2197, %v2198
    %v2200 = vsel %vm2176, %v2194, 0.0
    %v2201 = vadd.f32 %v2199, %v2200
    %v2202 = vrot.slane %v2201, 4
    %v2203 = vadd.f32 %v2201, %v2202
    %v2204 = vrot.slane %v2203, 2
    %v2205 = vadd.f32 %v2203, %v2204
    %v2206 = vrot.slane %v2205, 1
    %v2207 = vadd.f32 %v2205, %v2206
    %v2208 = vmul.f32 %v2207, 0.03125
    %v2209 = vmul.f32 %v2190, %v2190
    %v2210 = vsub.f32 %v2208, %v2209
    %v2211 = vadd.f32 %v2210, 1e-05
    %v2212 = vrsqrt.pop %v2211
    %v2213 = vmul.f32 %v396, %v2212
    %v2214 = vmul.f32 %v2190, %v2213
    %v2215 = vsub.f32 %v397, %v2214
    %v2217 = vlaneseq
    %v2218 = vshrl.u32 %v2217, 7
    %v2219 = vsub.s32 0, %v2218
    %v2220 = vrot.slane %v2213, %v2219
    %v2222 = vmul.f32 %v2172, %v2220
    %v2223 = vmul.f32 %v2173, %v2220
    %v2224 = vmul.f32 %v2174, %v2220
    %v2225 = vmul.f32 %v2175, %v2220
    %v2227 = vlaneseq
    %v2228 = vshrl.u32 %v2227, 7
    %v2229 = vsub.s32 0, %v2228
    %v2230 = vrot.slane %v2215, %v2229
    %v2232 = vadd.f32 %v2222, %v2230
    %v2233 = vadd.f32 %v2223, %v2230
    %v2234 = vadd.f32 %v2224, %v2230
    %v2235 = vadd.f32 %v2225, %v2230
    %v2236 = vld [vmem:[#allocation14] sm:$0x1]
    %v2237 = vld [vmem:[#allocation16] sm:$0x1]
    %v2238 = vld [vmem:[#allocation17] sm:$0x1]
    %v2239 = vld [vmem:[#allocation11] sm:$0xff]
    %vm2240 = vcmask 261120
    %v2242 = vsel %vm2240, %v2239, 0
    %2244 = vmatprep.subr.mxu0 0.0
    %2245 = vmatpush1.msra.mxu0 %v2232
    %2246 = vmatprep.subr.mxu0 0.0
    %2247 = vmatpush1.msra.mxu0 %v2233
    %2248 = vmatprep.subr.mxu0 0.0
    %2249 = vmatpush1.msra.mxu0 %v2234
    %2250 = vmatprep.subr.mxu0 0.0
    %2251 = vmatpush1.msra.mxu0 %v2235
    %2252 = vmatprep.subr.mxu0 0.0
    %2253 = vmatpush1.msra.mxu0 0.0
    %2254 = vmatprep.subr.mxu0 0.0
    %2255 = vmatpush1.msra.mxu0 0.0
    %2256 = vmatprep.subr.mxu0 0.0
    %2257 = vmatpush1.msra.mxu0 0.0
    %2258 = vmatprep.subr.mxu0 0.0
    %2259 = vmatpush1.msra.mxu0 0.0
    %2260 = vmatprep.subr.mxu0 0.0
    %2261 = vmatpush1.msra.mxu0 0.0
    %2262 = vmatprep.subr.mxu0 0.0
    %2263 = vmatpush1.msra.mxu0 0.0
    %2264 = vmatprep.subr.mxu0 0.0
    %2265 = vmatpush1.msra.mxu0 0.0
    %2266 = vmatprep.subr.mxu0 0.0
    %2267 = vmatpush1.msra.mxu0 0.0
    %2268 = vmatprep.subr.mxu0 0.0
    %2269 = vmatpush1.msra.mxu0 0.0
    %2270 = vmatprep.subr.mxu0 0.0
    %2271 = vmatpush1.msra.mxu0 0.0
    %2272 = vmatprep.subr.mxu0 0.0
    %2273 = vmatpush1.msra.mxu0 0.0
    %2274 = vmatprep.subr.mxu0 0.0
    %2275 = vmatpush1.msra.mxu0 0.0
    %2276 = vmatprep.subr.mxu0 0.0
    %2277 = vmatpush1.msra.mxu0 0.0
    %2278 = vmatprep.subr.mxu0 0.0
    %2279 = vmatpush1.msra.mxu0 0.0
    %2280 = vmatprep.subr.mxu0 0.0
    %2281 = vmatpush1.msra.mxu0 0.0
    %2282 = vmatprep.subr.mxu0 0.0
    %2283 = vmatpush1.msra.mxu0 0.0
    %2284 = vmatprep.subr.mxu0 0.0
    %2285 = vmatpush1.msra.mxu0 0.0
    %2286 = vmatprep.subr.mxu0 0.0
    %2287 = vmatpush1.msra.mxu0 0.0
    %2288 = vmatprep.subr.mxu0 0.0
    %2289 = vmatpush1.msra.mxu0 0.0
    %2290 = vmatprep.subr.mxu0 0.0
    %2291 = vmatpush1.msra.mxu0 0.0
    %2292 = vmatprep.subr.mxu0 0.0
    %2293 = vmatpush1.msra.mxu0 0.0
    %2294 = vmatprep.subr.mxu0 0.0
    %2295 = vmatpush1.msra.mxu0 0.0
    %2296 = vmatprep.subr.mxu0 0.0
    %2297 = vmatpush1.msra.mxu0 0.0
    %2298 = vmatprep.subr.mxu0 0.0
    %2299 = vmatpush1.msra.mxu0 0.0
    %2300 = vmatprep.subr.mxu0 0.0
    %2301 = vmatpush1.msra.mxu0 0.0
    %2302 = vmatprep.subr.mxu0 0.0
    %2303 = vmatpush1.msra.mxu0 0.0
    %2304 = vmatprep.subr.mxu0 0.0
    %2305 = vmatpush1.msra.mxu0 0.0
    %2306 = vmatprep.subr.mxu0 0.0
    %2307 = vmatpush1.msra.mxu0 0.0
    %2308 = vmatprep.mubr.f32.mxu0 0.0
    %2309 = vmatmul.mubr.f32.gmra.mrb[0].mxu0 %v2242
    %v2310 = vpop.f32.mrb[0].mxu0
    %v2311 = vadd.f32 0.0, %v2310
    %v2312 = vpop.f32.mrb[0].mxu0
    %2313 = vdwg.mxu0
    %v2314 = vld [vmem:[#allocation13] sm:$0xff]
    %v2315 = vld [vmem:[#allocation13 + $0x8] sm:$0xff]
    %v2316 = vld [vmem:[#allocation13 + $0x10] sm:$0xff]
    %v2317 = vld [vmem:[#allocation13 + $0x18] sm:$0xff]
    %v2318 = vld [vmem:[#allocation13 + $0x20] sm:$0xff]
    %v2319 = vld [vmem:[#allocation13 + $0x28] sm:$0xff]
    %v2320 = vld [vmem:[#allocation13 + $0x30] sm:$0xff]
    %v2321 = vld [vmem:[#allocation13 + $0x38] sm:$0xff]
    %s2322 = scalar_lea.vmem [#allocation11], 8
    %v2323 = vld [vmem:[%s2322] sm:$0xff]
    %v2325 = vsel %vm2240, %v2323, 0
    %2327 = vmatprep.subr.mxu0 0.0
    %2328 = vmatpush1.msra.mxu0 %v2232
    %2329 = vmatprep.subr.mxu0 0.0
    %2330 = vmatpush1.msra.mxu0 %v2233
    %2331 = vmatprep.subr.mxu0 0.0
    %2332 = vmatpush1.msra.mxu0 %v2234
    %2333 = vmatprep.subr.mxu0 0.0
    %2334 = vmatpush1.msra.mxu0 %v2235
    %2335 = vmatprep.subr.mxu0 0.0
    %2336 = vmatpush1.msra.mxu0 0.0
    %2337 = vmatprep.subr.mxu0 0.0
    %2338 = vmatpush1.msra.mxu0 0.0
    %2339 = vmatprep.subr.mxu0 0.0
    %2340 = vmatpush1.msra.mxu0 0.0
    %2341 = vmatprep.subr.mxu0 0.0
    %2342 = vmatpush1.msra.mxu0 0.0
    %2343 = vmatprep.subr.mxu0 0.0
    %2344 = vmatpush1.msra.mxu0 0.0
    %2345 = vmatprep.subr.mxu0 0.0
    %2346 = vmatpush1.msra.mxu0 0.0
    %2347 = vmatprep.subr.mxu0 0.0
    %2348 = vmatpush1.msra.mxu0 0.0
    %2349 = vmatprep.subr.mxu0 0.0
    %2350 = vmatpush1.msra.mxu0 0.0
    %2351 = vmatprep.subr.mxu0 0.0
    %2352 = vmatpush1.msra.mxu0 0.0
    %2353 = vmatprep.subr.mxu0 0.0
    %2354 = vmatpush1.msra.mxu0 0.0
    %2355 = vmatprep.subr.mxu0 0.0
    %2356 = vmatpush1.msra.mxu0 0.0
    %2357 = vmatprep.subr.mxu0 0.0
    %2358 = vmatpush1.msra.mxu0 0.0
    %2359 = vmatprep.subr.mxu0 0.0
    %2360 = vmatpush1.msra.mxu0 0.0
    %2361 = vmatprep.subr.mxu0 0.0
    %2362 = vmatpush1.msra.mxu0 0.0
    %2363 = vmatprep.subr.mxu0 0.0
    %2364 = vmatpush1.msra.mxu0 0.0
    %2365 = vmatprep.subr.mxu0 0.0
    %2366 = vmatpush1.msra.mxu0 0.0
    %2367 = vmatprep.subr.mxu0 0.0
    %2368 = vmatpush1.msra.mxu0 0.0
    %2369 = vmatprep.subr.mxu0 0.0
    %2370 = vmatpush1.msra.mxu0 0.0
    %2371 = vmatprep.subr.mxu0 0.0
    %2372 = vmatpush1.msra.mxu0 0.0
    %2373 = vmatprep.subr.mxu0 0.0
    %2374 = vmatpush1.msra.mxu0 0.0
    %2375 = vmatprep.subr.mxu0 0.0
    %2376 = vmatpush1.msra.mxu0 0.0
    %2377 = vmatprep.subr.mxu0 0.0
    %2378 = vmatpush1.msra.mxu0 0.0
    %2379 = vmatprep.subr.mxu0 0.0
    %2380 = vmatpush1.msra.mxu0 0.0
    %2381 = vmatprep.subr.mxu0 0.0
    %2382 = vmatpush1.msra.mxu0 0.0
    %2383 = vmatprep.subr.mxu0 0.0
    %2384 = vmatpush1.msra.mxu0 0.0
    %2385 = vmatprep.subr.mxu0 0.0
    %2386 = vmatpush1.msra.mxu0 0.0
    %2387 = vmatprep.subr.mxu0 0.0
    %2388 = vmatpush1.msra.mxu0 0.0
    %2389 = vmatprep.subr.mxu0 0.0
    %2390 = vmatpush1.msra.mxu0 0.0
    %2391 = vmatprep.mubr.f32.mxu0 0.0
    %2392 = vmatmul.mubr.f32.gmra.mrb[0].mxu0 %v2325
    %v2393 = vpop.f32.mrb[0].mxu0
    %v2394 = vadd.f32 0.0, %v2393
    %v2395 = vpop.f32.mrb[0].mxu0
    %2396 = vdwg.mxu0
    %s2397 = scalar_lea.vmem [#allocation13], 64
    %v2398 = vld [vmem:[%s2397] sm:$0xff]
    %v2399 = vld [vmem:[%s2397 + $0x8] sm:$0xff]
    %v2400 = vld [vmem:[%s2397 + $0x10] sm:$0xff]
    %v2401 = vld [vmem:[%s2397 + $0x18] sm:$0xff]
    %v2402 = vld [vmem:[%s2397 + $0x20] sm:$0xff]
    %v2403 = vld [vmem:[%s2397 + $0x28] sm:$0xff]
    %v2404 = vld [vmem:[%s2397 + $0x30] sm:$0xff]
    %v2405 = vld [vmem:[%s2397 + $0x38] sm:$0xff]
    %v2407 = vsel %vm2176, %v2394, 0
    %2409 = vmatprep.subr.mxu0 0.0
    %2410 = vmatpush1.msra.mxu0 %v2398
    %2411 = vmatprep.subr.mxu0 0.0
    %2412 = vmatpush1.msra.mxu0 %v2399
    %2413 = vmatprep.subr.mxu0 0.0
    %2414 = vmatpush1.msra.mxu0 %v2400
    %2415 = vmatprep.subr.mxu0 0.0
    %2416 = vmatpush1.msra.mxu0 %v2401
    %2417 = vmatprep.subr.mxu0 0.0
    %2418 = vmatpush1.msra.mxu0 %v2402
    %2419 = vmatprep.subr.mxu0 0.0
    %2420 = vmatpush1.msra.mxu0 %v2403
    %2421 = vmatprep.subr.mxu0 0.0
    %2422 = vmatpush1.msra.mxu0 %v2404
    %2423 = vmatprep.subr.mxu0 0.0
    %2424 = vmatpush1.msra.mxu0 %v2405
    %2425 = vmatprep.subr.mxu0 0.0
    %2426 = vmatpush1.msra.mxu0 0.0
    %2427 = vmatprep.subr.mxu0 0.0
    %2428 = vmatpush1.msra.mxu0 0.0
    %2429 = vmatprep.subr.mxu0 0.0
    %2430 = vmatpush1.msra.mxu0 0.0
    %2431 = vmatprep.subr.mxu0 0.0
    %2432 = vmatpush1.msra.mxu0 0.0
    %2433 = vmatprep.subr.mxu0 0.0
    %2434 = vmatpush1.msra.mxu0 0.0
    %2435 = vmatprep.subr.mxu0 0.0
    %2436 = vmatpush1.msra.mxu0 0.0
    %2437 = vmatprep.subr.mxu0 0.0
    %2438 = vmatpush1.msra.mxu0 0.0
    %2439 = vmatprep.subr.mxu0 0.0
    %2440 = vmatpush1.msra.mxu0 0.0
    %2441 = vmatprep.subr.mxu0 0.0
    %2442 = vmatpush1.msra.mxu0 0.0
    %2443 = vmatprep.subr.mxu0 0.0
    %2444 = vmatpush1.msra.mxu0 0.0
    %2445 = vmatprep.subr.mxu0 0.0
    %2446 = vmatpush1.msra.mxu0 0.0
    %2447 = vmatprep.subr.mxu0 0.0
    %2448 = vmatpush1.msra.mxu0 0.0
    %2449 = vmatprep.subr.mxu0 0.0
    %2450 = vmatpush1.msra.mxu0 0.0
    %2451 = vmatprep.subr.mxu0 0.0
    %2452 = vmatpush1.msra.mxu0 0.0
    %2453 = vmatprep.subr.mxu0 0.0
    %2454 = vmatpush1.msra.mxu0 0.0
    %2455 = vmatprep.subr.mxu0 0.0
    %2456 = vmatpush1.msra.mxu0 0.0
    %2457 = vmatprep.subr.mxu0 0.0
    %2458 = vmatpush1.msra.mxu0 0.0
    %2459 = vmatprep.subr.mxu0 0.0
    %2460 = vmatpush1.msra.mxu0 0.0
    %2461 = vmatprep.subr.mxu0 0.0
    %2462 = vmatpush1.msra.mxu0 0.0
    %2463 = vmatprep.subr.mxu0 0.0
    %2464 = vmatpush1.msra.mxu0 0.0
    %2465 = vmatprep.subr.mxu0 0.0
    %2466 = vmatpush1.msra.mxu0 0.0
    %2467 = vmatprep.subr.mxu0 0.0
    %2468 = vmatpush1.msra.mxu0 0.0
    %2469 = vmatprep.subr.mxu0 0.0
    %2470 = vmatpush1.msra.mxu0 0.0
    %2471 = vmatprep.subr.mxu0 0.0
    %2472 = vmatpush1.msra.mxu0 0.0
    %2473 = vmatprep.mubr.f32.mxu0 0.0
    %2474 = vmatmul.mubr.f32.gmra.mrb[0].mxu0 %v2407
    %v2475 = vpop.f32.mrb[0].mxu0
    %v2476 = vadd.f32 0.0, %v2475
    %v2477 = vpop.f32.mrb[0].mxu0
    %2478 = vdwg.mxu0
    %v2480 = vsel %vm2176, %v2311, 0
    %2482 = vmatprep.subr.mxu0 0.0
    %2483 = vmatpush1.msra.mxu0 %v2314
    %2484 = vmatprep.subr.mxu0 0.0
    %2485 = vmatpush1.msra.mxu0 %v2315
    %2486 = vmatprep.subr.mxu0 0.0
    %2487 = vmatpush1.msra.mxu0 %v2316
    %2488 = vmatprep.subr.mxu0 0.0
    %2489 = vmatpush1.msra.mxu0 %v2317
    %2490 = vmatprep.subr.mxu0 0.0
    %2491 = vmatpush1.msra.mxu0 %v2318
    %2492 = vmatprep.subr.mxu0 0.0
    %2493 = vmatpush1.msra.mxu0 %v2319
    %2494 = vmatprep.subr.mxu0 0.0
    %2495 = vmatpush1.msra.mxu0 %v2320
    %2496 = vmatprep.subr.mxu0 0.0
    %2497 = vmatpush1.msra.mxu0 %v2321
    %2498 = vmatprep.subr.mxu0 0.0
    %2499 = vmatpush1.msra.mxu0 0.0
    %2500 = vmatprep.subr.mxu0 0.0
    %2501 = vmatpush1.msra.mxu0 0.0
    %2502 = vmatprep.subr.mxu0 0.0
    %2503 = vmatpush1.msra.mxu0 0.0
    %2504 = vmatprep.subr.mxu0 0.0
    %2505 = vmatpush1.msra.mxu0 0.0
    %2506 = vmatprep.subr.mxu0 0.0
    %2507 = vmatpush1.msra.mxu0 0.0
    %2508 = vmatprep.subr.mxu0 0.0
    %2509 = vmatpush1.msra.mxu0 0.0
    %2510 = vmatprep.subr.mxu0 0.0
    %2511 = vmatpush1.msra.mxu0 0.0
    %2512 = vmatprep.subr.mxu0 0.0
    %2513 = vmatpush1.msra.mxu0 0.0
    %2514 = vmatprep.subr.mxu0 0.0
    %2515 = vmatpush1.msra.mxu0 0.0
    %2516 = vmatprep.subr.mxu0 0.0
    %2517 = vmatpush1.msra.mxu0 0.0
    %2518 = vmatprep.subr.mxu0 0.0
    %2519 = vmatpush1.msra.mxu0 0.0
    %2520 = vmatprep.subr.mxu0 0.0
    %2521 = vmatpush1.msra.mxu0 0.0
    %2522 = vmatprep.subr.mxu0 0.0
    %2523 = vmatpush1.msra.mxu0 0.0
    %2524 = vmatprep.subr.mxu0 0.0
    %2525 = vmatpush1.msra.mxu0 0.0
    %2526 = vmatprep.subr.mxu0 0.0
    %2527 = vmatpush1.msra.mxu0 0.0
    %2528 = vmatprep.subr.mxu0 0.0
    %2529 = vmatpush1.msra.mxu0 0.0
    %2530 = vmatprep.subr.mxu0 0.0
    %2531 = vmatpush1.msra.mxu0 0.0
    %2532 = vmatprep.subr.mxu0 0.0
    %2533 = vmatpush1.msra.mxu0 0.0
    %2534 = vmatprep.subr.mxu0 0.0
    %2535 = vmatpush1.msra.mxu0 0.0
    %2536 = vmatprep.subr.mxu0 0.0
    %2537 = vmatpush1.msra.mxu0 0.0
    %2538 = vmatprep.subr.mxu0 0.0
    %2539 = vmatpush1.msra.mxu0 0.0
    %2540 = vmatprep.subr.mxu0 0.0
    %2541 = vmatpush1.msra.mxu0 0.0
    %2542 = vmatprep.subr.mxu0 0.0
    %2543 = vmatpush1.msra.mxu0 0.0
    %2544 = vmatprep.subr.mxu0 0.0
    %2545 = vmatpush1.msra.mxu0 0.0
    %2546 = vmatprep.mubr.f32.mxu0 0.0
    %2547 = vmatmul.mubr.f32.gmra.mrb[0].mxu0 %v2480
    %v2548 = vpop.f32.mrb[0].mxu0
    %v2549 = vadd.f32 %v2476, %v2548
    %v2550 = vpop.f32.mrb[0].mxu0
    %2551 = vdwg.mxu0
    %s2552 = scalar_lea.vmem [#allocation11], 16
    %v2553 = vld [vmem:[%s2552] sm:$0xff]
    %v2555 = vsel %vm2240, %v2553, 0
    %2557 = vmatprep.subr.mxu0 0.0
    %2558 = vmatpush1.msra.mxu0 %v2232
    %2559 = vmatprep.subr.mxu0 0.0
    %2560 = vmatpush1.msra.mxu0 %v2233
    %2561 = vmatprep.subr.mxu0 0.0
    %2562 = vmatpush1.msra.mxu0 %v2234
    %2563 = vmatprep.subr.mxu0 0.0
    %2564 = vmatpush1.msra.mxu0 %v2235
    %2565 = vmatprep.subr.mxu0 0.0
    %2566 = vmatpush1.msra.mxu0 0.0
    %2567 = vmatprep.subr.mxu0 0.0
    %2568 = vmatpush1.msra.mxu0 0.0
    %2569 = vmatprep.subr.mxu0 0.0
    %2570 = vmatpush1.msra.mxu0 0.0
    %2571 = vmatprep.subr.mxu0 0.0
    %2572 = vmatpush1.msra.mxu0 0.0
    %2573 = vmatprep.subr.mxu0 0.0
    %2574 = vmatpush1.msra.mxu0 0.0
    %2575 = vmatprep.subr.mxu0 0.0
    %2576 = vmatpush1.msra.mxu0 0.0
    %2577 = vmatprep.subr.mxu0 0.0
    %2578 = vmatpush1.msra.mxu0 0.0
    %2579 = vmatprep.subr.mxu0 0.0
    %2580 = vmatpush1.msra.mxu0 0.0
    %2581 = vmatprep.subr.mxu0 0.0
    %2582 = vmatpush1.msra.mxu0 0.0
    %2583 = vmatprep.subr.mxu0 0.0
    %2584 = vmatpush1.msra.mxu0 0.0
    %2585 = vmatprep.subr.mxu0 0.0
    %2586 = vmatpush1.msra.mxu0 0.0
    %2587 = vmatprep.subr.mxu0 0.0
    %2588 = vmatpush1.msra.mxu0 0.0
    %2589 = vmatprep.subr.mxu0 0.0
    %2590 = vmatpush1.msra.mxu0 0.0
    %2591 = vmatprep.subr.mxu0 0.0
    %2592 = vmatpush1.msra.mxu0 0.0
    %2593 = vmatprep.subr.mxu0 0.0
    %2594 = vmatpush1.msra.mxu0 0.0
    %2595 = vmatprep.subr.mxu0 0.0
    %2596 = vmatpush1.msra.mxu0 0.0
    %2597 = vmatprep.subr.mxu0 0.0
    %2598 = vmatpush1.msra.mxu0 0.0
    %2599 = vmatprep.subr.mxu0 0.0
    %2600 = vmatpush1.msra.mxu0 0.0
    %2601 = vmatprep.subr.mxu0 0.0
    %2602 = vmatpush1.msra.mxu0 0.0
    %2603 = vmatprep.subr.mxu0 0.0
    %2604 = vmatpush1.msra.mxu0 0.0
    %2605 = vmatprep.subr.mxu0 0.0
    %2606 = vmatpush1.msra.mxu0 0.0
    %2607 = vmatprep.subr.mxu0 0.0
    %2608 = vmatpush1.msra.mxu0 0.0
    %2609 = vmatprep.subr.mxu0 0.0
    %2610 = vmatpush1.msra.mxu0 0.0
    %2611 = vmatprep.subr.mxu0 0.0
    %2612 = vmatpush1.msra.mxu0 0.0
    %2613 = vmatprep.subr.mxu0 0.0
    %2614 = vmatpush1.msra.mxu0 0.0
    %2615 = vmatprep.subr.mxu0 0.0
    %2616 = vmatpush1.msra.mxu0 0.0
    %2617 = vmatprep.subr.mxu0 0.0
    %2618 = vmatpush1.msra.mxu0 0.0
    %2619 = vmatprep.subr.mxu0 0.0
    %2620 = vmatpush1.msra.mxu0 0.0
    %2621 = vmatprep.mubr.f32.mxu0 0.0
    %2622 = vmatmul.mubr.f32.gmra.mrb[0].mxu0 %v2555
    %v2623 = vpop.f32.mrb[0].mxu0
    %v2624 = vadd.f32 0.0, %v2623
    %v2625 = vpop.f32.mrb[0].mxu0
    %2626 = vdwg.mxu0
    %s2627 = scalar_lea.vmem [#allocation13], 128
    %v2628 = vld [vmem:[%s2627] sm:$0xff]
    %v2629 = vld [vmem:[%s2627 + $0x8] sm:$0xff]
    %v2630 = vld [vmem:[%s2627 + $0x10] sm:$0xff]
    %v2631 = vld [vmem:[%s2627 + $0x18] sm:$0xff]
    %v2632 = vld [vmem:[%s2627 + $0x20] sm:$0xff]
    %v2633 = vld [vmem:[%s2627 + $0x28] sm:$0xff]
    %v2634 = vld [vmem:[%s2627 + $0x30] sm:$0xff]
    %v2635 = vld [vmem:[%s2627 + $0x38] sm:$0xff]
    %v2637 = vsel %vm2176, %v2624, 0
    %2639 = vmatprep.subr.mxu0 0.0
    %2640 = vmatpush1.msra.mxu0 %v2628
    %2641 = vmatprep.subr.mxu0 0.0
    %2642 = vmatpush1.msra.mxu0 %v2629
    %2643 = vmatprep.subr.mxu0 0.0
    %2644 = vmatpush1.msra.mxu0 %v2630
    %2645 = vmatprep.subr.mxu0 0.0
    %2646 = vmatpush1.msra.mxu0 %v2631
    %2647 = vmatprep.subr.mxu0 0.0
    %2648 = vmatpush1.msra.mxu0 %v2632
    %2649 = vmatprep.subr.mxu0 0.0
    %2650 = vmatpush1.msra.mxu0 %v2633
    %2651 = vmatprep.subr.mxu0 0.0
    %2652 = vmatpush1.msra.mxu0 %v2634
    %2653 = vmatprep.subr.mxu0 0.0
    %2654 = vmatpush1.msra.mxu0 %v2635
    %2655 = vmatprep.subr.mxu0 0.0
    %2656 = vmatpush1.msra.mxu0 0.0
    %2657 = vmatprep.subr.mxu0 0.0
    %2658 = vmatpush1.msra.mxu0 0.0
    %2659 = vmatprep.subr.mxu0 0.0
    %2660 = vmatpush1.msra.mxu0 0.0
    %2661 = vmatprep.subr.mxu0 0.0
    %2662 = vmatpush1.msra.mxu0 0.0
    %2663 = vmatprep.subr.mxu0 0.0
    %2664 = vmatpush1.msra.mxu0 0.0
    %2665 = vmatprep.subr.mxu0 0.0
    %2666 = vmatpush1.msra.mxu0 0.0
    %2667 = vmatprep.subr.mxu0 0.0
    %2668 = vmatpush1.msra.mxu0 0.0
    %2669 = vmatprep.subr.mxu0 0.0
    %2670 = vmatpush1.msra.mxu0 0.0
    %2671 = vmatprep.subr.mxu0 0.0
    %2672 = vmatpush1.msra.mxu0 0.0
    %2673 = vmatprep.subr.mxu0 0.0
    %2674 = vmatpush1.msra.mxu0 0.0
    %2675 = vmatprep.subr.mxu0 0.0
    %2676 = vmatpush1.msra.mxu0 0.0
    %2677 = vmatprep.subr.mxu0 0.0
    %2678 = vmatpush1.msra.mxu0 0.0
    %2679 = vmatprep.subr.mxu0 0.0
    %2680 = vmatpush1.msra.mxu0 0.0
    %2681 = vmatprep.subr.mxu0 0.0
    %2682 = vmatpush1.msra.mxu0 0.0
    %2683 = vmatprep.subr.mxu0 0.0
    %2684 = vmatpush1.msra.mxu0 0.0
    %2685 = vmatprep.subr.mxu0 0.0
    %2686 = vmatpush1.msra.mxu0 0.0
    %2687 = vmatprep.subr.mxu0 0.0
    %2688 = vmatpush1.msra.mxu0 0.0
    %2689 = vmatprep.subr.mxu0 0.0
    %2690 = vmatpush1.msra.mxu0 0.0
    %2691 = vmatprep.subr.mxu0 0.0
    %2692 = vmatpush1.msra.mxu0 0.0
    %2693 = vmatprep.subr.mxu0 0.0
    %2694 = vmatpush1.msra.mxu0 0.0
    %2695 = vmatprep.subr.mxu0 0.0
    %2696 = vmatpush1.msra.mxu0 0.0
    %2697 = vmatprep.subr.mxu0 0.0
    %2698 = vmatpush1.msra.mxu0 0.0
    %2699 = vmatprep.subr.mxu0 0.0
    %2700 = vmatpush1.msra.mxu0 0.0
    %2701 = vmatprep.subr.mxu0 0.0
    %2702 = vmatpush1.msra.mxu0 0.0
    %2703 = vmatprep.mubr.f32.mxu0 0.0
    %2704 = vmatmul.mubr.f32.gmra.mrb[0].mxu0 %v2637
    %v2705 = vpop.f32.mrb[0].mxu0
    %v2706 = vadd.f32 0.0, %v2705
    %v2707 = vpop.f32.mrb[0].mxu0
    %2708 = vdwg.mxu0
    %v2709 = vadd.f32 %v2549, %v2706
    %s2710 = scalar_lea.vmem [#allocation11], 24
    %v2711 = vld [vmem:[%s2710] sm:$0xff]
    %v2713 = vsel %vm2240, %v2711, 0
    %2715 = vmatprep.subr.mxu0 0.0
    %2716 = vmatpush1.msra.mxu0 %v2232
    %2717 = vmatprep.subr.mxu0 0.0
    %2718 = vmatpush1.msra.mxu0 %v2233
    %2719 = vmatprep.subr.mxu0 0.0
    %2720 = vmatpush1.msra.mxu0 %v2234
    %2721 = vmatprep.subr.mxu0 0.0
    %2722 = vmatpush1.msra.mxu0 %v2235
    %2723 = vmatprep.subr.mxu0 0.0
    %2724 = vmatpush1.msra.mxu0 0.0
    %2725 = vmatprep.subr.mxu0 0.0
    %2726 = vmatpush1.msra.mxu0 0.0
    %2727 = vmatprep.subr.mxu0 0.0
    %2728 = vmatpush1.msra.mxu0 0.0
    %2729 = vmatprep.subr.mxu0 0.0
    %2730 = vmatpush1.msra.mxu0 0.0
    %2731 = vmatprep.subr.mxu0 0.0
    %2732 = vmatpush1.msra.mxu0 0.0
    %2733 = vmatprep.subr.mxu0 0.0
    %2734 = vmatpush1.msra.mxu0 0.0
    %2735 = vmatprep.subr.mxu0 0.0
    %2736 = vmatpush1.msra.mxu0 0.0
    %2737 = vmatprep.subr.mxu0 0.0
    %2738 = vmatpush1.msra.mxu0 0.0
    %2739 = vmatprep.subr.mxu0 0.0
    %2740 = vmatpush1.msra.mxu0 0.0
    %2741 = vmatprep.subr.mxu0 0.0
    %2742 = vmatpush1.msra.mxu0 0.0
    %2743 = vmatprep.subr.mxu0 0.0
    %2744 = vmatpush1.msra.mxu0 0.0
    %2745 = vmatprep.subr.mxu0 0.0
    %2746 = vmatpush1.msra.mxu0 0.0
    %2747 = vmatprep.subr.mxu0 0.0
    %2748 = vmatpush1.msra.mxu0 0.0
    %2749 = vmatprep.subr.mxu0 0.0
    %2750 = vmatpush1.msra.mxu0 0.0
    %2751 = vmatprep.subr.mxu0 0.0
    %2752 = vmatpush1.msra.mxu0 0.0
    %2753 = vmatprep.subr.mxu0 0.0
    %2754 = vmatpush1.msra.mxu0 0.0
    %2755 = vmatprep.subr.mxu0 0.0
    %2756 = vmatpush1.msra.mxu0 0.0
    %2757 = vmatprep.subr.mxu0 0.0
    %2758 = vmatpush1.msra.mxu0 0.0
    %2759 = vmatprep.subr.mxu0 0.0
    %2760 = vmatpush1.msra.mxu0 0.0
    %2761 = vmatprep.subr.mxu0 0.0
    %2762 = vmatpush1.msra.mxu0 0.0
    %2763 = vmatprep.subr.mxu0 0.0
    %2764 = vmatpush1.msra.mxu0 0.0
    %2765 = vmatprep.subr.mxu0 0.0
    %2766 = vmatpush1.msra.mxu0 0.0
    %2767 = vmatprep.subr.mxu0 0.0
    %2768 = vmatpush1.msra.mxu0 0.0
    %2769 = vmatprep.subr.mxu0 0.0
    %2770 = vmatpush1.msra.mxu0 0.0
    %2771 = vmatprep.subr.mxu0 0.0
    %2772 = vmatpush1.msra.mxu0 0.0
    %2773 = vmatprep.subr.mxu0 0.0
    %2774 = vmatpush1.msra.mxu0 0.0
    %2775 = vmatprep.subr.mxu0 0.0
    %2776 = vmatpush1.msra.mxu0 0.0
    %2777 = vmatprep.subr.mxu0 0.0
    %2778 = vmatpush1.msra.mxu0 0.0
    %2779 = vmatprep.mubr.f32.mxu0 0.0
    %2780 = vmatmul.mubr.f32.gmra.mrb[0].mxu0 %v2713
    %v2781 = vpop.f32.mrb[0].mxu0
    %v2782 = vadd.f32 0.0, %v2781
    %v2783 = vpop.f32.mrb[0].mxu0
    %2784 = vdwg.mxu0
    %s2785 = scalar_lea.vmem [#allocation13], 192
    %v2786 = vld [vmem:[%s2785] sm:$0xff]
    %v2787 = vld [vmem:[%s2785 + $0x8] sm:$0xff]
    %v2788 = vld [vmem:[%s2785 + $0x10] sm:$0xff]
    %v2789 = vld [vmem:[%s2785 + $0x18] sm:$0xff]
    %v2790 = vld [vmem:[%s2785 + $0x20] sm:$0xff]
    %v2791 = vld [vmem:[%s2785 + $0x28] sm:$0xff]
    %v2792 = vld [vmem:[%s2785 + $0x30] sm:$0xff]
    %v2793 = vld [vmem:[%s2785 + $0x38] sm:$0xff]
    %v2795 = vsel %vm2176, %v2782, 0
    %2797 = vmatprep.subr.mxu0 0.0
    %2798 = vmatpush1.msra.mxu0 %v2786
    %2799 = vmatprep.subr.mxu0 0.0
    %2800 = vmatpush1.msra.mxu0 %v2787
    %2801 = vmatprep.subr.mxu0 0.0
    %2802 = vmatpush1.msra.mxu0 %v2788
    %2803 = vmatprep.subr.mxu0 0.0
    %2804 = vmatpush1.msra.mxu0 %v2789
    %2805 = vmatprep.subr.mxu0 0.0
    %2806 = vmatpush1.msra.mxu0 %v2790
    %2807 = vmatprep.subr.mxu0 0.0
    %2808 = vmatpush1.msra.mxu0 %v2791
    %2809 = vmatprep.subr.mxu0 0.0
    %2810 = vmatpush1.msra.mxu0 %v2792
    %2811 = vmatprep.subr.mxu0 0.0
    %2812 = vmatpush1.msra.mxu0 %v2793
    %2813 = vmatprep.subr.mxu0 0.0
    %2814 = vmatpush1.msra.mxu0 0.0
    %2815 = vmatprep.subr.mxu0 0.0
    %2816 = vmatpush1.msra.mxu0 0.0
    %2817 = vmatprep.subr.mxu0 0.0
    %2818 = vmatpush1.msra.mxu0 0.0
    %2819 = vmatprep.subr.mxu0 0.0
    %2820 = vmatpush1.msra.mxu0 0.0
    %2821 = vmatprep.subr.mxu0 0.0
    %2822 = vmatpush1.msra.mxu0 0.0
    %2823 = vmatprep.subr.mxu0 0.0
    %2824 = vmatpush1.msra.mxu0 0.0
    %2825 = vmatprep.subr.mxu0 0.0
    %2826 = vmatpush1.msra.mxu0 0.0
    %2827 = vmatprep.subr.mxu0 0.0
    %2828 = vmatpush1.msra.mxu0 0.0
    %2829 = vmatprep.subr.mxu0 0.0
    %2830 = vmatpush1.msra.mxu0 0.0
    %2831 = vmatprep.subr.mxu0 0.0
    %2832 = vmatpush1.msra.mxu0 0.0
    %2833 = vmatprep.subr.mxu0 0.0
    %2834 = vmatpush1.msra.mxu0 0.0
    %2835 = vmatprep.subr.mxu0 0.0
    %2836 = vmatpush1.msra.mxu0 0.0
    %2837 = vmatprep.subr.mxu0 0.0
    %2838 = vmatpush1.msra.mxu0 0.0
    %2839 = vmatprep.subr.mxu0 0.0
    %2840 = vmatpush1.msra.mxu0 0.0
    %2841 = vmatprep.subr.mxu0 0.0
    %2842 = vmatpush1.msra.mxu0 0.0
    %2843 = vmatprep.subr.mxu0 0.0
    %2844 = vmatpush1.msra.mxu0 0.0
    %2845 = vmatprep.subr.mxu0 0.0
    %2846 = vmatpush1.msra.mxu0 0.0
    %2847 = vmatprep.subr.mxu0 0.0
    %2848 = vmatpush1.msra.mxu0 0.0
    %2849 = vmatprep.subr.mxu0 0.0
    %2850 = vmatpush1.msra.mxu0 0.0
    %2851 = vmatprep.subr.mxu0 0.0
    %2852 = vmatpush1.msra.mxu0 0.0
    %2853 = vmatprep.subr.mxu0 0.0
    %2854 = vmatpush1.msra.mxu0 0.0
    %2855 = vmatprep.subr.mxu0 0.0
    %2856 = vmatpush1.msra.mxu0 0.0
    %2857 = vmatprep.subr.mxu0 0.0
    %2858 = vmatpush1.msra.mxu0 0.0
    %2859 = vmatprep.subr.mxu0 0.0
    %2860 = vmatpush1.msra.mxu0 0.0
    %2861 = vmatprep.mubr.f32.mxu0 0.0
    %2862 = vmatmul.mubr.f32.gmra.mrb[0].mxu0 %v2795
    %v2863 = vpop.f32.mrb[0].mxu0
    %v2864 = vadd.f32 0.0, %v2863
    %v2865 = vpop.f32.mrb[0].mxu0
    %2866 = vdwg.mxu0
    %v2867 = vadd.f32 %v2709, %v2864
    %s2868 = scalar_lea.vmem [#allocation11], 32
    %v2869 = vld [vmem:[%s2868] sm:$0xff]
    %v2871 = vsel %vm2240, %v2869, 0
    %2873 = vmatprep.subr.mxu0 0.0
    %2874 = vmatpush1.msra.mxu0 %v2232
    %2875 = vmatprep.subr.mxu0 0.0
    %2876 = vmatpush1.msra.mxu0 %v2233
    %2877 = vmatprep.subr.mxu0 0.0
    %2878 = vmatpush1.msra.mxu0 %v2234
    %2879 = vmatprep.subr.mxu0 0.0
    %2880 = vmatpush1.msra.mxu0 %v2235
    %2881 = vmatprep.subr.mxu0 0.0
    %2882 = vmatpush1.msra.mxu0 0.0
    %2883 = vmatprep.subr.mxu0 0.0
    %2884 = vmatpush1.msra.mxu0 0.0
    %2885 = vmatprep.subr.mxu0 0.0
    %2886 = vmatpush1.msra.mxu0 0.0
    %2887 = vmatprep.subr.mxu0 0.0
    %2888 = vmatpush1.msra.mxu0 0.0
    %2889 = vmatprep.subr.mxu0 0.0
    %2890 = vmatpush1.msra.mxu0 0.0
    %2891 = vmatprep.subr.mxu0 0.0
    %2892 = vmatpush1.msra.mxu0 0.0
    %2893 = vmatprep.subr.mxu0 0.0
    %2894 = vmatpush1.msra.mxu0 0.0
    %2895 = vmatprep.subr.mxu0 0.0
    %2896 = vmatpush1.msra.mxu0 0.0
    %2897 = vmatprep.subr.mxu0 0.0
    %2898 = vmatpush1.msra.mxu0 0.0
    %2899 = vmatprep.subr.mxu0 0.0
    %2900 = vmatpush1.msra.mxu0 0.0
    %2901 = vmatprep.subr.mxu0 0.0
    %2902 = vmatpush1.msra.mxu0 0.0
    %2903 = vmatprep.subr.mxu0 0.0
    %2904 = vmatpush1.msra.mxu0 0.0
    %2905 = vmatprep.subr.mxu0 0.0
    %2906 = vmatpush1.msra.mxu0 0.0
    %2907 = vmatprep.subr.mxu0 0.0
    %2908 = vmatpush1.msra.mxu0 0.0
    %2909 = vmatprep.subr.mxu0 0.0
    %2910 = vmatpush1.msra.mxu0 0.0
    %2911 = vmatprep.subr.mxu0 0.0
    %2912 = vmatpush1.msra.mxu0 0.0
    %2913 = vmatprep.subr.mxu0 0.0
    %2914 = vmatpush1.msra.mxu0 0.0
    %2915 = vmatprep.subr.mxu0 0.0
    %2916 = vmatpush1.msra.mxu0 0.0
    %2917 = vmatprep.subr.mxu0 0.0
    %2918 = vmatpush1.msra.mxu0 0.0
    %2919 = vmatprep.subr.mxu0 0.0
    %2920 = vmatpush1.msra.mxu0 0.0
    %2921 = vmatprep.subr.mxu0 0.0
    %2922 = vmatpush1.msra.mxu0 0.0
    %2923 = vmatprep.subr.mxu0 0.0
    %2924 = vmatpush1.msra.mxu0 0.0
    %2925 = vmatprep.subr.mxu0 0.0
    %2926 = vmatpush1.msra.mxu0 0.0
    %2927 = vmatprep.subr.mxu0 0.0
    %2928 = vmatpush1.msra.mxu0 0.0
    %2929 = vmatprep.subr.mxu0 0.0
    %2930 = vmatpush1.msra.mxu0 0.0
    %2931 = vmatprep.subr.mxu0 0.0
    %2932 = vmatpush1.msra.mxu0 0.0
    %2933 = vmatprep.subr.mxu0 0.0
    %2934 = vmatpush1.msra.mxu0 0.0
    %2935 = vmatprep.subr.mxu0 0.0
    %2936 = vmatpush1.msra.mxu0 0.0
    %2937 = vmatprep.mubr.f32.mxu0 0.0
    %2938 = vmatmul.mubr.f32.gmra.mrb[0].mxu0 %v2871
    %v2939 = vpop.f32.mrb[0].mxu0
    %v2940 = vadd.f32 0.0, %v2939
    %v2941 = vpop.f32.mrb[0].mxu0
    %2942 = vdwg.mxu0
    %s2943 = scalar_lea.vmem [#allocation13], 256
    %v2944 = vld [vmem:[%s2943] sm:$0xff]
    %v2945 = vld [vmem:[%s2943 + $0x8] sm:$0xff]
    %v2946 = vld [vmem:[%s2943 + $0x10] sm:$0xff]
    %v2947 = vld [vmem:[%s2943 + $0x18] sm:$0xff]
    %v2948 = vld [vmem:[%s2943 + $0x20] sm:$0xff]
    %v2949 = vld [vmem:[%s2943 + $0x28] sm:$0xff]
    %v2950 = vld [vmem:[%s2943 + $0x30] sm:$0xff]
    %v2951 = vld [vmem:[%s2943 + $0x38] sm:$0xff]
    %v2953 = vsel %vm2176, %v2940, 0
    %2955 = vmatprep.subr.mxu0 0.0
    %2956 = vmatpush1.msra.mxu0 %v2944
    %2957 = vmatprep.subr.mxu0 0.0
    %2958 = vmatpush1.msra.mxu0 %v2945
    %2959 = vmatprep.subr.mxu0 0.0
    %2960 = vmatpush1.msra.mxu0 %v2946
    %2961 = vmatprep.subr.mxu0 0.0
    %2962 = vmatpush1.msra.mxu0 %v2947
    %2963 = vmatprep.subr.mxu0 0.0
    %2964 = vmatpush1.msra.mxu0 %v2948
    %2965 = vmatprep.subr.mxu0 0.0
    %2966 = vmatpush1.msra.mxu0 %v2949
    %2967 = vmatprep.subr.mxu0 0.0
    %2968 = vmatpush1.msra.mxu0 %v2950
    %2969 = vmatprep.subr.mxu0 0.0
    %2970 = vmatpush1.msra.mxu0 %v2951
    %2971 = vmatprep.subr.mxu0 0.0
    %2972 = vmatpush1.msra.mxu0 0.0
    %2973 = vmatprep.subr.mxu0 0.0
    %2974 = vmatpush1.msra.mxu0 0.0
    %2975 = vmatprep.subr.mxu0 0.0
    %2976 = vmatpush1.msra.mxu0 0.0
    %2977 = vmatprep.subr.mxu0 0.0
    %2978 = vmatpush1.msra.mxu0 0.0
    %2979 = vmatprep.subr.mxu0 0.0
    %2980 = vmatpush1.msra.mxu0 0.0
    %2981 = vmatprep.subr.mxu0 0.0
    %2982 = vmatpush1.msra.mxu0 0.0
    %2983 = vmatprep.subr.mxu0 0.0
    %2984 = vmatpush1.msra.mxu0 0.0
    %2985 = vmatprep.subr.mxu0 0.0
    %2986 = vmatpush1.msra.mxu0 0.0
    %2987 = vmatprep.subr.mxu0 0.0
    %2988 = vmatpush1.msra.mxu0 0.0
    %2989 = vmatprep.subr.mxu0 0.0
    %2990 = vmatpush1.msra.mxu0 0.0
    %2991 = vmatprep.subr.mxu0 0.0
    %2992 = vmatpush1.msra.mxu0 0.0
    %2993 = vmatprep.subr.mxu0 0.0
    %2994 = vmatpush1.msra.mxu0 0.0
    %2995 = vmatprep.subr.mxu0 0.0
    %2996 = vmatpush1.msra.mxu0 0.0
    %2997 = vmatprep.subr.mxu0 0.0
    %2998 = vmatpush1.msra.mxu0 0.0
    %2999 = vmatprep.subr.mxu0 0.0
    %3000 = vmatpush1.msra.mxu0 0.0
    %3001 = vmatprep.subr.mxu0 0.0
    %3002 = vmatpush1.msra.mxu0 0.0
    %3003 = vmatprep.subr.mxu0 0.0
    %3004 = vmatpush1.msra.mxu0 0.0
    %3005 = vmatprep.subr.mxu0 0.0
    %3006 = vmatpush1.msra.mxu0 0.0
    %3007 = vmatprep.subr.mxu0 0.0
    %3008 = vmatpush1.msra.mxu0 0.0
    %3009 = vmatprep.subr.mxu0 0.0
    %3010 = vmatpush1.msra.mxu0 0.0
    %3011 = vmatprep.subr.mxu0 0.0
    %3012 = vmatpush1.msra.mxu0 0.0
    %3013 = vmatprep.subr.mxu0 0.0
    %3014 = vmatpush1.msra.mxu0 0.0
    %3015 = vmatprep.subr.mxu0 0.0
    %3016 = vmatpush1.msra.mxu0 0.0
    %3017 = vmatprep.subr.mxu0 0.0
    %3018 = vmatpush1.msra.mxu0 0.0
    %3019 = vmatprep.mubr.f32.mxu0 0.0
    %3020 = vmatmul.mubr.f32.gmra.mrb[0].mxu0 %v2953
    %v3021 = vpop.f32.mrb[0].mxu0
    %v3022 = vadd.f32 0.0, %v3021
    %v3023 = vpop.f32.mrb[0].mxu0
    %3024 = vdwg.mxu0
    %v3025 = vadd.f32 %v2867, %v3022
    %s3026 = scalar_lea.vmem [#allocation11], 40
    %v3027 = vld [vmem:[%s3026] sm:$0xff]
    %v3029 = vsel %vm2240, %v3027, 0
    %3031 = vmatprep.subr.mxu0 0.0
    %3032 = vmatpush1.msra.mxu0 %v2232
    %3033 = vmatprep.subr.mxu0 0.0
    %3034 = vmatpush1.msra.mxu0 %v2233
    %3035 = vmatprep.subr.mxu0 0.0
    %3036 = vmatpush1.msra.mxu0 %v2234
    %3037 = vmatprep.subr.mxu0 0.0
    %3038 = vmatpush1.msra.mxu0 %v2235
    %3039 = vmatprep.subr.mxu0 0.0
    %3040 = vmatpush1.msra.mxu0 0.0
    %3041 = vmatprep.subr.mxu0 0.0
    %3042 = vmatpush1.msra.mxu0 0.0
    %3043 = vmatprep.subr.mxu0 0.0
    %3044 = vmatpush1.msra.mxu0 0.0
    %3045 = vmatprep.subr.mxu0 0.0
    %3046 = vmatpush1.msra.mxu0 0.0
    %3047 = vmatprep.subr.mxu0 0.0
    %3048 = vmatpush1.msra.mxu0 0.0
    %3049 = vmatprep.subr.mxu0 0.0
    %3050 = vmatpush1.msra.mxu0 0.0
    %3051 = vmatprep.subr.mxu0 0.0
    %3052 = vmatpush1.msra.mxu0 0.0
    %3053 = vmatprep.subr.mxu0 0.0
    %3054 = vmatpush1.msra.mxu0 0.0
    %3055 = vmatprep.subr.mxu0 0.0
    %3056 = vmatpush1.msra.mxu0 0.0
    %3057 = vmatprep.subr.mxu0 0.0
    %3058 = vmatpush1.msra.mxu0 0.0
    %3059 = vmatprep.subr.mxu0 0.0
    %3060 = vmatpush1.msra.mxu0 0.0
    %3061 = vmatprep.subr.mxu0 0.0
    %3062 = vmatpush1.msra.mxu0 0.0
    %3063 = vmatprep.subr.mxu0 0.0
    %3064 = vmatpush1.msra.mxu0 0.0
    %3065 = vmatprep.subr.mxu0 0.0
    %3066 = vmatpush1.msra.mxu0 0.0
    %3067 = vmatprep.subr.mxu0 0.0
    %3068 = vmatpush1.msra.mxu0 0.0
    %3069 = vmatprep.subr.mxu0 0.0
    %3070 = vmatpush1.msra.mxu0 0.0
    %3071 = vmatprep.subr.mxu0 0.0
    %3072 = vmatpush1.msra.mxu0 0.0
    %3073 = vmatprep.subr.mxu0 0.0
    %3074 = vmatpush1.msra.mxu0 0.0
    %3075 = vmatprep.subr.mxu0 0.0
    %3076 = vmatpush1.msra.mxu0 0.0
    %3077 = vmatprep.subr.mxu0 0.0
    %3078 = vmatpush1.msra.mxu0 0.0
    %3079 = vmatprep.subr.mxu0 0.0
    %3080 = vmatpush1.msra.mxu0 0.0
    %3081 = vmatprep.subr.mxu0 0.0
    %3082 = vmatpush1.msra.mxu0 0.0
    %3083 = vmatprep.subr.mxu0 0.0
    %3084 = vmatpush1.msra.mxu0 0.0
    %3085 = vmatprep.subr.mxu0 0.0
    %3086 = vmatpush1.msra.mxu0 0.0
    %3087 = vmatprep.subr.mxu0 0.0
    %3088 = vmatpush1.msra.mxu0 0.0
    %3089 = vmatprep.subr.mxu0 0.0
    %3090 = vmatpush1.msra.mxu0 0.0
    %3091 = vmatprep.subr.mxu0 0.0
    %3092 = vmatpush1.msra.mxu0 0.0
    %3093 = vmatprep.subr.mxu0 0.0
    %3094 = vmatpush1.msra.mxu0 0.0
    %3095 = vmatprep.mubr.f32.mxu0 0.0
    %3096 = vmatmul.mubr.f32.gmra.mrb[0].mxu0 %v3029
    %v3097 = vpop.f32.mrb[0].mxu0
    %v3098 = vadd.f32 0.0, %v3097
    %v3099 = vpop.f32.mrb[0].mxu0
    %3100 = vdwg.mxu0
    %s3101 = scalar_lea.vmem [#allocation13], 320
    %v3102 = vld [vmem:[%s3101] sm:$0xff]
    %v3103 = vld [vmem:[%s3101 + $0x8] sm:$0xff]
    %v3104 = vld [vmem:[%s3101 + $0x10] sm:$0xff]
    %v3105 = vld [vmem:[%s3101 + $0x18] sm:$0xff]
    %v3106 = vld [vmem:[%s3101 + $0x20] sm:$0xff]
    %v3107 = vld [vmem:[%s3101 + $0x28] sm:$0xff]
    %v3108 = vld [vmem:[%s3101 + $0x30] sm:$0xff]
    %v3109 = vld [vmem:[%s3101 + $0x38] sm:$0xff]
    %v3111 = vsel %vm2176, %v3098, 0
    %3113 = vmatprep.subr.mxu0 0.0
    %3114 = vmatpush1.msra.mxu0 %v3102
    %3115 = vmatprep.subr.mxu0 0.0
    %3116 = vmatpush1.msra.mxu0 %v3103
    %3117 = vmatprep.subr.mxu0 0.0
    %3118 = vmatpush1.msra.mxu0 %v3104
    %3119 = vmatprep.subr.mxu0 0.0
    %3120 = vmatpush1.msra.mxu0 %v3105
    %3121 = vmatprep.subr.mxu0 0.0
    %3122 = vmatpush1.msra.mxu0 %v3106
    %3123 = vmatprep.subr.mxu0 0.0
    %3124 = vmatpush1.msra.mxu0 %v3107
    %3125 = vmatprep.subr.mxu0 0.0
    %3126 = vmatpush1.msra.mxu0 %v3108
    %3127 = vmatprep.subr.mxu0 0.0
    %3128 = vmatpush1.msra.mxu0 %v3109
    %3129 = vmatprep.subr.mxu0 0.0
    %3130 = vmatpush1.msra.mxu0 0.0
    %3131 = vmatprep.subr.mxu0 0.0
    %3132 = vmatpush1.msra.mxu0 0.0
    %3133 = vmatprep.subr.mxu0 0.0
    %3134 = vmatpush1.msra.mxu0 0.0
    %3135 = vmatprep.subr.mxu0 0.0
    %3136 = vmatpush1.msra.mxu0 0.0
    %3137 = vmatprep.subr.mxu0 0.0
    %3138 = vmatpush1.msra.mxu0 0.0
    %3139 = vmatprep.subr.mxu0 0.0
    %3140 = vmatpush1.msra.mxu0 0.0
    %3141 = vmatprep.subr.mxu0 0.0
    %3142 = vmatpush1.msra.mxu0 0.0
    %3143 = vmatprep.subr.mxu0 0.0
    %3144 = vmatpush1.msra.mxu0 0.0
    %3145 = vmatprep.subr.mxu0 0.0
    %3146 = vmatpush1.msra.mxu0 0.0
    %3147 = vmatprep.subr.mxu0 0.0
    %3148 = vmatpush1.msra.mxu0 0.0
    %3149 = vmatprep.subr.mxu0 0.0
    %3150 = vmatpush1.msra.mxu0 0.0
    %3151 = vmatprep.subr.mxu0 0.0
    %3152 = vmatpush1.msra.mxu0 0.0
    %3153 = vmatprep.subr.mxu0 0.0
    %3154 = vmatpush1.msra.mxu0 0.0
    %3155 = vmatprep.subr.mxu0 0.0
    %3156 = vmatpush1.msra.mxu0 0.0
    %3157 = vmatprep.subr.mxu0 0.0
    %3158 = vmatpush1.msra.mxu0 0.0
    %3159 = vmatprep.subr.mxu0 0.0
    %3160 = vmatpush1.msra.mxu0 0.0
    %3161 = vmatprep.subr.mxu0 0.0
    %3162 = vmatpush1.msra.mxu0 0.0
    %3163 = vmatprep.subr.mxu0 0.0
    %3164 = vmatpush1.msra.mxu0 0.0
    %3165 = vmatprep.subr.mxu0 0.0
    %3166 = vmatpush1.msra.mxu0 0.0
    %3167 = vmatprep.subr.mxu0 0.0
    %3168 = vmatpush1.msra.mxu0 0.0
    %3169 = vmatprep.subr.mxu0 0.0
    %3170 = vmatpush1.msra.mxu0 0.0
    %3171 = vmatprep.subr.mxu0 0.0
    %3172 = vmatpush1.msra.mxu0 0.0
    %3173 = vmatprep.subr.mxu0 0.0
    %3174 = vmatpush1.msra.mxu0 0.0
    %3175 = vmatprep.subr.mxu0 0.0
    %3176 = vmatpush1.msra.mxu0 0.0
    %3177 = vmatprep.mubr.f32.mxu0 0.0
    %3178 = vmatmul.mubr.f32.gmra.mrb[0].mxu0 %v3111
    %v3179 = vpop.f32.mrb[0].mxu0
    %v3180 = vadd.f32 0.0, %v3179
    %v3181 = vpop.f32.mrb[0].mxu0
    %3182 = vdwg.mxu0
    %v3183 = vadd.f32 %v3025, %v3180
    %s3184 = scalar_lea.vmem [#allocation11], 48
    %v3185 = vld [vmem:[%s3184] sm:$0xff]
    %v3187 = vsel %vm2240, %v3185, 0
    %3189 = vmatprep.subr.mxu0 0.0
    %3190 = vmatpush1.msra.mxu0 %v2232
    %3191 = vmatprep.subr.mxu0 0.0
    %3192 = vmatpush1.msra.mxu0 %v2233
    %3193 = vmatprep.subr.mxu0 0.0
    %3194 = vmatpush1.msra.mxu0 %v2234
    %3195 = vmatprep.subr.mxu0 0.0
    %3196 = vmatpush1.msra.mxu0 %v2235
    %3197 = vmatprep.subr.mxu0 0.0
    %3198 = vmatpush1.msra.mxu0 0.0
    %3199 = vmatprep.subr.mxu0 0.0
    %3200 = vmatpush1.msra.mxu0 0.0
    %3201 = vmatprep.subr.mxu0 0.0
    %3202 = vmatpush1.msra.mxu0 0.0
    %3203 = vmatprep.subr.mxu0 0.0
    %3204 = vmatpush1.msra.mxu0 0.0
    %3205 = vmatprep.subr.mxu0 0.0
    %3206 = vmatpush1.msra.mxu0 0.0
    %3207 = vmatprep.subr.mxu0 0.0
    %3208 = vmatpush1.msra.mxu0 0.0
    %3209 = vmatprep.subr.mxu0 0.0
    %3210 = vmatpush1.msra.mxu0 0.0
    %3211 = vmatprep.subr.mxu0 0.0
    %3212 = vmatpush1.msra.mxu0 0.0
    %3213 = vmatprep.subr.mxu0 0.0
    %3214 = vmatpush1.msra.mxu0 0.0
    %3215 = vmatprep.subr.mxu0 0.0
    %3216 = vmatpush1.msra.mxu0 0.0
    %3217 = vmatprep.subr.mxu0 0.0
    %3218 = vmatpush1.msra.mxu0 0.0
    %3219 = vmatprep.subr.mxu0 0.0
    %3220 = vmatpush1.msra.mxu0 0.0
    %3221 = vmatprep.subr.mxu0 0.0
    %3222 = vmatpush1.msra.mxu0 0.0
    %3223 = vmatprep.subr.mxu0 0.0
    %3224 = vmatpush1.msra.mxu0 0.0
    %3225 = vmatprep.subr.mxu0 0.0
    %3226 = vmatpush1.msra.mxu0 0.0
    %3227 = vmatprep.subr.mxu0 0.0
    %3228 = vmatpush1.msra.mxu0 0.0
    %3229 = vmatprep.subr.mxu0 0.0
    %3230 = vmatpush1.msra.mxu0 0.0
    %3231 = vmatprep.subr.mxu0 0.0
    %3232 = vmatpush1.msra.mxu0 0.0
    %3233 = vmatprep.subr.mxu0 0.0
    %3234 = vmatpush1.msra.mxu0 0.0
    %3235 = vmatprep.subr.mxu0 0.0
    %3236 = vmatpush1.msra.mxu0 0.0
    %3237 = vmatprep.subr.mxu0 0.0
    %3238 = vmatpush1.msra.mxu0 0.0
    %3239 = vmatprep.subr.mxu0 0.0
    %3240 = vmatpush1.msra.mxu0 0.0
    %3241 = vmatprep.subr.mxu0 0.0
    %3242 = vmatpush1.msra.mxu0 0.0
    %3243 = vmatprep.subr.mxu0 0.0
    %3244 = vmatpush1.msra.mxu0 0.0
    %3245 = vmatprep.subr.mxu0 0.0
    %3246 = vmatpush1.msra.mxu0 0.0
    %3247 = vmatprep.subr.mxu0 0.0
    %3248 = vmatpush1.msra.mxu0 0.0
    %3249 = vmatprep.subr.mxu0 0.0
    %3250 = vmatpush1.msra.mxu0 0.0
    %3251 = vmatprep.subr.mxu0 0.0
    %3252 = vmatpush1.msra.mxu0 0.0
    %3253 = vmatprep.mubr.f32.mxu0 0.0
    %3254 = vmatmul.mubr.f32.gmra.mrb[0].mxu0 %v3187
    %v3255 = vpop.f32.mrb[0].mxu0
    %v3256 = vadd.f32 0.0, %v3255
    %v3257 = vpop.f32.mrb[0].mxu0
    %3258 = vdwg.mxu0
    %s3259 = scalar_lea.vmem [#allocation13], 384
    %v3260 = vld [vmem:[%s3259] sm:$0xff]
    %v3261 = vld [vmem:[%s3259 + $0x8] sm:$0xff]
    %v3262 = vld [vmem:[%s3259 + $0x10] sm:$0xff]
    %v3263 = vld [vmem:[%s3259 + $0x18] sm:$0xff]
    %v3264 = vld [vmem:[%s3259 + $0x20] sm:$0xff]
    %v3265 = vld [vmem:[%s3259 + $0x28] sm:$0xff]
    %v3266 = vld [vmem:[%s3259 + $0x30] sm:$0xff]
    %v3267 = vld [vmem:[%s3259 + $0x38] sm:$0xff]
    %v3269 = vsel %vm2176, %v3256, 0
    %3271 = vmatprep.subr.mxu0 0.0
    %3272 = vmatpush1.msra.mxu0 %v3260
    %3273 = vmatprep.subr.mxu0 0.0
    %3274 = vmatpush1.msra.mxu0 %v3261
    %3275 = vmatprep.subr.mxu0 0.0
    %3276 = vmatpush1.msra.mxu0 %v3262
    %3277 = vmatprep.subr.mxu0 0.0
    %3278 = vmatpush1.msra.mxu0 %v3263
    %3279 = vmatprep.subr.mxu0 0.0
    %3280 = vmatpush1.msra.mxu0 %v3264
    %3281 = vmatprep.subr.mxu0 0.0
    %3282 = vmatpush1.msra.mxu0 %v3265
    %3283 = vmatprep.subr.mxu0 0.0
    %3284 = vmatpush1.msra.mxu0 %v3266
    %3285 = vmatprep.subr.mxu0 0.0
    %3286 = vmatpush1.msra.mxu0 %v3267
    %3287 = vmatprep.subr.mxu0 0.0
    %3288 = vmatpush1.msra.mxu0 0.0
    %3289 = vmatprep.subr.mxu0 0.0
    %3290 = vmatpush1.msra.mxu0 0.0
    %3291 = vmatprep.subr.mxu0 0.0
    %3292 = vmatpush1.msra.mxu0 0.0
    %3293 = vmatprep.subr.mxu0 0.0
    %3294 = vmatpush1.msra.mxu0 0.0
    %3295 = vmatprep.subr.mxu0 0.0
    %3296 = vmatpush1.msra.mxu0 0.0
    %3297 = vmatprep.subr.mxu0 0.0
    %3298 = vmatpush1.msra.mxu0 0.0
    %3299 = vmatprep.subr.mxu0 0.0
    %3300 = vmatpush1.msra.mxu0 0.0
    %3301 = vmatprep.subr.mxu0 0.0
    %3302 = vmatpush1.msra.mxu0 0.0
    %3303 = vmatprep.subr.mxu0 0.0
    %3304 = vmatpush1.msra.mxu0 0.0
    %3305 = vmatprep.subr.mxu0 0.0
    %3306 = vmatpush1.msra.mxu0 0.0
    %3307 = vmatprep.subr.mxu0 0.0
    %3308 = vmatpush1.msra.mxu0 0.0
    %3309 = vmatprep.subr.mxu0 0.0
    %3310 = vmatpush1.msra.mxu0 0.0
    %3311 = vmatprep.subr.mxu0 0.0
    %3312 = vmatpush1.msra.mxu0 0.0
    %3313 = vmatprep.subr.mxu0 0.0
    %3314 = vmatpush1.msra.mxu0 0.0
    %3315 = vmatprep.subr.mxu0 0.0
    %3316 = vmatpush1.msra.mxu0 0.0
    %3317 = vmatprep.subr.mxu0 0.0
    %3318 = vmatpush1.msra.mxu0 0.0
    %3319 = vmatprep.subr.mxu0 0.0
    %3320 = vmatpush1.msra.mxu0 0.0
    %3321 = vmatprep.subr.mxu0 0.0
    %3322 = vmatpush1.msra.mxu0 0.0
    %3323 = vmatprep.subr.mxu0 0.0
    %3324 = vmatpush1.msra.mxu0 0.0
    %3325 = vmatprep.subr.mxu0 0.0
    %3326 = vmatpush1.msra.mxu0 0.0
    %3327 = vmatprep.subr.mxu0 0.0
    %3328 = vmatpush1.msra.mxu0 0.0
    %3329 = vmatprep.subr.mxu0 0.0
    %3330 = vmatpush1.msra.mxu0 0.0
    %3331 = vmatprep.subr.mxu0 0.0
    %3332 = vmatpush1.msra.mxu0 0.0
    %3333 = vmatprep.subr.mxu0 0.0
    %3334 = vmatpush1.msra.mxu0 0.0
    %3335 = vmatprep.mubr.f32.mxu0 0.0
    %3336 = vmatmul.mubr.f32.gmra.mrb[0].mxu0 %v3269
    %v3337 = vpop.f32.mrb[0].mxu0
    %v3338 = vadd.f32 0.0, %v3337
    %v3339 = vpop.f32.mrb[0].mxu0
    %3340 = vdwg.mxu0
    %v3341 = vadd.f32 %v3183, %v3338
    %s3342 = scalar_lea.vmem [#allocation11], 56
    %v3343 = vld [vmem:[%s3342] sm:$0xff]
    %v3345 = vsel %vm2240, %v3343, 0
    %3347 = vmatprep.subr.mxu0 0.0
    %3348 = vmatpush1.msra.mxu0 %v2232
    %3349 = vmatprep.subr.mxu0 0.0
    %3350 = vmatpush1.msra.mxu0 %v2233
    %3351 = vmatprep.subr.mxu0 0.0
    %3352 = vmatpush1.msra.mxu0 %v2234
    %3353 = vmatprep.subr.mxu0 0.0
    %3354 = vmatpush1.msra.mxu0 %v2235
    %3355 = vmatprep.subr.mxu0 0.0
    %3356 = vmatpush1.msra.mxu0 0.0
    %3357 = vmatprep.subr.mxu0 0.0
    %3358 = vmatpush1.msra.mxu0 0.0
    %3359 = vmatprep.subr.mxu0 0.0
    %3360 = vmatpush1.msra.mxu0 0.0
    %3361 = vmatprep.subr.mxu0 0.0
    %3362 = vmatpush1.msra.mxu0 0.0
    %3363 = vmatprep.subr.mxu0 0.0
    %3364 = vmatpush1.msra.mxu0 0.0
    %3365 = vmatprep.subr.mxu0 0.0
    %3366 = vmatpush1.msra.mxu0 0.0
    %3367 = vmatprep.subr.mxu0 0.0
    %3368 = vmatpush1.msra.mxu0 0.0
    %3369 = vmatprep.subr.mxu0 0.0
    %3370 = vmatpush1.msra.mxu0 0.0
    %3371 = vmatprep.subr.mxu0 0.0
    %3372 = vmatpush1.msra.mxu0 0.0
    %3373 = vmatprep.subr.mxu0 0.0
    %3374 = vmatpush1.msra.mxu0 0.0
    %3375 = vmatprep.subr.mxu0 0.0
    %3376 = vmatpush1.msra.mxu0 0.0
    %3377 = vmatprep.subr.mxu0 0.0
    %3378 = vmatpush1.msra.mxu0 0.0
    %3379 = vmatprep.subr.mxu0 0.0
    %3380 = vmatpush1.msra.mxu0 0.0
    %3381 = vmatprep.subr.mxu0 0.0
    %3382 = vmatpush1.msra.mxu0 0.0
    %3383 = vmatprep.subr.mxu0 0.0
    %3384 = vmatpush1.msra.mxu0 0.0
    %3385 = vmatprep.subr.mxu0 0.0
    %3386 = vmatpush1.msra.mxu0 0.0
    %3387 = vmatprep.subr.mxu0 0.0
    %3388 = vmatpush1.msra.mxu0 0.0
    %3389 = vmatprep.subr.mxu0 0.0
    %3390 = vmatpush1.msra.mxu0 0.0
    %3391 = vmatprep.subr.mxu0 0.0
    %3392 = vmatpush1.msra.mxu0 0.0
    %3393 = vmatprep.subr.mxu0 0.0
    %3394 = vmatpush1.msra.mxu0 0.0
    %3395 = vmatprep.subr.mxu0 0.0
    %3396 = vmatpush1.msra.mxu0 0.0
    %3397 = vmatprep.subr.mxu0 0.0
    %3398 = vmatpush1.msra.mxu0 0.0
    %3399 = vmatprep.subr.mxu0 0.0
    %3400 = vmatpush1.msra.mxu0 0.0
    %3401 = vmatprep.subr.mxu0 0.0
    %3402 = vmatpush1.msra.mxu0 0.0
    %3403 = vmatprep.subr.mxu0 0.0
    %3404 = vmatpush1.msra.mxu0 0.0
    %3405 = vmatprep.subr.mxu0 0.0
    %3406 = vmatpush1.msra.mxu0 0.0
    %3407 = vmatprep.subr.mxu0 0.0
    %3408 = vmatpush1.msra.mxu0 0.0
    %3409 = vmatprep.subr.mxu0 0.0
    %3410 = vmatpush1.msra.mxu0 0.0
    %3411 = vmatprep.mubr.f32.mxu0 0.0
    %3412 = vmatmul.mubr.f32.gmra.mrb[0].mxu0 %v3345
    %v3413 = vpop.f32.mrb[0].mxu0
    %v3414 = vadd.f32 0.0, %v3413
    %v3415 = vpop.f32.mrb[0].mxu0
    %3416 = vdwg.mxu0
    %s3417 = scalar_lea.vmem [#allocation13], 448
    %v3418 = vld [vmem:[%s3417] sm:$0xff]
    %v3419 = vld [vmem:[%s3417 + $0x8] sm:$0xff]
    %v3420 = vld [vmem:[%s3417 + $0x10] sm:$0xff]
    %v3421 = vld [vmem:[%s3417 + $0x18] sm:$0xff]
    %v3422 = vld [vmem:[%s3417 + $0x20] sm:$0xff]
    %v3423 = vld [vmem:[%s3417 + $0x28] sm:$0xff]
    %v3424 = vld [vmem:[%s3417 + $0x30] sm:$0xff]
    %v3425 = vld [vmem:[%s3417 + $0x38] sm:$0xff]
    %v3427 = vsel %vm2176, %v3414, 0
    %3429 = vmatprep.subr.mxu0 0.0
    %3430 = vmatpush1.msra.mxu0 %v3418
    %3431 = vmatprep.subr.mxu0 0.0
    %3432 = vmatpush1.msra.mxu0 %v3419
    %3433 = vmatprep.subr.mxu0 0.0
    %3434 = vmatpush1.msra.mxu0 %v3420
    %3435 = vmatprep.subr.mxu0 0.0
    %3436 = vmatpush1.msra.mxu0 %v3421
    %3437 = vmatprep.subr.mxu0 0.0
    %3438 = vmatpush1.msra.mxu0 %v3422
    %3439 = vmatprep.subr.mxu0 0.0
    %3440 = vmatpush1.msra.mxu0 %v3423
    %3441 = vmatprep.subr.mxu0 0.0
    %3442 = vmatpush1.msra.mxu0 %v3424
    %3443 = vmatprep.subr.mxu0 0.0
    %3444 = vmatpush1.msra.mxu0 %v3425
    %3445 = vmatprep.subr.mxu0 0.0
    %3446 = vmatpush1.msra.mxu0 0.0
    %3447 = vmatprep.subr.mxu0 0.0
    %3448 = vmatpush1.msra.mxu0 0.0
    %3449 = vmatprep.subr.mxu0 0.0
    %3450 = vmatpush1.msra.mxu0 0.0
    %3451 = vmatprep.subr.mxu0 0.0
    %3452 = vmatpush1.msra.mxu0 0.0
    %3453 = vmatprep.subr.mxu0 0.0
    %3454 = vmatpush1.msra.mxu0 0.0
    %3455 = vmatprep.subr.mxu0 0.0
    %3456 = vmatpush1.msra.mxu0 0.0
    %3457 = vmatprep.subr.mxu0 0.0
    %3458 = vmatpush1.msra.mxu0 0.0
    %3459 = vmatprep.subr.mxu0 0.0
    %3460 = vmatpush1.msra.mxu0 0.0
    %3461 = vmatprep.subr.mxu0 0.0
    %3462 = vmatpush1.msra.mxu0 0.0
    %3463 = vmatprep.subr.mxu0 0.0
    %3464 = vmatpush1.msra.mxu0 0.0
    %3465 = vmatprep.subr.mxu0 0.0
    %3466 = vmatpush1.msra.mxu0 0.0
    %3467 = vmatprep.subr.mxu0 0.0
    %3468 = vmatpush1.msra.mxu0 0.0
    %3469 = vmatprep.subr.mxu0 0.0
    %3470 = vmatpush1.msra.mxu0 0.0
    %3471 = vmatprep.subr.mxu0 0.0
    %3472 = vmatpush1.msra.mxu0 0.0
    %3473 = vmatprep.subr.mxu0 0.0
    %3474 = vmatpush1.msra.mxu0 0.0
    %3475 = vmatprep.subr.mxu0 0.0
    %3476 = vmatpush1.msra.mxu0 0.0
    %3477 = vmatprep.subr.mxu0 0.0
    %3478 = vmatpush1.msra.mxu0 0.0
    %3479 = vmatprep.subr.mxu0 0.0
    %3480 = vmatpush1.msra.mxu0 0.0
    %3481 = vmatprep.subr.mxu0 0.0
    %3482 = vmatpush1.msra.mxu0 0.0
    %3483 = vmatprep.subr.mxu0 0.0
    %3484 = vmatpush1.msra.mxu0 0.0
    %3485 = vmatprep.subr.mxu0 0.0
    %3486 = vmatpush1.msra.mxu0 0.0
    %3487 = vmatprep.subr.mxu0 0.0
    %3488 = vmatpush1.msra.mxu0 0.0
    %3489 = vmatprep.subr.mxu0 0.0
    %3490 = vmatpush1.msra.mxu0 0.0
    %3491 = vmatprep.subr.mxu0 0.0
    %3492 = vmatpush1.msra.mxu0 0.0
    %3493 = vmatprep.mubr.f32.mxu0 0.0
    %3494 = vmatmul.mubr.f32.gmra.mrb[0].mxu0 %v3427
    %v3495 = vpop.f32.mrb[0].mxu0
    %v3496 = vadd.f32 0.0, %v3495
    %v3497 = vpop.f32.mrb[0].mxu0
    %3498 = vdwg.mxu0
    %v3499 = vadd.f32 %v3341, %v3496
    %s3500 = scalar_lea.vmem [#allocation11], 64
    %v3501 = vld [vmem:[%s3500] sm:$0xff]
    %v3503 = vsel %vm2240, %v3501, 0
    %3505 = vmatprep.subr.mxu0 0.0
    %3506 = vmatpush1.msra.mxu0 %v2232
    %3507 = vmatprep.subr.mxu0 0.0
    %3508 = vmatpush1.msra.mxu0 %v2233
    %3509 = vmatprep.subr.mxu0 0.0
    %3510 = vmatpush1.msra.mxu0 %v2234
    %3511 = vmatprep.subr.mxu0 0.0
    %3512 = vmatpush1.msra.mxu0 %v2235
    %3513 = vmatprep.subr.mxu0 0.0
    %3514 = vmatpush1.msra.mxu0 0.0
    %3515 = vmatprep.subr.mxu0 0.0
    %3516 = vmatpush1.msra.mxu0 0.0
    %3517 = vmatprep.subr.mxu0 0.0
    %3518 = vmatpush1.msra.mxu0 0.0
    %3519 = vmatprep.subr.mxu0 0.0
    %3520 = vmatpush1.msra.mxu0 0.0
    %3521 = vmatprep.subr.mxu0 0.0
    %3522 = vmatpush1.msra.mxu0 0.0
    %3523 = vmatprep.subr.mxu0 0.0
    %3524 = vmatpush1.msra.mxu0 0.0
    %3525 = vmatprep.subr.mxu0 0.0
    %3526 = vmatpush1.msra.mxu0 0.0
    %3527 = vmatprep.subr.mxu0 0.0
    %3528 = vmatpush1.msra.mxu0 0.0
    %3529 = vmatprep.subr.mxu0 0.0
    %3530 = vmatpush1.msra.mxu0 0.0
    %3531 = vmatprep.subr.mxu0 0.0
    %3532 = vmatpush1.msra.mxu0 0.0
    %3533 = vmatprep.subr.mxu0 0.0
    %3534 = vmatpush1.msra.mxu0 0.0
    %3535 = vmatprep.subr.mxu0 0.0
    %3536 = vmatpush1.msra.mxu0 0.0
    %3537 = vmatprep.subr.mxu0 0.0
    %3538 = vmatpush1.msra.mxu0 0.0
    %3539 = vmatprep.subr.mxu0 0.0
    %3540 = vmatpush1.msra.mxu0 0.0
    %3541 = vmatprep.subr.mxu0 0.0
    %3542 = vmatpush1.msra.mxu0 0.0
    %3543 = vmatprep.subr.mxu0 0.0
    %3544 = vmatpush1.msra.mxu0 0.0
    %3545 = vmatprep.subr.mxu0 0.0
    %3546 = vmatpush1.msra.mxu0 0.0
    %3547 = vmatprep.subr.mxu0 0.0
    %3548 = vmatpush1.msra.mxu0 0.0
    %3549 = vmatprep.subr.mxu0 0.0
    %3550 = vmatpush1.msra.mxu0 0.0
    %3551 = vmatprep.subr.mxu0 0.0
    %3552 = vmatpush1.msra.mxu0 0.0
    %3553 = vmatprep.subr.mxu0 0.0
    %3554 = vmatpush1.msra.mxu0 0.0
    %3555 = vmatprep.subr.mxu0 0.0
    %3556 = vmatpush1.msra.mxu0 0.0
    %3557 = vmatprep.subr.mxu0 0.0
    %3558 = vmatpush1.msra.mxu0 0.0
    %3559 = vmatprep.subr.mxu0 0.0
    %3560 = vmatpush1.msra.mxu0 0.0
    %3561 = vmatprep.subr.mxu0 0.0
    %3562 = vmatpush1.msra.mxu0 0.0
    %3563 = vmatprep.subr.mxu0 0.0
    %3564 = vmatpush1.msra.mxu0 0.0
    %3565 = vmatprep.subr.mxu0 0.0
    %3566 = vmatpush1.msra.mxu0 0.0
    %3567 = vmatprep.subr.mxu0 0.0
    %3568 = vmatpush1.msra.mxu0 0.0
    %3569 = vmatprep.mubr.f32.mxu0 0.0
    %3570 = vmatmul.mubr.f32.gmra.mrb[0].mxu0 %v3503
    %v3571 = vpop.f32.mrb[0].mxu0
    %v3572 = vadd.f32 0.0, %v3571
    %v3573 = vpop.f32.mrb[0].mxu0
    %3574 = vdwg.mxu0
    %s3575 = scalar_lea.vmem [#allocation13], 512
    %v3576 = vld [vmem:[%s3575] sm:$0xff]
    %v3577 = vld [vmem:[%s3575 + $0x8] sm:$0xff]
    %v3578 = vld [vmem:[%s3575 + $0x10] sm:$0xff]
    %v3579 = vld [vmem:[%s3575 + $0x18] sm:$0xff]
    %v3580 = vld [vmem:[%s3575 + $0x20] sm:$0xff]
    %v3581 = vld [vmem:[%s3575 + $0x28] sm:$0xff]
    %v3582 = vld [vmem:[%s3575 + $0x30] sm:$0xff]
    %v3583 = vld [vmem:[%s3575 + $0x38] sm:$0xff]
    %v3585 = vsel %vm2176, %v3572, 0
    %3587 = vmatprep.subr.mxu0 0.0
    %3588 = vmatpush1.msra.mxu0 %v3576
    %3589 = vmatprep.subr.mxu0 0.0
    %3590 = vmatpush1.msra.mxu0 %v3577
    %3591 = vmatprep.subr.mxu0 0.0
    %3592 = vmatpush1.msra.mxu0 %v3578
    %3593 = vmatprep.subr.mxu0 0.0
    %3594 = vmatpush1.msra.mxu0 %v3579
    %3595 = vmatprep.subr.mxu0 0.0
    %3596 = vmatpush1.msra.mxu0 %v3580
    %3597 = vmatprep.subr.mxu0 0.0
    %3598 = vmatpush1.msra.mxu0 %v3581
    %3599 = vmatprep.subr.mxu0 0.0
    %3600 = vmatpush1.msra.mxu0 %v3582
    %3601 = vmatprep.subr.mxu0 0.0
    %3602 = vmatpush1.msra.mxu0 %v3583
    %3603 = vmatprep.subr.mxu0 0.0
    %3604 = vmatpush1.msra.mxu0 0.0
    %3605 = vmatprep.subr.mxu0 0.0
    %3606 = vmatpush1.msra.mxu0 0.0
    %3607 = vmatprep.subr.mxu0 0.0
    %3608 = vmatpush1.msra.mxu0 0.0
    %3609 = vmatprep.subr.mxu0 0.0
    %3610 = vmatpush1.msra.mxu0 0.0
    %3611 = vmatprep.subr.mxu0 0.0
    %3612 = vmatpush1.msra.mxu0 0.0
    %3613 = vmatprep.subr.mxu0 0.0
    %3614 = vmatpush1.msra.mxu0 0.0
    %3615 = vmatprep.subr.mxu0 0.0
    %3616 = vmatpush1.msra.mxu0 0.0
    %3617 = vmatprep.subr.mxu0 0.0
    %3618 = vmatpush1.msra.mxu0 0.0
    %3619 = vmatprep.subr.mxu0 0.0
    %3620 = vmatpush1.msra.mxu0 0.0
    %3621 = vmatprep.subr.mxu0 0.0
    %3622 = vmatpush1.msra.mxu0 0.0
    %3623 = vmatprep.subr.mxu0 0.0
    %3624 = vmatpush1.msra.mxu0 0.0
    %3625 = vmatprep.subr.mxu0 0.0
    %3626 = vmatpush1.msra.mxu0 0.0
    %3627 = vmatprep.subr.mxu0 0.0
    %3628 = vmatpush1.msra.mxu0 0.0
    %3629 = vmatprep.subr.mxu0 0.0
    %3630 = vmatpush1.msra.mxu0 0.0
    %3631 = vmatprep.subr.mxu0 0.0
    %3632 = vmatpush1.msra.mxu0 0.0
    %3633 = vmatprep.subr.mxu0 0.0
    %3634 = vmatpush1.msra.mxu0 0.0
    %3635 = vmatprep.subr.mxu0 0.0
    %3636 = vmatpush1.msra.mxu0 0.0
    %3637 = vmatprep.subr.mxu0 0.0
    %3638 = vmatpush1.msra.mxu0 0.0
    %3639 = vmatprep.subr.mxu0 0.0
    %3640 = vmatpush1.msra.mxu0 0.0
    %3641 = vmatprep.subr.mxu0 0.0
    %3642 = vmatpush1.msra.mxu0 0.0
    %3643 = vmatprep.subr.mxu0 0.0
    %3644 = vmatpush1.msra.mxu0 0.0
    %3645 = vmatprep.subr.mxu0 0.0
    %3646 = vmatpush1.msra.mxu0 0.0
    %3647 = vmatprep.subr.mxu0 0.0
    %3648 = vmatpush1.msra.mxu0 0.0
    %3649 = vmatprep.subr.mxu0 0.0
    %3650 = vmatpush1.msra.mxu0 0.0
    %3651 = vmatprep.mubr.f32.mxu0 0.0
    %3652 = vmatmul.mubr.f32.gmra.mrb[0].mxu0 %v3585
    %v3653 = vpop.f32.mrb[0].mxu0
    %v3654 = vadd.f32 0.0, %v3653
    %v3655 = vpop.f32.mrb[0].mxu0
    %3656 = vdwg.mxu0
    %v3657 = vadd.f32 %v3499, %v3654
    %v3659 = vlaneseq
    %v3660 = vshrl.u32 %v3659, 7
    %v3661 = vsub.s32 0, %v3660
    %v3662 = vrot.slane %v2236, %v3661
    %v3664 = vadd.f32 %v3657, %v3662
    %vm3665 = vcmp.gt.f32.partialorder %v3664, 0.0
    %v3666 = vmul.f32 %v3664, 0.2
    %v3667 = vsel %vm3665, %v3664, %v3666
    %v3668 = vrot.slane %v3667, 4
    %v3669 = vadd.f32 %v3667, %v3668
    %v3670 = vrot.slane %v3669, 2
    %v3671 = vadd.f32 %v3669, %v3670
    %v3672 = vrot.slane %v3671, 1
    %v3673 = vadd.f32 %v3671, %v3672
    %v3674 = vmul.f32 %v3673, 0.125
    %v3675 = vmul.f32 %v3667, %v3667
    %v3676 = vrot.slane %v3675, 4
    %v3677 = vadd.f32 %v3675, %v3676
    %v3678 = vrot.slane %v3677, 2
    %v3679 = vadd.f32 %v3677, %v3678
    %v3680 = vrot.slane %v3679, 1
    %v3681 = vadd.f32 %v3679, %v3680
    %v3682 = vmul.f32 %v3681, 0.125
    %v3683 = vmul.f32 %v3674, %v3674
    %v3684 = vsub.f32 %v3682, %v3683
    %v3685 = vadd.f32 %v3684, 1e-05
    %v3686 = vrsqrt.pop %v3685
    %v3687 = vmul.f32 %v2237, %v3686
    %v3688 = vmul.f32 %v3674, %v3687
    %v3689 = vsub.f32 %v2238, %v3688
    %v3691 = vlaneseq
    %v3692 = vshrl.u32 %v3691, 7
    %v3693 = vsub.s32 0, %v3692
    %v3694 = vrot.slane %v3687, %v3693
    %v3696 = vmul.f32 %v3667, %v3694
    %v3698 = vlaneseq
    %v3699 = vshrl.u32 %v3698, 7
    %v3700 = vsub.s32 0, %v3699
    %v3701 = vrot.slane %v3689, %v3700
    %v3703 = vadd.f32 %v3696, %v3701
    %v3704 = vld [vmem:[#allocation20] sm:$0x3]
    %v3705 = vld [vmem:[#allocation22] sm:$0x3]
    %v3706 = vld [vmem:[#allocation23] sm:$0x3]
    %v3707 = vld [vmem:[%s11] sm:$0x3]
    %vm3708 = vcmask 64512
    %v3710 = vsel %vm3708, %v3707, 0
    %3712 = vmatprep.subr.mxu0 0.0
    %3713 = vmatpush1.msra.mxu0 %v3703
    %3714 = vmatprep.subr.mxu0 0.0
    %3715 = vmatpush1.msra.mxu0 0.0
    %3716 = vmatprep.subr.mxu0 0.0
    %3717 = vmatpush1.msra.mxu0 0.0
    %3718 = vmatprep.subr.mxu0 0.0
    %3719 = vmatpush1.msra.mxu0 0.0
    %3720 = vmatprep.subr.mxu0 0.0
    %3721 = vmatpush1.msra.mxu0 0.0
    %3722 = vmatprep.subr.mxu0 0.0
    %3723 = vmatpush1.msra.mxu0 0.0
    %3724 = vmatprep.subr.mxu0 0.0
    %3725 = vmatpush1.msra.mxu0 0.0
    %3726 = vmatprep.subr.mxu0 0.0
    %3727 = vmatpush1.msra.mxu0 0.0
    %3728 = vmatprep.subr.mxu0 0.0
    %3729 = vmatpush1.msra.mxu0 0.0
    %3730 = vmatprep.subr.mxu0 0.0
    %3731 = vmatpush1.msra.mxu0 0.0
    %3732 = vmatprep.subr.mxu0 0.0
    %3733 = vmatpush1.msra.mxu0 0.0
    %3734 = vmatprep.subr.mxu0 0.0
    %3735 = vmatpush1.msra.mxu0 0.0
    %3736 = vmatprep.subr.mxu0 0.0
    %3737 = vmatpush1.msra.mxu0 0.0
    %3738 = vmatprep.subr.mxu0 0.0
    %3739 = vmatpush1.msra.mxu0 0.0
    %3740 = vmatprep.subr.mxu0 0.0
    %3741 = vmatpush1.msra.mxu0 0.0
    %3742 = vmatprep.subr.mxu0 0.0
    %3743 = vmatpush1.msra.mxu0 0.0
    %3744 = vmatprep.subr.mxu0 0.0
    %3745 = vmatpush1.msra.mxu0 0.0
    %3746 = vmatprep.subr.mxu0 0.0
    %3747 = vmatpush1.msra.mxu0 0.0
    %3748 = vmatprep.subr.mxu0 0.0
    %3749 = vmatpush1.msra.mxu0 0.0
    %3750 = vmatprep.subr.mxu0 0.0
    %3751 = vmatpush1.msra.mxu0 0.0
    %3752 = vmatprep.subr.mxu0 0.0
    %3753 = vmatpush1.msra.mxu0 0.0
    %3754 = vmatprep.subr.mxu0 0.0
    %3755 = vmatpush1.msra.mxu0 0.0
    %3756 = vmatprep.subr.mxu0 0.0
    %3757 = vmatpush1.msra.mxu0 0.0
    %3758 = vmatprep.subr.mxu0 0.0
    %3759 = vmatpush1.msra.mxu0 0.0
    %3760 = vmatprep.subr.mxu0 0.0
    %3761 = vmatpush1.msra.mxu0 0.0
    %3762 = vmatprep.subr.mxu0 0.0
    %3763 = vmatpush1.msra.mxu0 0.0
    %3764 = vmatprep.subr.mxu0 0.0
    %3765 = vmatpush1.msra.mxu0 0.0
    %3766 = vmatprep.subr.mxu0 0.0
    %3767 = vmatpush1.msra.mxu0 0.0
    %3768 = vmatprep.subr.mxu0 0.0
    %3769 = vmatpush1.msra.mxu0 0.0
    %3770 = vmatprep.subr.mxu0 0.0
    %3771 = vmatpush1.msra.mxu0 0.0
    %3772 = vmatprep.subr.mxu0 0.0
    %3773 = vmatpush1.msra.mxu0 0.0
    %3774 = vmatprep.subr.mxu0 0.0
    %3775 = vmatpush1.msra.mxu0 0.0
    %3776 = vmatprep.mubr.f32.mxu0 0.0
    %3777 = vmatmul.mubr.f32.gmra.mrb[0].mxu0 %v3710
    %v3778 = vpop.f32.mrb[0].mxu0
    %v3779 = vadd.f32 0.0, %v3778
    %v3780 = vpop.f32.mrb[0].mxu0
    %3781 = vdwg.mxu0
    %v3782 = vld [vmem:[#allocation19] sm:$0xff]
    %v3783 = vld [vmem:[#allocation19 + $0x8] sm:$0xff]
    %v3784 = vld [vmem:[#allocation19 + $0x10] sm:$0xff]
    %v3785 = vld [vmem:[#allocation19 + $0x18] sm:$0xff]
    %v3786 = vld [vmem:[#allocation19 + $0x20] sm:$0xff]
    %v3787 = vld [vmem:[#allocation19 + $0x28] sm:$0xff]
    %v3788 = vld [vmem:[#allocation19 + $0x30] sm:$0xff]
    %v3789 = vld [vmem:[#allocation19 + $0x38] sm:$0xff]
    %v3790 = vld [vmem:[#allocation19 + $0x40] sm:$0xff]
    %v3791 = vld [vmem:[#allocation19 + $0x48] sm:$0xff]
    %v3792 = vld [vmem:[#allocation19 + $0x50] sm:$0xff]
    %v3793 = vld [vmem:[#allocation19 + $0x58] sm:$0xff]
    %v3794 = vld [vmem:[#allocation19 + $0x60] sm:$0xff]
    %v3795 = vld [vmem:[#allocation19 + $0x68] sm:$0xff]
    %v3796 = vld [vmem:[#allocation19 + $0x70] sm:$0xff]
    %v3797 = vld [vmem:[#allocation19 + $0x78] sm:$0xff]
    %v3798 = vld [vmem:[#allocation19 + $0x80] sm:$0xff]
    %v3799 = vld [vmem:[#allocation19 + $0x88] sm:$0xff]
    %v3800 = vld [vmem:[#allocation19 + $0x90] sm:$0xff]
    %v3801 = vld [vmem:[#allocation19 + $0x98] sm:$0xff]
    %v3802 = vld [vmem:[#allocation19 + $0xa0] sm:$0xff]
    %v3803 = vld [vmem:[#allocation19 + $0xa8] sm:$0xff]
    %v3804 = vld [vmem:[#allocation19 + $0xb0] sm:$0xff]
    %v3805 = vld [vmem:[#allocation19 + $0xb8] sm:$0xff]
    %v3806 = vld [vmem:[#allocation19 + $0xc0] sm:$0xff]
    %v3807 = vld [vmem:[#allocation19 + $0xc8] sm:$0xff]
    %v3808 = vld [vmem:[#allocation19 + $0xd0] sm:$0xff]
    %v3809 = vld [vmem:[#allocation19 + $0xd8] sm:$0xff]
    %v3810 = vld [vmem:[#allocation19 + $0xe0] sm:$0xff]
    %v3811 = vld [vmem:[#allocation19 + $0xe8] sm:$0xff]
    %v3812 = vld [vmem:[#allocation19 + $0xf0] sm:$0xff]
    %v3813 = vld [vmem:[#allocation19 + $0xf8] sm:$0xff]
    %s3814 = scalar_lea.vmem %s11, 2
    %v3815 = vld [vmem:[%s3814] sm:$0x3]
    %v3817 = vsel %vm3708, %v3815, 0
    %3819 = vmatprep.subr.mxu0 0.0
    %3820 = vmatpush1.msra.mxu0 %v3703
    %3821 = vmatprep.subr.mxu0 0.0
    %3822 = vmatpush1.msra.mxu0 0.0
    %3823 = vmatprep.subr.mxu0 0.0
    %3824 = vmatpush1.msra.mxu0 0.0
    %3825 = vmatprep.subr.mxu0 0.0
    %3826 = vmatpush1.msra.mxu0 0.0
    %3827 = vmatprep.subr.mxu0 0.0
    %3828 = vmatpush1.msra.mxu0 0.0
    %3829 = vmatprep.subr.mxu0 0.0
    %3830 = vmatpush1.msra.mxu0 0.0
    %3831 = vmatprep.subr.mxu0 0.0
    %3832 = vmatpush1.msra.mxu0 0.0
    %3833 = vmatprep.subr.mxu0 0.0
    %3834 = vmatpush1.msra.mxu0 0.0
    %3835 = vmatprep.subr.mxu0 0.0
    %3836 = vmatpush1.msra.mxu0 0.0
    %3837 = vmatprep.subr.mxu0 0.0
    %3838 = vmatpush1.msra.mxu0 0.0
    %3839 = vmatprep.subr.mxu0 0.0
    %3840 = vmatpush1.msra.mxu0 0.0
    %3841 = vmatprep.subr.mxu0 0.0
    %3842 = vmatpush1.msra.mxu0 0.0
    %3843 = vmatprep.subr.mxu0 0.0
    %3844 = vmatpush1.msra.mxu0 0.0
    %3845 = vmatprep.subr.mxu0 0.0
    %3846 = vmatpush1.msra.mxu0 0.0
    %3847 = vmatprep.subr.mxu0 0.0
    %3848 = vmatpush1.msra.mxu0 0.0
    %3849 = vmatprep.subr.mxu0 0.0
    %3850 = vmatpush1.msra.mxu0 0.0
    %3851 = vmatprep.subr.mxu0 0.0
    %3852 = vmatpush1.msra.mxu0 0.0
    %3853 = vmatprep.subr.mxu0 0.0
    %3854 = vmatpush1.msra.mxu0 0.0
    %3855 = vmatprep.subr.mxu0 0.0
    %3856 = vmatpush1.msra.mxu0 0.0
    %3857 = vmatprep.subr.mxu0 0.0
    %3858 = vmatpush1.msra.mxu0 0.0
    %3859 = vmatprep.subr.mxu0 0.0
    %3860 = vmatpush1.msra.mxu0 0.0
    %3861 = vmatprep.subr.mxu0 0.0
    %3862 = vmatpush1.msra.mxu0 0.0
    %3863 = vmatprep.subr.mxu0 0.0
    %3864 = vmatpush1.msra.mxu0 0.0
    %3865 = vmatprep.subr.mxu0 0.0
    %3866 = vmatpush1.msra.mxu0 0.0
    %3867 = vmatprep.subr.mxu0 0.0
    %3868 = vmatpush1.msra.mxu0 0.0
    %3869 = vmatprep.subr.mxu0 0.0
    %3870 = vmatpush1.msra.mxu0 0.0
    %3871 = vmatprep.subr.mxu0 0.0
    %3872 = vmatpush1.msra.mxu0 0.0
    %3873 = vmatprep.subr.mxu0 0.0
    %3874 = vmatpush1.msra.mxu0 0.0
    %3875 = vmatprep.subr.mxu0 0.0
    %3876 = vmatpush1.msra.mxu0 0.0
    %3877 = vmatprep.subr.mxu0 0.0
    %3878 = vmatpush1.msra.mxu0 0.0
    %3879 = vmatprep.subr.mxu0 0.0
    %3880 = vmatpush1.msra.mxu0 0.0
    %3881 = vmatprep.subr.mxu0 0.0
    %3882 = vmatpush1.msra.mxu0 0.0
    %3883 = vmatprep.mubr.f32.mxu0 0.0
    %3884 = vmatmul.mubr.f32.gmra.mrb[0].mxu0 %v3817
    %v3885 = vpop.f32.mrb[0].mxu0
    %v3886 = vadd.f32 0.0, %v3885
    %v3887 = vpop.f32.mrb[0].mxu0
    %3888 = vdwg.mxu0
    %s3889 = scalar_lea.vmem [#allocation19], 256
    %v3890 = vld [vmem:[%s3889] sm:$0xff]
    %v3891 = vld [vmem:[%s3889 + $0x8] sm:$0xff]
    %v3892 = vld [vmem:[%s3889 + $0x10] sm:$0xff]
    %v3893 = vld [vmem:[%s3889 + $0x18] sm:$0xff]
    %v3894 = vld [vmem:[%s3889 + $0x20] sm:$0xff]
    %v3895 = vld [vmem:[%s3889 + $0x28] sm:$0xff]
    %v3896 = vld [vmem:[%s3889 + $0x30] sm:$0xff]
    %v3897 = vld [vmem:[%s3889 + $0x38] sm:$0xff]
    %v3898 = vld [vmem:[%s3889 + $0x40] sm:$0xff]
    %v3899 = vld [vmem:[%s3889 + $0x48] sm:$0xff]
    %v3900 = vld [vmem:[%s3889 + $0x50] sm:$0xff]
    %v3901 = vld [vmem:[%s3889 + $0x58] sm:$0xff]
    %v3902 = vld [vmem:[%s3889 + $0x60] sm:$0xff]
    %v3903 = vld [vmem:[%s3889 + $0x68] sm:$0xff]
    %v3904 = vld [vmem:[%s3889 + $0x70] sm:$0xff]
    %v3905 = vld [vmem:[%s3889 + $0x78] sm:$0xff]
    %v3906 = vld [vmem:[%s3889 + $0x80] sm:$0xff]
    %v3907 = vld [vmem:[%s3889 + $0x88] sm:$0xff]
    %v3908 = vld [vmem:[%s3889 + $0x90] sm:$0xff]
    %v3909 = vld [vmem:[%s3889 + $0x98] sm:$0xff]
    %v3910 = vld [vmem:[%s3889 + $0xa0] sm:$0xff]
    %v3911 = vld [vmem:[%s3889 + $0xa8] sm:$0xff]
    %v3912 = vld [vmem:[%s3889 + $0xb0] sm:$0xff]
    %v3913 = vld [vmem:[%s3889 + $0xb8] sm:$0xff]
    %v3914 = vld [vmem:[%s3889 + $0xc0] sm:$0xff]
    %v3915 = vld [vmem:[%s3889 + $0xc8] sm:$0xff]
    %v3916 = vld [vmem:[%s3889 + $0xd0] sm:$0xff]
    %v3917 = vld [vmem:[%s3889 + $0xd8] sm:$0xff]
    %v3918 = vld [vmem:[%s3889 + $0xe0] sm:$0xff]
    %v3919 = vld [vmem:[%s3889 + $0xe8] sm:$0xff]
    %v3920 = vld [vmem:[%s3889 + $0xf0] sm:$0xff]
    %v3921 = vld [vmem:[%s3889 + $0xf8] sm:$0xff]
    %3922 = vmatprep.subr.mxu0 %v3891
    %3923 = vmatpush1.msra.mxu0 %v3890
    %3924 = vmatprep.subr.mxu0 %v3893
    %3925 = vmatpush1.msra.mxu0 %v3892
    %3926 = vmatprep.subr.mxu0 %v3895
    %3927 = vmatpush1.msra.mxu0 %v3894
    %3928 = vmatprep.subr.mxu0 %v3897
    %3929 = vmatpush1.msra.mxu0 %v3896
    %3930 = vmatprep.subr.mxu0 %v3899
    %3931 = vmatpush1.msra.mxu0 %v3898
    %3932 = vmatprep.subr.mxu0 %v3901
    %3933 = vmatpush1.msra.mxu0 %v3900
    %3934 = vmatprep.subr.mxu0 %v3903
    %3935 = vmatpush1.msra.mxu0 %v3902
    %3936 = vmatprep.subr.mxu0 %v3905
    %3937 = vmatpush1.msra.mxu0 %v3904
    %3938 = vmatprep.subr.mxu0 %v3907
    %3939 = vmatpush1.msra.mxu0 %v3906
    %3940 = vmatprep.subr.mxu0 %v3909
    %3941 = vmatpush1.msra.mxu0 %v3908
    %3942 = vmatprep.subr.mxu0 %v3911
    %3943 = vmatpush1.msra.mxu0 %v3910
    %3944 = vmatprep.subr.mxu0 %v3913
    %3945 = vmatpush1.msra.mxu0 %v3912
    %3946 = vmatprep.subr.mxu0 %v3915
    %3947 = vmatpush1.msra.mxu0 %v3914
    %3948 = vmatprep.subr.mxu0 %v3917
    %3949 = vmatpush1.msra.mxu0 %v3916
    %3950 = vmatprep.subr.mxu0 %v3919
    %3951 = vmatpush1.msra.mxu0 %v3918
    %3952 = vmatprep.subr.mxu0 %v3921
    %3953 = vmatpush1.msra.mxu0 %v3920
    %3954 = vmatprep.subr.mxu0 0.0
    %3955 = vmatpush1.msra.mxu0 0.0
    %3956 = vmatprep.subr.mxu0 0.0
    %3957 = vmatpush1.msra.mxu0 0.0
    %3958 = vmatprep.subr.mxu0 0.0
    %3959 = vmatpush1.msra.mxu0 0.0
    %3960 = vmatprep.subr.mxu0 0.0
    %3961 = vmatpush1.msra.mxu0 0.0
    %3962 = vmatprep.subr.mxu0 0.0
    %3963 = vmatpush1.msra.mxu0 0.0
    %3964 = vmatprep.subr.mxu0 0.0
    %3965 = vmatpush1.msra.mxu0 0.0
    %3966 = vmatprep.subr.mxu0 0.0
    %3967 = vmatpush1.msra.mxu0 0.0
    %3968 = vmatprep.subr.mxu0 0.0
    %3969 = vmatpush1.msra.mxu0 0.0
    %3970 = vmatprep.subr.mxu0 0.0
    %3971 = vmatpush1.msra.mxu0 0.0
    %3972 = vmatprep.subr.mxu0 0.0
    %3973 = vmatpush1.msra.mxu0 0.0
    %3974 = vmatprep.subr.mxu0 0.0
    %3975 = vmatpush1.msra.mxu0 0.0
    %3976 = vmatprep.subr.mxu0 0.0
    %3977 = vmatpush1.msra.mxu0 0.0
    %3978 = vmatprep.subr.mxu0 0.0
    %3979 = vmatpush1.msra.mxu0 0.0
    %3980 = vmatprep.subr.mxu0 0.0
    %3981 = vmatpush1.msra.mxu0 0.0
    %3982 = vmatprep.subr.mxu0 0.0
    %3983 = vmatpush1.msra.mxu0 0.0
    %3984 = vmatprep.subr.mxu0 0.0
    %3985 = vmatpush1.msra.mxu0 0.0
    %3986 = vmatprep.mubr.f32.mxu0 0.0
    %3987 = vmatmul.mubr.f32.gmra.mrb[0].mxu0 %v3886
    %v3988 = vpop.f32.mrb[0].mxu0
    %v3989 = vadd.f32 0.0, %v3988
    %v3990 = vpop.f32.mrb[0].mxu0
    %v3991 = vadd.f32 0.0, %v3990
    %3992 = vdwg.mxu0
    %3993 = vmatprep.subr.mxu0 %v3783
    %3994 = vmatpush1.msra.mxu0 %v3782
    %3995 = vmatprep.subr.mxu0 %v3785
    %3996 = vmatpush1.msra.mxu0 %v3784
    %3997 = vmatprep.subr.mxu0 %v3787
    %3998 = vmatpush1.msra.mxu0 %v3786
    %3999 = vmatprep.subr.mxu0 %v3789
    %4000 = vmatpush1.msra.mxu0 %v3788
    %4001 = vmatprep.subr.mxu0 %v3791
    %4002 = vmatpush1.msra.mxu0 %v3790
    %4003 = vmatprep.subr.mxu0 %v3793
    %4004 = vmatpush1.msra.mxu0 %v3792
    %4005 = vmatprep.subr.mxu0 %v3795
    %4006 = vmatpush1.msra.mxu0 %v3794
    %4007 = vmatprep.subr.mxu0 %v3797
    %4008 = vmatpush1.msra.mxu0 %v3796
    %4009 = vmatprep.subr.mxu0 %v3799
    %4010 = vmatpush1.msra.mxu0 %v3798
    %4011 = vmatprep.subr.mxu0 %v3801
    %4012 = vmatpush1.msra.mxu0 %v3800
    %4013 = vmatprep.subr.mxu0 %v3803
    %4014 = vmatpush1.msra.mxu0 %v3802
    %4015 = vmatprep.subr.mxu0 %v3805
    %4016 = vmatpush1.msra.mxu0 %v3804
    %4017 = vmatprep.subr.mxu0 %v3807
    %4018 = vmatpush1.msra.mxu0 %v3806
    %4019 = vmatprep.subr.mxu0 %v3809
    %4020 = vmatpush1.msra.mxu0 %v3808
    %4021 = vmatprep.subr.mxu0 %v3811
    %4022 = vmatpush1.msra.mxu0 %v3810
    %4023 = vmatprep.subr.mxu0 %v3813
    %4024 = vmatpush1.msra.mxu0 %v3812
    %4025 = vmatprep.subr.mxu0 0.0
    %4026 = vmatpush1.msra.mxu0 0.0
    %4027 = vmatprep.subr.mxu0 0.0
    %4028 = vmatpush1.msra.mxu0 0.0
    %4029 = vmatprep.subr.mxu0 0.0
    %4030 = vmatpush1.msra.mxu0 0.0
    %4031 = vmatprep.subr.mxu0 0.0
    %4032 = vmatpush1.msra.mxu0 0.0
    %4033 = vmatprep.subr.mxu0 0.0
    %4034 = vmatpush1.msra.mxu0 0.0
    %4035 = vmatprep.subr.mxu0 0.0
    %4036 = vmatpush1.msra.mxu0 0.0
    %4037 = vmatprep.subr.mxu0 0.0
    %4038 = vmatpush1.msra.mxu0 0.0
    %4039 = vmatprep.subr.mxu0 0.0
    %4040 = vmatpush1.msra.mxu0 0.0
    %4041 = vmatprep.subr.mxu0 0.0
    %4042 = vmatpush1.msra.mxu0 0.0
    %4043 = vmatprep.subr.mxu0 0.0
    %4044 = vmatpush1.msra.mxu0 0.0
    %4045 = vmatprep.subr.mxu0 0.0
    %4046 = vmatpush1.msra.mxu0 0.0
    %4047 = vmatprep.subr.mxu0 0.0
    %4048 = vmatpush1.msra.mxu0 0.0
    %4049 = vmatprep.subr.mxu0 0.0
    %4050 = vmatpush1.msra.mxu0 0.0
    %4051 = vmatprep.subr.mxu0 0.0
    %4052 = vmatpush1.msra.mxu0 0.0
    %4053 = vmatprep.subr.mxu0 0.0
    %4054 = vmatpush1.msra.mxu0 0.0
    %4055 = vmatprep.subr.mxu0 0.0
    %4056 = vmatpush1.msra.mxu0 0.0
    %4057 = vmatprep.mubr.f32.mxu0 0.0
    %4058 = vmatmul.mubr.f32.gmra.mrb[0].mxu0 %v3779
    %v4059 = vpop.f32.mrb[0].mxu0
    %v4060 = vadd.f32 %v3989, %v4059
    %v4061 = vpop.f32.mrb[0].mxu0
    %v4062 = vadd.f32 %v3991, %v4061
    %4063 = vdwg.mxu0
    %s4064 = scalar_lea.vmem %s11, 4
    %v4065 = vld [vmem:[%s4064] sm:$0x3]
    %v4067 = vsel %vm3708, %v4065, 0
    %4069 = vmatprep.subr.mxu0 0.0
    %4070 = vmatpush1.msra.mxu0 %v3703
    %4071 = vmatprep.subr.mxu0 0.0
    %4072 = vmatpush1.msra.mxu0 0.0
    %4073 = vmatprep.subr.mxu0 0.0
    %4074 = vmatpush1.msra.mxu0 0.0
    %4075 = vmatprep.subr.mxu0 0.0
    %4076 = vmatpush1.msra.mxu0 0.0
    %4077 = vmatprep.subr.mxu0 0.0
    %4078 = vmatpush1.msra.mxu0 0.0
    %4079 = vmatprep.subr.mxu0 0.0
    %4080 = vmatpush1.msra.mxu0 0.0
    %4081 = vmatprep.subr.mxu0 0.0
    %4082 = vmatpush1.msra.mxu0 0.0
    %4083 = vmatprep.subr.mxu0 0.0
    %4084 = vmatpush1.msra.mxu0 0.0
    %4085 = vmatprep.subr.mxu0 0.0
    %4086 = vmatpush1.msra.mxu0 0.0
    %4087 = vmatprep.subr.mxu0 0.0
    %4088 = vmatpush1.msra.mxu0 0.0
    %4089 = vmatprep.subr.mxu0 0.0
    %4090 = vmatpush1.msra.mxu0 0.0
    %4091 = vmatprep.subr.mxu0 0.0
    %4092 = vmatpush1.msra.mxu0 0.0
    %4093 = vmatprep.subr.mxu0 0.0
    %4094 = vmatpush1.msra.mxu0 0.0
    %4095 = vmatprep.subr.mxu0 0.0
    %4096 = vmatpush1.msra.mxu0 0.0
    %4097 = vmatprep.subr.mxu0 0.0
    %4098 = vmatpush1.msra.mxu0 0.0
    %4099 = vmatprep.subr.mxu0 0.0
    %4100 = vmatpush1.msra.mxu0 0.0
    %4101 = vmatprep.subr.mxu0 0.0
    %4102 = vmatpush1.msra.mxu0 0.0
    %4103 = vmatprep.subr.mxu0 0.0
    %4104 = vmatpush1.msra.mxu0 0.0
    %4105 = vmatprep.subr.mxu0 0.0
    %4106 = vmatpush1.msra.mxu0 0.0
    %4107 = vmatprep.subr.mxu0 0.0
    %4108 = vmatpush1.msra.mxu0 0.0
    %4109 = vmatprep.subr.mxu0 0.0
    %4110 = vmatpush1.msra.mxu0 0.0
    %4111 = vmatprep.subr.mxu0 0.0
    %4112 = vmatpush1.msra.mxu0 0.0
    %4113 = vmatprep.subr.mxu0 0.0
    %4114 = vmatpush1.msra.mxu0 0.0
    %4115 = vmatprep.subr.mxu0 0.0
    %4116 = vmatpush1.msra.mxu0 0.0
    %4117 = vmatprep.subr.mxu0 0.0
    %4118 = vmatpush1.msra.mxu0 0.0
    %4119 = vmatprep.subr.mxu0 0.0
    %4120 = vmatpush1.msra.mxu0 0.0
    %4121 = vmatprep.subr.mxu0 0.0
    %4122 = vmatpush1.msra.mxu0 0.0
    %4123 = vmatprep.subr.mxu0 0.0
    %4124 = vmatpush1.msra.mxu0 0.0
    %4125 = vmatprep.subr.mxu0 0.0
    %4126 = vmatpush1.msra.mxu0 0.0
    %4127 = vmatprep.subr.mxu0 0.0
    %4128 = vmatpush1.msra.mxu0 0.0
    %4129 = vmatprep.subr.mxu0 0.0
    %4130 = vmatpush1.msra.mxu0 0.0
    %4131 = vmatprep.subr.mxu0 0.0
    %4132 = vmatpush1.msra.mxu0 0.0
    %4133 = vmatprep.mubr.f32.mxu0 0.0
    %4134 = vmatmul.mubr.f32.gmra.mrb[0].mxu0 %v4067
    %v4135 = vpop.f32.mrb[0].mxu0
    %v4136 = vadd.f32 0.0, %v4135
    %v4137 = vpop.f32.mrb[0].mxu0
    %4138 = vdwg.mxu0
    %s4139 = scalar_lea.vmem [#allocation19], 512
    %v4140 = vld [vmem:[%s4139] sm:$0xff]
    %v4141 = vld [vmem:[%s4139 + $0x8] sm:$0xff]
    %v4142 = vld [vmem:[%s4139 + $0x10] sm:$0xff]
    %v4143 = vld [vmem:[%s4139 + $0x18] sm:$0xff]
    %v4144 = vld [vmem:[%s4139 + $0x20] sm:$0xff]
    %v4145 = vld [vmem:[%s4139 + $0x28] sm:$0xff]
    %v4146 = vld [vmem:[%s4139 + $0x30] sm:$0xff]
    %v4147 = vld [vmem:[%s4139 + $0x38] sm:$0xff]
    %v4148 = vld [vmem:[%s4139 + $0x40] sm:$0xff]
    %v4149 = vld [vmem:[%s4139 + $0x48] sm:$0xff]
    %v4150 = vld [vmem:[%s4139 + $0x50] sm:$0xff]
    %v4151 = vld [vmem:[%s4139 + $0x58] sm:$0xff]
    %v4152 = vld [vmem:[%s4139 + $0x60] sm:$0xff]
    %v4153 = vld [vmem:[%s4139 + $0x68] sm:$0xff]
    %v4154 = vld [vmem:[%s4139 + $0x70] sm:$0xff]
    %v4155 = vld [vmem:[%s4139 + $0x78] sm:$0xff]
    %v4156 = vld [vmem:[%s4139 + $0x80] sm:$0xff]
    %v4157 = vld [vmem:[%s4139 + $0x88] sm:$0xff]
    %v4158 = vld [vmem:[%s4139 + $0x90] sm:$0xff]
    %v4159 = vld [vmem:[%s4139 + $0x98] sm:$0xff]
    %v4160 = vld [vmem:[%s4139 + $0xa0] sm:$0xff]
    %v4161 = vld [vmem:[%s4139 + $0xa8] sm:$0xff]
    %v4162 = vld [vmem:[%s4139 + $0xb0] sm:$0xff]
    %v4163 = vld [vmem:[%s4139 + $0xb8] sm:$0xff]
    %v4164 = vld [vmem:[%s4139 + $0xc0] sm:$0xff]
    %v4165 = vld [vmem:[%s4139 + $0xc8] sm:$0xff]
    %v4166 = vld [vmem:[%s4139 + $0xd0] sm:$0xff]
    %v4167 = vld [vmem:[%s4139 + $0xd8] sm:$0xff]
    %v4168 = vld [vmem:[%s4139 + $0xe0] sm:$0xff]
    %v4169 = vld [vmem:[%s4139 + $0xe8] sm:$0xff]
    %v4170 = vld [vmem:[%s4139 + $0xf0] sm:$0xff]
    %v4171 = vld [vmem:[%s4139 + $0xf8] sm:$0xff]
    %4172 = vmatprep.subr.mxu0 %v4141
    %4173 = vmatpush1.msra.mxu0 %v4140
    %4174 = vmatprep.subr.mxu0 %v4143
    %4175 = vmatpush1.msra.mxu0 %v4142
    %4176 = vmatprep.subr.mxu0 %v4145
    %4177 = vmatpush1.msra.mxu0 %v4144
    %4178 = vmatprep.subr.mxu0 %v4147
    %4179 = vmatpush1.msra.mxu0 %v4146
    %4180 = vmatprep.subr.mxu0 %v4149
    %4181 = vmatpush1.msra.mxu0 %v4148
    %4182 = vmatprep.subr.mxu0 %v4151
    %4183 = vmatpush1.msra.mxu0 %v4150
    %4184 = vmatprep.subr.mxu0 %v4153
    %4185 = vmatpush1.msra.mxu0 %v4152
    %4186 = vmatprep.subr.mxu0 %v4155
    %4187 = vmatpush1.msra.mxu0 %v4154
    %4188 = vmatprep.subr.mxu0 %v4157
    %4189 = vmatpush1.msra.mxu0 %v4156
    %4190 = vmatprep.subr.mxu0 %v4159
    %4191 = vmatpush1.msra.mxu0 %v4158
    %4192 = vmatprep.subr.mxu0 %v4161
    %4193 = vmatpush1.msra.mxu0 %v4160
    %4194 = vmatprep.subr.mxu0 %v4163
    %4195 = vmatpush1.msra.mxu0 %v4162
    %4196 = vmatprep.subr.mxu0 %v4165
    %4197 = vmatpush1.msra.mxu0 %v4164
    %4198 = vmatprep.subr.mxu0 %v4167
    %4199 = vmatpush1.msra.mxu0 %v4166
    %4200 = vmatprep.subr.mxu0 %v4169
    %4201 = vmatpush1.msra.mxu0 %v4168
    %4202 = vmatprep.subr.mxu0 %v4171
    %4203 = vmatpush1.msra.mxu0 %v4170
    %4204 = vmatprep.subr.mxu0 0.0
    %4205 = vmatpush1.msra.mxu0 0.0
    %4206 = vmatprep.subr.mxu0 0.0
    %4207 = vmatpush1.msra.mxu0 0.0
    %4208 = vmatprep.subr.mxu0 0.0
    %4209 = vmatpush1.msra.mxu0 0.0
    %4210 = vmatprep.subr.mxu0 0.0
    %4211 = vmatpush1.msra.mxu0 0.0
    %4212 = vmatprep.subr.mxu0 0.0
    %4213 = vmatpush1.msra.mxu0 0.0
    %4214 = vmatprep.subr.mxu0 0.0
    %4215 = vmatpush1.msra.mxu0 0.0
    %4216 = vmatprep.subr.mxu0 0.0
    %4217 = vmatpush1.msra.mxu0 0.0
    %4218 = vmatprep.subr.mxu0 0.0
    %4219 = vmatpush1.msra.mxu0 0.0
    %4220 = vmatprep.subr.mxu0 0.0
    %4221 = vmatpush1.msra.mxu0 0.0
    %4222 = vmatprep.subr.mxu0 0.0
    %4223 = vmatpush1.msra.mxu0 0.0
    %4224 = vmatprep.subr.mxu0 0.0
    %4225 = vmatpush1.msra.mxu0 0.0
    %4226 = vmatprep.subr.mxu0 0.0
    %4227 = vmatpush1.msra.mxu0 0.0
    %4228 = vmatprep.subr.mxu0 0.0
    %4229 = vmatpush1.msra.mxu0 0.0
    %4230 = vmatprep.subr.mxu0 0.0
    %4231 = vmatpush1.msra.mxu0 0.0
    %4232 = vmatprep.subr.mxu0 0.0
    %4233 = vmatpush1.msra.mxu0 0.0
    %4234 = vmatprep.subr.mxu0 0.0
    %4235 = vmatpush1.msra.mxu0 0.0
    %4236 = vmatprep.mubr.f32.mxu0 0.0
    %4237 = vmatmul.mubr.f32.gmra.mrb[0].mxu0 %v4136
    %v4238 = vpop.f32.mrb[0].mxu0
    %v4239 = vadd.f32 0.0, %v4238
    %v4240 = vpop.f32.mrb[0].mxu0
    %v4241 = vadd.f32 0.0, %v4240
    %4242 = vdwg.mxu0
    %v4243 = vadd.f32 %v4060, %v4239
    %v4244 = vadd.f32 %v4062, %v4241
    %s4245 = scalar_lea.vmem %s11, 6
    %v4246 = vld [vmem:[%s4245] sm:$0x3]
    %v4248 = vsel %vm3708, %v4246, 0
    %4250 = vmatprep.subr.mxu0 0.0
    %4251 = vmatpush1.msra.mxu0 %v3703
    %4252 = vmatprep.subr.mxu0 0.0
    %4253 = vmatpush1.msra.mxu0 0.0
    %4254 = vmatprep.subr.mxu0 0.0
    %4255 = vmatpush1.msra.mxu0 0.0
    %4256 = vmatprep.subr.mxu0 0.0
    %4257 = vmatpush1.msra.mxu0 0.0
    %4258 = vmatprep.subr.mxu0 0.0
    %4259 = vmatpush1.msra.mxu0 0.0
    %4260 = vmatprep.subr.mxu0 0.0
    %4261 = vmatpush1.msra.mxu0 0.0
    %4262 = vmatprep.subr.mxu0 0.0
    %4263 = vmatpush1.msra.mxu0 0.0
    %4264 = vmatprep.subr.mxu0 0.0
    %4265 = vmatpush1.msra.mxu0 0.0
    %4266 = vmatprep.subr.mxu0 0.0
    %4267 = vmatpush1.msra.mxu0 0.0
    %4268 = vmatprep.subr.mxu0 0.0
    %4269 = vmatpush1.msra.mxu0 0.0
    %4270 = vmatprep.subr.mxu0 0.0
    %4271 = vmatpush1.msra.mxu0 0.0
    %4272 = vmatprep.subr.mxu0 0.0
    %4273 = vmatpush1.msra.mxu0 0.0
    %4274 = vmatprep.subr.mxu0 0.0
    %4275 = vmatpush1.msra.mxu0 0.0
    %4276 = vmatprep.subr.mxu0 0.0
    %4277 = vmatpush1.msra.mxu0 0.0
    %4278 = vmatprep.subr.mxu0 0.0
    %4279 = vmatpush1.msra.mxu0 0.0
    %4280 = vmatprep.subr.mxu0 0.0
    %4281 = vmatpush1.msra.mxu0 0.0
    %4282 = vmatprep.subr.mxu0 0.0
    %4283 = vmatpush1.msra.mxu0 0.0
    %4284 = vmatprep.subr.mxu0 0.0
    %4285 = vmatpush1.msra.mxu0 0.0
    %4286 = vmatprep.subr.mxu0 0.0
    %4287 = vmatpush1.msra.mxu0 0.0
    %4288 = vmatprep.subr.mxu0 0.0
    %4289 = vmatpush1.msra.mxu0 0.0
    %4290 = vmatprep.subr.mxu0 0.0
    %4291 = vmatpush1.msra.mxu0 0.0
    %4292 = vmatprep.subr.mxu0 0.0
    %4293 = vmatpush1.msra.mxu0 0.0
    %4294 = vmatprep.subr.mxu0 0.0
    %4295 = vmatpush1.msra.mxu0 0.0
    %4296 = vmatprep.subr.mxu0 0.0
    %4297 = vmatpush1.msra.mxu0 0.0
    %4298 = vmatprep.subr.mxu0 0.0
    %4299 = vmatpush1.msra.mxu0 0.0
    %4300 = vmatprep.subr.mxu0 0.0
    %4301 = vmatpush1.msra.mxu0 0.0
    %4302 = vmatprep.subr.mxu0 0.0
    %4303 = vmatpush1.msra.mxu0 0.0
    %4304 = vmatprep.subr.mxu0 0.0
    %4305 = vmatpush1.msra.mxu0 0.0
    %4306 = vmatprep.subr.mxu0 0.0
    %4307 = vmatpush1.msra.mxu0 0.0
    %4308 = vmatprep.subr.mxu0 0.0
    %4309 = vmatpush1.msra.mxu0 0.0
    %4310 = vmatprep.subr.mxu0 0.0
    %4311 = vmatpush1.msra.mxu0 0.0
    %4312 = vmatprep.subr.mxu0 0.0
    %4313 = vmatpush1.msra.mxu0 0.0
    %4314 = vmatprep.mubr.f32.mxu0 0.0
    %4315 = vmatmul.mubr.f32.gmra.mrb[0].mxu0 %v4248
    %v4316 = vpop.f32.mrb[0].mxu0
    %v4317 = vadd.f32 0.0, %v4316
    %v4318 = vpop.f32.mrb[0].mxu0
    %4319 = vdwg.mxu0
    %s4320 = scalar_lea.vmem [#allocation19], 768
    %v4321 = vld [vmem:[%s4320] sm:$0xff]
    %v4322 = vld [vmem:[%s4320 + $0x8] sm:$0xff]
    %v4323 = vld [vmem:[%s4320 + $0x10] sm:$0xff]
    %v4324 = vld [vmem:[%s4320 + $0x18] sm:$0xff]
    %v4325 = vld [vmem:[%s4320 + $0x20] sm:$0xff]
    %v4326 = vld [vmem:[%s4320 + $0x28] sm:$0xff]
    %v4327 = vld [vmem:[%s4320 + $0x30] sm:$0xff]
    %v4328 = vld [vmem:[%s4320 + $0x38] sm:$0xff]
    %v4329 = vld [vmem:[%s4320 + $0x40] sm:$0xff]
    %v4330 = vld [vmem:[%s4320 + $0x48] sm:$0xff]
    %v4331 = vld [vmem:[%s4320 + $0x50] sm:$0xff]
    %v4332 = vld [vmem:[%s4320 + $0x58] sm:$0xff]
    %v4333 = vld [vmem:[%s4320 + $0x60] sm:$0xff]
    %v4334 = vld [vmem:[%s4320 + $0x68] sm:$0xff]
    %v4335 = vld [vmem:[%s4320 + $0x70] sm:$0xff]
    %v4336 = vld [vmem:[%s4320 + $0x78] sm:$0xff]
    %v4337 = vld [vmem:[%s4320 + $0x80] sm:$0xff]
    %v4338 = vld [vmem:[%s4320 + $0x88] sm:$0xff]
    %v4339 = vld [vmem:[%s4320 + $0x90] sm:$0xff]
    %v4340 = vld [vmem:[%s4320 + $0x98] sm:$0xff]
    %v4341 = vld [vmem:[%s4320 + $0xa0] sm:$0xff]
    %v4342 = vld [vmem:[%s4320 + $0xa8] sm:$0xff]
    %v4343 = vld [vmem:[%s4320 + $0xb0] sm:$0xff]
    %v4344 = vld [vmem:[%s4320 + $0xb8] sm:$0xff]
    %v4345 = vld [vmem:[%s4320 + $0xc0] sm:$0xff]
    %v4346 = vld [vmem:[%s4320 + $0xc8] sm:$0xff]
    %v4347 = vld [vmem:[%s4320 + $0xd0] sm:$0xff]
    %v4348 = vld [vmem:[%s4320 + $0xd8] sm:$0xff]
    %v4349 = vld [vmem:[%s4320 + $0xe0] sm:$0xff]
    %v4350 = vld [vmem:[%s4320 + $0xe8] sm:$0xff]
    %v4351 = vld [vmem:[%s4320 + $0xf0] sm:$0xff]
    %v4352 = vld [vmem:[%s4320 + $0xf8] sm:$0xff]
    %4353 = vmatprep.subr.mxu0 %v4322
    %4354 = vmatpush1.msra.mxu0 %v4321
    %4355 = vmatprep.subr.mxu0 %v4324
    %4356 = vmatpush1.msra.mxu0 %v4323
    %4357 = vmatprep.subr.mxu0 %v4326
    %4358 = vmatpush1.msra.mxu0 %v4325
    %4359 = vmatprep.subr.mxu0 %v4328
    %4360 = vmatpush1.msra.mxu0 %v4327
    %4361 = vmatprep.subr.mxu0 %v4330
    %4362 = vmatpush1.msra.mxu0 %v4329
    %4363 = vmatprep.subr.mxu0 %v4332
    %4364 = vmatpush1.msra.mxu0 %v4331
    %4365 = vmatprep.subr.mxu0 %v4334
    %4366 = vmatpush1.msra.mxu0 %v4333
    %4367 = vmatprep.subr.mxu0 %v4336
    %4368 = vmatpush1.msra.mxu0 %v4335
    %4369 = vmatprep.subr.mxu0 %v4338
    %4370 = vmatpush1.msra.mxu0 %v4337
    %4371 = vmatprep.subr.mxu0 %v4340
    %4372 = vmatpush1.msra.mxu0 %v4339
    %4373 = vmatprep.subr.mxu0 %v4342
    %4374 = vmatpush1.msra.mxu0 %v4341
    %4375 = vmatprep.subr.mxu0 %v4344
    %4376 = vmatpush1.msra.mxu0 %v4343
    %4377 = vmatprep.subr.mxu0 %v4346
    %4378 = vmatpush1.msra.mxu0 %v4345
    %4379 = vmatprep.subr.mxu0 %v4348
    %4380 = vmatpush1.msra.mxu0 %v4347
    %4381 = vmatprep.subr.mxu0 %v4350
    %4382 = vmatpush1.msra.mxu0 %v4349
    %4383 = vmatprep.subr.mxu0 %v4352
    %4384 = vmatpush1.msra.mxu0 %v4351
    %4385 = vmatprep.subr.mxu0 0.0
    %4386 = vmatpush1.msra.mxu0 0.0
    %4387 = vmatprep.subr.mxu0 0.0
    %4388 = vmatpush1.msra.mxu0 0.0
    %4389 = vmatprep.subr.mxu0 0.0
    %4390 = vmatpush1.msra.mxu0 0.0
    %4391 = vmatprep.subr.mxu0 0.0
    %4392 = vmatpush1.msra.mxu0 0.0
    %4393 = vmatprep.subr.mxu0 0.0
    %4394 = vmatpush1.msra.mxu0 0.0
    %4395 = vmatprep.subr.mxu0 0.0
    %4396 = vmatpush1.msra.mxu0 0.0
    %4397 = vmatprep.subr.mxu0 0.0
    %4398 = vmatpush1.msra.mxu0 0.0
    %4399 = vmatprep.subr.mxu0 0.0
    %4400 = vmatpush1.msra.mxu0 0.0
    %4401 = vmatprep.subr.mxu0 0.0
    %4402 = vmatpush1.msra.mxu0 0.0
    %4403 = vmatprep.subr.mxu0 0.0
    %4404 = vmatpush1.msra.mxu0 0.0
    %4405 = vmatprep.subr.mxu0 0.0
    %4406 = vmatpush1.msra.mxu0 0.0
    %4407 = vmatprep.subr.mxu0 0.0
    %4408 = vmatpush1.msra.mxu0 0.0
    %4409 = vmatprep.subr.mxu0 0.0
    %4410 = vmatpush1.msra.mxu0 0.0
    %4411 = vmatprep.subr.mxu0 0.0
    %4412 = vmatpush1.msra.mxu0 0.0
    %4413 = vmatprep.subr.mxu0 0.0
    %4414 = vmatpush1.msra.mxu0 0.0
    %4415 = vmatprep.subr.mxu0 0.0
    %4416 = vmatpush1.msra.mxu0 0.0
    %4417 = vmatprep.mubr.f32.mxu0 0.0
    %4418 = vmatmul.mubr.f32.gmra.mrb[0].mxu0 %v4317
    %v4419 = vpop.f32.mrb[0].mxu0
    %v4420 = vadd.f32 0.0, %v4419
    %v4421 = vpop.f32.mrb[0].mxu0
    %v4422 = vadd.f32 0.0, %v4421
    %4423 = vdwg.mxu0
    %v4424 = vadd.f32 %v4243, %v4420
    %v4425 = vadd.f32 %v4244, %v4422
    %s4426 = scalar_lea.vmem %s11, 8
    %v4427 = vld [vmem:[%s4426] sm:$0x3]
    %v4429 = vsel %vm3708, %v4427, 0
    %4431 = vmatprep.subr.mxu0 0.0
    %4432 = vmatpush1.msra.mxu0 %v3703
    %4433 = vmatprep.subr.mxu0 0.0
    %4434 = vmatpush1.msra.mxu0 0.0
    %4435 = vmatprep.subr.mxu0 0.0
    %4436 = vmatpush1.msra.mxu0 0.0
    %4437 = vmatprep.subr.mxu0 0.0
    %4438 = vmatpush1.msra.mxu0 0.0
    %4439 = vmatprep.subr.mxu0 0.0
    %4440 = vmatpush1.msra.mxu0 0.0
    %4441 = vmatprep.subr.mxu0 0.0
    %4442 = vmatpush1.msra.mxu0 0.0
    %4443 = vmatprep.subr.mxu0 0.0
    %4444 = vmatpush1.msra.mxu0 0.0
    %4445 = vmatprep.subr.mxu0 0.0
    %4446 = vmatpush1.msra.mxu0 0.0
    %4447 = vmatprep.subr.mxu0 0.0
    %4448 = vmatpush1.msra.mxu0 0.0
    %4449 = vmatprep.subr.mxu0 0.0
    %4450 = vmatpush1.msra.mxu0 0.0
    %4451 = vmatprep.subr.mxu0 0.0
    %4452 = vmatpush1.msra.mxu0 0.0
    %4453 = vmatprep.subr.mxu0 0.0
    %4454 = vmatpush1.msra.mxu0 0.0
    %4455 = vmatprep.subr.mxu0 0.0
    %4456 = vmatpush1.msra.mxu0 0.0
    %4457 = vmatprep.subr.mxu0 0.0
    %4458 = vmatpush1.msra.mxu0 0.0
    %4459 = vmatprep.subr.mxu0 0.0
    %4460 = vmatpush1.msra.mxu0 0.0
    %4461 = vmatprep.subr.mxu0 0.0
    %4462 = vmatpush1.msra.mxu0 0.0
    %4463 = vmatprep.subr.mxu0 0.0
    %4464 = vmatpush1.msra.mxu0 0.0
    %4465 = vmatprep.subr.mxu0 0.0
    %4466 = vmatpush1.msra.mxu0 0.0
    %4467 = vmatprep.subr.mxu0 0.0
    %4468 = vmatpush1.msra.mxu0 0.0
    %4469 = vmatprep.subr.mxu0 0.0
    %4470 = vmatpush1.msra.mxu0 0.0
    %4471 = vmatprep.subr.mxu0 0.0
    %4472 = vmatpush1.msra.mxu0 0.0
    %4473 = vmatprep.subr.mxu0 0.0
    %4474 = vmatpush1.msra.mxu0 0.0
    %4475 = vmatprep.subr.mxu0 0.0
    %4476 = vmatpush1.msra.mxu0 0.0
    %4477 = vmatprep.subr.mxu0 0.0
    %4478 = vmatpush1.msra.mxu0 0.0
    %4479 = vmatprep.subr.mxu0 0.0
    %4480 = vmatpush1.msra.mxu0 0.0
    %4481 = vmatprep.subr.mxu0 0.0
    %4482 = vmatpush1.msra.mxu0 0.0
    %4483 = vmatprep.subr.mxu0 0.0
    %4484 = vmatpush1.msra.mxu0 0.0
    %4485 = vmatprep.subr.mxu0 0.0
    %4486 = vmatpush1.msra.mxu0 0.0
    %4487 = vmatprep.subr.mxu0 0.0
    %4488 = vmatpush1.msra.mxu0 0.0
    %4489 = vmatprep.subr.mxu0 0.0
    %4490 = vmatpush1.msra.mxu0 0.0
    %4491 = vmatprep.subr.mxu0 0.0
    %4492 = vmatpush1.msra.mxu0 0.0
    %4493 = vmatprep.subr.mxu0 0.0
    %4494 = vmatpush1.msra.mxu0 0.0
    %4495 = vmatprep.mubr.f32.mxu0 0.0
    %4496 = vmatmul.mubr.f32.gmra.mrb[0].mxu0 %v4429
    %v4497 = vpop.f32.mrb[0].mxu0
    %v4498 = vadd.f32 0.0, %v4497
    %v4499 = vpop.f32.mrb[0].mxu0
    %4500 = vdwg.mxu0
    %s4501 = scalar_lea.vmem [#allocation19], 1024
    %v4502 = vld [vmem:[%s4501] sm:$0xff]
    %v4503 = vld [vmem:[%s4501 + $0x8] sm:$0xff]
    %v4504 = vld [vmem:[%s4501 + $0x10] sm:$0xff]
    %v4505 = vld [vmem:[%s4501 + $0x18] sm:$0xff]
    %v4506 = vld [vmem:[%s4501 + $0x20] sm:$0xff]
    %v4507 = vld [vmem:[%s4501 + $0x28] sm:$0xff]
    %v4508 = vld [vmem:[%s4501 + $0x30] sm:$0xff]
    %v4509 = vld [vmem:[%s4501 + $0x38] sm:$0xff]
    %v4510 = vld [vmem:[%s4501 + $0x40] sm:$0xff]
    %v4511 = vld [vmem:[%s4501 + $0x48] sm:$0xff]
    %v4512 = vld [vmem:[%s4501 + $0x50] sm:$0xff]
    %v4513 = vld [vmem:[%s4501 + $0x58] sm:$0xff]
    %v4514 = vld [vmem:[%s4501 + $0x60] sm:$0xff]
    %v4515 = vld [vmem:[%s4501 + $0x68] sm:$0xff]
    %v4516 = vld [vmem:[%s4501 + $0x70] sm:$0xff]
    %v4517 = vld [vmem:[%s4501 + $0x78] sm:$0xff]
    %v4518 = vld [vmem:[%s4501 + $0x80] sm:$0xff]
    %v4519 = vld [vmem:[%s4501 + $0x88] sm:$0xff]
    %v4520 = vld [vmem:[%s4501 + $0x90] sm:$0xff]
    %v4521 = vld [vmem:[%s4501 + $0x98] sm:$0xff]
    %v4522 = vld [vmem:[%s4501 + $0xa0] sm:$0xff]
    %v4523 = vld [vmem:[%s4501 + $0xa8] sm:$0xff]
    %v4524 = vld [vmem:[%s4501 + $0xb0] sm:$0xff]
    %v4525 = vld [vmem:[%s4501 + $0xb8] sm:$0xff]
    %v4526 = vld [vmem:[%s4501 + $0xc0] sm:$0xff]
    %v4527 = vld [vmem:[%s4501 + $0xc8] sm:$0xff]
    %v4528 = vld [vmem:[%s4501 + $0xd0] sm:$0xff]
    %v4529 = vld [vmem:[%s4501 + $0xd8] sm:$0xff]
    %v4530 = vld [vmem:[%s4501 + $0xe0] sm:$0xff]
    %v4531 = vld [vmem:[%s4501 + $0xe8] sm:$0xff]
    %v4532 = vld [vmem:[%s4501 + $0xf0] sm:$0xff]
    %v4533 = vld [vmem:[%s4501 + $0xf8] sm:$0xff]
    %4534 = vmatprep.subr.mxu0 %v4503
    %4535 = vmatpush1.msra.mxu0 %v4502
    %4536 = vmatprep.subr.mxu0 %v4505
    %4537 = vmatpush1.msra.mxu0 %v4504
    %4538 = vmatprep.subr.mxu0 %v4507
    %4539 = vmatpush1.msra.mxu0 %v4506
    %4540 = vmatprep.subr.mxu0 %v4509
    %4541 = vmatpush1.msra.mxu0 %v4508
    %4542 = vmatprep.subr.mxu0 %v4511
    %4543 = vmatpush1.msra.mxu0 %v4510
    %4544 = vmatprep.subr.mxu0 %v4513
    %4545 = vmatpush1.msra.mxu0 %v4512
    %4546 = vmatprep.subr.mxu0 %v4515
    %4547 = vmatpush1.msra.mxu0 %v4514
    %4548 = vmatprep.subr.mxu0 %v4517
    %4549 = vmatpush1.msra.mxu0 %v4516
    %4550 = vmatprep.subr.mxu0 %v4519
    %4551 = vmatpush1.msra.mxu0 %v4518
    %4552 = vmatprep.subr.mxu0 %v4521
    %4553 = vmatpush1.msra.mxu0 %v4520
    %4554 = vmatprep.subr.mxu0 %v4523
    %4555 = vmatpush1.msra.mxu0 %v4522
    %4556 = vmatprep.subr.mxu0 %v4525
    %4557 = vmatpush1.msra.mxu0 %v4524
    %4558 = vmatprep.subr.mxu0 %v4527
    %4559 = vmatpush1.msra.mxu0 %v4526
    %4560 = vmatprep.subr.mxu0 %v4529
    %4561 = vmatpush1.msra.mxu0 %v4528
    %4562 = vmatprep.subr.mxu0 %v4531
    %4563 = vmatpush1.msra.mxu0 %v4530
    %4564 = vmatprep.subr.mxu0 %v4533
    %4565 = vmatpush1.msra.mxu0 %v4532
    %4566 = vmatprep.subr.mxu0 0.0
    %4567 = vmatpush1.msra.mxu0 0.0
    %4568 = vmatprep.subr.mxu0 0.0
    %4569 = vmatpush1.msra.mxu0 0.0
    %4570 = vmatprep.subr.mxu0 0.0
    %4571 = vmatpush1.msra.mxu0 0.0
    %4572 = vmatprep.subr.mxu0 0.0
    %4573 = vmatpush1.msra.mxu0 0.0
    %4574 = vmatprep.subr.mxu0 0.0
    %4575 = vmatpush1.msra.mxu0 0.0
    %4576 = vmatprep.subr.mxu0 0.0
    %4577 = vmatpush1.msra.mxu0 0.0
    %4578 = vmatprep.subr.mxu0 0.0
    %4579 = vmatpush1.msra.mxu0 0.0
    %4580 = vmatprep.subr.mxu0 0.0
    %4581 = vmatpush1.msra.mxu0 0.0
    %4582 = vmatprep.subr.mxu0 0.0
    %4583 = vmatpush1.msra.mxu0 0.0
    %4584 = vmatprep.subr.mxu0 0.0
    %4585 = vmatpush1.msra.mxu0 0.0
    %4586 = vmatprep.subr.mxu0 0.0
    %4587 = vmatpush1.msra.mxu0 0.0
    %4588 = vmatprep.subr.mxu0 0.0
    %4589 = vmatpush1.msra.mxu0 0.0
    %4590 = vmatprep.subr.mxu0 0.0
    %4591 = vmatpush1.msra.mxu0 0.0
    %4592 = vmatprep.subr.mxu0 0.0
    %4593 = vmatpush1.msra.mxu0 0.0
    %4594 = vmatprep.subr.mxu0 0.0
    %4595 = vmatpush1.msra.mxu0 0.0
    %4596 = vmatprep.subr.mxu0 0.0
    %4597 = vmatpush1.msra.mxu0 0.0
    %4598 = vmatprep.mubr.f32.mxu0 0.0
    %4599 = vmatmul.mubr.f32.gmra.mrb[0].mxu0 %v4498
    %v4600 = vpop.f32.mrb[0].mxu0
    %v4601 = vadd.f32 0.0, %v4600
    %v4602 = vpop.f32.mrb[0].mxu0
    %v4603 = vadd.f32 0.0, %v4602
    %4604 = vdwg.mxu0
    %v4605 = vadd.f32 %v4424, %v4601
    %v4606 = vadd.f32 %v4425, %v4603
    %s4607 = scalar_lea.vmem %s11, 10
    %v4608 = vld [vmem:[%s4607] sm:$0x3]
    %v4610 = vsel %vm3708, %v4608, 0
    %4612 = vmatprep.subr.mxu0 0.0
    %4613 = vmatpush1.msra.mxu0 %v3703
    %4614 = vmatprep.subr.mxu0 0.0
    %4615 = vmatpush1.msra.mxu0 0.0
    %4616 = vmatprep.subr.mxu0 0.0
    %4617 = vmatpush1.msra.mxu0 0.0
    %4618 = vmatprep.subr.mxu0 0.0
    %4619 = vmatpush1.msra.mxu0 0.0
    %4620 = vmatprep.subr.mxu0 0.0
    %4621 = vmatpush1.msra.mxu0 0.0
    %4622 = vmatprep.subr.mxu0 0.0
    %4623 = vmatpush1.msra.mxu0 0.0
    %4624 = vmatprep.subr.mxu0 0.0
    %4625 = vmatpush1.msra.mxu0 0.0
    %4626 = vmatprep.subr.mxu0 0.0
    %4627 = vmatpush1.msra.mxu0 0.0
    %4628 = vmatprep.subr.mxu0 0.0
    %4629 = vmatpush1.msra.mxu0 0.0
    %4630 = vmatprep.subr.mxu0 0.0
    %4631 = vmatpush1.msra.mxu0 0.0
    %4632 = vmatprep.subr.mxu0 0.0
    %4633 = vmatpush1.msra.mxu0 0.0
    %4634 = vmatprep.subr.mxu0 0.0
    %4635 = vmatpush1.msra.mxu0 0.0
    %4636 = vmatprep.subr.mxu0 0.0
    %4637 = vmatpush1.msra.mxu0 0.0
    %4638 = vmatprep.subr.mxu0 0.0
    %4639 = vmatpush1.msra.mxu0 0.0
    %4640 = vmatprep.subr.mxu0 0.0
    %4641 = vmatpush1.msra.mxu0 0.0
    %4642 = vmatprep.subr.mxu0 0.0
    %4643 = vmatpush1.msra.mxu0 0.0
    %4644 = vmatprep.subr.mxu0 0.0
    %4645 = vmatpush1.msra.mxu0 0.0
    %4646 = vmatprep.subr.mxu0 0.0
    %4647 = vmatpush1.msra.mxu0 0.0
    %4648 = vmatprep.subr.mxu0 0.0
    %4649 = vmatpush1.msra.mxu0 0.0
    %4650 = vmatprep.subr.mxu0 0.0
    %4651 = vmatpush1.msra.mxu0 0.0
    %4652 = vmatprep.subr.mxu0 0.0
    %4653 = vmatpush1.msra.mxu0 0.0
    %4654 = vmatprep.subr.mxu0 0.0
    %4655 = vmatpush1.msra.mxu0 0.0
    %4656 = vmatprep.subr.mxu0 0.0
    %4657 = vmatpush1.msra.mxu0 0.0
    %4658 = vmatprep.subr.mxu0 0.0
    %4659 = vmatpush1.msra.mxu0 0.0
    %4660 = vmatprep.subr.mxu0 0.0
    %4661 = vmatpush1.msra.mxu0 0.0
    %4662 = vmatprep.subr.mxu0 0.0
    %4663 = vmatpush1.msra.mxu0 0.0
    %4664 = vmatprep.subr.mxu0 0.0
    %4665 = vmatpush1.msra.mxu0 0.0
    %4666 = vmatprep.subr.mxu0 0.0
    %4667 = vmatpush1.msra.mxu0 0.0
    %4668 = vmatprep.subr.mxu0 0.0
    %4669 = vmatpush1.msra.mxu0 0.0
    %4670 = vmatprep.subr.mxu0 0.0
    %4671 = vmatpush1.msra.mxu0 0.0
    %4672 = vmatprep.subr.mxu0 0.0
    %4673 = vmatpush1.msra.mxu0 0.0
    %4674 = vmatprep.subr.mxu0 0.0
    %4675 = vmatpush1.msra.mxu0 0.0
    %4676 = vmatprep.mubr.f32.mxu0 0.0
    %4677 = vmatmul.mubr.f32.gmra.mrb[0].mxu0 %v4610
    %v4678 = vpop.f32.mrb[0].mxu0
    %v4679 = vadd.f32 0.0, %v4678
    %v4680 = vpop.f32.mrb[0].mxu0
    %4681 = vdwg.mxu0
    %s4682 = scalar_lea.vmem [#allocation19], 1280
    %v4683 = vld [vmem:[%s4682] sm:$0xff]
    %v4684 = vld [vmem:[%s4682 + $0x8] sm:$0xff]
    %v4685 = vld [vmem:[%s4682 + $0x10] sm:$0xff]
    %v4686 = vld [vmem:[%s4682 + $0x18] sm:$0xff]
    %v4687 = vld [vmem:[%s4682 + $0x20] sm:$0xff]
    %v4688 = vld [vmem:[%s4682 + $0x28] sm:$0xff]
    %v4689 = vld [vmem:[%s4682 + $0x30] sm:$0xff]
    %v4690 = vld [vmem:[%s4682 + $0x38] sm:$0xff]
    %v4691 = vld [vmem:[%s4682 + $0x40] sm:$0xff]
    %v4692 = vld [vmem:[%s4682 + $0x48] sm:$0xff]
    %v4693 = vld [vmem:[%s4682 + $0x50] sm:$0xff]
    %v4694 = vld [vmem:[%s4682 + $0x58] sm:$0xff]
    %v4695 = vld [vmem:[%s4682 + $0x60] sm:$0xff]
    %v4696 = vld [vmem:[%s4682 + $0x68] sm:$0xff]
    %v4697 = vld [vmem:[%s4682 + $0x70] sm:$0xff]
    %v4698 = vld [vmem:[%s4682 + $0x78] sm:$0xff]
    %v4699 = vld [vmem:[%s4682 + $0x80] sm:$0xff]
    %v4700 = vld [vmem:[%s4682 + $0x88] sm:$0xff]
    %v4701 = vld [vmem:[%s4682 + $0x90] sm:$0xff]
    %v4702 = vld [vmem:[%s4682 + $0x98] sm:$0xff]
    %v4703 = vld [vmem:[%s4682 + $0xa0] sm:$0xff]
    %v4704 = vld [vmem:[%s4682 + $0xa8] sm:$0xff]
    %v4705 = vld [vmem:[%s4682 + $0xb0] sm:$0xff]
    %v4706 = vld [vmem:[%s4682 + $0xb8] sm:$0xff]
    %v4707 = vld [vmem:[%s4682 + $0xc0] sm:$0xff]
    %v4708 = vld [vmem:[%s4682 + $0xc8] sm:$0xff]
    %v4709 = vld [vmem:[%s4682 + $0xd0] sm:$0xff]
    %v4710 = vld [vmem:[%s4682 + $0xd8] sm:$0xff]
    %v4711 = vld [vmem:[%s4682 + $0xe0] sm:$0xff]
    %v4712 = vld [vmem:[%s4682 + $0xe8] sm:$0xff]
    %v4713 = vld [vmem:[%s4682 + $0xf0] sm:$0xff]
    %v4714 = vld [vmem:[%s4682 + $0xf8] sm:$0xff]
    %4715 = vmatprep.subr.mxu0 %v4684
    %4716 = vmatpush1.msra.mxu0 %v4683
    %4717 = vmatprep.subr.mxu0 %v4686
    %4718 = vmatpush1.msra.mxu0 %v4685
    %4719 = vmatprep.subr.mxu0 %v4688
    %4720 = vmatpush1.msra.mxu0 %v4687
    %4721 = vmatprep.subr.mxu0 %v4690
    %4722 = vmatpush1.msra.mxu0 %v4689
    %4723 = vmatprep.subr.mxu0 %v4692
    %4724 = vmatpush1.msra.mxu0 %v4691
    %4725 = vmatprep.subr.mxu0 %v4694
    %4726 = vmatpush1.msra.mxu0 %v4693
    %4727 = vmatprep.subr.mxu0 %v4696
    %4728 = vmatpush1.msra.mxu0 %v4695
    %4729 = vmatprep.subr.mxu0 %v4698
    %4730 = vmatpush1.msra.mxu0 %v4697
    %4731 = vmatprep.subr.mxu0 %v4700
    %4732 = vmatpush1.msra.mxu0 %v4699
    %4733 = vmatprep.subr.mxu0 %v4702
    %4734 = vmatpush1.msra.mxu0 %v4701
    %4735 = vmatprep.subr.mxu0 %v4704
    %4736 = vmatpush1.msra.mxu0 %v4703
    %4737 = vmatprep.subr.mxu0 %v4706
    %4738 = vmatpush1.msra.mxu0 %v4705
    %4739 = vmatprep.subr.mxu0 %v4708
    %4740 = vmatpush1.msra.mxu0 %v4707
    %4741 = vmatprep.subr.mxu0 %v4710
    %4742 = vmatpush1.msra.mxu0 %v4709
    %4743 = vmatprep.subr.mxu0 %v4712
    %4744 = vmatpush1.msra.mxu0 %v4711
    %4745 = vmatprep.subr.mxu0 %v4714
    %4746 = vmatpush1.msra.mxu0 %v4713
    %4747 = vmatprep.subr.mxu0 0.0
    %4748 = vmatpush1.msra.mxu0 0.0
    %4749 = vmatprep.subr.mxu0 0.0
    %4750 = vmatpush1.msra.mxu0 0.0
    %4751 = vmatprep.subr.mxu0 0.0
    %4752 = vmatpush1.msra.mxu0 0.0
    %4753 = vmatprep.subr.mxu0 0.0
    %4754 = vmatpush1.msra.mxu0 0.0
    %4755 = vmatprep.subr.mxu0 0.0
    %4756 = vmatpush1.msra.mxu0 0.0
    %4757 = vmatprep.subr.mxu0 0.0
    %4758 = vmatpush1.msra.mxu0 0.0
    %4759 = vmatprep.subr.mxu0 0.0
    %4760 = vmatpush1.msra.mxu0 0.0
    %4761 = vmatprep.subr.mxu0 0.0
    %4762 = vmatpush1.msra.mxu0 0.0
    %4763 = vmatprep.subr.mxu0 0.0
    %4764 = vmatpush1.msra.mxu0 0.0
    %4765 = vmatprep.subr.mxu0 0.0
    %4766 = vmatpush1.msra.mxu0 0.0
    %4767 = vmatprep.subr.mxu0 0.0
    %4768 = vmatpush1.msra.mxu0 0.0
    %4769 = vmatprep.subr.mxu0 0.0
    %4770 = vmatpush1.msra.mxu0 0.0
    %4771 = vmatprep.subr.mxu0 0.0
    %4772 = vmatpush1.msra.mxu0 0.0
    %4773 = vmatprep.subr.mxu0 0.0
    %4774 = vmatpush1.msra.mxu0 0.0
    %4775 = vmatprep.subr.mxu0 0.0
    %4776 = vmatpush1.msra.mxu0 0.0
    %4777 = vmatprep.subr.mxu0 0.0
    %4778 = vmatpush1.msra.mxu0 0.0
    %4779 = vmatprep.mubr.f32.mxu0 0.0
    %4780 = vmatmul.mubr.f32.gmra.mrb[0].mxu0 %v4679
    %v4781 = vpop.f32.mrb[0].mxu0
    %v4782 = vadd.f32 0.0, %v4781
    %v4783 = vpop.f32.mrb[0].mxu0
    %v4784 = vadd.f32 0.0, %v4783
    %4785 = vdwg.mxu0
    %v4786 = vadd.f32 %v4605, %v4782
    %v4787 = vadd.f32 %v4606, %v4784
    %s4788 = scalar_lea.vmem %s11, 12
    %v4789 = vld [vmem:[%s4788] sm:$0x3]
    %v4791 = vsel %vm3708, %v4789, 0
    %4793 = vmatprep.subr.mxu0 0.0
    %4794 = vmatpush1.msra.mxu0 %v3703
    %4795 = vmatprep.subr.mxu0 0.0
    %4796 = vmatpush1.msra.mxu0 0.0
    %4797 = vmatprep.subr.mxu0 0.0
    %4798 = vmatpush1.msra.mxu0 0.0
    %4799 = vmatprep.subr.mxu0 0.0
    %4800 = vmatpush1.msra.mxu0 0.0
    %4801 = vmatprep.subr.mxu0 0.0
    %4802 = vmatpush1.msra.mxu0 0.0
    %4803 = vmatprep.subr.mxu0 0.0
    %4804 = vmatpush1.msra.mxu0 0.0
    %4805 = vmatprep.subr.mxu0 0.0
    %4806 = vmatpush1.msra.mxu0 0.0
    %4807 = vmatprep.subr.mxu0 0.0
    %4808 = vmatpush1.msra.mxu0 0.0
    %4809 = vmatprep.subr.mxu0 0.0
    %4810 = vmatpush1.msra.mxu0 0.0
    %4811 = vmatprep.subr.mxu0 0.0
    %4812 = vmatpush1.msra.mxu0 0.0
    %4813 = vmatprep.subr.mxu0 0.0
    %4814 = vmatpush1.msra.mxu0 0.0
    %4815 = vmatprep.subr.mxu0 0.0
    %4816 = vmatpush1.msra.mxu0 0.0
    %4817 = vmatprep.subr.mxu0 0.0
    %4818 = vmatpush1.msra.mxu0 0.0
    %4819 = vmatprep.subr.mxu0 0.0
    %4820 = vmatpush1.msra.mxu0 0.0
    %4821 = vmatprep.subr.mxu0 0.0
    %4822 = vmatpush1.msra.mxu0 0.0
    %4823 = vmatprep.subr.mxu0 0.0
    %4824 = vmatpush1.msra.mxu0 0.0
    %4825 = vmatprep.subr.mxu0 0.0
    %4826 = vmatpush1.msra.mxu0 0.0
    %4827 = vmatprep.subr.mxu0 0.0
    %4828 = vmatpush1.msra.mxu0 0.0
    %4829 = vmatprep.subr.mxu0 0.0
    %4830 = vmatpush1.msra.mxu0 0.0
    %4831 = vmatprep.subr.mxu0 0.0
    %4832 = vmatpush1.msra.mxu0 0.0
    %4833 = vmatprep.subr.mxu0 0.0
    %4834 = vmatpush1.msra.mxu0 0.0
    %4835 = vmatprep.subr.mxu0 0.0
    %4836 = vmatpush1.msra.mxu0 0.0
    %4837 = vmatprep.subr.mxu0 0.0
    %4838 = vmatpush1.msra.mxu0 0.0
    %4839 = vmatprep.subr.mxu0 0.0
    %4840 = vmatpush1.msra.mxu0 0.0
    %4841 = vmatprep.subr.mxu0 0.0
    %4842 = vmatpush1.msra.mxu0 0.0
    %4843 = vmatprep.subr.mxu0 0.0
    %4844 = vmatpush1.msra.mxu0 0.0
    %4845 = vmatprep.subr.mxu0 0.0
    %4846 = vmatpush1.msra.mxu0 0.0
    %4847 = vmatprep.subr.mxu0 0.0
    %4848 = vmatpush1.msra.mxu0 0.0
    %4849 = vmatprep.subr.mxu0 0.0
    %4850 = vmatpush1.msra.mxu0 0.0
    %4851 = vmatprep.subr.mxu0 0.0
    %4852 = vmatpush1.msra.mxu0 0.0
    %4853 = vmatprep.subr.mxu0 0.0
    %4854 = vmatpush1.msra.mxu0 0.0
    %4855 = vmatprep.subr.mxu0 0.0
    %4856 = vmatpush1.msra.mxu0 0.0
    %4857 = vmatprep.mubr.f32.mxu0 0.0
    %4858 = vmatmul.mubr.f32.gmra.mrb[0].mxu0 %v4791
    %v4859 = vpop.f32.mrb[0].mxu0
    %v4860 = vadd.f32 0.0, %v4859
    %v4861 = vpop.f32.mrb[0].mxu0
    %4862 = vdwg.mxu0
    %s4863 = scalar_lea.vmem [#allocation19], 1536
    %v4864 = vld [vmem:[%s4863] sm:$0xff]
    %v4865 = vld [vmem:[%s4863 + $0x8] sm:$0xff]
    %v4866 = vld [vmem:[%s4863 + $0x10] sm:$0xff]
    %v4867 = vld [vmem:[%s4863 + $0x18] sm:$0xff]
    %v4868 = vld [vmem:[%s4863 + $0x20] sm:$0xff]
    %v4869 = vld [vmem:[%s4863 + $0x28] sm:$0xff]
    %v4870 = vld [vmem:[%s4863 + $0x30] sm:$0xff]
    %v4871 = vld [vmem:[%s4863 + $0x38] sm:$0xff]
    %v4872 = vld [vmem:[%s4863 + $0x40] sm:$0xff]
    %v4873 = vld [vmem:[%s4863 + $0x48] sm:$0xff]
    %v4874 = vld [vmem:[%s4863 + $0x50] sm:$0xff]
    %v4875 = vld [vmem:[%s4863 + $0x58] sm:$0xff]
    %v4876 = vld [vmem:[%s4863 + $0x60] sm:$0xff]
    %v4877 = vld [vmem:[%s4863 + $0x68] sm:$0xff]
    %v4878 = vld [vmem:[%s4863 + $0x70] sm:$0xff]
    %v4879 = vld [vmem:[%s4863 + $0x78] sm:$0xff]
    %v4880 = vld [vmem:[%s4863 + $0x80] sm:$0xff]
    %v4881 = vld [vmem:[%s4863 + $0x88] sm:$0xff]
    %v4882 = vld [vmem:[%s4863 + $0x90] sm:$0xff]
    %v4883 = vld [vmem:[%s4863 + $0x98] sm:$0xff]
    %v4884 = vld [vmem:[%s4863 + $0xa0] sm:$0xff]
    %v4885 = vld [vmem:[%s4863 + $0xa8] sm:$0xff]
    %v4886 = vld [vmem:[%s4863 + $0xb0] sm:$0xff]
    %v4887 = vld [vmem:[%s4863 + $0xb8] sm:$0xff]
    %v4888 = vld [vmem:[%s4863 + $0xc0] sm:$0xff]
    %v4889 = vld [vmem:[%s4863 + $0xc8] sm:$0xff]
    %v4890 = vld [vmem:[%s4863 + $0xd0] sm:$0xff]
    %v4891 = vld [vmem:[%s4863 + $0xd8] sm:$0xff]
    %v4892 = vld [vmem:[%s4863 + $0xe0] sm:$0xff]
    %v4893 = vld [vmem:[%s4863 + $0xe8] sm:$0xff]
    %v4894 = vld [vmem:[%s4863 + $0xf0] sm:$0xff]
    %v4895 = vld [vmem:[%s4863 + $0xf8] sm:$0xff]
    %4896 = vmatprep.subr.mxu0 %v4865
    %4897 = vmatpush1.msra.mxu0 %v4864
    %4898 = vmatprep.subr.mxu0 %v4867
    %4899 = vmatpush1.msra.mxu0 %v4866
    %4900 = vmatprep.subr.mxu0 %v4869
    %4901 = vmatpush1.msra.mxu0 %v4868
    %4902 = vmatprep.subr.mxu0 %v4871
    %4903 = vmatpush1.msra.mxu0 %v4870
    %4904 = vmatprep.subr.mxu0 %v4873
    %4905 = vmatpush1.msra.mxu0 %v4872
    %4906 = vmatprep.subr.mxu0 %v4875
    %4907 = vmatpush1.msra.mxu0 %v4874
    %4908 = vmatprep.subr.mxu0 %v4877
    %4909 = vmatpush1.msra.mxu0 %v4876
    %4910 = vmatprep.subr.mxu0 %v4879
    %4911 = vmatpush1.msra.mxu0 %v4878
    %4912 = vmatprep.subr.mxu0 %v4881
    %4913 = vmatpush1.msra.mxu0 %v4880
    %4914 = vmatprep.subr.mxu0 %v4883
    %4915 = vmatpush1.msra.mxu0 %v4882
    %4916 = vmatprep.subr.mxu0 %v4885
    %4917 = vmatpush1.msra.mxu0 %v4884
    %4918 = vmatprep.subr.mxu0 %v4887
    %4919 = vmatpush1.msra.mxu0 %v4886
    %4920 = vmatprep.subr.mxu0 %v4889
    %4921 = vmatpush1.msra.mxu0 %v4888
    %4922 = vmatprep.subr.mxu0 %v4891
    %4923 = vmatpush1.msra.mxu0 %v4890
    %4924 = vmatprep.subr.mxu0 %v4893
    %4925 = vmatpush1.msra.mxu0 %v4892
    %4926 = vmatprep.subr.mxu0 %v4895
    %4927 = vmatpush1.msra.mxu0 %v4894
    %4928 = vmatprep.subr.mxu0 0.0
    %4929 = vmatpush1.msra.mxu0 0.0
    %4930 = vmatprep.subr.mxu0 0.0
    %4931 = vmatpush1.msra.mxu0 0.0
    %4932 = vmatprep.subr.mxu0 0.0
    %4933 = vmatpush1.msra.mxu0 0.0
    %4934 = vmatprep.subr.mxu0 0.0
    %4935 = vmatpush1.msra.mxu0 0.0
    %4936 = vmatprep.subr.mxu0 0.0
    %4937 = vmatpush1.msra.mxu0 0.0
    %4938 = vmatprep.subr.mxu0 0.0
    %4939 = vmatpush1.msra.mxu0 0.0
    %4940 = vmatprep.subr.mxu0 0.0
    %4941 = vmatpush1.msra.mxu0 0.0
    %4942 = vmatprep.subr.mxu0 0.0
    %4943 = vmatpush1.msra.mxu0 0.0
    %4944 = vmatprep.subr.mxu0 0.0
    %4945 = vmatpush1.msra.mxu0 0.0
    %4946 = vmatprep.subr.mxu0 0.0
    %4947 = vmatpush1.msra.mxu0 0.0
    %4948 = vmatprep.subr.mxu0 0.0
    %4949 = vmatpush1.msra.mxu0 0.0
    %4950 = vmatprep.subr.mxu0 0.0
    %4951 = vmatpush1.msra.mxu0 0.0
    %4952 = vmatprep.subr.mxu0 0.0
    %4953 = vmatpush1.msra.mxu0 0.0
    %4954 = vmatprep.subr.mxu0 0.0
    %4955 = vmatpush1.msra.mxu0 0.0
    %4956 = vmatprep.subr.mxu0 0.0
    %4957 = vmatpush1.msra.mxu0 0.0
    %4958 = vmatprep.subr.mxu0 0.0
    %4959 = vmatpush1.msra.mxu0 0.0
    %4960 = vmatprep.mubr.f32.mxu0 0.0
    %4961 = vmatmul.mubr.f32.gmra.mrb[0].mxu0 %v4860
    %v4962 = vpop.f32.mrb[0].mxu0
    %v4963 = vadd.f32 0.0, %v4962
    %v4964 = vpop.f32.mrb[0].mxu0
    %v4965 = vadd.f32 0.0, %v4964
    %4966 = vdwg.mxu0
    %v4967 = vadd.f32 %v4786, %v4963
    %v4968 = vadd.f32 %v4787, %v4965
    %s4969 = scalar_lea.vmem %s11, 14
    %v4970 = vld [vmem:[%s4969] sm:$0x3]
    %v4972 = vsel %vm3708, %v4970, 0
    %4974 = vmatprep.subr.mxu0 0.0
    %4975 = vmatpush1.msra.mxu0 %v3703
    %4976 = vmatprep.subr.mxu0 0.0
    %4977 = vmatpush1.msra.mxu0 0.0
    %4978 = vmatprep.subr.mxu0 0.0
    %4979 = vmatpush1.msra.mxu0 0.0
    %4980 = vmatprep.subr.mxu0 0.0
    %4981 = vmatpush1.msra.mxu0 0.0
    %4982 = vmatprep.subr.mxu0 0.0
    %4983 = vmatpush1.msra.mxu0 0.0
    %4984 = vmatprep.subr.mxu0 0.0
    %4985 = vmatpush1.msra.mxu0 0.0
    %4986 = vmatprep.subr.mxu0 0.0
    %4987 = vmatpush1.msra.mxu0 0.0
    %4988 = vmatprep.subr.mxu0 0.0
    %4989 = vmatpush1.msra.mxu0 0.0
    %4990 = vmatprep.subr.mxu0 0.0
    %4991 = vmatpush1.msra.mxu0 0.0
    %4992 = vmatprep.subr.mxu0 0.0
    %4993 = vmatpush1.msra.mxu0 0.0
    %4994 = vmatprep.subr.mxu0 0.0
    %4995 = vmatpush1.msra.mxu0 0.0
    %4996 = vmatprep.subr.mxu0 0.0
    %4997 = vmatpush1.msra.mxu0 0.0
    %4998 = vmatprep.subr.mxu0 0.0
    %4999 = vmatpush1.msra.mxu0 0.0
    %5000 = vmatprep.subr.mxu0 0.0
    %5001 = vmatpush1.msra.mxu0 0.0
    %5002 = vmatprep.subr.mxu0 0.0
    %5003 = vmatpush1.msra.mxu0 0.0
    %5004 = vmatprep.subr.mxu0 0.0
    %5005 = vmatpush1.msra.mxu0 0.0
    %5006 = vmatprep.subr.mxu0 0.0
    %5007 = vmatpush1.msra.mxu0 0.0
    %5008 = vmatprep.subr.mxu0 0.0
    %5009 = vmatpush1.msra.mxu0 0.0
    %5010 = vmatprep.subr.mxu0 0.0
    %5011 = vmatpush1.msra.mxu0 0.0
    %5012 = vmatprep.subr.mxu0 0.0
    %5013 = vmatpush1.msra.mxu0 0.0
    %5014 = vmatprep.subr.mxu0 0.0
    %5015 = vmatpush1.msra.mxu0 0.0
    %5016 = vmatprep.subr.mxu0 0.0
    %5017 = vmatpush1.msra.mxu0 0.0
    %5018 = vmatprep.subr.mxu0 0.0
    %5019 = vmatpush1.msra.mxu0 0.0
    %5020 = vmatprep.subr.mxu0 0.0
    %5021 = vmatpush1.msra.mxu0 0.0
    %5022 = vmatprep.subr.mxu0 0.0
    %5023 = vmatpush1.msra.mxu0 0.0
    %5024 = vmatprep.subr.mxu0 0.0
    %5025 = vmatpush1.msra.mxu0 0.0
    %5026 = vmatprep.subr.mxu0 0.0
    %5027 = vmatpush1.msra.mxu0 0.0
    %5028 = vmatprep.subr.mxu0 0.0
    %5029 = vmatpush1.msra.mxu0 0.0
    %5030 = vmatprep.subr.mxu0 0.0
    %5031 = vmatpush1.msra.mxu0 0.0
    %5032 = vmatprep.subr.mxu0 0.0
    %5033 = vmatpush1.msra.mxu0 0.0
    %5034 = vmatprep.subr.mxu0 0.0
    %5035 = vmatpush1.msra.mxu0 0.0
    %5036 = vmatprep.subr.mxu0 0.0
    %5037 = vmatpush1.msra.mxu0 0.0
    %5038 = vmatprep.mubr.f32.mxu0 0.0
    %5039 = vmatmul.mubr.f32.gmra.mrb[0].mxu0 %v4972
    %v5040 = vpop.f32.mrb[0].mxu0
    %v5041 = vadd.f32 0.0, %v5040
    %v5042 = vpop.f32.mrb[0].mxu0
    %5043 = vdwg.mxu0
    %s5044 = scalar_lea.vmem [#allocation19], 1792
    %v5045 = vld [vmem:[%s5044] sm:$0xff]
    %v5046 = vld [vmem:[%s5044 + $0x8] sm:$0xff]
    %v5047 = vld [vmem:[%s5044 + $0x10] sm:$0xff]
    %v5048 = vld [vmem:[%s5044 + $0x18] sm:$0xff]
    %v5049 = vld [vmem:[%s5044 + $0x20] sm:$0xff]
    %v5050 = vld [vmem:[%s5044 + $0x28] sm:$0xff]
    %v5051 = vld [vmem:[%s5044 + $0x30] sm:$0xff]
    %v5052 = vld [vmem:[%s5044 + $0x38] sm:$0xff]
    %v5053 = vld [vmem:[%s5044 + $0x40] sm:$0xff]
    %v5054 = vld [vmem:[%s5044 + $0x48] sm:$0xff]
    %v5055 = vld [vmem:[%s5044 + $0x50] sm:$0xff]
    %v5056 = vld [vmem:[%s5044 + $0x58] sm:$0xff]
    %v5057 = vld [vmem:[%s5044 + $0x60] sm:$0xff]
    %v5058 = vld [vmem:[%s5044 + $0x68] sm:$0xff]
    %v5059 = vld [vmem:[%s5044 + $0x70] sm:$0xff]
    %v5060 = vld [vmem:[%s5044 + $0x78] sm:$0xff]
    %v5061 = vld [vmem:[%s5044 + $0x80] sm:$0xff]
    %v5062 = vld [vmem:[%s5044 + $0x88] sm:$0xff]
    %v5063 = vld [vmem:[%s5044 + $0x90] sm:$0xff]
    %v5064 = vld [vmem:[%s5044 + $0x98] sm:$0xff]
    %v5065 = vld [vmem:[%s5044 + $0xa0] sm:$0xff]
    %v5066 = vld [vmem:[%s5044 + $0xa8] sm:$0xff]
    %v5067 = vld [vmem:[%s5044 + $0xb0] sm:$0xff]
    %v5068 = vld [vmem:[%s5044 + $0xb8] sm:$0xff]
    %v5069 = vld [vmem:[%s5044 + $0xc0] sm:$0xff]
    %v5070 = vld [vmem:[%s5044 + $0xc8] sm:$0xff]
    %v5071 = vld [vmem:[%s5044 + $0xd0] sm:$0xff]
    %v5072 = vld [vmem:[%s5044 + $0xd8] sm:$0xff]
    %v5073 = vld [vmem:[%s5044 + $0xe0] sm:$0xff]
    %v5074 = vld [vmem:[%s5044 + $0xe8] sm:$0xff]
    %v5075 = vld [vmem:[%s5044 + $0xf0] sm:$0xff]
    %v5076 = vld [vmem:[%s5044 + $0xf8] sm:$0xff]
    %5077 = vmatprep.subr.mxu0 %v5046
    %5078 = vmatpush1.msra.mxu0 %v5045
    %5079 = vmatprep.subr.mxu0 %v5048
    %5080 = vmatpush1.msra.mxu0 %v5047
    %5081 = vmatprep.subr.mxu0 %v5050
    %5082 = vmatpush1.msra.mxu0 %v5049
    %5083 = vmatprep.subr.mxu0 %v5052
    %5084 = vmatpush1.msra.mxu0 %v5051
    %5085 = vmatprep.subr.mxu0 %v5054
    %5086 = vmatpush1.msra.mxu0 %v5053
    %5087 = vmatprep.subr.mxu0 %v5056
    %5088 = vmatpush1.msra.mxu0 %v5055
    %5089 = vmatprep.subr.mxu0 %v5058
    %5090 = vmatpush1.msra.mxu0 %v5057
    %5091 = vmatprep.subr.mxu0 %v5060
    %5092 = vmatpush1.msra.mxu0 %v5059
    %5093 = vmatprep.subr.mxu0 %v5062
    %5094 = vmatpush1.msra.mxu0 %v5061
    %5095 = vmatprep.subr.mxu0 %v5064
    %5096 = vmatpush1.msra.mxu0 %v5063
    %5097 = vmatprep.subr.mxu0 %v5066
    %5098 = vmatpush1.msra.mxu0 %v5065
    %5099 = vmatprep.subr.mxu0 %v5068
    %5100 = vmatpush1.msra.mxu0 %v5067
    %5101 = vmatprep.subr.mxu0 %v5070
    %5102 = vmatpush1.msra.mxu0 %v5069
    %5103 = vmatprep.subr.mxu0 %v5072
    %5104 = vmatpush1.msra.mxu0 %v5071
    %5105 = vmatprep.subr.mxu0 %v5074
    %5106 = vmatpush1.msra.mxu0 %v5073
    %5107 = vmatprep.subr.mxu0 %v5076
    %5108 = vmatpush1.msra.mxu0 %v5075
    %5109 = vmatprep.subr.mxu0 0.0
    %5110 = vmatpush1.msra.mxu0 0.0
    %5111 = vmatprep.subr.mxu0 0.0
    %5112 = vmatpush1.msra.mxu0 0.0
    %5113 = vmatprep.subr.mxu0 0.0
    %5114 = vmatpush1.msra.mxu0 0.0
    %5115 = vmatprep.subr.mxu0 0.0
    %5116 = vmatpush1.msra.mxu0 0.0
    %5117 = vmatprep.subr.mxu0 0.0
    %5118 = vmatpush1.msra.mxu0 0.0
    %5119 = vmatprep.subr.mxu0 0.0
    %5120 = vmatpush1.msra.mxu0 0.0
    %5121 = vmatprep.subr.mxu0 0.0
    %5122 = vmatpush1.msra.mxu0 0.0
    %5123 = vmatprep.subr.mxu0 0.0
    %5124 = vmatpush1.msra.mxu0 0.0
    %5125 = vmatprep.subr.mxu0 0.0
    %5126 = vmatpush1.msra.mxu0 0.0
    %5127 = vmatprep.subr.mxu0 0.0
    %5128 = vmatpush1.msra.mxu0 0.0
    %5129 = vmatprep.subr.mxu0 0.0
    %5130 = vmatpush1.msra.mxu0 0.0
    %5131 = vmatprep.subr.mxu0 0.0
    %5132 = vmatpush1.msra.mxu0 0.0
    %5133 = vmatprep.subr.mxu0 0.0
    %5134 = vmatpush1.msra.mxu0 0.0
    %5135 = vmatprep.subr.mxu0 0.0
    %5136 = vmatpush1.msra.mxu0 0.0
    %5137 = vmatprep.subr.mxu0 0.0
    %5138 = vmatpush1.msra.mxu0 0.0
    %5139 = vmatprep.subr.mxu0 0.0
    %5140 = vmatpush1.msra.mxu0 0.0
    %5141 = vmatprep.mubr.f32.mxu0 0.0
    %5142 = vmatmul.mubr.f32.gmra.mrb[0].mxu0 %v5041
    %v5143 = vpop.f32.mrb[0].mxu0
    %v5144 = vadd.f32 0.0, %v5143
    %v5145 = vpop.f32.mrb[0].mxu0
    %v5146 = vadd.f32 0.0, %v5145
    %5147 = vdwg.mxu0
    %v5148 = vadd.f32 %v4967, %v5144
    %v5149 = vadd.f32 %v4968, %v5146
    %s5150 = scalar_lea.vmem %s11, 16
    %v5151 = vld [vmem:[%s5150] sm:$0x3]
    %v5153 = vsel %vm3708, %v5151, 0
    %5155 = vmatprep.subr.mxu0 0.0
    %5156 = vmatpush1.msra.mxu0 %v3703
    %5157 = vmatprep.subr.mxu0 0.0
    %5158 = vmatpush1.msra.mxu0 0.0
    %5159 = vmatprep.subr.mxu0 0.0
    %5160 = vmatpush1.msra.mxu0 0.0
    %5161 = vmatprep.subr.mxu0 0.0
    %5162 = vmatpush1.msra.mxu0 0.0
    %5163 = vmatprep.subr.mxu0 0.0
    %5164 = vmatpush1.msra.mxu0 0.0
    %5165 = vmatprep.subr.mxu0 0.0
    %5166 = vmatpush1.msra.mxu0 0.0
    %5167 = vmatprep.subr.mxu0 0.0
    %5168 = vmatpush1.msra.mxu0 0.0
    %5169 = vmatprep.subr.mxu0 0.0
    %5170 = vmatpush1.msra.mxu0 0.0
    %5171 = vmatprep.subr.mxu0 0.0
    %5172 = vmatpush1.msra.mxu0 0.0
    %5173 = vmatprep.subr.mxu0 0.0
    %5174 = vmatpush1.msra.mxu0 0.0
    %5175 = vmatprep.subr.mxu0 0.0
    %5176 = vmatpush1.msra.mxu0 0.0
    %5177 = vmatprep.subr.mxu0 0.0
    %5178 = vmatpush1.msra.mxu0 0.0
    %5179 = vmatprep.subr.mxu0 0.0
    %5180 = vmatpush1.msra.mxu0 0.0
    %5181 = vmatprep.subr.mxu0 0.0
    %5182 = vmatpush1.msra.mxu0 0.0
    %5183 = vmatprep.subr.mxu0 0.0
    %5184 = vmatpush1.msra.mxu0 0.0
    %5185 = vmatprep.subr.mxu0 0.0
    %5186 = vmatpush1.msra.mxu0 0.0
    %5187 = vmatprep.subr.mxu0 0.0
    %5188 = vmatpush1.msra.mxu0 0.0
    %5189 = vmatprep.subr.mxu0 0.0
    %5190 = vmatpush1.msra.mxu0 0.0
    %5191 = vmatprep.subr.mxu0 0.0
    %5192 = vmatpush1.msra.mxu0 0.0
    %5193 = vmatprep.subr.mxu0 0.0
    %5194 = vmatpush1.msra.mxu0 0.0
    %5195 = vmatprep.subr.mxu0 0.0
    %5196 = vmatpush1.msra.mxu0 0.0
    %5197 = vmatprep.subr.mxu0 0.0
    %5198 = vmatpush1.msra.mxu0 0.0
    %5199 = vmatprep.subr.mxu0 0.0
    %5200 = vmatpush1.msra.mxu0 0.0
    %5201 = vmatprep.subr.mxu0 0.0
    %5202 = vmatpush1.msra.mxu0 0.0
    %5203 = vmatprep.subr.mxu0 0.0
    %5204 = vmatpush1.msra.mxu0 0.0
    %5205 = vmatprep.subr.mxu0 0.0
    %5206 = vmatpush1.msra.mxu0 0.0
    %5207 = vmatprep.subr.mxu0 0.0
    %5208 = vmatpush1.msra.mxu0 0.0
    %5209 = vmatprep.subr.mxu0 0.0
    %5210 = vmatpush1.msra.mxu0 0.0
    %5211 = vmatprep.subr.mxu0 0.0
    %5212 = vmatpush1.msra.mxu0 0.0
    %5213 = vmatprep.subr.mxu0 0.0
    %5214 = vmatpush1.msra.mxu0 0.0
    %5215 = vmatprep.subr.mxu0 0.0
    %5216 = vmatpush1.msra.mxu0 0.0
    %5217 = vmatprep.subr.mxu0 0.0
    %5218 = vmatpush1.msra.mxu0 0.0
    %5219 = vmatprep.mubr.f32.mxu0 0.0
    %5220 = vmatmul.mubr.f32.gmra.mrb[0].mxu0 %v5153
    %v5221 = vpop.f32.mrb[0].mxu0
    %v5222 = vadd.f32 0.0, %v5221
    %v5223 = vpop.f32.mrb[0].mxu0
    %5224 = vdwg.mxu0
    %s5225 = scalar_lea.vmem [#allocation19], 2048
    %v5226 = vld [vmem:[%s5225] sm:$0xff]
    %v5227 = vld [vmem:[%s5225 + $0x8] sm:$0xff]
    %v5228 = vld [vmem:[%s5225 + $0x10] sm:$0xff]
    %v5229 = vld [vmem:[%s5225 + $0x18] sm:$0xff]
    %v5230 = vld [vmem:[%s5225 + $0x20] sm:$0xff]
    %v5231 = vld [vmem:[%s5225 + $0x28] sm:$0xff]
    %v5232 = vld [vmem:[%s5225 + $0x30] sm:$0xff]
    %v5233 = vld [vmem:[%s5225 + $0x38] sm:$0xff]
    %v5234 = vld [vmem:[%s5225 + $0x40] sm:$0xff]
    %v5235 = vld [vmem:[%s5225 + $0x48] sm:$0xff]
    %v5236 = vld [vmem:[%s5225 + $0x50] sm:$0xff]
    %v5237 = vld [vmem:[%s5225 + $0x58] sm:$0xff]
    %v5238 = vld [vmem:[%s5225 + $0x60] sm:$0xff]
    %v5239 = vld [vmem:[%s5225 + $0x68] sm:$0xff]
    %v5240 = vld [vmem:[%s5225 + $0x70] sm:$0xff]
    %v5241 = vld [vmem:[%s5225 + $0x78] sm:$0xff]
    %v5242 = vld [vmem:[%s5225 + $0x80] sm:$0xff]
    %v5243 = vld [vmem:[%s5225 + $0x88] sm:$0xff]
    %v5244 = vld [vmem:[%s5225 + $0x90] sm:$0xff]
    %v5245 = vld [vmem:[%s5225 + $0x98] sm:$0xff]
    %v5246 = vld [vmem:[%s5225 + $0xa0] sm:$0xff]
    %v5247 = vld [vmem:[%s5225 + $0xa8] sm:$0xff]
    %v5248 = vld [vmem:[%s5225 + $0xb0] sm:$0xff]
    %v5249 = vld [vmem:[%s5225 + $0xb8] sm:$0xff]
    %v5250 = vld [vmem:[%s5225 + $0xc0] sm:$0xff]
    %v5251 = vld [vmem:[%s5225 + $0xc8] sm:$0xff]
    %v5252 = vld [vmem:[%s5225 + $0xd0] sm:$0xff]
    %v5253 = vld [vmem:[%s5225 + $0xd8] sm:$0xff]
    %v5254 = vld [vmem:[%s5225 + $0xe0] sm:$0xff]
    %v5255 = vld [vmem:[%s5225 + $0xe8] sm:$0xff]
    %v5256 = vld [vmem:[%s5225 + $0xf0] sm:$0xff]
    %v5257 = vld [vmem:[%s5225 + $0xf8] sm:$0xff]
    %5258 = vmatprep.subr.mxu0 %v5227
    %5259 = vmatpush1.msra.mxu0 %v5226
    %5260 = vmatprep.subr.mxu0 %v5229
    %5261 = vmatpush1.msra.mxu0 %v5228
    %5262 = vmatprep.subr.mxu0 %v5231
    %5263 = vmatpush1.msra.mxu0 %v5230
    %5264 = vmatprep.subr.mxu0 %v5233
    %5265 = vmatpush1.msra.mxu0 %v5232
    %5266 = vmatprep.subr.mxu0 %v5235
    %5267 = vmatpush1.msra.mxu0 %v5234
    %5268 = vmatprep.subr.mxu0 %v5237
    %5269 = vmatpush1.msra.mxu0 %v5236
    %5270 = vmatprep.subr.mxu0 %v5239
    %5271 = vmatpush1.msra.mxu0 %v5238
    %5272 = vmatprep.subr.mxu0 %v5241
    %5273 = vmatpush1.msra.mxu0 %v5240
    %5274 = vmatprep.subr.mxu0 %v5243
    %5275 = vmatpush1.msra.mxu0 %v5242
    %5276 = vmatprep.subr.mxu0 %v5245
    %5277 = vmatpush1.msra.mxu0 %v5244
    %5278 = vmatprep.subr.mxu0 %v5247
    %5279 = vmatpush1.msra.mxu0 %v5246
    %5280 = vmatprep.subr.mxu0 %v5249
    %5281 = vmatpush1.msra.mxu0 %v5248
    %5282 = vmatprep.subr.mxu0 %v5251
    %5283 = vmatpush1.msra.mxu0 %v5250
    %5284 = vmatprep.subr.mxu0 %v5253
    %5285 = vmatpush1.msra.mxu0 %v5252
    %5286 = vmatprep.subr.mxu0 %v5255
    %5287 = vmatpush1.msra.mxu0 %v5254
    %5288 = vmatprep.subr.mxu0 %v5257
    %5289 = vmatpush1.msra.mxu0 %v5256
    %5290 = vmatprep.subr.mxu0 0.0
    %5291 = vmatpush1.msra.mxu0 0.0
    %5292 = vmatprep.subr.mxu0 0.0
    %5293 = vmatpush1.msra.mxu0 0.0
    %5294 = vmatprep.subr.mxu0 0.0
    %5295 = vmatpush1.msra.mxu0 0.0
    %5296 = vmatprep.subr.mxu0 0.0
    %5297 = vmatpush1.msra.mxu0 0.0
    %5298 = vmatprep.subr.mxu0 0.0
    %5299 = vmatpush1.msra.mxu0 0.0
    %5300 = vmatprep.subr.mxu0 0.0
    %5301 = vmatpush1.msra.mxu0 0.0
    %5302 = vmatprep.subr.mxu0 0.0
    %5303 = vmatpush1.msra.mxu0 0.0
    %5304 = vmatprep.subr.mxu0 0.0
    %5305 = vmatpush1.msra.mxu0 0.0
    %5306 = vmatprep.subr.mxu0 0.0
    %5307 = vmatpush1.msra.mxu0 0.0
    %5308 = vmatprep.subr.mxu0 0.0
    %5309 = vmatpush1.msra.mxu0 0.0
    %5310 = vmatprep.subr.mxu0 0.0
    %5311 = vmatpush1.msra.mxu0 0.0
    %5312 = vmatprep.subr.mxu0 0.0
    %5313 = vmatpush1.msra.mxu0 0.0
    %5314 = vmatprep.subr.mxu0 0.0
    %5315 = vmatpush1.msra.mxu0 0.0
    %5316 = vmatprep.subr.mxu0 0.0
    %5317 = vmatpush1.msra.mxu0 0.0
    %5318 = vmatprep.subr.mxu0 0.0
    %5319 = vmatpush1.msra.mxu0 0.0
    %5320 = vmatprep.subr.mxu0 0.0
    %5321 = vmatpush1.msra.mxu0 0.0
    %5322 = vmatprep.mubr.f32.mxu0 0.0
    %5323 = vmatmul.mubr.f32.gmra.mrb[0].mxu0 %v5222
    %v5324 = vpop.f32.mrb[0].mxu0
    %v5325 = vadd.f32 0.0, %v5324
    %v5326 = vpop.f32.mrb[0].mxu0
    %v5327 = vadd.f32 0.0, %v5326
    %5328 = vdwg.mxu0
    %v5329 = vadd.f32 %v5148, %v5325
    %v5330 = vadd.f32 %v5149, %v5327
    %v5332 = vlaneseq
    %v5333 = vshrl.u32 %v5332, 7
    %v5334 = vsub.s32 0, %v5333
    %v5335 = vrot.slane %v3704, %v5334
    %v5336 = vlaneseq
    %v5337 = vshrl.u32 %v5336, 7
    %v5338 = vsub.s32 1, %v5337
    %v5339 = vrot.slane %v3704, %v5338
    %v5342 = vadd.f32 %v5329, %v5335
    %v5343 = vadd.f32 %v5330, %v5339
    %vm5344 = vcmp.gt.f32.partialorder %v5342, 0.0
    %vm5345 = vcmp.gt.f32.partialorder %v5343, 0.0
    %v5346 = vmul.f32 %v5342, 0.2
    %v5347 = vmul.f32 %v5343, 0.2
    %v5348 = vsel %vm5344, %v5342, %v5346
    %v5349 = vsel %vm5345, %v5343, %v5347
    %vm5350 = vcmask 1041408
    %v5351 = vsel %vm5350, %v5348, 0.0
    %v5352 = vrot.slane %v5351, 4
    %v5353 = vadd.f32 %v5351, %v5352
    %v5354 = vrot.slane %v5353, 2
    %v5355 = vadd.f32 %v5353, %v5354
    %v5356 = vrot.slane %v5355, 1
    %v5357 = vadd.f32 %v5355, %v5356
    %v5358 = vsel %vm5350, %v5349, 0.0
    %v5359 = vrot.slane %v5358, 4
    %v5360 = vadd.f32 %v5358, %v5359
    %v5361 = vrot.slane %v5360, 2
    %v5362 = vadd.f32 %v5360, %v5361
    %v5363 = vrot.slane %v5362, 1
    %v5364 = vadd.f32 %v5362, %v5363
    %v5365 = vmul.f32 %v5357, 0.5
    %v5366 = vmul.f32 %v5364, 0.5
    %v5367 = vmul.f32 %v5348, %v5348
    %v5368 = vmul.f32 %v5349, %v5349
    %v5369 = vsel %vm5350, %v5367, 0.0
    %v5370 = vrot.slane %v5369, 4
    %v5371 = vadd.f32 %v5369, %v5370
    %v5372 = vrot.slane %v5371, 2
    %v5373 = vadd.f32 %v5371, %v5372
    %v5374 = vrot.slane %v5373, 1
    %v5375 = vadd.f32 %v5373, %v5374
    %v5376 = vsel %vm5350, %v5368, 0.0
    %v5377 = vrot.slane %v5376, 4
    %v5378 = vadd.f32 %v5376, %v5377
    %v5379 = vrot.slane %v5378, 2
    %v5380 = vadd.f32 %v5378, %v5379
    %v5381 = vrot.slane %v5380, 1
    %v5382 = vadd.f32 %v5380, %v5381
    %v5383 = vmul.f32 %v5375, 0.5
    %v5384 = vmul.f32 %v5382, 0.5
    %v5385 = vmul.f32 %v5365, %v5365
    %v5386 = vmul.f32 %v5366, %v5366
    %v5387 = vsub.f32 %v5383, %v5385
    %v5388 = vsub.f32 %v5384, %v5386
    %v5389 = vadd.f32 %v5387, 1e-05
    %v5390 = vadd.f32 %v5388, 1e-05
    %v5391 = vrsqrt.pop %v5389
    %v5392 = vrsqrt.pop %v5390
    %v5395 = vcombine.low %v5391, %v5392
    %v5397 = vunpack.c.l.s4 1966171168
    %v5398 = vunpack.c.0.s8 %v5397
    %v5399 = vlaneseq
    %v5400 = vshrl.u32 %v5399, 7
    %v5401 = vsub.s32 %v5398, %v5400
    %v5402 = vrot.slane %v5395, %v5401
    %v5404 = vunpack.c.l.s4 1966171168
    %v5405 = vunpack.c.0.s8 %v5404
    %v5406 = vlaneseq
    %v5407 = vshrl.u32 %v5406, 7
    %v5408 = vsub.s32 %v5405, %v5407
    %v5409 = vrot.slane %v5402, %v5408
    %v5411 = vmul.f32 %v3705, %v5409
    %v5413 = vlaneseq
    %v5414 = vshrl.u32 %v5413, 7
    %v5415 = vsub.s32 0, %v5414
    %v5416 = vrot.slane %v5411, %v5415
    %v5417 = vlaneseq
    %v5418 = vshrl.u32 %v5417, 7
    %v5419 = vsub.s32 1, %v5418
    %v5420 = vrot.slane %v5411, %v5419
    %v5423 = vmul.f32 %v5365, %v5416
    %v5424 = vmul.f32 %v5366, %v5420
    %v5427 = vcombine.low %v5423, %v5424
    %v5429 = vunpack.c.l.s4 1966171168
    %v5430 = vunpack.c.0.s8 %v5429
    %v5431 = vlaneseq
    %v5432 = vshrl.u32 %v5431, 7
    %v5433 = vsub.s32 %v5430, %v5432
    %v5434 = vrot.slane %v5427, %v5433
    %v5436 = vunpack.c.l.s4 1966171168
    %v5437 = vunpack.c.0.s8 %v5436
    %v5438 = vlaneseq
    %v5439 = vshrl.u32 %v5438, 7
    %v5440 = vsub.s32 %v5437, %v5439
    %v5441 = vrot.slane %v5434, %v5440
    %v5443 = vsub.f32 %v3706, %v5441
    %v5444 = vmul.f32 %v5348, %v5416
    %v5445 = vmul.f32 %v5349, %v5420
    %v5447 = vlaneseq
    %v5448 = vshrl.u32 %v5447, 7
    %v5449 = vsub.s32 0, %v5448
    %v5450 = vrot.slane %v5443, %v5449
    %v5451 = vlaneseq
    %v5452 = vshrl.u32 %v5451, 7
    %v5453 = vsub.s32 1, %v5452
    %v5454 = vrot.slane %v5443, %v5453
    %v5457 = vadd.f32 %v5444, %v5450
    %v5458 = vadd.f32 %v5445, %v5454
    %v5459 = vld [vmem:[#allocation25] sm:$0x3]
    %v5460 = vld [vmem:[#allocation26] sm:$0xff]
    %v5461 = vld [vmem:[#allocation26 + $0x8] sm:$0xff]
    %v5462 = vld [vmem:[#allocation26 + $0x10] sm:$0xff]
    %v5463 = vld [vmem:[#allocation26 + $0x18] sm:$0xff]
    %v5464 = vld [vmem:[#allocation28] sm:$0x3]
    %v5466 = vlaneseq
    %v5467 = vshrl.u32 %v5466, 7
    %v5468 = vsub.s32 0, %v5467
    %v5469 = vrot.slane %v5464, %v5468
    %v5470 = vlaneseq
    %v5471 = vshrl.u32 %v5470, 7
    %v5472 = vsub.s32 1, %v5471
    %v5473 = vrot.slane %v5464, %v5472
    %vm5476 = vcmask 130048
    %v5478 = vsel %vm5476, %v5459, 0
    %5480 = vmatprep.subr.mxu0 %v5461
    %5481 = vmatpush1.msra.mxu0 %v5460
    %5482 = vmatprep.subr.mxu0 %v5463
    %5483 = vmatpush1.msra.mxu0 %v5462
    %5484 = vmatprep.subr.mxu0 0.0
    %5485 = vmatpush1.msra.mxu0 0.0
    %5486 = vmatprep.subr.mxu0 0.0
    %5487 = vmatpush1.msra.mxu0 0.0
    %5488 = vmatprep.subr.mxu0 0.0
    %5489 = vmatpush1.msra.mxu0 0.0
    %5490 = vmatprep.subr.mxu0 0.0
    %5491 = vmatpush1.msra.mxu0 0.0
    %5492 = vmatprep.subr.mxu0 0.0
    %5493 = vmatpush1.msra.mxu0 0.0
    %5494 = vmatprep.subr.mxu0 0.0
    %5495 = vmatpush1.msra.mxu0 0.0
    %5496 = vmatprep.subr.mxu0 0.0
    %5497 = vmatpush1.msra.mxu0 0.0
    %5498 = vmatprep.subr.mxu0 0.0
    %5499 = vmatpush1.msra.mxu0 0.0
    %5500 = vmatprep.subr.mxu0 0.0
    %5501 = vmatpush1.msra.mxu0 0.0
    %5502 = vmatprep.subr.mxu0 0.0
    %5503 = vmatpush1.msra.mxu0 0.0
    %5504 = vmatprep.subr.mxu0 0.0
    %5505 = vmatpush1.msra.mxu0 0.0
    %5506 = vmatprep.subr.mxu0 0.0
    %5507 = vmatpush1.msra.mxu0 0.0
    %5508 = vmatprep.subr.mxu0 0.0
    %5509 = vmatpush1.msra.mxu0 0.0
    %5510 = vmatprep.subr.mxu0 0.0
    %5511 = vmatpush1.msra.mxu0 0.0
    %5512 = vmatprep.subr.mxu0 0.0
    %5513 = vmatpush1.msra.mxu0 0.0
    %5514 = vmatprep.subr.mxu0 0.0
    %5515 = vmatpush1.msra.mxu0 0.0
    %5516 = vmatprep.subr.mxu0 0.0
    %5517 = vmatpush1.msra.mxu0 0.0
    %5518 = vmatprep.subr.mxu0 0.0
    %5519 = vmatpush1.msra.mxu0 0.0
    %5520 = vmatprep.subr.mxu0 0.0
    %5521 = vmatpush1.msra.mxu0 0.0
    %5522 = vmatprep.subr.mxu0 0.0
    %5523 = vmatpush1.msra.mxu0 0.0
    %5524 = vmatprep.subr.mxu0 0.0
    %5525 = vmatpush1.msra.mxu0 0.0
    %5526 = vmatprep.subr.mxu0 0.0
    %5527 = vmatpush1.msra.mxu0 0.0
    %5528 = vmatprep.subr.mxu0 0.0
    %5529 = vmatpush1.msra.mxu0 0.0
    %5530 = vmatprep.subr.mxu0 0.0
    %5531 = vmatpush1.msra.mxu0 0.0
    %5532 = vmatprep.subr.mxu0 0.0
    %5533 = vmatpush1.msra.mxu0 0.0
    %5534 = vmatprep.subr.mxu0 0.0
    %5535 = vmatpush1.msra.mxu0 0.0
    %5536 = vmatprep.subr.mxu0 0.0
    %5537 = vmatpush1.msra.mxu0 0.0
    %5538 = vmatprep.subr.mxu0 0.0
    %5539 = vmatpush1.msra.mxu0 0.0
    %5540 = vmatprep.subr.mxu0 0.0
    %5541 = vmatpush1.msra.mxu0 0.0
    %5542 = vmatprep.subr.mxu0 0.0
    %5543 = vmatpush1.msra.mxu0 0.0
    %5544 = vmatprep.mubr.f32.mxu0 0.0
    %5545 = vmatmul.mubr.f32.gmra.mrb[0].mxu0 %v5478
    %v5546 = vpop.f32.mrb[0].mxu0
    %v5547 = vadd.f32 %v5469, %v5546
    %v5548 = vpop.f32.mrb[0].mxu0
    %v5549 = vadd.f32 %v5473, %v5548
    %5550 = vdwg.mxu0
    %v5551 = vld [vmem:[#allocation29] sm:$0x3]
    %v5552 = vld [vmem:[#allocation31] sm:$0x3]
    %vm5553 = vcmp.gt.f32.partialorder %v5547, 0.0
    %vm5554 = vcmp.gt.f32.partialorder %v5549, 0.0
    %v5555 = vmul.f32 %v5547, 0.2
    %v5556 = vmul.f32 %v5549, 0.2
    %v5557 = vsel %vm5553, %v5547, %v5555
    %v5558 = vsel %vm5554, %v5549, %v5556
    %v5559 = vsel %vm5350, %v5557, 0.0
    %v5560 = vrot.slane %v5559, 4
    %v5561 = vadd.f32 %v5559, %v5560
    %v5562 = vrot.slane %v5561, 2
    %v5563 = vadd.f32 %v5561, %v5562
    %v5564 = vrot.slane %v5563, 1
    %v5565 = vadd.f32 %v5563, %v5564
    %v5566 = vsel %vm5350, %v5558, 0.0
    %v5567 = vrot.slane %v5566, 4
    %v5568 = vadd.f32 %v5566, %v5567
    %v5569 = vrot.slane %v5568, 2
    %v5570 = vadd.f32 %v5568, %v5569
    %v5571 = vrot.slane %v5570, 1
    %v5572 = vadd.f32 %v5570, %v5571
    %v5573 = vmul.f32 %v5565, 0.5
    %v5574 = vmul.f32 %v5572, 0.5
    %v5575 = vmul.f32 %v5557, %v5557
    %v5576 = vmul.f32 %v5558, %v5558
    %v5577 = vsel %vm5350, %v5575, 0.0
    %v5578 = vrot.slane %v5577, 4
    %v5579 = vadd.f32 %v5577, %v5578
    %v5580 = vrot.slane %v5579, 2
    %v5581 = vadd.f32 %v5579, %v5580
    %v5582 = vrot.slane %v5581, 1
    %v5583 = vadd.f32 %v5581, %v5582
    %v5584 = vsel %vm5350, %v5576, 0.0
    %v5585 = vrot.slane %v5584, 4
    %v5586 = vadd.f32 %v5584, %v5585
    %v5587 = vrot.slane %v5586, 2
    %v5588 = vadd.f32 %v5586, %v5587
    %v5589 = vrot.slane %v5588, 1
    %v5590 = vadd.f32 %v5588, %v5589
    %v5591 = vmul.f32 %v5583, 0.5
    %v5592 = vmul.f32 %v5590, 0.5
    %v5593 = vmul.f32 %v5573, %v5573
    %v5594 = vmul.f32 %v5574, %v5574
    %v5595 = vsub.f32 %v5591, %v5593
    %v5596 = vsub.f32 %v5592, %v5594
    %v5597 = vadd.f32 %v5595, 1e-05
    %v5598 = vadd.f32 %v5596, 1e-05
    %v5599 = vrsqrt.pop %v5597
    %v5600 = vrsqrt.pop %v5598
    %v5603 = vcombine.low %v5599, %v5600
    %v5605 = vunpack.c.l.s4 1966171168
    %v5606 = vunpack.c.0.s8 %v5605
    %v5607 = vlaneseq
    %v5608 = vshrl.u32 %v5607, 7
    %v5609 = vsub.s32 %v5606, %v5608
    %v5610 = vrot.slane %v5603, %v5609
    %v5612 = vunpack.c.l.s4 1966171168
    %v5613 = vunpack.c.0.s8 %v5612
    %v5614 = vlaneseq
    %v5615 = vshrl.u32 %v5614, 7
    %v5616 = vsub.s32 %v5613, %v5615
    %v5617 = vrot.slane %v5610, %v5616
    %v5619 = vmul.f32 %v5551, %v5617
    %v5621 = vlaneseq
    %v5622 = vshrl.u32 %v5621, 7
    %v5623 = vsub.s32 0, %v5622
    %v5624 = vrot.slane %v5619, %v5623
    %v5625 = vlaneseq
    %v5626 = vshrl.u32 %v5625, 7
    %v5627 = vsub.s32 1, %v5626
    %v5628 = vrot.slane %v5619, %v5627
    %v5631 = vmul.f32 %v5573, %v5624
    %v5632 = vmul.f32 %v5574, %v5628
    %v5635 = vcombine.low %v5631, %v5632
    %v5637 = vunpack.c.l.s4 1966171168
    %v5638 = vunpack.c.0.s8 %v5637
    %v5639 = vlaneseq
    %v5640 = vshrl.u32 %v5639, 7
    %v5641 = vsub.s32 %v5638, %v5640
    %v5642 = vrot.slane %v5635, %v5641
    %v5644 = vunpack.c.l.s4 1966171168
    %v5645 = vunpack.c.0.s8 %v5644
    %v5646 = vlaneseq
    %v5647 = vshrl.u32 %v5646, 7
    %v5648 = vsub.s32 %v5645, %v5647
    %v5649 = vrot.slane %v5642, %v5648
    %v5651 = vsub.f32 %v5552, %v5649
    %v5652 = vmul.f32 %v5557, %v5624
    %v5653 = vmul.f32 %v5558, %v5628
    %v5655 = vlaneseq
    %v5656 = vshrl.u32 %v5655, 7
    %v5657 = vsub.s32 0, %v5656
    %v5658 = vrot.slane %v5651, %v5657
    %v5659 = vlaneseq
    %v5660 = vshrl.u32 %v5659, 7
    %v5661 = vsub.s32 1, %v5660
    %v5662 = vrot.slane %v5651, %v5661
    %v5665 = vadd.f32 %v5652, %v5658
    %v5666 = vadd.f32 %v5653, %v5662
    %v5667 = vld [vmem:[#allocation32] sm:$0xff]
    %v5668 = vld [vmem:[#allocation32 + $0x8] sm:$0xff]
    %v5669 = vld [vmem:[#allocation32 + $0x10] sm:$0xff]
    %v5670 = vld [vmem:[#allocation32 + $0x18] sm:$0xff]
    %v5671 = vld [vmem:[#allocation32 + $0x20] sm:$0xff]
    %v5672 = vld [vmem:[#allocation32 + $0x28] sm:$0xff]
    %v5673 = vld [vmem:[#allocation32 + $0x30] sm:$0xff]
    %v5674 = vld [vmem:[#allocation32 + $0x38] sm:$0xff]
    %v5675 = vld [vmem:[#allocation32 + $0x40] sm:$0xff]
    %v5676 = vld [vmem:[#allocation32 + $0x48] sm:$0xff]
    %v5677 = vld [vmem:[#allocation32 + $0x50] sm:$0xff]
    %v5678 = vld [vmem:[#allocation32 + $0x58] sm:$0xff]
    %v5679 = vld [vmem:[#allocation32 + $0x60] sm:$0xff]
    %v5680 = vld [vmem:[#allocation32 + $0x68] sm:$0xff]
    %v5681 = vld [vmem:[#allocation32 + $0x70] sm:$0xff]
    %v5682 = vld [vmem:[#allocation32 + $0x78] sm:$0xff]
    %v5683 = vld [vmem:[#allocation32 + $0x80] sm:$0xff]
    %v5684 = vld [vmem:[#allocation32 + $0x88] sm:$0xff]
    %v5685 = vld [vmem:[#allocation32 + $0x90] sm:$0xff]
    %v5686 = vld [vmem:[#allocation32 + $0x98] sm:$0xff]
    %v5687 = vld [vmem:[#allocation32 + $0xa0] sm:$0xff]
    %v5688 = vld [vmem:[#allocation32 + $0xa8] sm:$0xff]
    %v5689 = vld [vmem:[#allocation32 + $0xb0] sm:$0xff]
    %v5690 = vld [vmem:[#allocation32 + $0xb8] sm:$0xff]
    %v5691 = vld [vmem:[#allocation32 + $0xc0] sm:$0xff]
    %v5692 = vld [vmem:[#allocation32 + $0xc8] sm:$0xff]
    %v5693 = vld [vmem:[#allocation32 + $0xd0] sm:$0xff]
    %v5694 = vld [vmem:[#allocation32 + $0xd8] sm:$0xff]
    %v5695 = vld [vmem:[#allocation32 + $0xe0] sm:$0xff]
    %v5696 = vld [vmem:[#allocation32 + $0xe8] sm:$0xff]
    %v5697 = vld [vmem:[#allocation32 + $0xf0] sm:$0xff]
    %v5698 = vld [vmem:[#allocation32 + $0xf8] sm:$0xff]
    %v5699 = vld [vmem:[#allocation32 + $0x100] sm:$0xff]
    %v5700 = vld [vmem:[#allocation32 + $0x108] sm:$0xff]
    %v5701 = vld [vmem:[#allocation32 + $0x110] sm:$0xff]
    %v5702 = vld [vmem:[#allocation32 + $0x118] sm:$0xff]
    %v5703 = vld [vmem:[#allocation32 + $0x120] sm:$0xff]
    %v5704 = vld [vmem:[#allocation32 + $0x128] sm:$0xff]
    %v5705 = vld [vmem:[#allocation32 + $0x130] sm:$0xff]
    %v5706 = vld [vmem:[#allocation32 + $0x138] sm:$0xff]
    %v5707 = vld [vmem:[#allocation32 + $0x140] sm:$0xff]
    %v5708 = vld [vmem:[#allocation32 + $0x148] sm:$0xff]
    %v5709 = vld [vmem:[#allocation32 + $0x150] sm:$0xff]
    %v5710 = vld [vmem:[#allocation32 + $0x158] sm:$0xff]
    %v5711 = vld [vmem:[#allocation32 + $0x160] sm:$0xff]
    %v5712 = vld [vmem:[#allocation32 + $0x168] sm:$0xff]
    %v5713 = vld [vmem:[#allocation32 + $0x170] sm:$0xff]
    %v5714 = vld [vmem:[#allocation32 + $0x178] sm:$0xff]
    %v5715 = vld [vmem:[#allocation32 + $0x180] sm:$0xff]
    %v5716 = vld [vmem:[#allocation32 + $0x188] sm:$0xff]
    %v5717 = vld [vmem:[#allocation32 + $0x190] sm:$0xff]
    %v5718 = vld [vmem:[#allocation32 + $0x198] sm:$0xff]
    %v5719 = vld [vmem:[#allocation32 + $0x1a0] sm:$0xff]
    %v5720 = vld [vmem:[#allocation32 + $0x1a8] sm:$0xff]
    %v5721 = vld [vmem:[#allocation32 + $0x1b0] sm:$0xff]
    %v5722 = vld [vmem:[#allocation32 + $0x1b8] sm:$0xff]
    %v5723 = vld [vmem:[#allocation32 + $0x1c0] sm:$0xff]
    %v5724 = vld [vmem:[#allocation32 + $0x1c8] sm:$0xff]
    %v5725 = vld [vmem:[#allocation32 + $0x1d0] sm:$0xff]
    %v5726 = vld [vmem:[#allocation32 + $0x1d8] sm:$0xff]
    %v5727 = vld [vmem:[#allocation32 + $0x1e0] sm:$0xff]
    %v5728 = vld [vmem:[#allocation32 + $0x1e8] sm:$0xff]
    %v5729 = vld [vmem:[#allocation32 + $0x1f0] sm:$0xff]
    %v5730 = vld [vmem:[#allocation32 + $0x1f8] sm:$0xff]
    %v5731 = vld [vmem:[#allocation32 + $0x200] sm:$0xff]
    %v5732 = vld [vmem:[#allocation32 + $0x208] sm:$0xff]
    %v5733 = vld [vmem:[#allocation32 + $0x210] sm:$0xff]
    %v5734 = vld [vmem:[#allocation32 + $0x218] sm:$0xff]
    %v5735 = vld [vmem:[#allocation32 + $0x220] sm:$0xff]
    %v5736 = vld [vmem:[#allocation32 + $0x228] sm:$0xff]
    %v5737 = vld [vmem:[#allocation32 + $0x230] sm:$0xff]
    %v5738 = vld [vmem:[#allocation32 + $0x238] sm:$0xff]
    %v5739 = vld [vmem:[#allocation32 + $0x240] sm:$0xff]
    %v5740 = vld [vmem:[#allocation32 + $0x248] sm:$0xff]
    %v5741 = vld [vmem:[#allocation32 + $0x250] sm:$0xff]
    %v5742 = vld [vmem:[#allocation32 + $0x258] sm:$0xff]
    %v5743 = vld [vmem:[#allocation32 + $0x260] sm:$0xff]
    %v5744 = vld [vmem:[#allocation32 + $0x268] sm:$0xff]
    %v5745 = vld [vmem:[#allocation32 + $0x270] sm:$0xff]
    %v5746 = vld [vmem:[#allocation32 + $0x278] sm:$0xff]
    %v5747 = vld [vmem:[#allocation32 + $0x280] sm:$0xff]
    %v5748 = vld [vmem:[#allocation32 + $0x288] sm:$0xff]
    %v5749 = vld [vmem:[#allocation32 + $0x290] sm:$0xff]
    %v5750 = vld [vmem:[#allocation32 + $0x298] sm:$0xff]
    %v5751 = vld [vmem:[#allocation32 + $0x2a0] sm:$0xff]
    %v5752 = vld [vmem:[#allocation32 + $0x2a8] sm:$0xff]
    %v5753 = vld [vmem:[#allocation32 + $0x2b0] sm:$0xff]
    %v5754 = vld [vmem:[#allocation32 + $0x2b8] sm:$0xff]
    %v5755 = vld [vmem:[#allocation32 + $0x2c0] sm:$0xff]
    %v5756 = vld [vmem:[#allocation32 + $0x2c8] sm:$0xff]
    %v5757 = vld [vmem:[#allocation32 + $0x2d0] sm:$0xff]
    %v5758 = vld [vmem:[#allocation32 + $0x2d8] sm:$0xff]
    %v5759 = vld [vmem:[#allocation32 + $0x2e0] sm:$0xff]
    %v5760 = vld [vmem:[#allocation32 + $0x2e8] sm:$0xff]
    %v5761 = vld [vmem:[#allocation32 + $0x2f0] sm:$0xff]
    %v5762 = vld [vmem:[#allocation32 + $0x2f8] sm:$0xff]
    %v5763 = vld [vmem:[#allocation32 + $0x300] sm:$0xff]
    %v5764 = vld [vmem:[#allocation32 + $0x308] sm:$0xff]
    %v5765 = vld [vmem:[#allocation32 + $0x310] sm:$0xff]
    %v5766 = vld [vmem:[#allocation32 + $0x318] sm:$0xff]
    %v5767 = vld [vmem:[#allocation32 + $0x320] sm:$0xff]
    %v5768 = vld [vmem:[#allocation32 + $0x328] sm:$0xff]
    %v5769 = vld [vmem:[#allocation32 + $0x330] sm:$0xff]
    %v5770 = vld [vmem:[#allocation32 + $0x338] sm:$0xff]
    %v5771 = vld [vmem:[#allocation32 + $0x340] sm:$0xff]
    %v5772 = vld [vmem:[#allocation32 + $0x348] sm:$0xff]
    %v5773 = vld [vmem:[#allocation32 + $0x350] sm:$0xff]
    %v5774 = vld [vmem:[#allocation32 + $0x358] sm:$0xff]
    %v5775 = vld [vmem:[#allocation32 + $0x360] sm:$0xff]
    %v5776 = vld [vmem:[#allocation32 + $0x368] sm:$0xff]
    %v5777 = vld [vmem:[#allocation32 + $0x370] sm:$0xff]
    %v5778 = vld [vmem:[#allocation32 + $0x378] sm:$0xff]
    %v5779 = vld [vmem:[#allocation32 + $0x380] sm:$0xff]
    %v5780 = vld [vmem:[#allocation32 + $0x388] sm:$0xff]
    %v5781 = vld [vmem:[#allocation32 + $0x390] sm:$0xff]
    %v5782 = vld [vmem:[#allocation32 + $0x398] sm:$0xff]
    %v5783 = vld [vmem:[#allocation32 + $0x3a0] sm:$0xff]
    %v5784 = vld [vmem:[#allocation32 + $0x3a8] sm:$0xff]
    %v5785 = vld [vmem:[#allocation32 + $0x3b0] sm:$0xff]
    %v5786 = vld [vmem:[#allocation32 + $0x3b8] sm:$0xff]
    %v5787 = vld [vmem:[#allocation32 + $0x3c0] sm:$0xff]
    %v5788 = vld [vmem:[#allocation32 + $0x3c8] sm:$0xff]
    %v5789 = vld [vmem:[#allocation32 + $0x3d0] sm:$0xff]
    %v5790 = vld [vmem:[#allocation32 + $0x3d8] sm:$0xff]
    %v5791 = vld [vmem:[#allocation32 + $0x3e0] sm:$0xff]
    %v5792 = vld [vmem:[#allocation32 + $0x3e8] sm:$0xff]
    %v5793 = vld [vmem:[#allocation32 + $0x3f0] sm:$0xff]
    %v5794 = vld [vmem:[#allocation32 + $0x3f8] sm:$0xff]
    %v5795 = vld [vmem:[#allocation32 + $0x400] sm:$0xff]
    %v5796 = vld [vmem:[#allocation32 + $0x408] sm:$0xff]
    %v5797 = vld [vmem:[#allocation32 + $0x410] sm:$0xff]
    %v5798 = vld [vmem:[#allocation32 + $0x418] sm:$0xff]
    %v5799 = vld [vmem:[#allocation32 + $0x420] sm:$0xff]
    %v5800 = vld [vmem:[#allocation32 + $0x428] sm:$0xff]
    %v5801 = vld [vmem:[#allocation32 + $0x430] sm:$0xff]
    %v5802 = vld [vmem:[#allocation32 + $0x438] sm:$0xff]
    %v5803 = vld [vmem:[#allocation32 + $0x440] sm:$0xff]
    %v5804 = vld [vmem:[#allocation32 + $0x448] sm:$0xff]
    %v5805 = vld [vmem:[#allocation32 + $0x450] sm:$0xff]
    %v5806 = vld [vmem:[#allocation32 + $0x458] sm:$0xff]
    %v5807 = vld [vmem:[#allocation32 + $0x460] sm:$0xff]
    %v5808 = vld [vmem:[#allocation32 + $0x468] sm:$0xff]
    %v5809 = vld [vmem:[#allocation32 + $0x470] sm:$0xff]
    %v5810 = vld [vmem:[#allocation32 + $0x478] sm:$0xff]
    %v5811 = vld [vmem:[#allocation32 + $0x480] sm:$0xff]
    %v5812 = vld [vmem:[#allocation32 + $0x488] sm:$0xff]
    %v5813 = vld [vmem:[#allocation32 + $0x490] sm:$0xff]
    %v5814 = vld [vmem:[#allocation32 + $0x498] sm:$0xff]
    %v5815 = vld [vmem:[#allocation32 + $0x4a0] sm:$0xff]
    %v5816 = vld [vmem:[#allocation32 + $0x4a8] sm:$0xff]
    %v5817 = vld [vmem:[#allocation32 + $0x4b0] sm:$0xff]
    %v5818 = vld [vmem:[#allocation32 + $0x4b8] sm:$0xff]
    %v5819 = vld [vmem:[#allocation32 + $0x4c0] sm:$0xff]
    %v5820 = vld [vmem:[#allocation32 + $0x4c8] sm:$0xff]
    %v5821 = vld [vmem:[#allocation32 + $0x4d0] sm:$0xff]
    %v5822 = vld [vmem:[#allocation32 + $0x4d8] sm:$0xff]
    %v5823 = vld [vmem:[#allocation32 + $0x4e0] sm:$0xff]
    %v5824 = vld [vmem:[#allocation32 + $0x4e8] sm:$0xff]
    %v5825 = vld [vmem:[#allocation32 + $0x4f0] sm:$0xff]
    %v5826 = vld [vmem:[#allocation32 + $0x4f8] sm:$0xff]
    %v5827 = vld [vmem:[#allocation32 + $0x500] sm:$0xff]
    %v5828 = vld [vmem:[#allocation32 + $0x508] sm:$0xff]
    %v5829 = vld [vmem:[#allocation32 + $0x510] sm:$0xff]
    %v5830 = vld [vmem:[#allocation32 + $0x518] sm:$0xff]
    %v5831 = vld [vmem:[#allocation32 + $0x520] sm:$0xff]
    %v5832 = vld [vmem:[#allocation32 + $0x528] sm:$0xff]
    %v5833 = vld [vmem:[#allocation32 + $0x530] sm:$0xff]
    %v5834 = vld [vmem:[#allocation32 + $0x538] sm:$0xff]
    %v5835 = vld [vmem:[#allocation32 + $0x540] sm:$0xff]
    %v5836 = vld [vmem:[#allocation32 + $0x548] sm:$0xff]
    %v5837 = vld [vmem:[#allocation32 + $0x550] sm:$0xff]
    %v5838 = vld [vmem:[#allocation32 + $0x558] sm:$0xff]
    %v5839 = vld [vmem:[#allocation32 + $0x560] sm:$0xff]
    %v5840 = vld [vmem:[#allocation32 + $0x568] sm:$0xff]
    %v5841 = vld [vmem:[#allocation32 + $0x570] sm:$0xff]
    %v5842 = vld [vmem:[#allocation32 + $0x578] sm:$0xff]
    %v5843 = vld [vmem:[#allocation32 + $0x580] sm:$0xff]
    %v5844 = vld [vmem:[#allocation32 + $0x588] sm:$0xff]
    %v5845 = vld [vmem:[#allocation32 + $0x590] sm:$0xff]
    %v5846 = vld [vmem:[#allocation32 + $0x598] sm:$0xff]
    %v5847 = vld [vmem:[#allocation32 + $0x5a0] sm:$0xff]
    %v5848 = vld [vmem:[#allocation32 + $0x5a8] sm:$0xff]
    %v5849 = vld [vmem:[#allocation32 + $0x5b0] sm:$0xff]
    %v5850 = vld [vmem:[#allocation32 + $0x5b8] sm:$0xff]
    %v5851 = vld [vmem:[#allocation32 + $0x5c0] sm:$0xff]
    %v5852 = vld [vmem:[#allocation32 + $0x5c8] sm:$0xff]
    %v5853 = vld [vmem:[#allocation32 + $0x5d0] sm:$0xff]
    %v5854 = vld [vmem:[#allocation32 + $0x5d8] sm:$0xff]
    %v5855 = vld [vmem:[#allocation32 + $0x5e0] sm:$0xff]
    %v5856 = vld [vmem:[#allocation32 + $0x5e8] sm:$0xff]
    %v5857 = vld [vmem:[#allocation32 + $0x5f0] sm:$0xff]
    %v5858 = vld [vmem:[#allocation32 + $0x5f8] sm:$0xff]
    %v5859 = vld [vmem:[#allocation32 + $0x600] sm:$0xff]
    %v5860 = vld [vmem:[#allocation32 + $0x608] sm:$0xff]
    %v5861 = vld [vmem:[#allocation32 + $0x610] sm:$0xff]
    %v5862 = vld [vmem:[#allocation32 + $0x618] sm:$0xff]
    %v5863 = vld [vmem:[#allocation32 + $0x620] sm:$0xff]
    %v5864 = vld [vmem:[#allocation32 + $0x628] sm:$0xff]
    %v5865 = vld [vmem:[#allocation32 + $0x630] sm:$0xff]
    %v5866 = vld [vmem:[#allocation32 + $0x638] sm:$0xff]
    %v5867 = vld [vmem:[#allocation32 + $0x640] sm:$0xff]
    %v5868 = vld [vmem:[#allocation32 + $0x648] sm:$0xff]
    %v5869 = vld [vmem:[#allocation32 + $0x650] sm:$0xff]
    %v5870 = vld [vmem:[#allocation32 + $0x658] sm:$0xff]
    %v5871 = vld [vmem:[#allocation32 + $0x660] sm:$0xff]
    %v5872 = vld [vmem:[#allocation32 + $0x668] sm:$0xff]
    %v5873 = vld [vmem:[#allocation32 + $0x670] sm:$0xff]
    %v5874 = vld [vmem:[#allocation32 + $0x678] sm:$0xff]
    %v5875 = vld [vmem:[#allocation32 + $0x680] sm:$0xff]
    %v5876 = vld [vmem:[#allocation32 + $0x688] sm:$0xff]
    %v5877 = vld [vmem:[#allocation32 + $0x690] sm:$0xff]
    %v5878 = vld [vmem:[#allocation32 + $0x698] sm:$0xff]
    %v5879 = vld [vmem:[#allocation32 + $0x6a0] sm:$0xff]
    %v5880 = vld [vmem:[#allocation32 + $0x6a8] sm:$0xff]
    %v5881 = vld [vmem:[#allocation32 + $0x6b0] sm:$0xff]
    %v5882 = vld [vmem:[#allocation32 + $0x6b8] sm:$0xff]
    %v5883 = vld [vmem:[#allocation32 + $0x6c0] sm:$0xff]
    %v5884 = vld [vmem:[#allocation32 + $0x6c8] sm:$0xff]
    %v5885 = vld [vmem:[#allocation32 + $0x6d0] sm:$0xff]
    %v5886 = vld [vmem:[#allocation32 + $0x6d8] sm:$0xff]
    %v5887 = vld [vmem:[#allocation32 + $0x6e0] sm:$0xff]
    %v5888 = vld [vmem:[#allocation32 + $0x6e8] sm:$0xff]
    %v5889 = vld [vmem:[#allocation32 + $0x6f0] sm:$0xff]
    %v5890 = vld [vmem:[#allocation32 + $0x6f8] sm:$0xff]
    %v5891 = vld [vmem:[#allocation32 + $0x700] sm:$0xff]
    %v5892 = vld [vmem:[#allocation32 + $0x708] sm:$0xff]
    %v5893 = vld [vmem:[#allocation32 + $0x710] sm:$0xff]
    %v5894 = vld [vmem:[#allocation32 + $0x718] sm:$0xff]
    %v5895 = vld [vmem:[#allocation32 + $0x720] sm:$0xff]
    %v5896 = vld [vmem:[#allocation32 + $0x728] sm:$0xff]
    %v5897 = vld [vmem:[#allocation32 + $0x730] sm:$0xff]
    %v5898 = vld [vmem:[#allocation32 + $0x738] sm:$0xff]
    %v5899 = vld [vmem:[#allocation32 + $0x740] sm:$0xff]
    %v5900 = vld [vmem:[#allocation32 + $0x748] sm:$0xff]
    %v5901 = vld [vmem:[#allocation32 + $0x750] sm:$0xff]
    %v5902 = vld [vmem:[#allocation32 + $0x758] sm:$0xff]
    %v5903 = vld [vmem:[#allocation32 + $0x760] sm:$0xff]
    %v5904 = vld [vmem:[#allocation32 + $0x768] sm:$0xff]
    %v5905 = vld [vmem:[#allocation32 + $0x770] sm:$0xff]
    %v5906 = vld [vmem:[#allocation32 + $0x778] sm:$0xff]
    %v5907 = vld [vmem:[#allocation32 + $0x780] sm:$0xff]
    %v5908 = vld [vmem:[#allocation32 + $0x788] sm:$0xff]
    %v5909 = vld [vmem:[#allocation32 + $0x790] sm:$0xff]
    %v5910 = vld [vmem:[#allocation32 + $0x798] sm:$0xff]
    %v5911 = vld [vmem:[#allocation32 + $0x7a0] sm:$0xff]
    %v5912 = vld [vmem:[#allocation32 + $0x7a8] sm:$0xff]
    %v5913 = vld [vmem:[#allocation32 + $0x7b0] sm:$0xff]
    %v5914 = vld [vmem:[#allocation32 + $0x7b8] sm:$0xff]
    %v5915 = vld [vmem:[#allocation32 + $0x7c0] sm:$0xff]
    %v5916 = vld [vmem:[#allocation32 + $0x7c8] sm:$0xff]
    %v5917 = vld [vmem:[#allocation32 + $0x7d0] sm:$0xff]
    %v5918 = vld [vmem:[#allocation32 + $0x7d8] sm:$0xff]
    %v5919 = vld [vmem:[#allocation32 + $0x7e0] sm:$0xff]
    %v5920 = vld [vmem:[#allocation32 + $0x7e8] sm:$0xff]
    %v5921 = vld [vmem:[#allocation32 + $0x7f0] sm:$0xff]
    %v5922 = vld [vmem:[#allocation32 + $0x7f8] sm:$0xff]
    %5923 = vmatprep.subr.mxu0 %v5796
    %5924 = vmatpush1.msra.mxu0 %v5795
    %5925 = vmatprep.subr.mxu0 %v5800
    %5926 = vmatpush1.msra.mxu0 %v5799
    %5927 = vmatprep.subr.mxu0 %v5804
    %5928 = vmatpush1.msra.mxu0 %v5803
    %5929 = vmatprep.subr.mxu0 %v5808
    %5930 = vmatpush1.msra.mxu0 %v5807
    %5931 = vmatprep.subr.mxu0 %v5812
    %5932 = vmatpush1.msra.mxu0 %v5811
    %5933 = vmatprep.subr.mxu0 %v5816
    %5934 = vmatpush1.msra.mxu0 %v5815
    %5935 = vmatprep.subr.mxu0 %v5820
    %5936 = vmatpush1.msra.mxu0 %v5819
    %5937 = vmatprep.subr.mxu0 %v5824
    %5938 = vmatpush1.msra.mxu0 %v5823
    %5939 = vmatprep.subr.mxu0 %v5828
    %5940 = vmatpush1.msra.mxu0 %v5827
    %5941 = vmatprep.subr.mxu0 %v5832
    %5942 = vmatpush1.msra.mxu0 %v5831
    %5943 = vmatprep.subr.mxu0 %v5836
    %5944 = vmatpush1.msra.mxu0 %v5835
    %5945 = vmatprep.subr.mxu0 %v5840
    %5946 = vmatpush1.msra.mxu0 %v5839
    %5947 = vmatprep.subr.mxu0 %v5844
    %5948 = vmatpush1.msra.mxu0 %v5843
    %5949 = vmatprep.subr.mxu0 %v5848
    %5950 = vmatpush1.msra.mxu0 %v5847
    %5951 = vmatprep.subr.mxu0 %v5852
    %5952 = vmatpush1.msra.mxu0 %v5851
    %5953 = vmatprep.subr.mxu0 %v5856
    %5954 = vmatpush1.msra.mxu0 %v5855
    %5955 = vmatprep.subr.mxu0 %v5860
    %5956 = vmatpush1.msra.mxu0 %v5859
    %5957 = vmatprep.subr.mxu0 %v5864
    %5958 = vmatpush1.msra.mxu0 %v5863
    %5959 = vmatprep.subr.mxu0 %v5868
    %5960 = vmatpush1.msra.mxu0 %v5867
    %5961 = vmatprep.subr.mxu0 %v5872
    %5962 = vmatpush1.msra.mxu0 %v5871
    %5963 = vmatprep.subr.mxu0 %v5876
    %5964 = vmatpush1.msra.mxu0 %v5875
    %5965 = vmatprep.subr.mxu0 %v5880
    %5966 = vmatpush1.msra.mxu0 %v5879
    %5967 = vmatprep.subr.mxu0 %v5884
    %5968 = vmatpush1.msra.mxu0 %v5883
    %5969 = vmatprep.subr.mxu0 %v5888
    %5970 = vmatpush1.msra.mxu0 %v5887
    %5971 = vmatprep.subr.mxu0 %v5892
    %5972 = vmatpush1.msra.mxu0 %v5891
    %5973 = vmatprep.subr.mxu0 %v5896
    %5974 = vmatpush1.msra.mxu0 %v5895
    %5975 = vmatprep.subr.mxu0 %v5900
    %5976 = vmatpush1.msra.mxu0 %v5899
    %5977 = vmatprep.subr.mxu0 %v5904
    %5978 = vmatpush1.msra.mxu0 %v5903
    %5979 = vmatprep.subr.mxu0 %v5908
    %5980 = vmatpush1.msra.mxu0 %v5907
    %5981 = vmatprep.subr.mxu0 %v5912
    %5982 = vmatpush1.msra.mxu0 %v5911
    %5983 = vmatprep.subr.mxu0 %v5916
    %5984 = vmatpush1.msra.mxu0 %v5915
    %5985 = vmatprep.subr.mxu0 %v5920
    %5986 = vmatpush1.msra.mxu0 %v5919
    %5987 = vmatprep.mubr.f32.mxu0 %v5666
    %5988 = vmatmul.mubr.f32.gmra.mrb[0].mxu0 %v5665
    %v5989 = vpop.f32.mrb[0].mxu0
    %v5990 = vadd.f32 0.0, %v5989
    %v5991 = vpop.f32.mrb[0].mxu0
    %v5992 = vadd.f32 0.0, %v5991
    %5993 = vdwg.mxu0
    %5994 = vmatprep.subr.mxu0 %v5798
    %5995 = vmatpush1.msra.mxu0 %v5797
    %5996 = vmatprep.subr.mxu0 %v5802
    %5997 = vmatpush1.msra.mxu0 %v5801
    %5998 = vmatprep.subr.mxu0 %v5806
    %5999 = vmatpush1.msra.mxu0 %v5805
    %6000 = vmatprep.subr.mxu0 %v5810
    %6001 = vmatpush1.msra.mxu0 %v5809
    %6002 = vmatprep.subr.mxu0 %v5814
    %6003 = vmatpush1.msra.mxu0 %v5813
    %6004 = vmatprep.subr.mxu0 %v5818
    %6005 = vmatpush1.msra.mxu0 %v5817
    %6006 = vmatprep.subr.mxu0 %v5822
    %6007 = vmatpush1.msra.mxu0 %v5821
    %6008 = vmatprep.subr.mxu0 %v5826
    %6009 = vmatpush1.msra.mxu0 %v5825
    %6010 = vmatprep.subr.mxu0 %v5830
    %6011 = vmatpush1.msra.mxu0 %v5829
    %6012 = vmatprep.subr.mxu0 %v5834
    %6013 = vmatpush1.msra.mxu0 %v5833
    %6014 = vmatprep.subr.mxu0 %v5838
    %6015 = vmatpush1.msra.mxu0 %v5837
    %6016 = vmatprep.subr.mxu0 %v5842
    %6017 = vmatpush1.msra.mxu0 %v5841
    %6018 = vmatprep.subr.mxu0 %v5846
    %6019 = vmatpush1.msra.mxu0 %v5845
    %6020 = vmatprep.subr.mxu0 %v5850
    %6021 = vmatpush1.msra.mxu0 %v5849
    %6022 = vmatprep.subr.mxu0 %v5854
    %6023 = vmatpush1.msra.mxu0 %v5853
    %6024 = vmatprep.subr.mxu0 %v5858
    %6025 = vmatpush1.msra.mxu0 %v5857
    %6026 = vmatprep.subr.mxu0 %v5862
    %6027 = vmatpush1.msra.mxu0 %v5861
    %6028 = vmatprep.subr.mxu0 %v5866
    %6029 = vmatpush1.msra.mxu0 %v5865
    %6030 = vmatprep.subr.mxu0 %v5870
    %6031 = vmatpush1.msra.mxu0 %v5869
    %6032 = vmatprep.subr.mxu0 %v5874
    %6033 = vmatpush1.msra.mxu0 %v5873
    %6034 = vmatprep.subr.mxu0 %v5878
    %6035 = vmatpush1.msra.mxu0 %v5877
    %6036 = vmatprep.subr.mxu0 %v5882
    %6037 = vmatpush1.msra.mxu0 %v5881
    %6038 = vmatprep.subr.mxu0 %v5886
    %6039 = vmatpush1.msra.mxu0 %v5885
    %6040 = vmatprep.subr.mxu0 %v5890
    %6041 = vmatpush1.msra.mxu0 %v5889
    %6042 = vmatprep.subr.mxu0 %v5894
    %6043 = vmatpush1.msra.mxu0 %v5893
    %6044 = vmatprep.subr.mxu0 %v5898
    %6045 = vmatpush1.msra.mxu0 %v5897
    %6046 = vmatprep.subr.mxu0 %v5902
    %6047 = vmatpush1.msra.mxu0 %v5901
    %6048 = vmatprep.subr.mxu0 %v5906
    %6049 = vmatpush1.msra.mxu0 %v5905
    %6050 = vmatprep.subr.mxu0 %v5910
    %6051 = vmatpush1.msra.mxu0 %v5909
    %6052 = vmatprep.subr.mxu0 %v5914
    %6053 = vmatpush1.msra.mxu0 %v5913
    %6054 = vmatprep.subr.mxu0 %v5918
    %6055 = vmatpush1.msra.mxu0 %v5917
    %6056 = vmatprep.subr.mxu0 %v5922
    %6057 = vmatpush1.msra.mxu0 %v5921
    %6058 = vmatprep.mubr.f32.mxu0 %v5666
    %6059 = vmatmul.mubr.f32.gmra.mrb[0].mxu0 %v5665
    %v6060 = vpop.f32.mrb[0].mxu0
    %v6061 = vadd.f32 0.0, %v6060
    %v6062 = vpop.f32.mrb[0].mxu0
    %v6063 = vadd.f32 0.0, %v6062
    %6064 = vdwg.mxu0
    %6065 = vmatprep.subr.mxu0 %v5668
    %6066 = vmatpush1.msra.mxu0 %v5667
    %6067 = vmatprep.subr.mxu0 %v5672
    %6068 = vmatpush1.msra.mxu0 %v5671
    %6069 = vmatprep.subr.mxu0 %v5676
    %6070 = vmatpush1.msra.mxu0 %v5675
    %6071 = vmatprep.subr.mxu0 %v5680
    %6072 = vmatpush1.msra.mxu0 %v5679
    %6073 = vmatprep.subr.mxu0 %v5684
    %6074 = vmatpush1.msra.mxu0 %v5683
    %6075 = vmatprep.subr.mxu0 %v5688
    %6076 = vmatpush1.msra.mxu0 %v5687
    %6077 = vmatprep.subr.mxu0 %v5692
    %6078 = vmatpush1.msra.mxu0 %v5691
    %6079 = vmatprep.subr.mxu0 %v5696
    %6080 = vmatpush1.msra.mxu0 %v5695
    %6081 = vmatprep.subr.mxu0 %v5700
    %6082 = vmatpush1.msra.mxu0 %v5699
    %6083 = vmatprep.subr.mxu0 %v5704
    %6084 = vmatpush1.msra.mxu0 %v5703
    %6085 = vmatprep.subr.mxu0 %v5708
    %6086 = vmatpush1.msra.mxu0 %v5707
    %6087 = vmatprep.subr.mxu0 %v5712
    %6088 = vmatpush1.msra.mxu0 %v5711
    %6089 = vmatprep.subr.mxu0 %v5716
    %6090 = vmatpush1.msra.mxu0 %v5715
    %6091 = vmatprep.subr.mxu0 %v5720
    %6092 = vmatpush1.msra.mxu0 %v5719
    %6093 = vmatprep.subr.mxu0 %v5724
    %6094 = vmatpush1.msra.mxu0 %v5723
    %6095 = vmatprep.subr.mxu0 %v5728
    %6096 = vmatpush1.msra.mxu0 %v5727
    %6097 = vmatprep.subr.mxu0 %v5732
    %6098 = vmatpush1.msra.mxu0 %v5731
    %6099 = vmatprep.subr.mxu0 %v5736
    %6100 = vmatpush1.msra.mxu0 %v5735
    %6101 = vmatprep.subr.mxu0 %v5740
    %6102 = vmatpush1.msra.mxu0 %v5739
    %6103 = vmatprep.subr.mxu0 %v5744
    %6104 = vmatpush1.msra.mxu0 %v5743
    %6105 = vmatprep.subr.mxu0 %v5748
    %6106 = vmatpush1.msra.mxu0 %v5747
    %6107 = vmatprep.subr.mxu0 %v5752
    %6108 = vmatpush1.msra.mxu0 %v5751
    %6109 = vmatprep.subr.mxu0 %v5756
    %6110 = vmatpush1.msra.mxu0 %v5755
    %6111 = vmatprep.subr.mxu0 %v5760
    %6112 = vmatpush1.msra.mxu0 %v5759
    %6113 = vmatprep.subr.mxu0 %v5764
    %6114 = vmatpush1.msra.mxu0 %v5763
    %6115 = vmatprep.subr.mxu0 %v5768
    %6116 = vmatpush1.msra.mxu0 %v5767
    %6117 = vmatprep.subr.mxu0 %v5772
    %6118 = vmatpush1.msra.mxu0 %v5771
    %6119 = vmatprep.subr.mxu0 %v5776
    %6120 = vmatpush1.msra.mxu0 %v5775
    %6121 = vmatprep.subr.mxu0 %v5780
    %6122 = vmatpush1.msra.mxu0 %v5779
    %6123 = vmatprep.subr.mxu0 %v5784
    %6124 = vmatpush1.msra.mxu0 %v5783
    %6125 = vmatprep.subr.mxu0 %v5788
    %6126 = vmatpush1.msra.mxu0 %v5787
    %6127 = vmatprep.subr.mxu0 %v5792
    %6128 = vmatpush1.msra.mxu0 %v5791
    %6129 = vmatprep.mubr.f32.mxu0 %v5458
    %6130 = vmatmul.mubr.f32.gmra.mrb[0].mxu0 %v5457
    %v6131 = vpop.f32.mrb[0].mxu0
    %v6132 = vadd.f32 %v5990, %v6131
    %v6133 = vpop.f32.mrb[0].mxu0
    %v6134 = vadd.f32 %v5992, %v6133
    %6135 = vdwg.mxu0
    %6136 = vmatprep.subr.mxu0 %v5670
    %6137 = vmatpush1.msra.mxu0 %v5669
    %6138 = vmatprep.subr.mxu0 %v5674
    %6139 = vmatpush1.msra.mxu0 %v5673
    %6140 = vmatprep.subr.mxu0 %v5678
    %6141 = vmatpush1.msra.mxu0 %v5677
    %6142 = vmatprep.subr.mxu0 %v5682
    %6143 = vmatpush1.msra.mxu0 %v5681
    %6144 = vmatprep.subr.mxu0 %v5686
    %6145 = vmatpush1.msra.mxu0 %v5685
    %6146 = vmatprep.subr.mxu0 %v5690
    %6147 = vmatpush1.msra.mxu0 %v5689
    %6148 = vmatprep.subr.mxu0 %v5694
    %6149 = vmatpush1.msra.mxu0 %v5693
    %6150 = vmatprep.subr.mxu0 %v5698
    %6151 = vmatpush1.msra.mxu0 %v5697
    %6152 = vmatprep.subr.mxu0 %v5702
    %6153 = vmatpush1.msra.mxu0 %v5701
    %6154 = vmatprep.subr.mxu0 %v5706
    %6155 = vmatpush1.msra.mxu0 %v5705
    %6156 = vmatprep.subr.mxu0 %v5710
    %6157 = vmatpush1.msra.mxu0 %v5709
    %6158 = vmatprep.subr.mxu0 %v5714
    %6159 = vmatpush1.msra.mxu0 %v5713
    %6160 = vmatprep.subr.mxu0 %v5718
    %6161 = vmatpush1.msra.mxu0 %v5717
    %6162 = vmatprep.subr.mxu0 %v5722
    %6163 = vmatpush1.msra.mxu0 %v5721
    %6164 = vmatprep.subr.mxu0 %v5726
    %6165 = vmatpush1.msra.mxu0 %v5725
    %6166 = vmatprep.subr.mxu0 %v5730
    %6167 = vmatpush1.msra.mxu0 %v5729
    %6168 = vmatprep.subr.mxu0 %v5734
    %6169 = vmatpush1.msra.mxu0 %v5733
    %6170 = vmatprep.subr.mxu0 %v5738
    %6171 = vmatpush1.msra.mxu0 %v5737
    %6172 = vmatprep.subr.mxu0 %v5742
    %6173 = vmatpush1.msra.mxu0 %v5741
    %6174 = vmatprep.subr.mxu0 %v5746
    %6175 = vmatpush1.msra.mxu0 %v5745
    %6176 = vmatprep.subr.mxu0 %v5750
    %6177 = vmatpush1.msra.mxu0 %v5749
    %6178 = vmatprep.subr.mxu0 %v5754
    %6179 = vmatpush1.msra.mxu0 %v5753
    %6180 = vmatprep.subr.mxu0 %v5758
    %6181 = vmatpush1.msra.mxu0 %v5757
    %6182 = vmatprep.subr.mxu0 %v5762
    %6183 = vmatpush1.msra.mxu0 %v5761
    %6184 = vmatprep.subr.mxu0 %v5766
    %6185 = vmatpush1.msra.mxu0 %v5765
    %6186 = vmatprep.subr.mxu0 %v5770
    %6187 = vmatpush1.msra.mxu0 %v5769
    %6188 = vmatprep.subr.mxu0 %v5774
    %6189 = vmatpush1.msra.mxu0 %v5773
    %6190 = vmatprep.subr.mxu0 %v5778
    %6191 = vmatpush1.msra.mxu0 %v5777
    %6192 = vmatprep.subr.mxu0 %v5782
    %6193 = vmatpush1.msra.mxu0 %v5781
    %6194 = vmatprep.subr.mxu0 %v5786
    %6195 = vmatpush1.msra.mxu0 %v5785
    %6196 = vmatprep.subr.mxu0 %v5790
    %6197 = vmatpush1.msra.mxu0 %v5789
    %6198 = vmatprep.subr.mxu0 %v5794
    %6199 = vmatpush1.msra.mxu0 %v5793
    %6200 = vmatprep.mubr.f32.mxu0 %v5458
    %6201 = vmatmul.mubr.f32.gmra.mrb[0].mxu0 %v5457
    %v6202 = vpop.f32.mrb[0].mxu0
    %v6203 = vadd.f32 %v6061, %v6202
    %v6204 = vpop.f32.mrb[0].mxu0
    %v6205 = vadd.f32 %v6063, %v6204
    %6206 = vdwg.mxu0
    %v6207 = vld [vmem:[#allocation34] sm:$0xf]
    %v6209 = vlaneseq
    %v6210 = vshrl.u32 %v6209, 7
    %v6211 = vsub.s32 0, %v6210
    %v6212 = vrot.slane %v6207, %v6211
    %v6213 = vlaneseq
    %v6214 = vshrl.u32 %v6213, 7
    %v6215 = vsub.s32 1, %v6214
    %v6216 = vrot.slane %v6207, %v6215
    %v6217 = vlaneseq
    %v6218 = vshrl.u32 %v6217, 7
    %v6219 = vsub.s32 2, %v6218
    %v6220 = vrot.slane %v6207, %v6219
    %v6221 = vlaneseq
    %v6222 = vshrl.u32 %v6221, 7
    %v6223 = vsub.s32 3, %v6222
    %v6224 = vrot.slane %v6207, %v6223
    %v6229 = vadd.f32 %v6132, %v6212
    %v6230 = vadd.f32 %v6134, %v6216
    %v6231 = vadd.f32 %v6203, %v6220
    %v6232 = vadd.f32 %v6205, %v6224
    %v6233 = vld [vmem:[#allocation35] sm:$0xf]
    %v6234 = vld [vmem:[#allocation37] sm:$0xf]
    %vm6235 = vcmp.gt.f32.partialorder %v6229, 0.0
    %vm6236 = vcmp.gt.f32.partialorder %v6230, 0.0
    %vm6237 = vcmp.gt.f32.partialorder %v6231, 0.0
    %vm6238 = vcmp.gt.f32.partialorder %v6232, 0.0
    %v6239 = vmul.f32 %v6229, 0.2
    %v6240 = vmul.f32 %v6230, 0.2
    %v6241 = vmul.f32 %v6231, 0.2
    %v6242 = vmul.f32 %v6232, 0.2
    %v6243 = vsel %vm6235, %v6229, %v6239
    %v6244 = vsel %vm6236, %v6230, %v6240
    %v6245 = vsel %vm6237, %v6231, %v6241
    %v6246 = vsel %vm6238, %v6232, %v6242
    %v6247 = vsel %vm5350, %v6243, 0.0
    %v6248 = vrot.slane %v6247, 4
    %v6249 = vadd.f32 %v6247, %v6248
    %v6250 = vrot.slane %v6249, 2
    %v6251 = vadd.f32 %v6249, %v6250
    %v6252 = vrot.slane %v6251, 1
    %v6253 = vadd.f32 %v6251, %v6252
    %v6254 = vsel %vm5350, %v6244, 0.0
    %v6255 = vrot.slane %v6254, 4
    %v6256 = vadd.f32 %v6254, %v6255
    %v6257 = vrot.slane %v6256, 2
    %v6258 = vadd.f32 %v6256, %v6257
    %v6259 = vrot.slane %v6258, 1
    %v6260 = vadd.f32 %v6258, %v6259
    %v6261 = vsel %vm5350, %v6245, 0.0
    %v6262 = vrot.slane %v6261, 4
    %v6263 = vadd.f32 %v6261, %v6262
    %v6264 = vrot.slane %v6263, 2
    %v6265 = vadd.f32 %v6263, %v6264
    %v6266 = vrot.slane %v6265, 1
    %v6267 = vadd.f32 %v6265, %v6266
    %v6268 = vsel %vm5350, %v6246, 0.0
    %v6269 = vrot.slane %v6268, 4
    %v6270 = vadd.f32 %v6268, %v6269
    %v6271 = vrot.slane %v6270, 2
    %v6272 = vadd.f32 %v6270, %v6271
    %v6273 = vrot.slane %v6272, 1
    %v6274 = vadd.f32 %v6272, %v6273
    %v6275 = vmul.f32 %v6253, 0.5
    %v6276 = vmul.f32 %v6260, 0.5
    %v6277 = vmul.f32 %v6267, 0.5
    %v6278 = vmul.f32 %v6274, 0.5
    %v6279 = vmul.f32 %v6243, %v6243
    %v6280 = vmul.f32 %v6244, %v6244
    %v6281 = vmul.f32 %v6245, %v6245
    %v6282 = vmul.f32 %v6246, %v6246
    %v6283 = vsel %vm5350, %v6279, 0.0
    %v6284 = vrot.slane %v6283, 4
    %v6285 = vadd.f32 %v6283, %v6284
    %v6286 = vrot.slane %v6285, 2
    %v6287 = vadd.f32 %v6285, %v6286
    %v6288 = vrot.slane %v6287, 1
    %v6289 = vadd.f32 %v6287, %v6288
    %v6290 = vsel %vm5350, %v6280, 0.0
    %v6291 = vrot.slane %v6290, 4
    %v6292 = vadd.f32 %v6290, %v6291
    %v6293 = vrot.slane %v6292, 2
    %v6294 = vadd.f32 %v6292, %v6293
    %v6295 = vrot.slane %v6294, 1
    %v6296 = vadd.f32 %v6294, %v6295
    %v6297 = vsel %vm5350, %v6281, 0.0
    %v6298 = vrot.slane %v6297, 4
    %v6299 = vadd.f32 %v6297, %v6298
    %v6300 = vrot.slane %v6299, 2
    %v6301 = vadd.f32 %v6299, %v6300
    %v6302 = vrot.slane %v6301, 1
    %v6303 = vadd.f32 %v6301, %v6302
    %v6304 = vsel %vm5350, %v6282, 0.0
    %v6305 = vrot.slane %v6304, 4
    %v6306 = vadd.f32 %v6304, %v6305
    %v6307 = vrot.slane %v6306, 2
    %v6308 = vadd.f32 %v6306, %v6307
    %v6309 = vrot.slane %v6308, 1
    %v6310 = vadd.f32 %v6308, %v6309
    %v6311 = vmul.f32 %v6289, 0.5
    %v6312 = vmul.f32 %v6296, 0.5
    %v6313 = vmul.f32 %v6303, 0.5
    %v6314 = vmul.f32 %v6310, 0.5
    %v6315 = vmul.f32 %v6275, %v6275
    %v6316 = vmul.f32 %v6276, %v6276
    %v6317 = vmul.f32 %v6277, %v6277
    %v6318 = vmul.f32 %v6278, %v6278
    %v6319 = vsub.f32 %v6311, %v6315
    %v6320 = vsub.f32 %v6312, %v6316
    %v6321 = vsub.f32 %v6313, %v6317
    %v6322 = vsub.f32 %v6314, %v6318
    %v6323 = vadd.f32 %v6319, 1e-05
    %v6324 = vadd.f32 %v6320, 1e-05
    %v6325 = vadd.f32 %v6321, 1e-05
    %v6326 = vadd.f32 %v6322, 1e-05
    %v6327 = vrsqrt.pop %v6323
    %v6328 = vrsqrt.pop %v6324
    %v6329 = vrsqrt.pop %v6325
    %v6330 = vrsqrt.pop %v6326
    %v6335 = vcombine.low %v6327, %v6328
    %v6336 = vcombine.low %v6329, %v6330
    %v6338 = vunpack.c.l.s4 1966171168
    %v6339 = vunpack.c.0.s8 %v6338
    %v6340 = vlaneseq
    %v6341 = vshrl.u32 %v6340, 7
    %v6342 = vsub.s32 %v6339, %v6341
    %v6343 = vrot.slane %v6335, %v6342
    %v6345 = vunpack.c.l.s4 1966171168
    %v6346 = vunpack.c.0.s8 %v6345
    %v6347 = vlaneseq
    %v6348 = vshrl.u32 %v6347, 7
    %v6349 = vsub.s32 %v6346, %v6348
    %v6350 = vrot.slane %v6336, %v6349
    %v6351 = vcombine.low %v6343, %v6350
    %v6353 = vunpack.c.l.s4 1966171168
    %v6354 = vunpack.c.0.s8 %v6353
    %v6355 = vlaneseq
    %v6356 = vshrl.u32 %v6355, 7
    %v6357 = vsub.s32 %v6354, %v6356
    %v6358 = vrot.slane %v6351, %v6357
    %v6360 = vmul.f32 %v6233, %v6358
    %v6362 = vlaneseq
    %v6363 = vshrl.u32 %v6362, 7
    %v6364 = vsub.s32 0, %v6363
    %v6365 = vrot.slane %v6360, %v6364
    %v6366 = vlaneseq
    %v6367 = vshrl.u32 %v6366, 7
    %v6368 = vsub.s32 1, %v6367
    %v6369 = vrot.slane %v6360, %v6368
    %v6370 = vlaneseq
    %v6371 = vshrl.u32 %v6370, 7
    %v6372 = vsub.s32 2, %v6371
    %v6373 = vrot.slane %v6360, %v6372
    %v6374 = vlaneseq
    %v6375 = vshrl.u32 %v6374, 7
    %v6376 = vsub.s32 3, %v6375
    %v6377 = vrot.slane %v6360, %v6376
    %v6382 = vmul.f32 %v6275, %v6365
    %v6383 = vmul.f32 %v6276, %v6369
    %v6384 = vmul.f32 %v6277, %v6373
    %v6385 = vmul.f32 %v6278, %v6377
    %v6390 = vcombine.low %v6382, %v6383
    %v6391 = vcombine.low %v6384, %v6385
    %v6393 = vunpack.c.l.s4 1966171168
    %v6394 = vunpack.c.0.s8 %v6393
    %v6395 = vlaneseq
    %v6396 = vshrl.u32 %v6395, 7
    %v6397 = vsub.s32 %v6394, %v6396
    %v6398 = vrot.slane %v6390, %v6397
    %v6400 = vunpack.c.l.s4 1966171168
    %v6401 = vunpack.c.0.s8 %v6400
    %v6402 = vlaneseq
    %v6403 = vshrl.u32 %v6402, 7
    %v6404 = vsub.s32 %v6401, %v6403
    %v6405 = vrot.slane %v6391, %v6404
    %v6406 = vcombine.low %v6398, %v6405
    %v6408 = vunpack.c.l.s4 1966171168
    %v6409 = vunpack.c.0.s8 %v6408
    %v6410 = vlaneseq
    %v6411 = vshrl.u32 %v6410, 7
    %v6412 = vsub.s32 %v6409, %v6411
    %v6413 = vrot.slane %v6406, %v6412
    %v6415 = vsub.f32 %v6234, %v6413
    %v6416 = vmul.f32 %v6243, %v6365
    %v6417 = vmul.f32 %v6244, %v6369
    %v6418 = vmul.f32 %v6245, %v6373
    %v6419 = vmul.f32 %v6246, %v6377
    %v6421 = vlaneseq
    %v6422 = vshrl.u32 %v6421, 7
    %v6423 = vsub.s32 0, %v6422
    %v6424 = vrot.slane %v6415, %v6423
    %v6425 = vlaneseq
    %v6426 = vshrl.u32 %v6425, 7
    %v6427 = vsub.s32 1, %v6426
    %v6428 = vrot.slane %v6415, %v6427
    %v6429 = vlaneseq
    %v6430 = vshrl.u32 %v6429, 7
    %v6431 = vsub.s32 2, %v6430
    %v6432 = vrot.slane %v6415, %v6431
    %v6433 = vlaneseq
    %v6434 = vshrl.u32 %v6433, 7
    %v6435 = vsub.s32 3, %v6434
    %v6436 = vrot.slane %v6415, %v6435
    %v6441 = vadd.f32 %v6416, %v6424
    %v6442 = vadd.f32 %v6417, %v6428
    %v6443 = vadd.f32 %v6418, %v6432
    %v6444 = vadd.f32 %v6419, %v6436
    %v6445 = vld [vmem:[#allocation38] sm:$0xf]
    %v6447 = vlaneseq
    %v6448 = vshrl.u32 %v6447, 7
    %v6449 = vsub.s32 0, %v6448
    %v6450 = vrot.slane %v6445, %v6449
    %v6451 = vlaneseq
    %v6452 = vshrl.u32 %v6451, 7
    %v6453 = vsub.s32 1, %v6452
    %v6454 = vrot.slane %v6445, %v6453
    %v6455 = vlaneseq
    %v6456 = vshrl.u32 %v6455, 7
    %v6457 = vsub.s32 2, %v6456
    %v6458 = vrot.slane %v6445, %v6457
    %v6459 = vlaneseq
    %v6460 = vshrl.u32 %v6459, 7
    %v6461 = vsub.s32 3, %v6460
    %v6462 = vrot.slane %v6445, %v6461
    %v6467 = vmul.f32 %v6441, %v6450
    %v6468 = vmul.f32 %v6442, %v6454
    %v6469 = vmul.f32 %v6443, %v6458
    %v6470 = vmul.f32 %v6444, %v6462
    %v6471 = vsel %vm5350, %v6467, 0.0
    %v6472 = vsel %vm5350, %v6468, 0.0
    %v6473 = vadd.f32 %v6471, %v6472
    %v6474 = vsel %vm5350, %v6469, 0.0
    %v6475 = vadd.f32 %v6473, %v6474
    %v6476 = vsel %vm5350, %v6470, 0.0
    %v6477 = vadd.f32 %v6475, %v6476
    %6478 = vadd.xlane.f32.xlu0 %v6477
    %v6479 = vpop.xlane.xlu0 %6478
    %v6480 = vld [vmem:[#allocation2] sm:$0x1]
    %v6482 = vlaneseq
    %v6483 = vshrl.u32 %v6482, 7
    %v6484 = vsub.s32 0, %v6483
    %v6485 = vrot.slane %v6480, %v6484
    %v6487 = vadd.f32 %v6479, %v6485
    %v6488 = vsub.f32 0.0, %v6487
    %v6489 = vmul.f32 %v6488, 1.442695
    %v6490 = vpow.pop %v6489
    %v6491 = vadd.f32 %v6490, 1.0
    %v6492 = vrcp.pop %v6491
    %v6493 = vmul.f32 1.0, %v6492
    %vm6494 = vcmask 1024
    %6495 = vst.msk [vmem:[%s27] sm:$0x3] %vm6494, %v6493
    // Predicated region
    $region206: #{discriminator_forward.1} parent=1 // pred_check
      _
    $region207: #{discriminator_forward.1} parent=1 // pred_check_branch
      %6497 = sbr.rel (0) target = $region209
    $region208: #{discriminator_forward.1} parent=1 // pred_region
      _
    $region209: #{discriminator_forward.1} parent=1 // pred_fallthru
      _
    // Predicated region
    $region210: #{discriminator_forward.1} parent=1 // pred_check
      _
    $region211: #{discriminator_forward.1} parent=1 // pred_check_branch
      %6499 = sbr.rel (0) target = $region213
    $region212: #{discriminator_forward.1} parent=1 // pred_region
      _
    $region213: #{discriminator_forward.1} parent=1 // pred_fallthru
      _
    %6500 = vsyncpa [#allocation4], 1
    %6501 = vsyncpa [#allocation6], 1
    %6502 = vsyncpa [#allocation9], 1
    %6503 = vsyncpa [#allocation12], 1
    %6504 = vsyncpa [#allocation15], 1
    %6505 = vsyncpa [#allocation18], 1
    %6506 = vsyncpa [#allocation21], 1
    %6507 = vsyncpa [#allocation24], 1
    %6508 = vsyncpa [#allocation27], 1
    %6509 = vsyncpa [#allocation30], 1
    %6510 = vsyncpa [#allocation33], 1
    %6511 = vsyncpa [#allocation36], 1
    %6512 = vsyncpa [#allocation39], 1

</llo_original>
